<compile_context>
chip_gen: v5e
topology: v5e:2x2
jax: 0.10.0
libtpu: 0.0.40
codegen_flags: <defaults>
</compile_context>

<pallas_src>
import functools

import jax
import jax.numpy as jnp
import numpy as np
from jax.experimental import pallas as pl
from jax.experimental.pallas import tpu as pltpu


# ----------------------------------------------------------------------------
# Static shape constants (MNIST_CNN)
# ----------------------------------------------------------------------------
C1, C2, C3 = 16, 16, 10          # conv output channels
H1_OUT, W1_OUT = 14, 14
H2_OUT, W2_OUT = 7, 7
H3_OUT, W3_OUT = 4, 4

ROW1 = 64                        # padded input row lanes (30 real px + 34 zero)
ROW2 = 256                       # layer-2 input row lanes (16 px * 16 ch, exact)
ROW3 = 256                       # layer-3 input row lanes (9*16 = 144 + 112 zero)

X_ROWS = 30                      # 28 + 2 pad rows
A2_ROWS = H1_OUT + 2             # 16 (bottom pad row never read)
A3_ROWS = H2_OUT + 2             # 9

X_LEN = X_ROWS * ROW1            # 1920
A2_LEN = A2_ROWS * ROW2          # 4096
A3_LEN = A3_ROWS * ROW3          # 2304


# ----------------------------------------------------------------------------
# One-time parameter preprocessing (host-side, hoisted out of the forward)
# ----------------------------------------------------------------------------
def make_row_weight(w_oihw, win, wout, in_lanes, out_lanes, out_col_offset):
    """(Cout, Cin, 3, 3) conv weight -> dense (3*in_lanes, out_lanes) slab.

    LHS K index = kh * in_lanes + w * Cin + c   (3 consecutive padded rows,
                                                 padded column w, channel c)
    RHS N index = (j + out_col_offset) * Cout + o
    Nonzero only where w == 2*j + kw (stride-2 conv with padding folded in).
    Columns outside the real outputs stay zero, so the matmul + zero-bias +
    ReLU writes exact zeros into the next layer's left/right/alignment pads.
    """
    w = np.asarray(w_oihw, np.float32)
    cout, cin, _, _ = w.shape
    slab = np.zeros((3, in_lanes, out_lanes), np.float32)
    for kh in range(3):
        for kw in range(3):
            wk = w[:, :, kh, kw].T                      # (Cin, Cout)
            for j in range(wout):
                k0 = (2 * j + kw) * cin                 # padded input column
                n0 = (j + out_col_offset) * cout
                slab[kh, k0:k0 + cin, n0:n0 + cout] = wk
    return jnp.asarray(slab.reshape(3 * in_lanes, out_lanes))


def make_row_bias(b, wout, out_lanes, out_col_offset):
    b = np.asarray(b, np.float32).reshape(-1)
    cout = b.shape[0]
    slab = np.zeros((1, out_lanes), np.float32)
    for j in range(wout):
        n0 = (j + out_col_offset) * cout
        slab[0, n0:n0 + cout] = b
    return jnp.asarray(slab)


def preprocess_params(params):
    (w1, b1), (w2, b2), (w3, b3) = params
    return (
        make_row_weight(w1, 28, W1_OUT, ROW1, ROW2, 1),          # (192, 256)
        make_row_bias(b1, W1_OUT, ROW2, 1),
        make_row_weight(w2, 14, W2_OUT, ROW2, ROW3, 1),          # (768, 256)
        make_row_bias(b2, W2_OUT, ROW3, 1),
        make_row_weight(w3, 7, W3_OUT, ROW3, W3_OUT * C3, 0),    # (768, 40)
        make_row_bias(b3, W3_OUT, W3_OUT * C3, 0),
    )


# ----------------------------------------------------------------------------
# Fused Pallas kernel
# ----------------------------------------------------------------------------
def mnist_fused_kernel(x_ref, w1_ref, b1_ref, w2_ref, b2_ref, w3_ref, b3_ref,
                       o_ref, a2_ref, a3_ref):
    # x_ref : (B, 1920) = 30 padded rows x 64 lanes (28x28 image + conv pad)
    # a2_ref: (B, 4096) = 16 rows x 256 lanes  (layer-2 padded input, VMEM)
    # a3_ref: (B, 2304) =  9 rows x 256 lanes  (layer-3 padded input, VMEM)
    # o_ref : (B, 10)
    bsz = x_ref.shape[0]

    # Zero only the pad rows that are actually read; interior rows (including
    # their left/right/alignment pad lanes) are fully overwritten each step by
    # the lane-dense conv-row stores below.  Row 15 of a2 is never read.
    a2_ref[:, 0:ROW2] = jnp.zeros((bsz, ROW2), jnp.float32)
    a3_ref[:, 0:ROW3] = jnp.zeros((bsz, ROW3), jnp.float32)
    a3_ref[:, (H2_OUT + 1) * ROW3:(H2_OUT + 2) * ROW3] = jnp.zeros(
        (bsz, ROW3), jnp.float32)

    # Hoist bias loads out of the unrolled row loops.
    b1 = b1_ref[...]
    b2 = b2_ref[...]
    b3 = b3_ref[...]

    # ---- layer 1: one MXU matmul per output row: (B, 192) @ (192, 256) -----
    for i in range(H1_OUT):
        rows = x_ref[:, 2 * i * ROW1:(2 * i + 3) * ROW1]          # 128*i, +192
        y = jnp.dot(rows, w1_ref[...], preferred_element_type=jnp.float32)
        y = jnp.maximum(y + b1, 0.0)
        a2_ref[:, (i + 1) * ROW2:(i + 2) * ROW2] = y              # full row

    # ---- layer 2: (B, 768) @ (768, 256) -------------------------------------
    for i in range(H2_OUT):
        rows = a2_ref[:, 2 * i * ROW2:(2 * i + 3) * ROW2]         # 512*i, +768
        y = jnp.dot(rows, w2_ref[...], preferred_element_type=jnp.float32)
        y = jnp.maximum(y + b2, 0.0)
        a3_ref[:, (i + 1) * ROW3:(i + 2) * ROW3] = y              # full row

    # ---- layer 3 + global 4x4 average pool: (B, 768) @ (768, 40) ------------
    acc = jnp.zeros((bsz, C3), jnp.float32)
    for i in range(H3_OUT):
        rows = a3_ref[:, 2 * i * ROW3:(2 * i + 3) * ROW3]         # 512*i, +768
        y = jnp.dot(rows, w3_ref[...], preferred_element_type=jnp.float32)
        y = jnp.maximum(y + b3, 0.0)
        for j in range(W3_OUT):
            acc = acc + y[:, j * C3:(j + 1) * C3]
    o_ref[...] = acc * (1.0 / float(H3_OUT * W3_OUT))


# ----------------------------------------------------------------------------
# Wrapper
# ----------------------------------------------------------------------------
@functools.partial(jax.jit, static_argnames=("block_batch",))
def mnist_cnn_forward(x, prep, *, block_batch=256):
    """Pallas implementation of MNIST_CNN.forward.  x: (N, 1, 28, 28) NCHW."""
    w1, b1, w2, b2, w3, b3 = prep

    x = x.reshape(-1, 1, 28, 28).astype(jnp.float32)
    n = x.shape[0]

    # Pad H by 1/1 (conv padding) and W by 1 left + (ROW1-29) right so each
    # padded row is a 64-lane-aligned slice, then flatten rows.
    xp = jnp.pad(x[:, 0], ((0, 0), (1, 1), (1, ROW1 - 29)))       # (N, 30, 64)
    xf = xp.reshape(n, X_LEN)

    bb = block_batch if n >= block_batch else n
    n_pad = ((n + bb - 1) // bb) * bb
    if n_pad != n:
        xf = jnp.pad(xf, ((0, n_pad - n), (0, 0)))

    out = pl.pallas_call(
        mnist_fused_kernel,
        out_shape=jax.ShapeDtypeStruct((n_pad, C3), jnp.float32),
        grid=(n_pad // bb,),
        in_specs=[
            pl.BlockSpec((bb, X_LEN), lambda i: (i, 0)),
            pl.BlockSpec(w1.shape, lambda i: (0, 0)),
            pl.BlockSpec(b1.shape, lambda i: (0, 0)),
            pl.BlockSpec(w2.shape, lambda i: (0, 0)),
            pl.BlockSpec(b2.shape, lambda i: (0, 0)),
            pl.BlockSpec(w3.shape, lambda i: (0, 0)),
            pl.BlockSpec(b3.shape, lambda i: (0, 0)),
        ],
        out_specs=pl.BlockSpec((bb, C3), lambda i: (i, 0)),
        scratch_shapes=[
            pltpu.VMEM((bb, A2_LEN), jnp.float32),
            pltpu.VMEM((bb, A3_LEN), jnp.float32),
        ],
        compiler_params=pltpu.CompilerParams(
            dimension_semantics=("parallel",),
            vmem_limit_bytes=32 * 1024 * 1024),
    )(xf, w1, b1, w2, b2, w3, b3)
    return out[:n]


# ----------------------------------------------------------------------------
# Pure-JAX reference (mirrors the PyTorch module exactly)
# ----------------------------------------------------------------------------
def reference_forward(x, params):
    (w1, b1), (w2, b2), (w3, b3) = params
    x = x.reshape(-1, 1, 28, 28)

    def conv(h, w, b):
        y = jax.lax.conv_general_dilated(
            h, w, window_strides=(2, 2), padding=((1, 1), (1, 1)),
            dimension_numbers=("NCHW", "OIHW", "NCHW"))
        return jax.nn.relu(y + b.reshape(1, -1, 1, 1))

    x = conv(x, w1, b1)
    x = conv(x, w2, b2)
    x = conv(x, w3, b3)
    return jnp.mean(x, axis=(2, 3))                                # (N, 10)


# ----------------------------------------------------------------------------
if __name__ == "__main__":
    key = jax.random.PRNGKey(0)
    ks = jax.random.split(key, 8)

    # Deterministic synthetic parameters (shapes from MNIST_CNN.__init__).
    w1 = jax.random.normal(ks[1], (16, 1, 3, 3), jnp.float32) * 0.2
    b1 = jax.random.normal(ks[2], (16,), jnp.float32) * 0.1
    w2 = jax.random.normal(ks[3], (16, 16, 3, 3), jnp.float32) * 0.1
    b2 = jax.random.normal(ks[4], (16,), jnp.float32) * 0.1
    w3 = jax.random.normal(ks[5], (10, 16, 3, 3), jnp.float32) * 0.1
    b3 = jax.random.normal(ks[6], (10,), jnp.float32) * 0.1
    params = ((w1, b1), (w2, b2), (w3, b3))
    prep = preprocess_params(params)          # one-time weight/bias slabs

    # Small batch, single grid step.
    x = jax.random.normal(ks[0], (2, 1, 28, 28), jnp.float32)
    out = jax.block_until_ready(mnist_cnn_forward(x, prep))
    assert out.shape == (2, 10), out.shape
    ref = jax.block_until_ready(reference_forward(x, params))
    max_diff = float(np.max(np.abs(np.asarray(out) - np.asarray(ref))))
    assert np.allclose(np.asarray(out), np.asarray(ref), atol=1e-3, rtol=1e-3), (
        "max abs diff = %g" % max_diff)

    # Multi-grid-step + batch-padding path (batch=10, block_batch=8 -> grid=2).
    x2 = jax.random.normal(ks[7], (10, 1, 28, 28), jnp.float32)
    out2 = jax.block_until_ready(mnist_cnn_forward(x2, prep, block_batch=8))
    ref2 = jax.block_until_ready(reference_forward(x2, params))
    max_diff2 = float(np.max(np.abs(np.asarray(out2) - np.asarray(ref2))))
    assert np.allclose(np.asarray(out2), np.asarray(ref2), atol=1e-3, rtol=1e-3), (
        "max abs diff = %g" % max_diff2)

    print("KERNEL_OK")
</pallas_src>

<mosaic_0001>
module attributes {stable_mosaic.version = 11 : i64} {
  func.func @mnist_fused_kernel(%arg0: i32, %arg1: memref<2x1920xf32, #tpu.memory_space<vmem>>, %arg2: memref<192x256xf32, #tpu.memory_space<vmem>>, %arg3: memref<1x256xf32, #tpu.memory_space<vmem>>, %arg4: memref<768x256xf32, #tpu.memory_space<vmem>>, %arg5: memref<1x256xf32, #tpu.memory_space<vmem>>, %arg6: memref<768x40xf32, #tpu.memory_space<vmem>>, %arg7: memref<1x40xf32, #tpu.memory_space<vmem>>, %arg8: memref<2x10xf32, #tpu.memory_space<vmem>>, %arg9: memref<2x4096xf32, #tpu.memory_space<vmem>>, %arg10: memref<2x2304xf32, #tpu.memory_space<vmem>>) attributes {dimension_semantics = [#tpu.dimension_semantics<parallel>], iteration_bounds = array<i64: 1>, scalar_prefetch = 0 : i64, scratch_operands = 2 : i64, tpu.core_type = #tpu.core_type<tc>, window_params = [{transform_indices = @transform_0, window_bounds = array<i64: 2, 1920>}, {pipeline_mode = #tpu.pipeline_mode<synchronous>, transform_indices = @transform_1, window_bounds = array<i64: 192, 256>}, {pipeline_mode = #tpu.pipeline_mode<synchronous>, transform_indices = @transform_2, window_bounds = array<i64: 1, 256>}, {pipeline_mode = #tpu.pipeline_mode<synchronous>, transform_indices = @transform_3, window_bounds = array<i64: 768, 256>}, {pipeline_mode = #tpu.pipeline_mode<synchronous>, transform_indices = @transform_4, window_bounds = array<i64: 1, 256>}, {pipeline_mode = #tpu.pipeline_mode<synchronous>, transform_indices = @transform_5, window_bounds = array<i64: 768, 40>}, {pipeline_mode = #tpu.pipeline_mode<synchronous>, transform_indices = @transform_6, window_bounds = array<i64: 1, 40>}, {transform_indices = @transform_7, window_bounds = array<i64: 2, 10>}]} {
    %cst = arith.constant 0.000000e+00 : f32
    %0 = vector.broadcast %cst : f32 to vector<2x256xf32>
    %c0 = arith.constant 0 : index
    %c0_0 = arith.constant 0 : index
    %1 = vector.load %arg9[%c0, %c0_0] : memref<2x4096xf32, #tpu.memory_space<vmem>>, vector<2x256xf32>
    tpu.vector_store %arg9[%c0, %c0_0], %0 {strides = array<i32>} : memref<2x4096xf32, #tpu.memory_space<vmem>>, vector<2x256xf32>,
    %cst_1 = arith.constant 0.000000e+00 : f32
    %2 = vector.broadcast %cst_1 : f32 to vector<2x256xf32>
    %c0_2 = arith.constant 0 : index
    %c0_3 = arith.constant 0 : index
    %3 = vector.load %arg10[%c0_2, %c0_3] : memref<2x2304xf32, #tpu.memory_space<vmem>>, vector<2x256xf32>
    tpu.vector_store %arg10[%c0_2, %c0_3], %2 {strides = array<i32>} : memref<2x2304xf32, #tpu.memory_space<vmem>>, vector<2x256xf32>,
    %cst_4 = arith.constant 0.000000e+00 : f32
    %4 = vector.broadcast %cst_4 : f32 to vector<2x256xf32>
    %c0_5 = arith.constant 0 : index
    %c2048 = arith.constant 2048 : index
    %5 = vector.load %arg10[%c0_5, %c2048] : memref<2x2304xf32, #tpu.memory_space<vmem>>, vector<2x256xf32>
    tpu.vector_store %arg10[%c0_5, %c2048], %4 {strides = array<i32>} : memref<2x2304xf32, #tpu.memory_space<vmem>>, vector<2x256xf32>,
    %c0_6 = arith.constant 0 : index
    %c0_7 = arith.constant 0 : index
    %6 = vector.load %arg3[%c0_6, %c0_7] : memref<1x256xf32, #tpu.memory_space<vmem>>, vector<1x256xf32>
    %c0_8 = arith.constant 0 : index
    %c0_9 = arith.constant 0 : index
    %7 = vector.load %arg5[%c0_8, %c0_9] : memref<1x256xf32, #tpu.memory_space<vmem>>, vector<1x256xf32>
    %c0_10 = arith.constant 0 : index
    %c0_11 = arith.constant 0 : index
    %8 = vector.load %arg7[%c0_10, %c0_11] : memref<1x40xf32, #tpu.memory_space<vmem>>, vector<1x40xf32>
    %c0_12 = arith.constant 0 : index
    %c0_13 = arith.constant 0 : index
    %9 = vector.load %arg1[%c0_12, %c0_13] : memref<2x1920xf32, #tpu.memory_space<vmem>>, vector<2x192xf32>
    %c0_14 = arith.constant 0 : index
    %c0_15 = arith.constant 0 : index
    %10 = vector.load %arg2[%c0_14, %c0_15] : memref<192x256xf32, #tpu.memory_space<vmem>>, vector<192x256xf32>
    %cst_16 = arith.constant dense<0.000000e+00> : vector<2x256xf32>
    %11 = tpu.matmul %9, %10, %cst_16 {dimension_numbers = #tpu.dot_dimension_numbers<[1], [0], [0], [1], [0, 0, 1, 1], [], []>} : vector<2x192xf32>, vector<192x256xf32>, vector<2x256xf32> -> vector<2x256xf32>
    %12 = vector.broadcast %6 : vector<1x256xf32> to vector<2x256xf32>
    %13 = arith.addf %11, %12 : vector<2x256xf32>
    %cst_17 = arith.constant 0.000000e+00 : f32
    %14 = vector.broadcast %cst_17 : f32 to vector<2x256xf32>
    %15 = arith.maximumf %13, %14 : vector<2x256xf32>
    %c0_18 = arith.constant 0 : index
    %c256 = arith.constant 256 : index
    %16 = vector.load %arg9[%c0_18, %c256] : memref<2x4096xf32, #tpu.memory_space<vmem>>, vector<2x256xf32>
    tpu.vector_store %arg9[%c0_18, %c256], %15 {strides = array<i32>} : memref<2x4096xf32, #tpu.memory_space<vmem>>, vector<2x256xf32>,
    %c0_19 = arith.constant 0 : index
    %c128 = arith.constant 128 : index
    %17 = vector.load %arg1[%c0_19, %c128] : memref<2x1920xf32, #tpu.memory_space<vmem>>, vector<2x192xf32>
    %c0_20 = arith.constant 0 : index
    %c0_21 = arith.constant 0 : index
    %18 = vector.load %arg2[%c0_20, %c0_21] : memref<192x256xf32, #tpu.memory_space<vmem>>, vector<192x256xf32>
    %cst_22 = arith.constant dense<0.000000e+00> : vector<2x256xf32>
    %19 = tpu.matmul %17, %18, %cst_22 {dimension_numbers = #tpu.dot_dimension_numbers<[1], [0], [0], [1], [0, 0, 1, 1], [], []>} : vector<2x192xf32>, vector<192x256xf32>, vector<2x256xf32> -> vector<2x256xf32>
    %20 = vector.broadcast %6 : vector<1x256xf32> to vector<2x256xf32>
    %21 = arith.addf %19, %20 : vector<2x256xf32>
    %cst_23 = arith.constant 0.000000e+00 : f32
    %22 = vector.broadcast %cst_23 : f32 to vector<2x256xf32>
    %23 = arith.maximumf %21, %22 : vector<2x256xf32>
    %c0_24 = arith.constant 0 : index
    %c512 = arith.constant 512 : index
    %24 = vector.load %arg9[%c0_24, %c512] : memref<2x4096xf32, #tpu.memory_space<vmem>>, vector<2x256xf32>
    tpu.vector_store %arg9[%c0_24, %c512], %23 {strides = array<i32>} : memref<2x4096xf32, #tpu.memory_space<vmem>>, vector<2x256xf32>,
    %c0_25 = arith.constant 0 : index
    %c256_26 = arith.constant 256 : index
    %25 = vector.load %arg1[%c0_25, %c256_26] : memref<2x1920xf32, #tpu.memory_space<vmem>>, vector<2x192xf32>
    %c0_27 = arith.constant 0 : index
    %c0_28 = arith.constant 0 : index
    %26 = vector.load %arg2[%c0_27, %c0_28] : memref<192x256xf32, #tpu.memory_space<vmem>>, vector<192x256xf32>
    %cst_29 = arith.constant dense<0.000000e+00> : vector<2x256xf32>
    %27 = tpu.matmul %25, %26, %cst_29 {dimension_numbers = #tpu.dot_dimension_numbers<[1], [0], [0], [1], [0, 0, 1, 1], [], []>} : vector<2x192xf32>, vector<192x256xf32>, vector<2x256xf32> -> vector<2x256xf32>
    %28 = vector.broadcast %6 : vector<1x256xf32> to vector<2x256xf32>
    %29 = arith.addf %27, %28 : vector<2x256xf32>
    %cst_30 = arith.constant 0.000000e+00 : f32
    %30 = vector.broadcast %cst_30 : f32 to vector<2x256xf32>
    %31 = arith.maximumf %29, %30 : vector<2x256xf32>
    %c0_31 = arith.constant 0 : index
    %c768 = arith.constant 768 : index
    %32 = vector.load %arg9[%c0_31, %c768] : memref<2x4096xf32, #tpu.memory_space<vmem>>, vector<2x256xf32>
    tpu.vector_store %arg9[%c0_31, %c768], %31 {strides = array<i32>} : memref<2x4096xf32, #tpu.memory_space<vmem>>, vector<2x256xf32>,
    %c0_32 = arith.constant 0 : index
    %c384 = arith.constant 384 : index
    %33 = vector.load %arg1[%c0_32, %c384] : memref<2x1920xf32, #tpu.memory_space<vmem>>, vector<2x192xf32>
    %c0_33 = arith.constant 0 : index
    %c0_34 = arith.constant 0 : index
    %34 = vector.load %arg2[%c0_33, %c0_34] : memref<192x256xf32, #tpu.memory_space<vmem>>, vector<192x256xf32>
    %cst_35 = arith.constant dense<0.000000e+00> : vector<2x256xf32>
    %35 = tpu.matmul %33, %34, %cst_35 {dimension_numbers = #tpu.dot_dimension_numbers<[1], [0], [0], [1], [0, 0, 1, 1], [], []>} : vector<2x192xf32>, vector<192x256xf32>, vector<2x256xf32> -> vector<2x256xf32>
    %36 = vector.broadcast %6 : vector<1x256xf32> to vector<2x256xf32>
    %37 = arith.addf %35, %36 : vector<2x256xf32>
    %cst_36 = arith.constant 0.000000e+00 : f32
    %38 = vector.broadcast %cst_36 : f32 to vector<2x256xf32>
    %39 = arith.maximumf %37, %38 : vector<2x256xf32>
    %c0_37 = arith.constant 0 : index
    %c1024 = arith.constant 1024 : index
    %40 = vector.load %arg9[%c0_37, %c1024] : memref<2x4096xf32, #tpu.memory_space<vmem>>, vector<2x256xf32>
    tpu.vector_store %arg9[%c0_37, %c1024], %39 {strides = array<i32>} : memref<2x4096xf32, #tpu.memory_space<vmem>>, vector<2x256xf32>,
    %c0_38 = arith.constant 0 : index
    %c512_39 = arith.constant 512 : index
    %41 = vector.load %arg1[%c0_38, %c512_39] : memref<2x1920xf32, #tpu.memory_space<vmem>>, vector<2x192xf32>
    %c0_40 = arith.constant 0 : index
    %c0_41 = arith.constant 0 : index
    %42 = vector.load %arg2[%c0_40, %c0_41] : memref<192x256xf32, #tpu.memory_space<vmem>>, vector<192x256xf32>
    %cst_42 = arith.constant dense<0.000000e+00> : vector<2x256xf32>
    %43 = tpu.matmul %41, %42, %cst_42 {dimension_numbers = #tpu.dot_dimension_numbers<[1], [0], [0], [1], [0, 0, 1, 1], [], []>} : vector<2x192xf32>, vector<192x256xf32>, vector<2x256xf32> -> vector<2x256xf32>
    %44 = vector.broadcast %6 : vector<1x256xf32> to vector<2x256xf32>
    %45 = arith.addf %43, %44 : vector<2x256xf32>
    %cst_43 = arith.constant 0.000000e+00 : f32
    %46 = vector.broadcast %cst_43 : f32 to vector<2x256xf32>
    %47 = arith.maximumf %45, %46 : vector<2x256xf32>
    %c0_44 = arith.constant 0 : index
    %c1280 = arith.constant 1280 : index
    %48 = vector.load %arg9[%c0_44, %c1280] : memref<2x4096xf32, #tpu.memory_space<vmem>>, vector<2x256xf32>
    tpu.vector_store %arg9[%c0_44, %c1280], %47 {strides = array<i32>} : memref<2x4096xf32, #tpu.memory_space<vmem>>, vector<2x256xf32>,
    %c0_45 = arith.constant 0 : index
    %c640 = arith.constant 640 : index
    %49 = vector.load %arg1[%c0_45, %c640] : memref<2x1920xf32, #tpu.memory_space<vmem>>, vector<2x192xf32>
    %c0_46 = arith.constant 0 : index
    %c0_47 = arith.constant 0 : index
    %50 = vector.load %arg2[%c0_46, %c0_47] : memref<192x256xf32, #tpu.memory_space<vmem>>, vector<192x256xf32>
    %cst_48 = arith.constant dense<0.000000e+00> : vector<2x256xf32>
    %51 = tpu.matmul %49, %50, %cst_48 {dimension_numbers = #tpu.dot_dimension_numbers<[1], [0], [0], [1], [0, 0, 1, 1], [], []>} : vector<2x192xf32>, vector<192x256xf32>, vector<2x256xf32> -> vector<2x256xf32>
    %52 = vector.broadcast %6 : vector<1x256xf32> to vector<2x256xf32>
    %53 = arith.addf %51, %52 : vector<2x256xf32>
    %cst_49 = arith.constant 0.000000e+00 : f32
    %54 = vector.broadcast %cst_49 : f32 to vector<2x256xf32>
    %55 = arith.maximumf %53, %54 : vector<2x256xf32>
    %c0_50 = arith.constant 0 : index
    %c1536 = arith.constant 1536 : index
    %56 = vector.load %arg9[%c0_50, %c1536] : memref<2x4096xf32, #tpu.memory_space<vmem>>, vector<2x256xf32>
    tpu.vector_store %arg9[%c0_50, %c1536], %55 {strides = array<i32>} : memref<2x4096xf32, #tpu.memory_space<vmem>>, vector<2x256xf32>,
    %c0_51 = arith.constant 0 : index
    %c768_52 = arith.constant 768 : index
    %57 = vector.load %arg1[%c0_51, %c768_52] : memref<2x1920xf32, #tpu.memory_space<vmem>>, vector<2x192xf32>
    %c0_53 = arith.constant 0 : index
    %c0_54 = arith.constant 0 : index
    %58 = vector.load %arg2[%c0_53, %c0_54] : memref<192x256xf32, #tpu.memory_space<vmem>>, vector<192x256xf32>
    %cst_55 = arith.constant dense<0.000000e+00> : vector<2x256xf32>
    %59 = tpu.matmul %57, %58, %cst_55 {dimension_numbers = #tpu.dot_dimension_numbers<[1], [0], [0], [1], [0, 0, 1, 1], [], []>} : vector<2x192xf32>, vector<192x256xf32>, vector<2x256xf32> -> vector<2x256xf32>
    %60 = vector.broadcast %6 : vector<1x256xf32> to vector<2x256xf32>
    %61 = arith.addf %59, %60 : vector<2x256xf32>
    %cst_56 = arith.constant 0.000000e+00 : f32
    %62 = vector.broadcast %cst_56 : f32 to vector<2x256xf32>
    %63 = arith.maximumf %61, %62 : vector<2x256xf32>
    %c0_57 = arith.constant 0 : index
    %c1792 = arith.constant 1792 : index
    %64 = vector.load %arg9[%c0_57, %c1792] : memref<2x4096xf32, #tpu.memory_space<vmem>>, vector<2x256xf32>
    tpu.vector_store %arg9[%c0_57, %c1792], %63 {strides = array<i32>} : memref<2x4096xf32, #tpu.memory_space<vmem>>, vector<2x256xf32>,
    %c0_58 = arith.constant 0 : index
    %c896 = arith.constant 896 : index
    %65 = vector.load %arg1[%c0_58, %c896] : memref<2x1920xf32, #tpu.memory_space<vmem>>, vector<2x192xf32>
    %c0_59 = arith.constant 0 : index
    %c0_60 = arith.constant 0 : index
    %66 = vector.load %arg2[%c0_59, %c0_60] : memref<192x256xf32, #tpu.memory_space<vmem>>, vector<192x256xf32>
    %cst_61 = arith.constant dense<0.000000e+00> : vector<2x256xf32>
    %67 = tpu.matmul %65, %66, %cst_61 {dimension_numbers = #tpu.dot_dimension_numbers<[1], [0], [0], [1], [0, 0, 1, 1], [], []>} : vector<2x192xf32>, vector<192x256xf32>, vector<2x256xf32> -> vector<2x256xf32>
    %68 = vector.broadcast %6 : vector<1x256xf32> to vector<2x256xf32>
    %69 = arith.addf %67, %68 : vector<2x256xf32>
    %cst_62 = arith.constant 0.000000e+00 : f32
    %70 = vector.broadcast %cst_62 : f32 to vector<2x256xf32>
    %71 = arith.maximumf %69, %70 : vector<2x256xf32>
    %c0_63 = arith.constant 0 : index
    %c2048_64 = arith.constant 2048 : index
    %72 = vector.load %arg9[%c0_63, %c2048_64] : memref<2x4096xf32, #tpu.memory_space<vmem>>, vector<2x256xf32>
    tpu.vector_store %arg9[%c0_63, %c2048_64], %71 {strides = array<i32>} : memref<2x4096xf32, #tpu.memory_space<vmem>>, vector<2x256xf32>,
    %c0_65 = arith.constant 0 : index
    %c1024_66 = arith.constant 1024 : index
    %73 = vector.load %arg1[%c0_65, %c1024_66] : memref<2x1920xf32, #tpu.memory_space<vmem>>, vector<2x192xf32>
    %c0_67 = arith.constant 0 : index
    %c0_68 = arith.constant 0 : index
    %74 = vector.load %arg2[%c0_67, %c0_68] : memref<192x256xf32, #tpu.memory_space<vmem>>, vector<192x256xf32>
    %cst_69 = arith.constant dense<0.000000e+00> : vector<2x256xf32>
    %75 = tpu.matmul %73, %74, %cst_69 {dimension_numbers = #tpu.dot_dimension_numbers<[1], [0], [0], [1], [0, 0, 1, 1], [], []>} : vector<2x192xf32>, vector<192x256xf32>, vector<2x256xf32> -> vector<2x256xf32>
    %76 = vector.broadcast %6 : vector<1x256xf32> to vector<2x256xf32>
    %77 = arith.addf %75, %76 : vector<2x256xf32>
    %cst_70 = arith.constant 0.000000e+00 : f32
    %78 = vector.broadcast %cst_70 : f32 to vector<2x256xf32>
    %79 = arith.maximumf %77, %78 : vector<2x256xf32>
    %c0_71 = arith.constant 0 : index
    %c2304 = arith.constant 2304 : index
    %80 = vector.load %arg9[%c0_71, %c2304] : memref<2x4096xf32, #tpu.memory_space<vmem>>, vector<2x256xf32>
    tpu.vector_store %arg9[%c0_71, %c2304], %79 {strides = array<i32>} : memref<2x4096xf32, #tpu.memory_space<vmem>>, vector<2x256xf32>,
    %c0_72 = arith.constant 0 : index
    %c1152 = arith.constant 1152 : index
    %81 = vector.load %arg1[%c0_72, %c1152] : memref<2x1920xf32, #tpu.memory_space<vmem>>, vector<2x192xf32>
    %c0_73 = arith.constant 0 : index
    %c0_74 = arith.constant 0 : index
    %82 = vector.load %arg2[%c0_73, %c0_74] : memref<192x256xf32, #tpu.memory_space<vmem>>, vector<192x256xf32>
    %cst_75 = arith.constant dense<0.000000e+00> : vector<2x256xf32>
    %83 = tpu.matmul %81, %82, %cst_75 {dimension_numbers = #tpu.dot_dimension_numbers<[1], [0], [0], [1], [0, 0, 1, 1], [], []>} : vector<2x192xf32>, vector<192x256xf32>, vector<2x256xf32> -> vector<2x256xf32>
    %84 = vector.broadcast %6 : vector<1x256xf32> to vector<2x256xf32>
    %85 = arith.addf %83, %84 : vector<2x256xf32>
    %cst_76 = arith.constant 0.000000e+00 : f32
    %86 = vector.broadcast %cst_76 : f32 to vector<2x256xf32>
    %87 = arith.maximumf %85, %86 : vector<2x256xf32>
    %c0_77 = arith.constant 0 : index
    %c2560 = arith.constant 2560 : index
    %88 = vector.load %arg9[%c0_77, %c2560] : memref<2x4096xf32, #tpu.memory_space<vmem>>, vector<2x256xf32>
    tpu.vector_store %arg9[%c0_77, %c2560], %87 {strides = array<i32>} : memref<2x4096xf32, #tpu.memory_space<vmem>>, vector<2x256xf32>,
    %c0_78 = arith.constant 0 : index
    %c1280_79 = arith.constant 1280 : index
    %89 = vector.load %arg1[%c0_78, %c1280_79] : memref<2x1920xf32, #tpu.memory_space<vmem>>, vector<2x192xf32>
    %c0_80 = arith.constant 0 : index
    %c0_81 = arith.constant 0 : index
    %90 = vector.load %arg2[%c0_80, %c0_81] : memref<192x256xf32, #tpu.memory_space<vmem>>, vector<192x256xf32>
    %cst_82 = arith.constant dense<0.000000e+00> : vector<2x256xf32>
    %91 = tpu.matmul %89, %90, %cst_82 {dimension_numbers = #tpu.dot_dimension_numbers<[1], [0], [0], [1], [0, 0, 1, 1], [], []>} : vector<2x192xf32>, vector<192x256xf32>, vector<2x256xf32> -> vector<2x256xf32>
    %92 = vector.broadcast %6 : vector<1x256xf32> to vector<2x256xf32>
    %93 = arith.addf %91, %92 : vector<2x256xf32>
    %cst_83 = arith.constant 0.000000e+00 : f32
    %94 = vector.broadcast %cst_83 : f32 to vector<2x256xf32>
    %95 = arith.maximumf %93, %94 : vector<2x256xf32>
    %c0_84 = arith.constant 0 : index
    %c2816 = arith.constant 2816 : index
    %96 = vector.load %arg9[%c0_84, %c2816] : memref<2x4096xf32, #tpu.memory_space<vmem>>, vector<2x256xf32>
    tpu.vector_store %arg9[%c0_84, %c2816], %95 {strides = array<i32>} : memref<2x4096xf32, #tpu.memory_space<vmem>>, vector<2x256xf32>,
    %c0_85 = arith.constant 0 : index
    %c1408 = arith.constant 1408 : index
    %97 = vector.load %arg1[%c0_85, %c1408] : memref<2x1920xf32, #tpu.memory_space<vmem>>, vector<2x192xf32>
    %c0_86 = arith.constant 0 : index
    %c0_87 = arith.constant 0 : index
    %98 = vector.load %arg2[%c0_86, %c0_87] : memref<192x256xf32, #tpu.memory_space<vmem>>, vector<192x256xf32>
    %cst_88 = arith.constant dense<0.000000e+00> : vector<2x256xf32>
    %99 = tpu.matmul %97, %98, %cst_88 {dimension_numbers = #tpu.dot_dimension_numbers<[1], [0], [0], [1], [0, 0, 1, 1], [], []>} : vector<2x192xf32>, vector<192x256xf32>, vector<2x256xf32> -> vector<2x256xf32>
    %100 = vector.broadcast %6 : vector<1x256xf32> to vector<2x256xf32>
    %101 = arith.addf %99, %100 : vector<2x256xf32>
    %cst_89 = arith.constant 0.000000e+00 : f32
    %102 = vector.broadcast %cst_89 : f32 to vector<2x256xf32>
    %103 = arith.maximumf %101, %102 : vector<2x256xf32>
    %c0_90 = arith.constant 0 : index
    %c3072 = arith.constant 3072 : index
    %104 = vector.load %arg9[%c0_90, %c3072] : memref<2x4096xf32, #tpu.memory_space<vmem>>, vector<2x256xf32>
    tpu.vector_store %arg9[%c0_90, %c3072], %103 {strides = array<i32>} : memref<2x4096xf32, #tpu.memory_space<vmem>>, vector<2x256xf32>,
    %c0_91 = arith.constant 0 : index
    %c1536_92 = arith.constant 1536 : index
    %105 = vector.load %arg1[%c0_91, %c1536_92] : memref<2x1920xf32, #tpu.memory_space<vmem>>, vector<2x192xf32>
    %c0_93 = arith.constant 0 : index
    %c0_94 = arith.constant 0 : index
    %106 = vector.load %arg2[%c0_93, %c0_94] : memref<192x256xf32, #tpu.memory_space<vmem>>, vector<192x256xf32>
    %cst_95 = arith.constant dense<0.000000e+00> : vector<2x256xf32>
    %107 = tpu.matmul %105, %106, %cst_95 {dimension_numbers = #tpu.dot_dimension_numbers<[1], [0], [0], [1], [0, 0, 1, 1], [], []>} : vector<2x192xf32>, vector<192x256xf32>, vector<2x256xf32> -> vector<2x256xf32>
    %108 = vector.broadcast %6 : vector<1x256xf32> to vector<2x256xf32>
    %109 = arith.addf %107, %108 : vector<2x256xf32>
    %cst_96 = arith.constant 0.000000e+00 : f32
    %110 = vector.broadcast %cst_96 : f32 to vector<2x256xf32>
    %111 = arith.maximumf %109, %110 : vector<2x256xf32>
    %c0_97 = arith.constant 0 : index
    %c3328 = arith.constant 3328 : index
    %112 = vector.load %arg9[%c0_97, %c3328] : memref<2x4096xf32, #tpu.memory_space<vmem>>, vector<2x256xf32>
    tpu.vector_store %arg9[%c0_97, %c3328], %111 {strides = array<i32>} : memref<2x4096xf32, #tpu.memory_space<vmem>>, vector<2x256xf32>,
    %c0_98 = arith.constant 0 : index
    %c1664 = arith.constant 1664 : index
    %113 = vector.load %arg1[%c0_98, %c1664] : memref<2x1920xf32, #tpu.memory_space<vmem>>, vector<2x192xf32>
    %c0_99 = arith.constant 0 : index
    %c0_100 = arith.constant 0 : index
    %114 = vector.load %arg2[%c0_99, %c0_100] : memref<192x256xf32, #tpu.memory_space<vmem>>, vector<192x256xf32>
    %cst_101 = arith.constant dense<0.000000e+00> : vector<2x256xf32>
    %115 = tpu.matmul %113, %114, %cst_101 {dimension_numbers = #tpu.dot_dimension_numbers<[1], [0], [0], [1], [0, 0, 1, 1], [], []>} : vector<2x192xf32>, vector<192x256xf32>, vector<2x256xf32> -> vector<2x256xf32>
    %116 = vector.broadcast %6 : vector<1x256xf32> to vector<2x256xf32>
    %117 = arith.addf %115, %116 : vector<2x256xf32>
    %cst_102 = arith.constant 0.000000e+00 : f32
    %118 = vector.broadcast %cst_102 : f32 to vector<2x256xf32>
    %119 = arith.maximumf %117, %118 : vector<2x256xf32>
    %c0_103 = arith.constant 0 : index
    %c3584 = arith.constant 3584 : index
    %120 = vector.load %arg9[%c0_103, %c3584] : memref<2x4096xf32, #tpu.memory_space<vmem>>, vector<2x256xf32>
    tpu.vector_store %arg9[%c0_103, %c3584], %119 {strides = array<i32>} : memref<2x4096xf32, #tpu.memory_space<vmem>>, vector<2x256xf32>,
    %c0_104 = arith.constant 0 : index
    %c0_105 = arith.constant 0 : index
    %121 = vector.load %arg9[%c0_104, %c0_105] : memref<2x4096xf32, #tpu.memory_space<vmem>>, vector<2x768xf32>
    %c0_106 = arith.constant 0 : index
    %c0_107 = arith.constant 0 : index
    %122 = vector.load %arg4[%c0_106, %c0_107] : memref<768x256xf32, #tpu.memory_space<vmem>>, vector<768x256xf32>
    %cst_108 = arith.constant dense<0.000000e+00> : vector<2x256xf32>
    %123 = tpu.matmul %121, %122, %cst_108 {dimension_numbers = #tpu.dot_dimension_numbers<[1], [0], [0], [1], [0, 0, 1, 1], [], []>} : vector<2x768xf32>, vector<768x256xf32>, vector<2x256xf32> -> vector<2x256xf32>
    %124 = vector.broadcast %7 : vector<1x256xf32> to vector<2x256xf32>
    %125 = arith.addf %123, %124 : vector<2x256xf32>
    %cst_109 = arith.constant 0.000000e+00 : f32
    %126 = vector.broadcast %cst_109 : f32 to vector<2x256xf32>
    %127 = arith.maximumf %125, %126 : vector<2x256xf32>
    %c0_110 = arith.constant 0 : index
    %c256_111 = arith.constant 256 : index
    %128 = vector.load %arg10[%c0_110, %c256_111] : memref<2x2304xf32, #tpu.memory_space<vmem>>, vector<2x256xf32>
    tpu.vector_store %arg10[%c0_110, %c256_111], %127 {strides = array<i32>} : memref<2x2304xf32, #tpu.memory_space<vmem>>, vector<2x256xf32>,
    %c0_112 = arith.constant 0 : index
    %c512_113 = arith.constant 512 : index
    %129 = vector.load %arg9[%c0_112, %c512_113] : memref<2x4096xf32, #tpu.memory_space<vmem>>, vector<2x768xf32>
    %c0_114 = arith.constant 0 : index
    %c0_115 = arith.constant 0 : index
    %130 = vector.load %arg4[%c0_114, %c0_115] : memref<768x256xf32, #tpu.memory_space<vmem>>, vector<768x256xf32>
    %cst_116 = arith.constant dense<0.000000e+00> : vector<2x256xf32>
    %131 = tpu.matmul %129, %130, %cst_116 {dimension_numbers = #tpu.dot_dimension_numbers<[1], [0], [0], [1], [0, 0, 1, 1], [], []>} : vector<2x768xf32>, vector<768x256xf32>, vector<2x256xf32> -> vector<2x256xf32>
    %132 = vector.broadcast %7 : vector<1x256xf32> to vector<2x256xf32>
    %133 = arith.addf %131, %132 : vector<2x256xf32>
    %cst_117 = arith.constant 0.000000e+00 : f32
    %134 = vector.broadcast %cst_117 : f32 to vector<2x256xf32>
    %135 = arith.maximumf %133, %134 : vector<2x256xf32>
    %c0_118 = arith.constant 0 : index
    %c512_119 = arith.constant 512 : index
    %136 = vector.load %arg10[%c0_118, %c512_119] : memref<2x2304xf32, #tpu.memory_space<vmem>>, vector<2x256xf32>
    tpu.vector_store %arg10[%c0_118, %c512_119], %135 {strides = array<i32>} : memref<2x2304xf32, #tpu.memory_space<vmem>>, vector<2x256xf32>,
    %c0_120 = arith.constant 0 : index
    %c1024_121 = arith.constant 1024 : index
    %137 = vector.load %arg9[%c0_120, %c1024_121] : memref<2x4096xf32, #tpu.memory_space<vmem>>, vector<2x768xf32>
    %c0_122 = arith.constant 0 : index
    %c0_123 = arith.constant 0 : index
    %138 = vector.load %arg4[%c0_122, %c0_123] : memref<768x256xf32, #tpu.memory_space<vmem>>, vector<768x256xf32>
    %cst_124 = arith.constant dense<0.000000e+00> : vector<2x256xf32>
    %139 = tpu.matmul %137, %138, %cst_124 {dimension_numbers = #tpu.dot_dimension_numbers<[1], [0], [0], [1], [0, 0, 1, 1], [], []>} : vector<2x768xf32>, vector<768x256xf32>, vector<2x256xf32> -> vector<2x256xf32>
    %140 = vector.broadcast %7 : vector<1x256xf32> to vector<2x256xf32>
    %141 = arith.addf %139, %140 : vector<2x256xf32>
    %cst_125 = arith.constant 0.000000e+00 : f32
    %142 = vector.broadcast %cst_125 : f32 to vector<2x256xf32>
    %143 = arith.maximumf %141, %142 : vector<2x256xf32>
    %c0_126 = arith.constant 0 : index
    %c768_127 = arith.constant 768 : index
    %144 = vector.load %arg10[%c0_126, %c768_127] : memref<2x2304xf32, #tpu.memory_space<vmem>>, vector<2x256xf32>
    tpu.vector_store %arg10[%c0_126, %c768_127], %143 {strides = array<i32>} : memref<2x2304xf32, #tpu.memory_space<vmem>>, vector<2x256xf32>,
    %c0_128 = arith.constant 0 : index
    %c1536_129 = arith.constant 1536 : index
    %145 = vector.load %arg9[%c0_128, %c1536_129] : memref<2x4096xf32, #tpu.memory_space<vmem>>, vector<2x768xf32>
    %c0_130 = arith.constant 0 : index
    %c0_131 = arith.constant 0 : index
    %146 = vector.load %arg4[%c0_130, %c0_131] : memref<768x256xf32, #tpu.memory_space<vmem>>, vector<768x256xf32>
    %cst_132 = arith.constant dense<0.000000e+00> : vector<2x256xf32>
    %147 = tpu.matmul %145, %146, %cst_132 {dimension_numbers = #tpu.dot_dimension_numbers<[1], [0], [0], [1], [0, 0, 1, 1], [], []>} : vector<2x768xf32>, vector<768x256xf32>, vector<2x256xf32> -> vector<2x256xf32>
    %148 = vector.broadcast %7 : vector<1x256xf32> to vector<2x256xf32>
    %149 = arith.addf %147, %148 : vector<2x256xf32>
    %cst_133 = arith.constant 0.000000e+00 : f32
    %150 = vector.broadcast %cst_133 : f32 to vector<2x256xf32>
    %151 = arith.maximumf %149, %150 : vector<2x256xf32>
    %c0_134 = arith.constant 0 : index
    %c1024_135 = arith.constant 1024 : index
    %152 = vector.load %arg10[%c0_134, %c1024_135] : memref<2x2304xf32, #tpu.memory_space<vmem>>, vector<2x256xf32>
    tpu.vector_store %arg10[%c0_134, %c1024_135], %151 {strides = array<i32>} : memref<2x2304xf32, #tpu.memory_space<vmem>>, vector<2x256xf32>,
    %c0_136 = arith.constant 0 : index
    %c2048_137 = arith.constant 2048 : index
    %153 = vector.load %arg9[%c0_136, %c2048_137] : memref<2x4096xf32, #tpu.memory_space<vmem>>, vector<2x768xf32>
    %c0_138 = arith.constant 0 : index
    %c0_139 = arith.constant 0 : index
    %154 = vector.load %arg4[%c0_138, %c0_139] : memref<768x256xf32, #tpu.memory_space<vmem>>, vector<768x256xf32>
    %cst_140 = arith.constant dense<0.000000e+00> : vector<2x256xf32>
    %155 = tpu.matmul %153, %154, %cst_140 {dimension_numbers = #tpu.dot_dimension_numbers<[1], [0], [0], [1], [0, 0, 1, 1], [], []>} : vector<2x768xf32>, vector<768x256xf32>, vector<2x256xf32> -> vector<2x256xf32>
    %156 = vector.broadcast %7 : vector<1x256xf32> to vector<2x256xf32>
    %157 = arith.addf %155, %156 : vector<2x256xf32>
    %cst_141 = arith.constant 0.000000e+00 : f32
    %158 = vector.broadcast %cst_141 : f32 to vector<2x256xf32>
    %159 = arith.maximumf %157, %158 : vector<2x256xf32>
    %c0_142 = arith.constant 0 : index
    %c1280_143 = arith.constant 1280 : index
    %160 = vector.load %arg10[%c0_142, %c1280_143] : memref<2x2304xf32, #tpu.memory_space<vmem>>, vector<2x256xf32>
    tpu.vector_store %arg10[%c0_142, %c1280_143], %159 {strides = array<i32>} : memref<2x2304xf32, #tpu.memory_space<vmem>>, vector<2x256xf32>,
    %c0_144 = arith.constant 0 : index
    %c2560_145 = arith.constant 2560 : index
    %161 = vector.load %arg9[%c0_144, %c2560_145] : memref<2x4096xf32, #tpu.memory_space<vmem>>, vector<2x768xf32>
    %c0_146 = arith.constant 0 : index
    %c0_147 = arith.constant 0 : index
    %162 = vector.load %arg4[%c0_146, %c0_147] : memref<768x256xf32, #tpu.memory_space<vmem>>, vector<768x256xf32>
    %cst_148 = arith.constant dense<0.000000e+00> : vector<2x256xf32>
    %163 = tpu.matmul %161, %162, %cst_148 {dimension_numbers = #tpu.dot_dimension_numbers<[1], [0], [0], [1], [0, 0, 1, 1], [], []>} : vector<2x768xf32>, vector<768x256xf32>, vector<2x256xf32> -> vector<2x256xf32>
    %164 = vector.broadcast %7 : vector<1x256xf32> to vector<2x256xf32>
    %165 = arith.addf %163, %164 : vector<2x256xf32>
    %cst_149 = arith.constant 0.000000e+00 : f32
    %166 = vector.broadcast %cst_149 : f32 to vector<2x256xf32>
    %167 = arith.maximumf %165, %166 : vector<2x256xf32>
    %c0_150 = arith.constant 0 : index
    %c1536_151 = arith.constant 1536 : index
    %168 = vector.load %arg10[%c0_150, %c1536_151] : memref<2x2304xf32, #tpu.memory_space<vmem>>, vector<2x256xf32>
    tpu.vector_store %arg10[%c0_150, %c1536_151], %167 {strides = array<i32>} : memref<2x2304xf32, #tpu.memory_space<vmem>>, vector<2x256xf32>,
    %c0_152 = arith.constant 0 : index
    %c3072_153 = arith.constant 3072 : index
    %169 = vector.load %arg9[%c0_152, %c3072_153] : memref<2x4096xf32, #tpu.memory_space<vmem>>, vector<2x768xf32>
    %c0_154 = arith.constant 0 : index
    %c0_155 = arith.constant 0 : index
    %170 = vector.load %arg4[%c0_154, %c0_155] : memref<768x256xf32, #tpu.memory_space<vmem>>, vector<768x256xf32>
    %cst_156 = arith.constant dense<0.000000e+00> : vector<2x256xf32>
    %171 = tpu.matmul %169, %170, %cst_156 {dimension_numbers = #tpu.dot_dimension_numbers<[1], [0], [0], [1], [0, 0, 1, 1], [], []>} : vector<2x768xf32>, vector<768x256xf32>, vector<2x256xf32> -> vector<2x256xf32>
    %172 = vector.broadcast %7 : vector<1x256xf32> to vector<2x256xf32>
    %173 = arith.addf %171, %172 : vector<2x256xf32>
    %cst_157 = arith.constant 0.000000e+00 : f32
    %174 = vector.broadcast %cst_157 : f32 to vector<2x256xf32>
    %175 = arith.maximumf %173, %174 : vector<2x256xf32>
    %c0_158 = arith.constant 0 : index
    %c1792_159 = arith.constant 1792 : index
    %176 = vector.load %arg10[%c0_158, %c1792_159] : memref<2x2304xf32, #tpu.memory_space<vmem>>, vector<2x256xf32>
    tpu.vector_store %arg10[%c0_158, %c1792_159], %175 {strides = array<i32>} : memref<2x2304xf32, #tpu.memory_space<vmem>>, vector<2x256xf32>,
    %cst_160 = arith.constant 0.000000e+00 : f32
    %177 = vector.broadcast %cst_160 : f32 to vector<2x10xf32>
    %c0_161 = arith.constant 0 : index
    %c0_162 = arith.constant 0 : index
    %178 = vector.load %arg10[%c0_161, %c0_162] : memref<2x2304xf32, #tpu.memory_space<vmem>>, vector<2x768xf32>
    %c0_163 = arith.constant 0 : index
    %c0_164 = arith.constant 0 : index
    %179 = vector.load %arg6[%c0_163, %c0_164] : memref<768x40xf32, #tpu.memory_space<vmem>>, vector<768x40xf32>
    %cst_165 = arith.constant dense<0.000000e+00> : vector<2x40xf32>
    %180 = tpu.matmul %178, %179, %cst_165 {dimension_numbers = #tpu.dot_dimension_numbers<[1], [0], [0], [1], [0, 0, 1, 1], [], []>} : vector<2x768xf32>, vector<768x40xf32>, vector<2x40xf32> -> vector<2x40xf32>
    %181 = vector.broadcast %8 : vector<1x40xf32> to vector<2x40xf32>
    %182 = arith.addf %180, %181 : vector<2x40xf32>
    %cst_166 = arith.constant 0.000000e+00 : f32
    %183 = vector.broadcast %cst_166 : f32 to vector<2x40xf32>
    %184 = arith.maximumf %182, %183 : vector<2x40xf32>
    %185 = vector.extract_strided_slice %184 {offsets = [0, 0], sizes = [2, 10], strides = [1, 1]} : vector<2x40xf32> to vector<2x10xf32>
    %186 = arith.addf %177, %185 : vector<2x10xf32>
    %187 = vector.extract_strided_slice %184 {offsets = [0, 10], sizes = [2, 10], strides = [1, 1]} : vector<2x40xf32> to vector<2x10xf32>
    %188 = arith.addf %186, %187 : vector<2x10xf32>
    %189 = vector.extract_strided_slice %184 {offsets = [0, 20], sizes = [2, 10], strides = [1, 1]} : vector<2x40xf32> to vector<2x10xf32>
    %190 = arith.addf %188, %189 : vector<2x10xf32>
    %191 = vector.extract_strided_slice %184 {offsets = [0, 30], sizes = [2, 10], strides = [1, 1]} : vector<2x40xf32> to vector<2x10xf32>
    %192 = arith.addf %190, %191 : vector<2x10xf32>
    %c0_167 = arith.constant 0 : index
    %c512_168 = arith.constant 512 : index
    %193 = vector.load %arg10[%c0_167, %c512_168] : memref<2x2304xf32, #tpu.memory_space<vmem>>, vector<2x768xf32>
    %c0_169 = arith.constant 0 : index
    %c0_170 = arith.constant 0 : index
    %194 = vector.load %arg6[%c0_169, %c0_170] : memref<768x40xf32, #tpu.memory_space<vmem>>, vector<768x40xf32>
    %cst_171 = arith.constant dense<0.000000e+00> : vector<2x40xf32>
    %195 = tpu.matmul %193, %194, %cst_171 {dimension_numbers = #tpu.dot_dimension_numbers<[1], [0], [0], [1], [0, 0, 1, 1], [], []>} : vector<2x768xf32>, vector<768x40xf32>, vector<2x40xf32> -> vector<2x40xf32>
    %196 = vector.broadcast %8 : vector<1x40xf32> to vector<2x40xf32>
    %197 = arith.addf %195, %196 : vector<2x40xf32>
    %cst_172 = arith.constant 0.000000e+00 : f32
    %198 = vector.broadcast %cst_172 : f32 to vector<2x40xf32>
    %199 = arith.maximumf %197, %198 : vector<2x40xf32>
    %200 = vector.extract_strided_slice %199 {offsets = [0, 0], sizes = [2, 10], strides = [1, 1]} : vector<2x40xf32> to vector<2x10xf32>
    %201 = arith.addf %192, %200 : vector<2x10xf32>
    %202 = vector.extract_strided_slice %199 {offsets = [0, 10], sizes = [2, 10], strides = [1, 1]} : vector<2x40xf32> to vector<2x10xf32>
    %203 = arith.addf %201, %202 : vector<2x10xf32>
    %204 = vector.extract_strided_slice %199 {offsets = [0, 20], sizes = [2, 10], strides = [1, 1]} : vector<2x40xf32> to vector<2x10xf32>
    %205 = arith.addf %203, %204 : vector<2x10xf32>
    %206 = vector.extract_strided_slice %199 {offsets = [0, 30], sizes = [2, 10], strides = [1, 1]} : vector<2x40xf32> to vector<2x10xf32>
    %207 = arith.addf %205, %206 : vector<2x10xf32>
    %c0_173 = arith.constant 0 : index
    %c1024_174 = arith.constant 1024 : index
    %208 = vector.load %arg10[%c0_173, %c1024_174] : memref<2x2304xf32, #tpu.memory_space<vmem>>, vector<2x768xf32>
    %c0_175 = arith.constant 0 : index
    %c0_176 = arith.constant 0 : index
    %209 = vector.load %arg6[%c0_175, %c0_176] : memref<768x40xf32, #tpu.memory_space<vmem>>, vector<768x40xf32>
    %cst_177 = arith.constant dense<0.000000e+00> : vector<2x40xf32>
    %210 = tpu.matmul %208, %209, %cst_177 {dimension_numbers = #tpu.dot_dimension_numbers<[1], [0], [0], [1], [0, 0, 1, 1], [], []>} : vector<2x768xf32>, vector<768x40xf32>, vector<2x40xf32> -> vector<2x40xf32>
    %211 = vector.broadcast %8 : vector<1x40xf32> to vector<2x40xf32>
    %212 = arith.addf %210, %211 : vector<2x40xf32>
    %cst_178 = arith.constant 0.000000e+00 : f32
    %213 = vector.broadcast %cst_178 : f32 to vector<2x40xf32>
    %214 = arith.maximumf %212, %213 : vector<2x40xf32>
    %215 = vector.extract_strided_slice %214 {offsets = [0, 0], sizes = [2, 10], strides = [1, 1]} : vector<2x40xf32> to vector<2x10xf32>
    %216 = arith.addf %207, %215 : vector<2x10xf32>
    %217 = vector.extract_strided_slice %214 {offsets = [0, 10], sizes = [2, 10], strides = [1, 1]} : vector<2x40xf32> to vector<2x10xf32>
    %218 = arith.addf %216, %217 : vector<2x10xf32>
    %219 = vector.extract_strided_slice %214 {offsets = [0, 20], sizes = [2, 10], strides = [1, 1]} : vector<2x40xf32> to vector<2x10xf32>
    %220 = arith.addf %218, %219 : vector<2x10xf32>
    %221 = vector.extract_strided_slice %214 {offsets = [0, 30], sizes = [2, 10], strides = [1, 1]} : vector<2x40xf32> to vector<2x10xf32>
    %222 = arith.addf %220, %221 : vector<2x10xf32>
    %c0_179 = arith.constant 0 : index
    %c1536_180 = arith.constant 1536 : index
    %223 = vector.load %arg10[%c0_179, %c1536_180] : memref<2x2304xf32, #tpu.memory_space<vmem>>, vector<2x768xf32>
    %c0_181 = arith.constant 0 : index
    %c0_182 = arith.constant 0 : index
    %224 = vector.load %arg6[%c0_181, %c0_182] : memref<768x40xf32, #tpu.memory_space<vmem>>, vector<768x40xf32>
    %cst_183 = arith.constant dense<0.000000e+00> : vector<2x40xf32>
    %225 = tpu.matmul %223, %224, %cst_183 {dimension_numbers = #tpu.dot_dimension_numbers<[1], [0], [0], [1], [0, 0, 1, 1], [], []>} : vector<2x768xf32>, vector<768x40xf32>, vector<2x40xf32> -> vector<2x40xf32>
    %226 = vector.broadcast %8 : vector<1x40xf32> to vector<2x40xf32>
    %227 = arith.addf %225, %226 : vector<2x40xf32>
    %cst_184 = arith.constant 0.000000e+00 : f32
    %228 = vector.broadcast %cst_184 : f32 to vector<2x40xf32>
    %229 = arith.maximumf %227, %228 : vector<2x40xf32>
    %230 = vector.extract_strided_slice %229 {offsets = [0, 0], sizes = [2, 10], strides = [1, 1]} : vector<2x40xf32> to vector<2x10xf32>
    %231 = arith.addf %222, %230 : vector<2x10xf32>
    %232 = vector.extract_strided_slice %229 {offsets = [0, 10], sizes = [2, 10], strides = [1, 1]} : vector<2x40xf32> to vector<2x10xf32>
    %233 = arith.addf %231, %232 : vector<2x10xf32>
    %234 = vector.extract_strided_slice %229 {offsets = [0, 20], sizes = [2, 10], strides = [1, 1]} : vector<2x40xf32> to vector<2x10xf32>
    %235 = arith.addf %233, %234 : vector<2x10xf32>
    %236 = vector.extract_strided_slice %229 {offsets = [0, 30], sizes = [2, 10], strides = [1, 1]} : vector<2x40xf32> to vector<2x10xf32>
    %237 = arith.addf %235, %236 : vector<2x10xf32>
    %cst_185 = arith.constant 6.250000e-02 : f32
    %238 = vector.broadcast %cst_185 : f32 to vector<2x10xf32>
    %239 = arith.mulf %237, %238 : vector<2x10xf32>
    %c0_186 = arith.constant 0 : index
    %c0_187 = arith.constant 0 : index
    %240 = vector.load %arg8[%c0_186, %c0_187] : memref<2x10xf32, #tpu.memory_space<vmem>>, vector<2x10xf32>
    tpu.vector_store %arg8[%c0_186, %c0_187], %239 {strides = array<i32>} : memref<2x10xf32, #tpu.memory_space<vmem>>, vector<2x10xf32>,
    return
  }
  func.func @transform_0(%arg0: i32) -> (i32, i32) {
    %c0_i32 = arith.constant 0 : i32
    %c0_i32_0 = arith.constant 0 : i32
    return %arg0, %c0_i32 : i32, i32
  }
  func.func @transform_1(%arg0: i32) -> (i32, i32) {
    %c0_i32 = arith.constant 0 : i32
    %c0_i32_0 = arith.constant 0 : i32
    %c0_i32_1 = arith.constant 0 : i32
    return %c0_i32, %c0_i32_0 : i32, i32
  }
  func.func @transform_2(%arg0: i32) -> (i32, i32) {
    %c0_i32 = arith.constant 0 : i32
    %c0_i32_0 = arith.constant 0 : i32
    %c0_i32_1 = arith.constant 0 : i32
    return %c0_i32, %c0_i32_0 : i32, i32
  }
  func.func @transform_3(%arg0: i32) -> (i32, i32) {
    %c0_i32 = arith.constant 0 : i32
    %c0_i32_0 = arith.constant 0 : i32
    %c0_i32_1 = arith.constant 0 : i32
    return %c0_i32, %c0_i32_0 : i32, i32
  }
  func.func @transform_4(%arg0: i32) -> (i32, i32) {
    %c0_i32 = arith.constant 0 : i32
    %c0_i32_0 = arith.constant 0 : i32
    %c0_i32_1 = arith.constant 0 : i32
    return %c0_i32, %c0_i32_0 : i32, i32
  }
  func.func @transform_5(%arg0: i32) -> (i32, i32) {
    %c0_i32 = arith.constant 0 : i32
    %c0_i32_0 = arith.constant 0 : i32
    %c0_i32_1 = arith.constant 0 : i32
    return %c0_i32, %c0_i32_0 : i32, i32
  }
  func.func @transform_6(%arg0: i32) -> (i32, i32) {
    %c0_i32 = arith.constant 0 : i32
    %c0_i32_0 = arith.constant 0 : i32
    %c0_i32_1 = arith.constant 0 : i32
    return %c0_i32, %c0_i32_0 : i32, i32
  }
  func.func @transform_7(%arg0: i32) -> (i32, i32) {
    %c0_i32 = arith.constant 0 : i32
    %c0_i32_0 = arith.constant 0 : i32
    return %arg0, %c0_i32 : i32, i32
  }
}

</mosaic_0001>

<llo_original>
// kernel: mnist_cnn_forward.1
$region0: #{mnist_cnn_forward.1}
  #allocation0 [shape = 'u32[]', space=smem, size = 0x4, offset = 0x4, fixed_abs, tag = 'smem constant byte address 0x4 - core index']
  #allocation1 [shape = 'u32[72,128]{1,0:T(1,128)}', space=vmem, size = 0x9000, scoped, tag = 'internal scratch']
  #allocation2 [shape = 'f32[2,4096]{1,0:T(2,128)}', space=vmem, size = 0x8000, scoped, tag = 'scratch operand']
  #allocation3 [shape = 'f32[2,2304]{1,0:T(2,128)}', space=vmem, size = 0x4800, scoped, tag = 'scratch operand']
  %s0 = inlined_call_operand.vmem [shape: f32[2,1920], index: 0, kind: input, shape index: {}]
  %s1 = inlined_call_operand.vmem [shape: f32[192,256], index: 1, kind: input, shape index: {}]
  %s2 = inlined_call_operand.vmem [shape: f32[1,256], index: 2, kind: input, shape index: {}]
  %s3 = inlined_call_operand.hbm [shape: f32[768,256], index: 3, kind: input, shape index: {}]
  %s4 = inlined_call_operand.vmem [shape: f32[1,256], index: 4, kind: input, shape index: {}]
  %s5 = inlined_call_operand.vmem [shape: f32[768,40], index: 5, kind: input, shape index: {}]
  %s6 = inlined_call_operand.vmem [shape: f32[1,40], index: 6, kind: input, shape index: {}]
  %s7 = inlined_call_operand.hbm [shape: f32[2,10], index: 7, kind: output, shape index: {}]
  %s8 = sld [smem:[#allocation0]]
  $region42: #{mnist_cnn_forward.1} parent=0
    _
  %s10 = ssub.s32 1, %s8
  %s11 = scalar_select 0, %s10, %s8
  $region1: #{mnist_cnn_forward.1} parent=0
    #allocation4 [shape = 'u8[786432]{0}', space=vmem, size = 0xc0000, scoped, tag = 'input window, operand 3, single buffered']
    #allocation5 [shape = 's32[1]{0}', space=sflag, size = 0x4, scoped, tag = 'scoped memory for mnist_cnn_forward.1']
    #allocation6 [shape = 's32[1]{0}', space=sflag, size = 0x4, scoped, tag = 'scoped memory for mnist_cnn_forward.1']
    #allocation7 [shape = 'u8[1024]{0}', space=vmem, size = 0x400, scoped, tag = 'output window, operand 0, single buffered']
    %12 = vsyncpa [#allocation5], 0
    %13 = vsyncpa [#allocation6], 0
    // Predicated region
    $region2: #{mnist_cnn_forward.1} parent=1 // pred_check
      _
    $region3: #{mnist_cnn_forward.1} parent=1 // pred_check_branch
      %15 = sbr.rel (0) target = $region5
    $region4: #{mnist_cnn_forward.1} parent=1 // pred_region
      _
    $region5: #{mnist_cnn_forward.1} parent=1 // pred_fallthru
      _
    // Predicated region
    $region6: #{mnist_cnn_forward.1} parent=1 // pred_check
      _
    $region7: #{mnist_cnn_forward.1} parent=1 // pred_check_branch
      %17 = sbr.rel (0) target = $region9
    $region8: #{mnist_cnn_forward.1} parent=1 // pred_region
      _
    $region9: #{mnist_cnn_forward.1} parent=1 // pred_fallthru
      _
    // Predicated region
    $region10: #{mnist_cnn_forward.1} parent=1 // pred_check
      _
    $region11: #{mnist_cnn_forward.1} parent=1 // pred_check_branch
      %19 = sbr.rel (0) target = $region13
    $region12: #{mnist_cnn_forward.1} parent=1 // pred_region
      _
    $region13: #{mnist_cnn_forward.1} parent=1 // pred_fallthru
      _
    // Predicated region
    $region14: #{mnist_cnn_forward.1} parent=1 // pred_check
      _
    $region15: #{mnist_cnn_forward.1} parent=1 // pred_check_branch
      %21 = sbr.rel (0) target = $region17
    $region16: #{mnist_cnn_forward.1} parent=1 // pred_region
      %23 = vsyncadd [#allocation5], 0
      %s24 = sshll.u32 %s3, 4
      %s25 = int_to_ptr.hbm [resolvable:$true] %s24
      %s26 = sshll.u32 [#allocation4], 4
      %s27 = int_to_ptr.vmem [resolvable:$true] %s26
      %32 = dma.hbm_to_vmem [thread:$0]  %s25, 24576, %s27, [#allocation5], 256, 256, 16
    $region17: #{mnist_cnn_forward.1} parent=1 // pred_fallthru
      _
    // Predicated region
    $region18: #{mnist_cnn_forward.1} parent=1 // pred_check
      _
    $region19: #{mnist_cnn_forward.1} parent=1 // pred_check_branch
      %34 = sbr.rel (0) target = $region21
    $region20: #{mnist_cnn_forward.1} parent=1 // pred_region
      _
    $region21: #{mnist_cnn_forward.1} parent=1 // pred_fallthru
      _
    // Predicated region
    $region22: #{mnist_cnn_forward.1} parent=1 // pred_check
      _
    $region23: #{mnist_cnn_forward.1} parent=1 // pred_check_branch
      %36 = sbr.rel (0) target = $region25
    $region24: #{mnist_cnn_forward.1} parent=1 // pred_region
      _
    $region25: #{mnist_cnn_forward.1} parent=1 // pred_fallthru
      _
    // Predicated region
    $region26: #{mnist_cnn_forward.1} parent=1 // pred_check
      _
    $region27: #{mnist_cnn_forward.1} parent=1 // pred_check_branch
      %38 = sbr.rel (0) target = $region29
    $region28: #{mnist_cnn_forward.1} parent=1 // pred_region
      _
    $region29: #{mnist_cnn_forward.1} parent=1 // pred_fallthru
      _
    // Predicated region
    $region30: #{mnist_cnn_forward.1} parent=1 // pred_check
      _
    $region31: #{mnist_cnn_forward.1} parent=1 // pred_check_branch
      %40 = sbr.rel (0) target = $region33
    $region32: #{mnist_cnn_forward.1} parent=1 // pred_region
      %42 = dma.done [#allocation5], 24576
    $region33: #{mnist_cnn_forward.1} parent=1 // pred_fallthru
      _
    %43 = vst [vmem:[#allocation2] sm:$0xf] 0.0
    %44 = vst [vmem:[#allocation3] sm:$0xf] 0.0
    %45 = vst [vmem:[#allocation3 + $0x20] sm:$0xf] 0.0
    %v46 = vld [vmem:[%s2] sm:$0x3]
    %v47 = vld [vmem:[%s4] sm:$0x3]
    %v48 = vld [vmem:[%s6] sm:$0x1]
    %v49 = vld [vmem:[%s0] sm:$0xf]
    %v50 = vld [vmem:[%s1] sm:$0xff]
    %v51 = vld [vmem:[%s1 + $0x8] sm:$0xff]
    %v52 = vld [vmem:[%s1 + $0x10] sm:$0xff]
    %v53 = vld [vmem:[%s1 + $0x18] sm:$0xff]
    %v54 = vld [vmem:[%s1 + $0x20] sm:$0xff]
    %v55 = vld [vmem:[%s1 + $0x28] sm:$0xff]
    %v56 = vld [vmem:[%s1 + $0x30] sm:$0xff]
    %v57 = vld [vmem:[%s1 + $0x38] sm:$0xff]
    %v58 = vld [vmem:[%s1 + $0x40] sm:$0xff]
    %v59 = vld [vmem:[%s1 + $0x48] sm:$0xff]
    %v60 = vld [vmem:[%s1 + $0x50] sm:$0xff]
    %v61 = vld [vmem:[%s1 + $0x58] sm:$0xff]
    %v62 = vld [vmem:[%s1 + $0x60] sm:$0xff]
    %v63 = vld [vmem:[%s1 + $0x68] sm:$0xff]
    %v64 = vld [vmem:[%s1 + $0x70] sm:$0xff]
    %v65 = vld [vmem:[%s1 + $0x78] sm:$0xff]
    %v66 = vld [vmem:[%s1 + $0x80] sm:$0xff]
    %v67 = vld [vmem:[%s1 + $0x88] sm:$0xff]
    %v68 = vld [vmem:[%s1 + $0x90] sm:$0xff]
    %v69 = vld [vmem:[%s1 + $0x98] sm:$0xff]
    %v70 = vld [vmem:[%s1 + $0xa0] sm:$0xff]
    %v71 = vld [vmem:[%s1 + $0xa8] sm:$0xff]
    %v72 = vld [vmem:[%s1 + $0xb0] sm:$0xff]
    %v73 = vld [vmem:[%s1 + $0xb8] sm:$0xff]
    %v74 = vld [vmem:[%s1 + $0xc0] sm:$0xff]
    %v75 = vld [vmem:[%s1 + $0xc8] sm:$0xff]
    %v76 = vld [vmem:[%s1 + $0xd0] sm:$0xff]
    %v77 = vld [vmem:[%s1 + $0xd8] sm:$0xff]
    %v78 = vld [vmem:[%s1 + $0xe0] sm:$0xff]
    %v79 = vld [vmem:[%s1 + $0xe8] sm:$0xff]
    %v80 = vld [vmem:[%s1 + $0xf0] sm:$0xff]
    %v81 = vld [vmem:[%s1 + $0xf8] sm:$0xff]
    %v82 = vld [vmem:[%s1 + $0x100] sm:$0xff]
    %v83 = vld [vmem:[%s1 + $0x108] sm:$0xff]
    %v84 = vld [vmem:[%s1 + $0x110] sm:$0xff]
    %v85 = vld [vmem:[%s1 + $0x118] sm:$0xff]
    %v86 = vld [vmem:[%s1 + $0x120] sm:$0xff]
    %v87 = vld [vmem:[%s1 + $0x128] sm:$0xff]
    %v88 = vld [vmem:[%s1 + $0x130] sm:$0xff]
    %v89 = vld [vmem:[%s1 + $0x138] sm:$0xff]
    %v90 = vld [vmem:[%s1 + $0x140] sm:$0xff]
    %v91 = vld [vmem:[%s1 + $0x148] sm:$0xff]
    %v92 = vld [vmem:[%s1 + $0x150] sm:$0xff]
    %v93 = vld [vmem:[%s1 + $0x158] sm:$0xff]
    %v94 = vld [vmem:[%s1 + $0x160] sm:$0xff]
    %v95 = vld [vmem:[%s1 + $0x168] sm:$0xff]
    %v96 = vld [vmem:[%s1 + $0x170] sm:$0xff]
    %v97 = vld [vmem:[%s1 + $0x178] sm:$0xff]
    %v99 = vperm.slane %v46, 0
    %v100 = vperm.slane %v46, 1
    %104 = vst [vmem:[#allocation1] ss:$4 sm:$0xff] %v49
    %v105 = vld.sshfl [vmem:[#allocation1] sm:$0xff pattern:$0x73625140]
    %v106 = vld.sshfl [vmem:[#allocation1 + $0x8] sm:$0xff pattern:$0x73625140]
    %vm108 = vcmask 523264
    %v109 = vsel %vm108, %v106, 0
    %111 = vmatpush.msra.mxu0 %v80
    %112 = vmatpush.msra.mxu0 %v78
    %113 = vmatpush.msra.mxu0 %v76
    %114 = vmatpush.msra.mxu0 %v74
    %115 = vmatpush.msra.mxu0 %v72
    %116 = vmatpush.msra.mxu0 %v70
    %117 = vmatpush.msra.mxu0 %v68
    %118 = vmatpush.msra.mxu0 %v66
    %119 = vmatpush.msra.mxu0 %v64
    %120 = vmatpush.msra.mxu0 %v62
    %121 = vmatpush.msra.mxu0 %v60
    %122 = vmatpush.msra.mxu0 %v58
    %123 = vmatpush.msra.mxu0 %v56
    %124 = vmatpush.msra.mxu0 %v54
    %125 = vmatpush.msra.mxu0 %v52
    %126 = vmatpush.msra.mxu0 %v50
    %127 = vmatmul.f32.gmra.mxu0 %v105
    %v128 = vpop.f32.mrf.mxu0
    %v129 = vadd.f32 %v99, %v128
    %130 = vdwg.mxu0
    %131 = vmatpush.msra.mxu0 0.0
    %132 = vmatpush.msra.mxu0 0.0
    %133 = vmatpush.msra.mxu0 0.0
    %134 = vmatpush.msra.mxu0 0.0
    %135 = vmatpush.msra.mxu0 0.0
    %136 = vmatpush.msra.mxu0 0.0
    %137 = vmatpush.msra.mxu0 0.0
    %138 = vmatpush.msra.mxu0 0.0
    %139 = vmatpush.msra.mxu0 %v96
    %140 = vmatpush.msra.mxu0 %v94
    %141 = vmatpush.msra.mxu0 %v92
    %142 = vmatpush.msra.mxu0 %v90
    %143 = vmatpush.msra.mxu0 %v88
    %144 = vmatpush.msra.mxu0 %v86
    %145 = vmatpush.msra.mxu0 %v84
    %146 = vmatpush.msra.mxu0 %v82
    %147 = vmatmul.f32.gmra.mxu0 %v109
    %v148 = vpop.f32.mrf.mxu0
    %v149 = vadd.f32 %v129, %v148
    %150 = vdwg.mxu0
    %151 = vmatpush.msra.mxu0 %v81
    %152 = vmatpush.msra.mxu0 %v79
    %153 = vmatpush.msra.mxu0 %v77
    %154 = vmatpush.msra.mxu0 %v75
    %155 = vmatpush.msra.mxu0 %v73
    %156 = vmatpush.msra.mxu0 %v71
    %157 = vmatpush.msra.mxu0 %v69
    %158 = vmatpush.msra.mxu0 %v67
    %159 = vmatpush.msra.mxu0 %v65
    %160 = vmatpush.msra.mxu0 %v63
    %161 = vmatpush.msra.mxu0 %v61
    %162 = vmatpush.msra.mxu0 %v59
    %163 = vmatpush.msra.mxu0 %v57
    %164 = vmatpush.msra.mxu0 %v55
    %165 = vmatpush.msra.mxu0 %v53
    %166 = vmatpush.msra.mxu0 %v51
    %167 = vmatmul.f32.gmra.mxu0 %v105
    %v168 = vpop.f32.mrf.mxu0
    %v169 = vadd.f32 %v100, %v168
    %170 = vdwg.mxu0
    %171 = vmatpush.msra.mxu0 0.0
    %172 = vmatpush.msra.mxu0 0.0
    %173 = vmatpush.msra.mxu0 0.0
    %174 = vmatpush.msra.mxu0 0.0
    %175 = vmatpush.msra.mxu0 0.0
    %176 = vmatpush.msra.mxu0 0.0
    %177 = vmatpush.msra.mxu0 0.0
    %178 = vmatpush.msra.mxu0 0.0
    %179 = vmatpush.msra.mxu0 %v97
    %180 = vmatpush.msra.mxu0 %v95
    %181 = vmatpush.msra.mxu0 %v93
    %182 = vmatpush.msra.mxu0 %v91
    %183 = vmatpush.msra.mxu0 %v89
    %184 = vmatpush.msra.mxu0 %v87
    %185 = vmatpush.msra.mxu0 %v85
    %186 = vmatpush.msra.mxu0 %v83
    %187 = vmatmul.f32.gmra.mxu0 %v109
    %v188 = vpop.f32.mrf.mxu0
    %v189 = vadd.f32 %v169, %v188
    %190 = vdwg.mxu0
    %v191 = vmax.f32 %v149, 0.0
    %v192 = vmax.f32 %v189, 0.0
    %v195 = vrot.slane %v192, 6
    %vm196 = vcmask 1041408
    %v197 = vsel %vm196, %v191, %v195
    %199 = vst [vmem:[#allocation2 + $0x4] sm:$0xf] %v197
    %v200 = vld [vmem:[%s0 + $0x2] sm:$0xf]
    %v201 = vld [vmem:[%s1] sm:$0xff]
    %v202 = vld [vmem:[%s1 + $0x8] sm:$0xff]
    %v203 = vld [vmem:[%s1 + $0x10] sm:$0xff]
    %v204 = vld [vmem:[%s1 + $0x18] sm:$0xff]
    %v205 = vld [vmem:[%s1 + $0x20] sm:$0xff]
    %v206 = vld [vmem:[%s1 + $0x28] sm:$0xff]
    %v207 = vld [vmem:[%s1 + $0x30] sm:$0xff]
    %v208 = vld [vmem:[%s1 + $0x38] sm:$0xff]
    %v209 = vld [vmem:[%s1 + $0x40] sm:$0xff]
    %v210 = vld [vmem:[%s1 + $0x48] sm:$0xff]
    %v211 = vld [vmem:[%s1 + $0x50] sm:$0xff]
    %v212 = vld [vmem:[%s1 + $0x58] sm:$0xff]
    %v213 = vld [vmem:[%s1 + $0x60] sm:$0xff]
    %v214 = vld [vmem:[%s1 + $0x68] sm:$0xff]
    %v215 = vld [vmem:[%s1 + $0x70] sm:$0xff]
    %v216 = vld [vmem:[%s1 + $0x78] sm:$0xff]
    %v217 = vld [vmem:[%s1 + $0x80] sm:$0xff]
    %v218 = vld [vmem:[%s1 + $0x88] sm:$0xff]
    %v219 = vld [vmem:[%s1 + $0x90] sm:$0xff]
    %v220 = vld [vmem:[%s1 + $0x98] sm:$0xff]
    %v221 = vld [vmem:[%s1 + $0xa0] sm:$0xff]
    %v222 = vld [vmem:[%s1 + $0xa8] sm:$0xff]
    %v223 = vld [vmem:[%s1 + $0xb0] sm:$0xff]
    %v224 = vld [vmem:[%s1 + $0xb8] sm:$0xff]
    %v225 = vld [vmem:[%s1 + $0xc0] sm:$0xff]
    %v226 = vld [vmem:[%s1 + $0xc8] sm:$0xff]
    %v227 = vld [vmem:[%s1 + $0xd0] sm:$0xff]
    %v228 = vld [vmem:[%s1 + $0xd8] sm:$0xff]
    %v229 = vld [vmem:[%s1 + $0xe0] sm:$0xff]
    %v230 = vld [vmem:[%s1 + $0xe8] sm:$0xff]
    %v231 = vld [vmem:[%s1 + $0xf0] sm:$0xff]
    %v232 = vld [vmem:[%s1 + $0xf8] sm:$0xff]
    %v233 = vld [vmem:[%s1 + $0x100] sm:$0xff]
    %v234 = vld [vmem:[%s1 + $0x108] sm:$0xff]
    %v235 = vld [vmem:[%s1 + $0x110] sm:$0xff]
    %v236 = vld [vmem:[%s1 + $0x118] sm:$0xff]
    %v237 = vld [vmem:[%s1 + $0x120] sm:$0xff]
    %v238 = vld [vmem:[%s1 + $0x128] sm:$0xff]
    %v239 = vld [vmem:[%s1 + $0x130] sm:$0xff]
    %v240 = vld [vmem:[%s1 + $0x138] sm:$0xff]
    %v241 = vld [vmem:[%s1 + $0x140] sm:$0xff]
    %v242 = vld [vmem:[%s1 + $0x148] sm:$0xff]
    %v243 = vld [vmem:[%s1 + $0x150] sm:$0xff]
    %v244 = vld [vmem:[%s1 + $0x158] sm:$0xff]
    %v245 = vld [vmem:[%s1 + $0x160] sm:$0xff]
    %v246 = vld [vmem:[%s1 + $0x168] sm:$0xff]
    %v247 = vld [vmem:[%s1 + $0x170] sm:$0xff]
    %v248 = vld [vmem:[%s1 + $0x178] sm:$0xff]
    %250 = vst [vmem:[#allocation1] ss:$4 sm:$0xff] %v200
    %v251 = vld.sshfl [vmem:[#allocation1] sm:$0xff pattern:$0x73625140]
    %v252 = vld.sshfl [vmem:[#allocation1 + $0x8] sm:$0xff pattern:$0x73625140]
    %v254 = vsel %vm108, %v252, 0
    %256 = vmatpush.msra.mxu0 %v231
    %257 = vmatpush.msra.mxu0 %v229
    %258 = vmatpush.msra.mxu0 %v227
    %259 = vmatpush.msra.mxu0 %v225
    %260 = vmatpush.msra.mxu0 %v223
    %261 = vmatpush.msra.mxu0 %v221
    %262 = vmatpush.msra.mxu0 %v219
    %263 = vmatpush.msra.mxu0 %v217
    %264 = vmatpush.msra.mxu0 %v215
    %265 = vmatpush.msra.mxu0 %v213
    %266 = vmatpush.msra.mxu0 %v211
    %267 = vmatpush.msra.mxu0 %v209
    %268 = vmatpush.msra.mxu0 %v207
    %269 = vmatpush.msra.mxu0 %v205
    %270 = vmatpush.msra.mxu0 %v203
    %271 = vmatpush.msra.mxu0 %v201
    %272 = vmatmul.f32.gmra.mxu0 %v251
    %v273 = vpop.f32.mrf.mxu0
    %v274 = vadd.f32 %v99, %v273
    %275 = vdwg.mxu0
    %276 = vmatpush.msra.mxu0 0.0
    %277 = vmatpush.msra.mxu0 0.0
    %278 = vmatpush.msra.mxu0 0.0
    %279 = vmatpush.msra.mxu0 0.0
    %280 = vmatpush.msra.mxu0 0.0
    %281 = vmatpush.msra.mxu0 0.0
    %282 = vmatpush.msra.mxu0 0.0
    %283 = vmatpush.msra.mxu0 0.0
    %284 = vmatpush.msra.mxu0 %v247
    %285 = vmatpush.msra.mxu0 %v245
    %286 = vmatpush.msra.mxu0 %v243
    %287 = vmatpush.msra.mxu0 %v241
    %288 = vmatpush.msra.mxu0 %v239
    %289 = vmatpush.msra.mxu0 %v237
    %290 = vmatpush.msra.mxu0 %v235
    %291 = vmatpush.msra.mxu0 %v233
    %292 = vmatmul.f32.gmra.mxu0 %v254
    %v293 = vpop.f32.mrf.mxu0
    %v294 = vadd.f32 %v274, %v293
    %295 = vdwg.mxu0
    %296 = vmatpush.msra.mxu0 %v232
    %297 = vmatpush.msra.mxu0 %v230
    %298 = vmatpush.msra.mxu0 %v228
    %299 = vmatpush.msra.mxu0 %v226
    %300 = vmatpush.msra.mxu0 %v224
    %301 = vmatpush.msra.mxu0 %v222
    %302 = vmatpush.msra.mxu0 %v220
    %303 = vmatpush.msra.mxu0 %v218
    %304 = vmatpush.msra.mxu0 %v216
    %305 = vmatpush.msra.mxu0 %v214
    %306 = vmatpush.msra.mxu0 %v212
    %307 = vmatpush.msra.mxu0 %v210
    %308 = vmatpush.msra.mxu0 %v208
    %309 = vmatpush.msra.mxu0 %v206
    %310 = vmatpush.msra.mxu0 %v204
    %311 = vmatpush.msra.mxu0 %v202
    %312 = vmatmul.f32.gmra.mxu0 %v251
    %v313 = vpop.f32.mrf.mxu0
    %v314 = vadd.f32 %v100, %v313
    %315 = vdwg.mxu0
    %316 = vmatpush.msra.mxu0 0.0
    %317 = vmatpush.msra.mxu0 0.0
    %318 = vmatpush.msra.mxu0 0.0
    %319 = vmatpush.msra.mxu0 0.0
    %320 = vmatpush.msra.mxu0 0.0
    %321 = vmatpush.msra.mxu0 0.0
    %322 = vmatpush.msra.mxu0 0.0
    %323 = vmatpush.msra.mxu0 0.0
    %324 = vmatpush.msra.mxu0 %v248
    %325 = vmatpush.msra.mxu0 %v246
    %326 = vmatpush.msra.mxu0 %v244
    %327 = vmatpush.msra.mxu0 %v242
    %328 = vmatpush.msra.mxu0 %v240
    %329 = vmatpush.msra.mxu0 %v238
    %330 = vmatpush.msra.mxu0 %v236
    %331 = vmatpush.msra.mxu0 %v234
    %332 = vmatmul.f32.gmra.mxu0 %v254
    %v333 = vpop.f32.mrf.mxu0
    %v334 = vadd.f32 %v314, %v333
    %335 = vdwg.mxu0
    %v336 = vmax.f32 %v294, 0.0
    %v337 = vmax.f32 %v334, 0.0
    %v340 = vrot.slane %v337, 6
    %v341 = vsel %vm196, %v336, %v340
    %343 = vst [vmem:[#allocation2 + $0x8] sm:$0xf] %v341
    %v344 = vld [vmem:[%s0 + $0x4] sm:$0xf]
    %v345 = vld [vmem:[%s1] sm:$0xff]
    %v346 = vld [vmem:[%s1 + $0x8] sm:$0xff]
    %v347 = vld [vmem:[%s1 + $0x10] sm:$0xff]
    %v348 = vld [vmem:[%s1 + $0x18] sm:$0xff]
    %v349 = vld [vmem:[%s1 + $0x20] sm:$0xff]
    %v350 = vld [vmem:[%s1 + $0x28] sm:$0xff]
    %v351 = vld [vmem:[%s1 + $0x30] sm:$0xff]
    %v352 = vld [vmem:[%s1 + $0x38] sm:$0xff]
    %v353 = vld [vmem:[%s1 + $0x40] sm:$0xff]
    %v354 = vld [vmem:[%s1 + $0x48] sm:$0xff]
    %v355 = vld [vmem:[%s1 + $0x50] sm:$0xff]
    %v356 = vld [vmem:[%s1 + $0x58] sm:$0xff]
    %v357 = vld [vmem:[%s1 + $0x60] sm:$0xff]
    %v358 = vld [vmem:[%s1 + $0x68] sm:$0xff]
    %v359 = vld [vmem:[%s1 + $0x70] sm:$0xff]
    %v360 = vld [vmem:[%s1 + $0x78] sm:$0xff]
    %v361 = vld [vmem:[%s1 + $0x80] sm:$0xff]
    %v362 = vld [vmem:[%s1 + $0x88] sm:$0xff]
    %v363 = vld [vmem:[%s1 + $0x90] sm:$0xff]
    %v364 = vld [vmem:[%s1 + $0x98] sm:$0xff]
    %v365 = vld [vmem:[%s1 + $0xa0] sm:$0xff]
    %v366 = vld [vmem:[%s1 + $0xa8] sm:$0xff]
    %v367 = vld [vmem:[%s1 + $0xb0] sm:$0xff]
    %v368 = vld [vmem:[%s1 + $0xb8] sm:$0xff]
    %v369 = vld [vmem:[%s1 + $0xc0] sm:$0xff]
    %v370 = vld [vmem:[%s1 + $0xc8] sm:$0xff]
    %v371 = vld [vmem:[%s1 + $0xd0] sm:$0xff]
    %v372 = vld [vmem:[%s1 + $0xd8] sm:$0xff]
    %v373 = vld [vmem:[%s1 + $0xe0] sm:$0xff]
    %v374 = vld [vmem:[%s1 + $0xe8] sm:$0xff]
    %v375 = vld [vmem:[%s1 + $0xf0] sm:$0xff]
    %v376 = vld [vmem:[%s1 + $0xf8] sm:$0xff]
    %v377 = vld [vmem:[%s1 + $0x100] sm:$0xff]
    %v378 = vld [vmem:[%s1 + $0x108] sm:$0xff]
    %v379 = vld [vmem:[%s1 + $0x110] sm:$0xff]
    %v380 = vld [vmem:[%s1 + $0x118] sm:$0xff]
    %v381 = vld [vmem:[%s1 + $0x120] sm:$0xff]
    %v382 = vld [vmem:[%s1 + $0x128] sm:$0xff]
    %v383 = vld [vmem:[%s1 + $0x130] sm:$0xff]
    %v384 = vld [vmem:[%s1 + $0x138] sm:$0xff]
    %v385 = vld [vmem:[%s1 + $0x140] sm:$0xff]
    %v386 = vld [vmem:[%s1 + $0x148] sm:$0xff]
    %v387 = vld [vmem:[%s1 + $0x150] sm:$0xff]
    %v388 = vld [vmem:[%s1 + $0x158] sm:$0xff]
    %v389 = vld [vmem:[%s1 + $0x160] sm:$0xff]
    %v390 = vld [vmem:[%s1 + $0x168] sm:$0xff]
    %v391 = vld [vmem:[%s1 + $0x170] sm:$0xff]
    %v392 = vld [vmem:[%s1 + $0x178] sm:$0xff]
    %394 = vst [vmem:[#allocation1] ss:$4 sm:$0xff] %v344
    %v395 = vld.sshfl [vmem:[#allocation1] sm:$0xff pattern:$0x73625140]
    %v396 = vld.sshfl [vmem:[#allocation1 + $0x8] sm:$0xff pattern:$0x73625140]
    %v398 = vsel %vm108, %v396, 0
    %400 = vmatpush.msra.mxu0 %v375
    %401 = vmatpush.msra.mxu0 %v373
    %402 = vmatpush.msra.mxu0 %v371
    %403 = vmatpush.msra.mxu0 %v369
    %404 = vmatpush.msra.mxu0 %v367
    %405 = vmatpush.msra.mxu0 %v365
    %406 = vmatpush.msra.mxu0 %v363
    %407 = vmatpush.msra.mxu0 %v361
    %408 = vmatpush.msra.mxu0 %v359
    %409 = vmatpush.msra.mxu0 %v357
    %410 = vmatpush.msra.mxu0 %v355
    %411 = vmatpush.msra.mxu0 %v353
    %412 = vmatpush.msra.mxu0 %v351
    %413 = vmatpush.msra.mxu0 %v349
    %414 = vmatpush.msra.mxu0 %v347
    %415 = vmatpush.msra.mxu0 %v345
    %416 = vmatmul.f32.gmra.mxu0 %v395
    %v417 = vpop.f32.mrf.mxu0
    %v418 = vadd.f32 %v99, %v417
    %419 = vdwg.mxu0
    %420 = vmatpush.msra.mxu0 0.0
    %421 = vmatpush.msra.mxu0 0.0
    %422 = vmatpush.msra.mxu0 0.0
    %423 = vmatpush.msra.mxu0 0.0
    %424 = vmatpush.msra.mxu0 0.0
    %425 = vmatpush.msra.mxu0 0.0
    %426 = vmatpush.msra.mxu0 0.0
    %427 = vmatpush.msra.mxu0 0.0
    %428 = vmatpush.msra.mxu0 %v391
    %429 = vmatpush.msra.mxu0 %v389
    %430 = vmatpush.msra.mxu0 %v387
    %431 = vmatpush.msra.mxu0 %v385
    %432 = vmatpush.msra.mxu0 %v383
    %433 = vmatpush.msra.mxu0 %v381
    %434 = vmatpush.msra.mxu0 %v379
    %435 = vmatpush.msra.mxu0 %v377
    %436 = vmatmul.f32.gmra.mxu0 %v398
    %v437 = vpop.f32.mrf.mxu0
    %v438 = vadd.f32 %v418, %v437
    %439 = vdwg.mxu0
    %440 = vmatpush.msra.mxu0 %v376
    %441 = vmatpush.msra.mxu0 %v374
    %442 = vmatpush.msra.mxu0 %v372
    %443 = vmatpush.msra.mxu0 %v370
    %444 = vmatpush.msra.mxu0 %v368
    %445 = vmatpush.msra.mxu0 %v366
    %446 = vmatpush.msra.mxu0 %v364
    %447 = vmatpush.msra.mxu0 %v362
    %448 = vmatpush.msra.mxu0 %v360
    %449 = vmatpush.msra.mxu0 %v358
    %450 = vmatpush.msra.mxu0 %v356
    %451 = vmatpush.msra.mxu0 %v354
    %452 = vmatpush.msra.mxu0 %v352
    %453 = vmatpush.msra.mxu0 %v350
    %454 = vmatpush.msra.mxu0 %v348
    %455 = vmatpush.msra.mxu0 %v346
    %456 = vmatmul.f32.gmra.mxu0 %v395
    %v457 = vpop.f32.mrf.mxu0
    %v458 = vadd.f32 %v100, %v457
    %459 = vdwg.mxu0
    %460 = vmatpush.msra.mxu0 0.0
    %461 = vmatpush.msra.mxu0 0.0
    %462 = vmatpush.msra.mxu0 0.0
    %463 = vmatpush.msra.mxu0 0.0
    %464 = vmatpush.msra.mxu0 0.0
    %465 = vmatpush.msra.mxu0 0.0
    %466 = vmatpush.msra.mxu0 0.0
    %467 = vmatpush.msra.mxu0 0.0
    %468 = vmatpush.msra.mxu0 %v392
    %469 = vmatpush.msra.mxu0 %v390
    %470 = vmatpush.msra.mxu0 %v388
    %471 = vmatpush.msra.mxu0 %v386
    %472 = vmatpush.msra.mxu0 %v384
    %473 = vmatpush.msra.mxu0 %v382
    %474 = vmatpush.msra.mxu0 %v380
    %475 = vmatpush.msra.mxu0 %v378
    %476 = vmatmul.f32.gmra.mxu0 %v398
    %v477 = vpop.f32.mrf.mxu0
    %v478 = vadd.f32 %v458, %v477
    %479 = vdwg.mxu0
    %v480 = vmax.f32 %v438, 0.0
    %v481 = vmax.f32 %v478, 0.0
    %v484 = vrot.slane %v481, 6
    %v485 = vsel %vm196, %v480, %v484
    %487 = vst [vmem:[#allocation2 + $0xc] sm:$0xf] %v485
    %v488 = vld [vmem:[%s0 + $0x6] sm:$0xf]
    %v489 = vld [vmem:[%s1] sm:$0xff]
    %v490 = vld [vmem:[%s1 + $0x8] sm:$0xff]
    %v491 = vld [vmem:[%s1 + $0x10] sm:$0xff]
    %v492 = vld [vmem:[%s1 + $0x18] sm:$0xff]
    %v493 = vld [vmem:[%s1 + $0x20] sm:$0xff]
    %v494 = vld [vmem:[%s1 + $0x28] sm:$0xff]
    %v495 = vld [vmem:[%s1 + $0x30] sm:$0xff]
    %v496 = vld [vmem:[%s1 + $0x38] sm:$0xff]
    %v497 = vld [vmem:[%s1 + $0x40] sm:$0xff]
    %v498 = vld [vmem:[%s1 + $0x48] sm:$0xff]
    %v499 = vld [vmem:[%s1 + $0x50] sm:$0xff]
    %v500 = vld [vmem:[%s1 + $0x58] sm:$0xff]
    %v501 = vld [vmem:[%s1 + $0x60] sm:$0xff]
    %v502 = vld [vmem:[%s1 + $0x68] sm:$0xff]
    %v503 = vld [vmem:[%s1 + $0x70] sm:$0xff]
    %v504 = vld [vmem:[%s1 + $0x78] sm:$0xff]
    %v505 = vld [vmem:[%s1 + $0x80] sm:$0xff]
    %v506 = vld [vmem:[%s1 + $0x88] sm:$0xff]
    %v507 = vld [vmem:[%s1 + $0x90] sm:$0xff]
    %v508 = vld [vmem:[%s1 + $0x98] sm:$0xff]
    %v509 = vld [vmem:[%s1 + $0xa0] sm:$0xff]
    %v510 = vld [vmem:[%s1 + $0xa8] sm:$0xff]
    %v511 = vld [vmem:[%s1 + $0xb0] sm:$0xff]
    %v512 = vld [vmem:[%s1 + $0xb8] sm:$0xff]
    %v513 = vld [vmem:[%s1 + $0xc0] sm:$0xff]
    %v514 = vld [vmem:[%s1 + $0xc8] sm:$0xff]
    %v515 = vld [vmem:[%s1 + $0xd0] sm:$0xff]
    %v516 = vld [vmem:[%s1 + $0xd8] sm:$0xff]
    %v517 = vld [vmem:[%s1 + $0xe0] sm:$0xff]
    %v518 = vld [vmem:[%s1 + $0xe8] sm:$0xff]
    %v519 = vld [vmem:[%s1 + $0xf0] sm:$0xff]
    %v520 = vld [vmem:[%s1 + $0xf8] sm:$0xff]
    %v521 = vld [vmem:[%s1 + $0x100] sm:$0xff]
    %v522 = vld [vmem:[%s1 + $0x108] sm:$0xff]
    %v523 = vld [vmem:[%s1 + $0x110] sm:$0xff]
    %v524 = vld [vmem:[%s1 + $0x118] sm:$0xff]
    %v525 = vld [vmem:[%s1 + $0x120] sm:$0xff]
    %v526 = vld [vmem:[%s1 + $0x128] sm:$0xff]
    %v527 = vld [vmem:[%s1 + $0x130] sm:$0xff]
    %v528 = vld [vmem:[%s1 + $0x138] sm:$0xff]
    %v529 = vld [vmem:[%s1 + $0x140] sm:$0xff]
    %v530 = vld [vmem:[%s1 + $0x148] sm:$0xff]
    %v531 = vld [vmem:[%s1 + $0x150] sm:$0xff]
    %v532 = vld [vmem:[%s1 + $0x158] sm:$0xff]
    %v533 = vld [vmem:[%s1 + $0x160] sm:$0xff]
    %v534 = vld [vmem:[%s1 + $0x168] sm:$0xff]
    %v535 = vld [vmem:[%s1 + $0x170] sm:$0xff]
    %v536 = vld [vmem:[%s1 + $0x178] sm:$0xff]
    %538 = vst [vmem:[#allocation1] ss:$4 sm:$0xff] %v488
    %v539 = vld.sshfl [vmem:[#allocation1] sm:$0xff pattern:$0x73625140]
    %v540 = vld.sshfl [vmem:[#allocation1 + $0x8] sm:$0xff pattern:$0x73625140]
    %v542 = vsel %vm108, %v540, 0
    %544 = vmatpush.msra.mxu0 %v519
    %545 = vmatpush.msra.mxu0 %v517
    %546 = vmatpush.msra.mxu0 %v515
    %547 = vmatpush.msra.mxu0 %v513
    %548 = vmatpush.msra.mxu0 %v511
    %549 = vmatpush.msra.mxu0 %v509
    %550 = vmatpush.msra.mxu0 %v507
    %551 = vmatpush.msra.mxu0 %v505
    %552 = vmatpush.msra.mxu0 %v503
    %553 = vmatpush.msra.mxu0 %v501
    %554 = vmatpush.msra.mxu0 %v499
    %555 = vmatpush.msra.mxu0 %v497
    %556 = vmatpush.msra.mxu0 %v495
    %557 = vmatpush.msra.mxu0 %v493
    %558 = vmatpush.msra.mxu0 %v491
    %559 = vmatpush.msra.mxu0 %v489
    %560 = vmatmul.f32.gmra.mxu0 %v539
    %v561 = vpop.f32.mrf.mxu0
    %v562 = vadd.f32 %v99, %v561
    %563 = vdwg.mxu0
    %564 = vmatpush.msra.mxu0 0.0
    %565 = vmatpush.msra.mxu0 0.0
    %566 = vmatpush.msra.mxu0 0.0
    %567 = vmatpush.msra.mxu0 0.0
    %568 = vmatpush.msra.mxu0 0.0
    %569 = vmatpush.msra.mxu0 0.0
    %570 = vmatpush.msra.mxu0 0.0
    %571 = vmatpush.msra.mxu0 0.0
    %572 = vmatpush.msra.mxu0 %v535
    %573 = vmatpush.msra.mxu0 %v533
    %574 = vmatpush.msra.mxu0 %v531
    %575 = vmatpush.msra.mxu0 %v529
    %576 = vmatpush.msra.mxu0 %v527
    %577 = vmatpush.msra.mxu0 %v525
    %578 = vmatpush.msra.mxu0 %v523
    %579 = vmatpush.msra.mxu0 %v521
    %580 = vmatmul.f32.gmra.mxu0 %v542
    %v581 = vpop.f32.mrf.mxu0
    %v582 = vadd.f32 %v562, %v581
    %583 = vdwg.mxu0
    %584 = vmatpush.msra.mxu0 %v520
    %585 = vmatpush.msra.mxu0 %v518
    %586 = vmatpush.msra.mxu0 %v516
    %587 = vmatpush.msra.mxu0 %v514
    %588 = vmatpush.msra.mxu0 %v512
    %589 = vmatpush.msra.mxu0 %v510
    %590 = vmatpush.msra.mxu0 %v508
    %591 = vmatpush.msra.mxu0 %v506
    %592 = vmatpush.msra.mxu0 %v504
    %593 = vmatpush.msra.mxu0 %v502
    %594 = vmatpush.msra.mxu0 %v500
    %595 = vmatpush.msra.mxu0 %v498
    %596 = vmatpush.msra.mxu0 %v496
    %597 = vmatpush.msra.mxu0 %v494
    %598 = vmatpush.msra.mxu0 %v492
    %599 = vmatpush.msra.mxu0 %v490
    %600 = vmatmul.f32.gmra.mxu0 %v539
    %v601 = vpop.f32.mrf.mxu0
    %v602 = vadd.f32 %v100, %v601
    %603 = vdwg.mxu0
    %604 = vmatpush.msra.mxu0 0.0
    %605 = vmatpush.msra.mxu0 0.0
    %606 = vmatpush.msra.mxu0 0.0
    %607 = vmatpush.msra.mxu0 0.0
    %608 = vmatpush.msra.mxu0 0.0
    %609 = vmatpush.msra.mxu0 0.0
    %610 = vmatpush.msra.mxu0 0.0
    %611 = vmatpush.msra.mxu0 0.0
    %612 = vmatpush.msra.mxu0 %v536
    %613 = vmatpush.msra.mxu0 %v534
    %614 = vmatpush.msra.mxu0 %v532
    %615 = vmatpush.msra.mxu0 %v530
    %616 = vmatpush.msra.mxu0 %v528
    %617 = vmatpush.msra.mxu0 %v526
    %618 = vmatpush.msra.mxu0 %v524
    %619 = vmatpush.msra.mxu0 %v522
    %620 = vmatmul.f32.gmra.mxu0 %v542
    %v621 = vpop.f32.mrf.mxu0
    %v622 = vadd.f32 %v602, %v621
    %623 = vdwg.mxu0
    %v624 = vmax.f32 %v582, 0.0
    %v625 = vmax.f32 %v622, 0.0
    %v628 = vrot.slane %v625, 6
    %v629 = vsel %vm196, %v624, %v628
    %631 = vst [vmem:[#allocation2 + $0x10] sm:$0xf] %v629
    %v632 = vld [vmem:[%s0 + $0x8] sm:$0xf]
    %v633 = vld [vmem:[%s1] sm:$0xff]
    %v634 = vld [vmem:[%s1 + $0x8] sm:$0xff]
    %v635 = vld [vmem:[%s1 + $0x10] sm:$0xff]
    %v636 = vld [vmem:[%s1 + $0x18] sm:$0xff]
    %v637 = vld [vmem:[%s1 + $0x20] sm:$0xff]
    %v638 = vld [vmem:[%s1 + $0x28] sm:$0xff]
    %v639 = vld [vmem:[%s1 + $0x30] sm:$0xff]
    %v640 = vld [vmem:[%s1 + $0x38] sm:$0xff]
    %v641 = vld [vmem:[%s1 + $0x40] sm:$0xff]
    %v642 = vld [vmem:[%s1 + $0x48] sm:$0xff]
    %v643 = vld [vmem:[%s1 + $0x50] sm:$0xff]
    %v644 = vld [vmem:[%s1 + $0x58] sm:$0xff]
    %v645 = vld [vmem:[%s1 + $0x60] sm:$0xff]
    %v646 = vld [vmem:[%s1 + $0x68] sm:$0xff]
    %v647 = vld [vmem:[%s1 + $0x70] sm:$0xff]
    %v648 = vld [vmem:[%s1 + $0x78] sm:$0xff]
    %v649 = vld [vmem:[%s1 + $0x80] sm:$0xff]
    %v650 = vld [vmem:[%s1 + $0x88] sm:$0xff]
    %v651 = vld [vmem:[%s1 + $0x90] sm:$0xff]
    %v652 = vld [vmem:[%s1 + $0x98] sm:$0xff]
    %v653 = vld [vmem:[%s1 + $0xa0] sm:$0xff]
    %v654 = vld [vmem:[%s1 + $0xa8] sm:$0xff]
    %v655 = vld [vmem:[%s1 + $0xb0] sm:$0xff]
    %v656 = vld [vmem:[%s1 + $0xb8] sm:$0xff]
    %v657 = vld [vmem:[%s1 + $0xc0] sm:$0xff]
    %v658 = vld [vmem:[%s1 + $0xc8] sm:$0xff]
    %v659 = vld [vmem:[%s1 + $0xd0] sm:$0xff]
    %v660 = vld [vmem:[%s1 + $0xd8] sm:$0xff]
    %v661 = vld [vmem:[%s1 + $0xe0] sm:$0xff]
    %v662 = vld [vmem:[%s1 + $0xe8] sm:$0xff]
    %v663 = vld [vmem:[%s1 + $0xf0] sm:$0xff]
    %v664 = vld [vmem:[%s1 + $0xf8] sm:$0xff]
    %v665 = vld [vmem:[%s1 + $0x100] sm:$0xff]
    %v666 = vld [vmem:[%s1 + $0x108] sm:$0xff]
    %v667 = vld [vmem:[%s1 + $0x110] sm:$0xff]
    %v668 = vld [vmem:[%s1 + $0x118] sm:$0xff]
    %v669 = vld [vmem:[%s1 + $0x120] sm:$0xff]
    %v670 = vld [vmem:[%s1 + $0x128] sm:$0xff]
    %v671 = vld [vmem:[%s1 + $0x130] sm:$0xff]
    %v672 = vld [vmem:[%s1 + $0x138] sm:$0xff]
    %v673 = vld [vmem:[%s1 + $0x140] sm:$0xff]
    %v674 = vld [vmem:[%s1 + $0x148] sm:$0xff]
    %v675 = vld [vmem:[%s1 + $0x150] sm:$0xff]
    %v676 = vld [vmem:[%s1 + $0x158] sm:$0xff]
    %v677 = vld [vmem:[%s1 + $0x160] sm:$0xff]
    %v678 = vld [vmem:[%s1 + $0x168] sm:$0xff]
    %v679 = vld [vmem:[%s1 + $0x170] sm:$0xff]
    %v680 = vld [vmem:[%s1 + $0x178] sm:$0xff]
    %682 = vst [vmem:[#allocation1] ss:$4 sm:$0xff] %v632
    %v683 = vld.sshfl [vmem:[#allocation1] sm:$0xff pattern:$0x73625140]
    %v684 = vld.sshfl [vmem:[#allocation1 + $0x8] sm:$0xff pattern:$0x73625140]
    %v686 = vsel %vm108, %v684, 0
    %688 = vmatpush.msra.mxu0 %v663
    %689 = vmatpush.msra.mxu0 %v661
    %690 = vmatpush.msra.mxu0 %v659
    %691 = vmatpush.msra.mxu0 %v657
    %692 = vmatpush.msra.mxu0 %v655
    %693 = vmatpush.msra.mxu0 %v653
    %694 = vmatpush.msra.mxu0 %v651
    %695 = vmatpush.msra.mxu0 %v649
    %696 = vmatpush.msra.mxu0 %v647
    %697 = vmatpush.msra.mxu0 %v645
    %698 = vmatpush.msra.mxu0 %v643
    %699 = vmatpush.msra.mxu0 %v641
    %700 = vmatpush.msra.mxu0 %v639
    %701 = vmatpush.msra.mxu0 %v637
    %702 = vmatpush.msra.mxu0 %v635
    %703 = vmatpush.msra.mxu0 %v633
    %704 = vmatmul.f32.gmra.mxu0 %v683
    %v705 = vpop.f32.mrf.mxu0
    %v706 = vadd.f32 %v99, %v705
    %707 = vdwg.mxu0
    %708 = vmatpush.msra.mxu0 0.0
    %709 = vmatpush.msra.mxu0 0.0
    %710 = vmatpush.msra.mxu0 0.0
    %711 = vmatpush.msra.mxu0 0.0
    %712 = vmatpush.msra.mxu0 0.0
    %713 = vmatpush.msra.mxu0 0.0
    %714 = vmatpush.msra.mxu0 0.0
    %715 = vmatpush.msra.mxu0 0.0
    %716 = vmatpush.msra.mxu0 %v679
    %717 = vmatpush.msra.mxu0 %v677
    %718 = vmatpush.msra.mxu0 %v675
    %719 = vmatpush.msra.mxu0 %v673
    %720 = vmatpush.msra.mxu0 %v671
    %721 = vmatpush.msra.mxu0 %v669
    %722 = vmatpush.msra.mxu0 %v667
    %723 = vmatpush.msra.mxu0 %v665
    %724 = vmatmul.f32.gmra.mxu0 %v686
    %v725 = vpop.f32.mrf.mxu0
    %v726 = vadd.f32 %v706, %v725
    %727 = vdwg.mxu0
    %728 = vmatpush.msra.mxu0 %v664
    %729 = vmatpush.msra.mxu0 %v662
    %730 = vmatpush.msra.mxu0 %v660
    %731 = vmatpush.msra.mxu0 %v658
    %732 = vmatpush.msra.mxu0 %v656
    %733 = vmatpush.msra.mxu0 %v654
    %734 = vmatpush.msra.mxu0 %v652
    %735 = vmatpush.msra.mxu0 %v650
    %736 = vmatpush.msra.mxu0 %v648
    %737 = vmatpush.msra.mxu0 %v646
    %738 = vmatpush.msra.mxu0 %v644
    %739 = vmatpush.msra.mxu0 %v642
    %740 = vmatpush.msra.mxu0 %v640
    %741 = vmatpush.msra.mxu0 %v638
    %742 = vmatpush.msra.mxu0 %v636
    %743 = vmatpush.msra.mxu0 %v634
    %744 = vmatmul.f32.gmra.mxu0 %v683
    %v745 = vpop.f32.mrf.mxu0
    %v746 = vadd.f32 %v100, %v745
    %747 = vdwg.mxu0
    %748 = vmatpush.msra.mxu0 0.0
    %749 = vmatpush.msra.mxu0 0.0
    %750 = vmatpush.msra.mxu0 0.0
    %751 = vmatpush.msra.mxu0 0.0
    %752 = vmatpush.msra.mxu0 0.0
    %753 = vmatpush.msra.mxu0 0.0
    %754 = vmatpush.msra.mxu0 0.0
    %755 = vmatpush.msra.mxu0 0.0
    %756 = vmatpush.msra.mxu0 %v680
    %757 = vmatpush.msra.mxu0 %v678
    %758 = vmatpush.msra.mxu0 %v676
    %759 = vmatpush.msra.mxu0 %v674
    %760 = vmatpush.msra.mxu0 %v672
    %761 = vmatpush.msra.mxu0 %v670
    %762 = vmatpush.msra.mxu0 %v668
    %763 = vmatpush.msra.mxu0 %v666
    %764 = vmatmul.f32.gmra.mxu0 %v686
    %v765 = vpop.f32.mrf.mxu0
    %v766 = vadd.f32 %v746, %v765
    %767 = vdwg.mxu0
    %v768 = vmax.f32 %v726, 0.0
    %v769 = vmax.f32 %v766, 0.0
    %v772 = vrot.slane %v769, 6
    %v773 = vsel %vm196, %v768, %v772
    %775 = vst [vmem:[#allocation2 + $0x14] sm:$0xf] %v773
    %v776 = vld [vmem:[%s0 + $0xa] sm:$0xf]
    %v777 = vld [vmem:[%s1] sm:$0xff]
    %v778 = vld [vmem:[%s1 + $0x8] sm:$0xff]
    %v779 = vld [vmem:[%s1 + $0x10] sm:$0xff]
    %v780 = vld [vmem:[%s1 + $0x18] sm:$0xff]
    %v781 = vld [vmem:[%s1 + $0x20] sm:$0xff]
    %v782 = vld [vmem:[%s1 + $0x28] sm:$0xff]
    %v783 = vld [vmem:[%s1 + $0x30] sm:$0xff]
    %v784 = vld [vmem:[%s1 + $0x38] sm:$0xff]
    %v785 = vld [vmem:[%s1 + $0x40] sm:$0xff]
    %v786 = vld [vmem:[%s1 + $0x48] sm:$0xff]
    %v787 = vld [vmem:[%s1 + $0x50] sm:$0xff]
    %v788 = vld [vmem:[%s1 + $0x58] sm:$0xff]
    %v789 = vld [vmem:[%s1 + $0x60] sm:$0xff]
    %v790 = vld [vmem:[%s1 + $0x68] sm:$0xff]
    %v791 = vld [vmem:[%s1 + $0x70] sm:$0xff]
    %v792 = vld [vmem:[%s1 + $0x78] sm:$0xff]
    %v793 = vld [vmem:[%s1 + $0x80] sm:$0xff]
    %v794 = vld [vmem:[%s1 + $0x88] sm:$0xff]
    %v795 = vld [vmem:[%s1 + $0x90] sm:$0xff]
    %v796 = vld [vmem:[%s1 + $0x98] sm:$0xff]
    %v797 = vld [vmem:[%s1 + $0xa0] sm:$0xff]
    %v798 = vld [vmem:[%s1 + $0xa8] sm:$0xff]
    %v799 = vld [vmem:[%s1 + $0xb0] sm:$0xff]
    %v800 = vld [vmem:[%s1 + $0xb8] sm:$0xff]
    %v801 = vld [vmem:[%s1 + $0xc0] sm:$0xff]
    %v802 = vld [vmem:[%s1 + $0xc8] sm:$0xff]
    %v803 = vld [vmem:[%s1 + $0xd0] sm:$0xff]
    %v804 = vld [vmem:[%s1 + $0xd8] sm:$0xff]
    %v805 = vld [vmem:[%s1 + $0xe0] sm:$0xff]
    %v806 = vld [vmem:[%s1 + $0xe8] sm:$0xff]
    %v807 = vld [vmem:[%s1 + $0xf0] sm:$0xff]
    %v808 = vld [vmem:[%s1 + $0xf8] sm:$0xff]
    %v809 = vld [vmem:[%s1 + $0x100] sm:$0xff]
    %v810 = vld [vmem:[%s1 + $0x108] sm:$0xff]
    %v811 = vld [vmem:[%s1 + $0x110] sm:$0xff]
    %v812 = vld [vmem:[%s1 + $0x118] sm:$0xff]
    %v813 = vld [vmem:[%s1 + $0x120] sm:$0xff]
    %v814 = vld [vmem:[%s1 + $0x128] sm:$0xff]
    %v815 = vld [vmem:[%s1 + $0x130] sm:$0xff]
    %v816 = vld [vmem:[%s1 + $0x138] sm:$0xff]
    %v817 = vld [vmem:[%s1 + $0x140] sm:$0xff]
    %v818 = vld [vmem:[%s1 + $0x148] sm:$0xff]
    %v819 = vld [vmem:[%s1 + $0x150] sm:$0xff]
    %v820 = vld [vmem:[%s1 + $0x158] sm:$0xff]
    %v821 = vld [vmem:[%s1 + $0x160] sm:$0xff]
    %v822 = vld [vmem:[%s1 + $0x168] sm:$0xff]
    %v823 = vld [vmem:[%s1 + $0x170] sm:$0xff]
    %v824 = vld [vmem:[%s1 + $0x178] sm:$0xff]
    %826 = vst [vmem:[#allocation1] ss:$4 sm:$0xff] %v776
    %v827 = vld.sshfl [vmem:[#allocation1] sm:$0xff pattern:$0x73625140]
    %v828 = vld.sshfl [vmem:[#allocation1 + $0x8] sm:$0xff pattern:$0x73625140]
    %v830 = vsel %vm108, %v828, 0
    %832 = vmatpush.msra.mxu0 %v807
    %833 = vmatpush.msra.mxu0 %v805
    %834 = vmatpush.msra.mxu0 %v803
    %835 = vmatpush.msra.mxu0 %v801
    %836 = vmatpush.msra.mxu0 %v799
    %837 = vmatpush.msra.mxu0 %v797
    %838 = vmatpush.msra.mxu0 %v795
    %839 = vmatpush.msra.mxu0 %v793
    %840 = vmatpush.msra.mxu0 %v791
    %841 = vmatpush.msra.mxu0 %v789
    %842 = vmatpush.msra.mxu0 %v787
    %843 = vmatpush.msra.mxu0 %v785
    %844 = vmatpush.msra.mxu0 %v783
    %845 = vmatpush.msra.mxu0 %v781
    %846 = vmatpush.msra.mxu0 %v779
    %847 = vmatpush.msra.mxu0 %v777
    %848 = vmatmul.f32.gmra.mxu0 %v827
    %v849 = vpop.f32.mrf.mxu0
    %v850 = vadd.f32 %v99, %v849
    %851 = vdwg.mxu0
    %852 = vmatpush.msra.mxu0 0.0
    %853 = vmatpush.msra.mxu0 0.0
    %854 = vmatpush.msra.mxu0 0.0
    %855 = vmatpush.msra.mxu0 0.0
    %856 = vmatpush.msra.mxu0 0.0
    %857 = vmatpush.msra.mxu0 0.0
    %858 = vmatpush.msra.mxu0 0.0
    %859 = vmatpush.msra.mxu0 0.0
    %860 = vmatpush.msra.mxu0 %v823
    %861 = vmatpush.msra.mxu0 %v821
    %862 = vmatpush.msra.mxu0 %v819
    %863 = vmatpush.msra.mxu0 %v817
    %864 = vmatpush.msra.mxu0 %v815
    %865 = vmatpush.msra.mxu0 %v813
    %866 = vmatpush.msra.mxu0 %v811
    %867 = vmatpush.msra.mxu0 %v809
    %868 = vmatmul.f32.gmra.mxu0 %v830
    %v869 = vpop.f32.mrf.mxu0
    %v870 = vadd.f32 %v850, %v869
    %871 = vdwg.mxu0
    %872 = vmatpush.msra.mxu0 %v808
    %873 = vmatpush.msra.mxu0 %v806
    %874 = vmatpush.msra.mxu0 %v804
    %875 = vmatpush.msra.mxu0 %v802
    %876 = vmatpush.msra.mxu0 %v800
    %877 = vmatpush.msra.mxu0 %v798
    %878 = vmatpush.msra.mxu0 %v796
    %879 = vmatpush.msra.mxu0 %v794
    %880 = vmatpush.msra.mxu0 %v792
    %881 = vmatpush.msra.mxu0 %v790
    %882 = vmatpush.msra.mxu0 %v788
    %883 = vmatpush.msra.mxu0 %v786
    %884 = vmatpush.msra.mxu0 %v784
    %885 = vmatpush.msra.mxu0 %v782
    %886 = vmatpush.msra.mxu0 %v780
    %887 = vmatpush.msra.mxu0 %v778
    %888 = vmatmul.f32.gmra.mxu0 %v827
    %v889 = vpop.f32.mrf.mxu0
    %v890 = vadd.f32 %v100, %v889
    %891 = vdwg.mxu0
    %892 = vmatpush.msra.mxu0 0.0
    %893 = vmatpush.msra.mxu0 0.0
    %894 = vmatpush.msra.mxu0 0.0
    %895 = vmatpush.msra.mxu0 0.0
    %896 = vmatpush.msra.mxu0 0.0
    %897 = vmatpush.msra.mxu0 0.0
    %898 = vmatpush.msra.mxu0 0.0
    %899 = vmatpush.msra.mxu0 0.0
    %900 = vmatpush.msra.mxu0 %v824
    %901 = vmatpush.msra.mxu0 %v822
    %902 = vmatpush.msra.mxu0 %v820
    %903 = vmatpush.msra.mxu0 %v818
    %904 = vmatpush.msra.mxu0 %v816
    %905 = vmatpush.msra.mxu0 %v814
    %906 = vmatpush.msra.mxu0 %v812
    %907 = vmatpush.msra.mxu0 %v810
    %908 = vmatmul.f32.gmra.mxu0 %v830
    %v909 = vpop.f32.mrf.mxu0
    %v910 = vadd.f32 %v890, %v909
    %911 = vdwg.mxu0
    %v912 = vmax.f32 %v870, 0.0
    %v913 = vmax.f32 %v910, 0.0
    %v916 = vrot.slane %v913, 6
    %v917 = vsel %vm196, %v912, %v916
    %919 = vst [vmem:[#allocation2 + $0x18] sm:$0xf] %v917
    %v920 = vld [vmem:[%s0 + $0xc] sm:$0xf]
    %v921 = vld [vmem:[%s1] sm:$0xff]
    %v922 = vld [vmem:[%s1 + $0x8] sm:$0xff]
    %v923 = vld [vmem:[%s1 + $0x10] sm:$0xff]
    %v924 = vld [vmem:[%s1 + $0x18] sm:$0xff]
    %v925 = vld [vmem:[%s1 + $0x20] sm:$0xff]
    %v926 = vld [vmem:[%s1 + $0x28] sm:$0xff]
    %v927 = vld [vmem:[%s1 + $0x30] sm:$0xff]
    %v928 = vld [vmem:[%s1 + $0x38] sm:$0xff]
    %v929 = vld [vmem:[%s1 + $0x40] sm:$0xff]
    %v930 = vld [vmem:[%s1 + $0x48] sm:$0xff]
    %v931 = vld [vmem:[%s1 + $0x50] sm:$0xff]
    %v932 = vld [vmem:[%s1 + $0x58] sm:$0xff]
    %v933 = vld [vmem:[%s1 + $0x60] sm:$0xff]
    %v934 = vld [vmem:[%s1 + $0x68] sm:$0xff]
    %v935 = vld [vmem:[%s1 + $0x70] sm:$0xff]
    %v936 = vld [vmem:[%s1 + $0x78] sm:$0xff]
    %v937 = vld [vmem:[%s1 + $0x80] sm:$0xff]
    %v938 = vld [vmem:[%s1 + $0x88] sm:$0xff]
    %v939 = vld [vmem:[%s1 + $0x90] sm:$0xff]
    %v940 = vld [vmem:[%s1 + $0x98] sm:$0xff]
    %v941 = vld [vmem:[%s1 + $0xa0] sm:$0xff]
    %v942 = vld [vmem:[%s1 + $0xa8] sm:$0xff]
    %v943 = vld [vmem:[%s1 + $0xb0] sm:$0xff]
    %v944 = vld [vmem:[%s1 + $0xb8] sm:$0xff]
    %v945 = vld [vmem:[%s1 + $0xc0] sm:$0xff]
    %v946 = vld [vmem:[%s1 + $0xc8] sm:$0xff]
    %v947 = vld [vmem:[%s1 + $0xd0] sm:$0xff]
    %v948 = vld [vmem:[%s1 + $0xd8] sm:$0xff]
    %v949 = vld [vmem:[%s1 + $0xe0] sm:$0xff]
    %v950 = vld [vmem:[%s1 + $0xe8] sm:$0xff]
    %v951 = vld [vmem:[%s1 + $0xf0] sm:$0xff]
    %v952 = vld [vmem:[%s1 + $0xf8] sm:$0xff]
    %v953 = vld [vmem:[%s1 + $0x100] sm:$0xff]
    %v954 = vld [vmem:[%s1 + $0x108] sm:$0xff]
    %v955 = vld [vmem:[%s1 + $0x110] sm:$0xff]
    %v956 = vld [vmem:[%s1 + $0x118] sm:$0xff]
    %v957 = vld [vmem:[%s1 + $0x120] sm:$0xff]
    %v958 = vld [vmem:[%s1 + $0x128] sm:$0xff]
    %v959 = vld [vmem:[%s1 + $0x130] sm:$0xff]
    %v960 = vld [vmem:[%s1 + $0x138] sm:$0xff]
    %v961 = vld [vmem:[%s1 + $0x140] sm:$0xff]
    %v962 = vld [vmem:[%s1 + $0x148] sm:$0xff]
    %v963 = vld [vmem:[%s1 + $0x150] sm:$0xff]
    %v964 = vld [vmem:[%s1 + $0x158] sm:$0xff]
    %v965 = vld [vmem:[%s1 + $0x160] sm:$0xff]
    %v966 = vld [vmem:[%s1 + $0x168] sm:$0xff]
    %v967 = vld [vmem:[%s1 + $0x170] sm:$0xff]
    %v968 = vld [vmem:[%s1 + $0x178] sm:$0xff]
    %970 = vst [vmem:[#allocation1] ss:$4 sm:$0xff] %v920
    %v971 = vld.sshfl [vmem:[#allocation1] sm:$0xff pattern:$0x73625140]
    %v972 = vld.sshfl [vmem:[#allocation1 + $0x8] sm:$0xff pattern:$0x73625140]
    %v974 = vsel %vm108, %v972, 0
    %976 = vmatpush.msra.mxu0 %v951
    %977 = vmatpush.msra.mxu0 %v949
    %978 = vmatpush.msra.mxu0 %v947
    %979 = vmatpush.msra.mxu0 %v945
    %980 = vmatpush.msra.mxu0 %v943
    %981 = vmatpush.msra.mxu0 %v941
    %982 = vmatpush.msra.mxu0 %v939
    %983 = vmatpush.msra.mxu0 %v937
    %984 = vmatpush.msra.mxu0 %v935
    %985 = vmatpush.msra.mxu0 %v933
    %986 = vmatpush.msra.mxu0 %v931
    %987 = vmatpush.msra.mxu0 %v929
    %988 = vmatpush.msra.mxu0 %v927
    %989 = vmatpush.msra.mxu0 %v925
    %990 = vmatpush.msra.mxu0 %v923
    %991 = vmatpush.msra.mxu0 %v921
    %992 = vmatmul.f32.gmra.mxu0 %v971
    %v993 = vpop.f32.mrf.mxu0
    %v994 = vadd.f32 %v99, %v993
    %995 = vdwg.mxu0
    %996 = vmatpush.msra.mxu0 0.0
    %997 = vmatpush.msra.mxu0 0.0
    %998 = vmatpush.msra.mxu0 0.0
    %999 = vmatpush.msra.mxu0 0.0
    %1000 = vmatpush.msra.mxu0 0.0
    %1001 = vmatpush.msra.mxu0 0.0
    %1002 = vmatpush.msra.mxu0 0.0
    %1003 = vmatpush.msra.mxu0 0.0
    %1004 = vmatpush.msra.mxu0 %v967
    %1005 = vmatpush.msra.mxu0 %v965
    %1006 = vmatpush.msra.mxu0 %v963
    %1007 = vmatpush.msra.mxu0 %v961
    %1008 = vmatpush.msra.mxu0 %v959
    %1009 = vmatpush.msra.mxu0 %v957
    %1010 = vmatpush.msra.mxu0 %v955
    %1011 = vmatpush.msra.mxu0 %v953
    %1012 = vmatmul.f32.gmra.mxu0 %v974
    %v1013 = vpop.f32.mrf.mxu0
    %v1014 = vadd.f32 %v994, %v1013
    %1015 = vdwg.mxu0
    %1016 = vmatpush.msra.mxu0 %v952
    %1017 = vmatpush.msra.mxu0 %v950
    %1018 = vmatpush.msra.mxu0 %v948
    %1019 = vmatpush.msra.mxu0 %v946
    %1020 = vmatpush.msra.mxu0 %v944
    %1021 = vmatpush.msra.mxu0 %v942
    %1022 = vmatpush.msra.mxu0 %v940
    %1023 = vmatpush.msra.mxu0 %v938
    %1024 = vmatpush.msra.mxu0 %v936
    %1025 = vmatpush.msra.mxu0 %v934
    %1026 = vmatpush.msra.mxu0 %v932
    %1027 = vmatpush.msra.mxu0 %v930
    %1028 = vmatpush.msra.mxu0 %v928
    %1029 = vmatpush.msra.mxu0 %v926
    %1030 = vmatpush.msra.mxu0 %v924
    %1031 = vmatpush.msra.mxu0 %v922
    %1032 = vmatmul.f32.gmra.mxu0 %v971
    %v1033 = vpop.f32.mrf.mxu0
    %v1034 = vadd.f32 %v100, %v1033
    %1035 = vdwg.mxu0
    %1036 = vmatpush.msra.mxu0 0.0
    %1037 = vmatpush.msra.mxu0 0.0
    %1038 = vmatpush.msra.mxu0 0.0
    %1039 = vmatpush.msra.mxu0 0.0
    %1040 = vmatpush.msra.mxu0 0.0
    %1041 = vmatpush.msra.mxu0 0.0
    %1042 = vmatpush.msra.mxu0 0.0
    %1043 = vmatpush.msra.mxu0 0.0
    %1044 = vmatpush.msra.mxu0 %v968
    %1045 = vmatpush.msra.mxu0 %v966
    %1046 = vmatpush.msra.mxu0 %v964
    %1047 = vmatpush.msra.mxu0 %v962
    %1048 = vmatpush.msra.mxu0 %v960
    %1049 = vmatpush.msra.mxu0 %v958
    %1050 = vmatpush.msra.mxu0 %v956
    %1051 = vmatpush.msra.mxu0 %v954
    %1052 = vmatmul.f32.gmra.mxu0 %v974
    %v1053 = vpop.f32.mrf.mxu0
    %v1054 = vadd.f32 %v1034, %v1053
    %1055 = vdwg.mxu0
    %v1056 = vmax.f32 %v1014, 0.0
    %v1057 = vmax.f32 %v1054, 0.0
    %v1060 = vrot.slane %v1057, 6
    %v1061 = vsel %vm196, %v1056, %v1060
    %1063 = vst [vmem:[#allocation2 + $0x1c] sm:$0xf] %v1061
    %v1064 = vld [vmem:[%s0 + $0xe] sm:$0xf]
    %v1065 = vld [vmem:[%s1] sm:$0xff]
    %v1066 = vld [vmem:[%s1 + $0x8] sm:$0xff]
    %v1067 = vld [vmem:[%s1 + $0x10] sm:$0xff]
    %v1068 = vld [vmem:[%s1 + $0x18] sm:$0xff]
    %v1069 = vld [vmem:[%s1 + $0x20] sm:$0xff]
    %v1070 = vld [vmem:[%s1 + $0x28] sm:$0xff]
    %v1071 = vld [vmem:[%s1 + $0x30] sm:$0xff]
    %v1072 = vld [vmem:[%s1 + $0x38] sm:$0xff]
    %v1073 = vld [vmem:[%s1 + $0x40] sm:$0xff]
    %v1074 = vld [vmem:[%s1 + $0x48] sm:$0xff]
    %v1075 = vld [vmem:[%s1 + $0x50] sm:$0xff]
    %v1076 = vld [vmem:[%s1 + $0x58] sm:$0xff]
    %v1077 = vld [vmem:[%s1 + $0x60] sm:$0xff]
    %v1078 = vld [vmem:[%s1 + $0x68] sm:$0xff]
    %v1079 = vld [vmem:[%s1 + $0x70] sm:$0xff]
    %v1080 = vld [vmem:[%s1 + $0x78] sm:$0xff]
    %v1081 = vld [vmem:[%s1 + $0x80] sm:$0xff]
    %v1082 = vld [vmem:[%s1 + $0x88] sm:$0xff]
    %v1083 = vld [vmem:[%s1 + $0x90] sm:$0xff]
    %v1084 = vld [vmem:[%s1 + $0x98] sm:$0xff]
    %v1085 = vld [vmem:[%s1 + $0xa0] sm:$0xff]
    %v1086 = vld [vmem:[%s1 + $0xa8] sm:$0xff]
    %v1087 = vld [vmem:[%s1 + $0xb0] sm:$0xff]
    %v1088 = vld [vmem:[%s1 + $0xb8] sm:$0xff]
    %v1089 = vld [vmem:[%s1 + $0xc0] sm:$0xff]
    %v1090 = vld [vmem:[%s1 + $0xc8] sm:$0xff]
    %v1091 = vld [vmem:[%s1 + $0xd0] sm:$0xff]
    %v1092 = vld [vmem:[%s1 + $0xd8] sm:$0xff]
    %v1093 = vld [vmem:[%s1 + $0xe0] sm:$0xff]
    %v1094 = vld [vmem:[%s1 + $0xe8] sm:$0xff]
    %v1095 = vld [vmem:[%s1 + $0xf0] sm:$0xff]
    %v1096 = vld [vmem:[%s1 + $0xf8] sm:$0xff]
    %v1097 = vld [vmem:[%s1 + $0x100] sm:$0xff]
    %v1098 = vld [vmem:[%s1 + $0x108] sm:$0xff]
    %v1099 = vld [vmem:[%s1 + $0x110] sm:$0xff]
    %v1100 = vld [vmem:[%s1 + $0x118] sm:$0xff]
    %v1101 = vld [vmem:[%s1 + $0x120] sm:$0xff]
    %v1102 = vld [vmem:[%s1 + $0x128] sm:$0xff]
    %v1103 = vld [vmem:[%s1 + $0x130] sm:$0xff]
    %v1104 = vld [vmem:[%s1 + $0x138] sm:$0xff]
    %v1105 = vld [vmem:[%s1 + $0x140] sm:$0xff]
    %v1106 = vld [vmem:[%s1 + $0x148] sm:$0xff]
    %v1107 = vld [vmem:[%s1 + $0x150] sm:$0xff]
    %v1108 = vld [vmem:[%s1 + $0x158] sm:$0xff]
    %v1109 = vld [vmem:[%s1 + $0x160] sm:$0xff]
    %v1110 = vld [vmem:[%s1 + $0x168] sm:$0xff]
    %v1111 = vld [vmem:[%s1 + $0x170] sm:$0xff]
    %v1112 = vld [vmem:[%s1 + $0x178] sm:$0xff]
    %1114 = vst [vmem:[#allocation1] ss:$4 sm:$0xff] %v1064
    %v1115 = vld.sshfl [vmem:[#allocation1] sm:$0xff pattern:$0x73625140]
    %v1116 = vld.sshfl [vmem:[#allocation1 + $0x8] sm:$0xff pattern:$0x73625140]
    %v1118 = vsel %vm108, %v1116, 0
    %1120 = vmatpush.msra.mxu0 %v1095
    %1121 = vmatpush.msra.mxu0 %v1093
    %1122 = vmatpush.msra.mxu0 %v1091
    %1123 = vmatpush.msra.mxu0 %v1089
    %1124 = vmatpush.msra.mxu0 %v1087
    %1125 = vmatpush.msra.mxu0 %v1085
    %1126 = vmatpush.msra.mxu0 %v1083
    %1127 = vmatpush.msra.mxu0 %v1081
    %1128 = vmatpush.msra.mxu0 %v1079
    %1129 = vmatpush.msra.mxu0 %v1077
    %1130 = vmatpush.msra.mxu0 %v1075
    %1131 = vmatpush.msra.mxu0 %v1073
    %1132 = vmatpush.msra.mxu0 %v1071
    %1133 = vmatpush.msra.mxu0 %v1069
    %1134 = vmatpush.msra.mxu0 %v1067
    %1135 = vmatpush.msra.mxu0 %v1065
    %1136 = vmatmul.f32.gmra.mxu0 %v1115
    %v1137 = vpop.f32.mrf.mxu0
    %v1138 = vadd.f32 %v99, %v1137
    %1139 = vdwg.mxu0
    %1140 = vmatpush.msra.mxu0 0.0
    %1141 = vmatpush.msra.mxu0 0.0
    %1142 = vmatpush.msra.mxu0 0.0
    %1143 = vmatpush.msra.mxu0 0.0
    %1144 = vmatpush.msra.mxu0 0.0
    %1145 = vmatpush.msra.mxu0 0.0
    %1146 = vmatpush.msra.mxu0 0.0
    %1147 = vmatpush.msra.mxu0 0.0
    %1148 = vmatpush.msra.mxu0 %v1111
    %1149 = vmatpush.msra.mxu0 %v1109
    %1150 = vmatpush.msra.mxu0 %v1107
    %1151 = vmatpush.msra.mxu0 %v1105
    %1152 = vmatpush.msra.mxu0 %v1103
    %1153 = vmatpush.msra.mxu0 %v1101
    %1154 = vmatpush.msra.mxu0 %v1099
    %1155 = vmatpush.msra.mxu0 %v1097
    %1156 = vmatmul.f32.gmra.mxu0 %v1118
    %v1157 = vpop.f32.mrf.mxu0
    %v1158 = vadd.f32 %v1138, %v1157
    %1159 = vdwg.mxu0
    %1160 = vmatpush.msra.mxu0 %v1096
    %1161 = vmatpush.msra.mxu0 %v1094
    %1162 = vmatpush.msra.mxu0 %v1092
    %1163 = vmatpush.msra.mxu0 %v1090
    %1164 = vmatpush.msra.mxu0 %v1088
    %1165 = vmatpush.msra.mxu0 %v1086
    %1166 = vmatpush.msra.mxu0 %v1084
    %1167 = vmatpush.msra.mxu0 %v1082
    %1168 = vmatpush.msra.mxu0 %v1080
    %1169 = vmatpush.msra.mxu0 %v1078
    %1170 = vmatpush.msra.mxu0 %v1076
    %1171 = vmatpush.msra.mxu0 %v1074
    %1172 = vmatpush.msra.mxu0 %v1072
    %1173 = vmatpush.msra.mxu0 %v1070
    %1174 = vmatpush.msra.mxu0 %v1068
    %1175 = vmatpush.msra.mxu0 %v1066
    %1176 = vmatmul.f32.gmra.mxu0 %v1115
    %v1177 = vpop.f32.mrf.mxu0
    %v1178 = vadd.f32 %v100, %v1177
    %1179 = vdwg.mxu0
    %1180 = vmatpush.msra.mxu0 0.0
    %1181 = vmatpush.msra.mxu0 0.0
    %1182 = vmatpush.msra.mxu0 0.0
    %1183 = vmatpush.msra.mxu0 0.0
    %1184 = vmatpush.msra.mxu0 0.0
    %1185 = vmatpush.msra.mxu0 0.0
    %1186 = vmatpush.msra.mxu0 0.0
    %1187 = vmatpush.msra.mxu0 0.0
    %1188 = vmatpush.msra.mxu0 %v1112
    %1189 = vmatpush.msra.mxu0 %v1110
    %1190 = vmatpush.msra.mxu0 %v1108
    %1191 = vmatpush.msra.mxu0 %v1106
    %1192 = vmatpush.msra.mxu0 %v1104
    %1193 = vmatpush.msra.mxu0 %v1102
    %1194 = vmatpush.msra.mxu0 %v1100
    %1195 = vmatpush.msra.mxu0 %v1098
    %1196 = vmatmul.f32.gmra.mxu0 %v1118
    %v1197 = vpop.f32.mrf.mxu0
    %v1198 = vadd.f32 %v1178, %v1197
    %1199 = vdwg.mxu0
    %v1200 = vmax.f32 %v1158, 0.0
    %v1201 = vmax.f32 %v1198, 0.0
    %v1204 = vrot.slane %v1201, 6
    %v1205 = vsel %vm196, %v1200, %v1204
    %1207 = vst [vmem:[#allocation2 + $0x20] sm:$0xf] %v1205
    %v1208 = vld [vmem:[%s0 + $0x10] sm:$0xf]
    %v1209 = vld [vmem:[%s1] sm:$0xff]
    %v1210 = vld [vmem:[%s1 + $0x8] sm:$0xff]
    %v1211 = vld [vmem:[%s1 + $0x10] sm:$0xff]
    %v1212 = vld [vmem:[%s1 + $0x18] sm:$0xff]
    %v1213 = vld [vmem:[%s1 + $0x20] sm:$0xff]
    %v1214 = vld [vmem:[%s1 + $0x28] sm:$0xff]
    %v1215 = vld [vmem:[%s1 + $0x30] sm:$0xff]
    %v1216 = vld [vmem:[%s1 + $0x38] sm:$0xff]
    %v1217 = vld [vmem:[%s1 + $0x40] sm:$0xff]
    %v1218 = vld [vmem:[%s1 + $0x48] sm:$0xff]
    %v1219 = vld [vmem:[%s1 + $0x50] sm:$0xff]
    %v1220 = vld [vmem:[%s1 + $0x58] sm:$0xff]
    %v1221 = vld [vmem:[%s1 + $0x60] sm:$0xff]
    %v1222 = vld [vmem:[%s1 + $0x68] sm:$0xff]
    %v1223 = vld [vmem:[%s1 + $0x70] sm:$0xff]
    %v1224 = vld [vmem:[%s1 + $0x78] sm:$0xff]
    %v1225 = vld [vmem:[%s1 + $0x80] sm:$0xff]
    %v1226 = vld [vmem:[%s1 + $0x88] sm:$0xff]
    %v1227 = vld [vmem:[%s1 + $0x90] sm:$0xff]
    %v1228 = vld [vmem:[%s1 + $0x98] sm:$0xff]
    %v1229 = vld [vmem:[%s1 + $0xa0] sm:$0xff]
    %v1230 = vld [vmem:[%s1 + $0xa8] sm:$0xff]
    %v1231 = vld [vmem:[%s1 + $0xb0] sm:$0xff]
    %v1232 = vld [vmem:[%s1 + $0xb8] sm:$0xff]
    %v1233 = vld [vmem:[%s1 + $0xc0] sm:$0xff]
    %v1234 = vld [vmem:[%s1 + $0xc8] sm:$0xff]
    %v1235 = vld [vmem:[%s1 + $0xd0] sm:$0xff]
    %v1236 = vld [vmem:[%s1 + $0xd8] sm:$0xff]
    %v1237 = vld [vmem:[%s1 + $0xe0] sm:$0xff]
    %v1238 = vld [vmem:[%s1 + $0xe8] sm:$0xff]
    %v1239 = vld [vmem:[%s1 + $0xf0] sm:$0xff]
    %v1240 = vld [vmem:[%s1 + $0xf8] sm:$0xff]
    %v1241 = vld [vmem:[%s1 + $0x100] sm:$0xff]
    %v1242 = vld [vmem:[%s1 + $0x108] sm:$0xff]
    %v1243 = vld [vmem:[%s1 + $0x110] sm:$0xff]
    %v1244 = vld [vmem:[%s1 + $0x118] sm:$0xff]
    %v1245 = vld [vmem:[%s1 + $0x120] sm:$0xff]
    %v1246 = vld [vmem:[%s1 + $0x128] sm:$0xff]
    %v1247 = vld [vmem:[%s1 + $0x130] sm:$0xff]
    %v1248 = vld [vmem:[%s1 + $0x138] sm:$0xff]
    %v1249 = vld [vmem:[%s1 + $0x140] sm:$0xff]
    %v1250 = vld [vmem:[%s1 + $0x148] sm:$0xff]
    %v1251 = vld [vmem:[%s1 + $0x150] sm:$0xff]
    %v1252 = vld [vmem:[%s1 + $0x158] sm:$0xff]
    %v1253 = vld [vmem:[%s1 + $0x160] sm:$0xff]
    %v1254 = vld [vmem:[%s1 + $0x168] sm:$0xff]
    %v1255 = vld [vmem:[%s1 + $0x170] sm:$0xff]
    %v1256 = vld [vmem:[%s1 + $0x178] sm:$0xff]
    %1258 = vst [vmem:[#allocation1] ss:$4 sm:$0xff] %v1208
    %v1259 = vld.sshfl [vmem:[#allocation1] sm:$0xff pattern:$0x73625140]
    %v1260 = vld.sshfl [vmem:[#allocation1 + $0x8] sm:$0xff pattern:$0x73625140]
    %v1262 = vsel %vm108, %v1260, 0
    %1264 = vmatpush.msra.mxu0 %v1239
    %1265 = vmatpush.msra.mxu0 %v1237
    %1266 = vmatpush.msra.mxu0 %v1235
    %1267 = vmatpush.msra.mxu0 %v1233
    %1268 = vmatpush.msra.mxu0 %v1231
    %1269 = vmatpush.msra.mxu0 %v1229
    %1270 = vmatpush.msra.mxu0 %v1227
    %1271 = vmatpush.msra.mxu0 %v1225
    %1272 = vmatpush.msra.mxu0 %v1223
    %1273 = vmatpush.msra.mxu0 %v1221
    %1274 = vmatpush.msra.mxu0 %v1219
    %1275 = vmatpush.msra.mxu0 %v1217
    %1276 = vmatpush.msra.mxu0 %v1215
    %1277 = vmatpush.msra.mxu0 %v1213
    %1278 = vmatpush.msra.mxu0 %v1211
    %1279 = vmatpush.msra.mxu0 %v1209
    %1280 = vmatmul.f32.gmra.mxu0 %v1259
    %v1281 = vpop.f32.mrf.mxu0
    %v1282 = vadd.f32 %v99, %v1281
    %1283 = vdwg.mxu0
    %1284 = vmatpush.msra.mxu0 0.0
    %1285 = vmatpush.msra.mxu0 0.0
    %1286 = vmatpush.msra.mxu0 0.0
    %1287 = vmatpush.msra.mxu0 0.0
    %1288 = vmatpush.msra.mxu0 0.0
    %1289 = vmatpush.msra.mxu0 0.0
    %1290 = vmatpush.msra.mxu0 0.0
    %1291 = vmatpush.msra.mxu0 0.0
    %1292 = vmatpush.msra.mxu0 %v1255
    %1293 = vmatpush.msra.mxu0 %v1253
    %1294 = vmatpush.msra.mxu0 %v1251
    %1295 = vmatpush.msra.mxu0 %v1249
    %1296 = vmatpush.msra.mxu0 %v1247
    %1297 = vmatpush.msra.mxu0 %v1245
    %1298 = vmatpush.msra.mxu0 %v1243
    %1299 = vmatpush.msra.mxu0 %v1241
    %1300 = vmatmul.f32.gmra.mxu0 %v1262
    %v1301 = vpop.f32.mrf.mxu0
    %v1302 = vadd.f32 %v1282, %v1301
    %1303 = vdwg.mxu0
    %1304 = vmatpush.msra.mxu0 %v1240
    %1305 = vmatpush.msra.mxu0 %v1238
    %1306 = vmatpush.msra.mxu0 %v1236
    %1307 = vmatpush.msra.mxu0 %v1234
    %1308 = vmatpush.msra.mxu0 %v1232
    %1309 = vmatpush.msra.mxu0 %v1230
    %1310 = vmatpush.msra.mxu0 %v1228
    %1311 = vmatpush.msra.mxu0 %v1226
    %1312 = vmatpush.msra.mxu0 %v1224
    %1313 = vmatpush.msra.mxu0 %v1222
    %1314 = vmatpush.msra.mxu0 %v1220
    %1315 = vmatpush.msra.mxu0 %v1218
    %1316 = vmatpush.msra.mxu0 %v1216
    %1317 = vmatpush.msra.mxu0 %v1214
    %1318 = vmatpush.msra.mxu0 %v1212
    %1319 = vmatpush.msra.mxu0 %v1210
    %1320 = vmatmul.f32.gmra.mxu0 %v1259
    %v1321 = vpop.f32.mrf.mxu0
    %v1322 = vadd.f32 %v100, %v1321
    %1323 = vdwg.mxu0
    %1324 = vmatpush.msra.mxu0 0.0
    %1325 = vmatpush.msra.mxu0 0.0
    %1326 = vmatpush.msra.mxu0 0.0
    %1327 = vmatpush.msra.mxu0 0.0
    %1328 = vmatpush.msra.mxu0 0.0
    %1329 = vmatpush.msra.mxu0 0.0
    %1330 = vmatpush.msra.mxu0 0.0
    %1331 = vmatpush.msra.mxu0 0.0
    %1332 = vmatpush.msra.mxu0 %v1256
    %1333 = vmatpush.msra.mxu0 %v1254
    %1334 = vmatpush.msra.mxu0 %v1252
    %1335 = vmatpush.msra.mxu0 %v1250
    %1336 = vmatpush.msra.mxu0 %v1248
    %1337 = vmatpush.msra.mxu0 %v1246
    %1338 = vmatpush.msra.mxu0 %v1244
    %1339 = vmatpush.msra.mxu0 %v1242
    %1340 = vmatmul.f32.gmra.mxu0 %v1262
    %v1341 = vpop.f32.mrf.mxu0
    %v1342 = vadd.f32 %v1322, %v1341
    %1343 = vdwg.mxu0
    %v1344 = vmax.f32 %v1302, 0.0
    %v1345 = vmax.f32 %v1342, 0.0
    %v1348 = vrot.slane %v1345, 6
    %v1349 = vsel %vm196, %v1344, %v1348
    %1351 = vst [vmem:[#allocation2 + $0x24] sm:$0xf] %v1349
    %v1352 = vld [vmem:[%s0 + $0x12] sm:$0xf]
    %v1353 = vld [vmem:[%s1] sm:$0xff]
    %v1354 = vld [vmem:[%s1 + $0x8] sm:$0xff]
    %v1355 = vld [vmem:[%s1 + $0x10] sm:$0xff]
    %v1356 = vld [vmem:[%s1 + $0x18] sm:$0xff]
    %v1357 = vld [vmem:[%s1 + $0x20] sm:$0xff]
    %v1358 = vld [vmem:[%s1 + $0x28] sm:$0xff]
    %v1359 = vld [vmem:[%s1 + $0x30] sm:$0xff]
    %v1360 = vld [vmem:[%s1 + $0x38] sm:$0xff]
    %v1361 = vld [vmem:[%s1 + $0x40] sm:$0xff]
    %v1362 = vld [vmem:[%s1 + $0x48] sm:$0xff]
    %v1363 = vld [vmem:[%s1 + $0x50] sm:$0xff]
    %v1364 = vld [vmem:[%s1 + $0x58] sm:$0xff]
    %v1365 = vld [vmem:[%s1 + $0x60] sm:$0xff]
    %v1366 = vld [vmem:[%s1 + $0x68] sm:$0xff]
    %v1367 = vld [vmem:[%s1 + $0x70] sm:$0xff]
    %v1368 = vld [vmem:[%s1 + $0x78] sm:$0xff]
    %v1369 = vld [vmem:[%s1 + $0x80] sm:$0xff]
    %v1370 = vld [vmem:[%s1 + $0x88] sm:$0xff]
    %v1371 = vld [vmem:[%s1 + $0x90] sm:$0xff]
    %v1372 = vld [vmem:[%s1 + $0x98] sm:$0xff]
    %v1373 = vld [vmem:[%s1 + $0xa0] sm:$0xff]
    %v1374 = vld [vmem:[%s1 + $0xa8] sm:$0xff]
    %v1375 = vld [vmem:[%s1 + $0xb0] sm:$0xff]
    %v1376 = vld [vmem:[%s1 + $0xb8] sm:$0xff]
    %v1377 = vld [vmem:[%s1 + $0xc0] sm:$0xff]
    %v1378 = vld [vmem:[%s1 + $0xc8] sm:$0xff]
    %v1379 = vld [vmem:[%s1 + $0xd0] sm:$0xff]
    %v1380 = vld [vmem:[%s1 + $0xd8] sm:$0xff]
    %v1381 = vld [vmem:[%s1 + $0xe0] sm:$0xff]
    %v1382 = vld [vmem:[%s1 + $0xe8] sm:$0xff]
    %v1383 = vld [vmem:[%s1 + $0xf0] sm:$0xff]
    %v1384 = vld [vmem:[%s1 + $0xf8] sm:$0xff]
    %v1385 = vld [vmem:[%s1 + $0x100] sm:$0xff]
    %v1386 = vld [vmem:[%s1 + $0x108] sm:$0xff]
    %v1387 = vld [vmem:[%s1 + $0x110] sm:$0xff]
    %v1388 = vld [vmem:[%s1 + $0x118] sm:$0xff]
    %v1389 = vld [vmem:[%s1 + $0x120] sm:$0xff]
    %v1390 = vld [vmem:[%s1 + $0x128] sm:$0xff]
    %v1391 = vld [vmem:[%s1 + $0x130] sm:$0xff]
    %v1392 = vld [vmem:[%s1 + $0x138] sm:$0xff]
    %v1393 = vld [vmem:[%s1 + $0x140] sm:$0xff]
    %v1394 = vld [vmem:[%s1 + $0x148] sm:$0xff]
    %v1395 = vld [vmem:[%s1 + $0x150] sm:$0xff]
    %v1396 = vld [vmem:[%s1 + $0x158] sm:$0xff]
    %v1397 = vld [vmem:[%s1 + $0x160] sm:$0xff]
    %v1398 = vld [vmem:[%s1 + $0x168] sm:$0xff]
    %v1399 = vld [vmem:[%s1 + $0x170] sm:$0xff]
    %v1400 = vld [vmem:[%s1 + $0x178] sm:$0xff]
    %1402 = vst [vmem:[#allocation1] ss:$4 sm:$0xff] %v1352
    %v1403 = vld.sshfl [vmem:[#allocation1] sm:$0xff pattern:$0x73625140]
    %v1404 = vld.sshfl [vmem:[#allocation1 + $0x8] sm:$0xff pattern:$0x73625140]
    %v1406 = vsel %vm108, %v1404, 0
    %1408 = vmatpush.msra.mxu0 %v1383
    %1409 = vmatpush.msra.mxu0 %v1381
    %1410 = vmatpush.msra.mxu0 %v1379
    %1411 = vmatpush.msra.mxu0 %v1377
    %1412 = vmatpush.msra.mxu0 %v1375
    %1413 = vmatpush.msra.mxu0 %v1373
    %1414 = vmatpush.msra.mxu0 %v1371
    %1415 = vmatpush.msra.mxu0 %v1369
    %1416 = vmatpush.msra.mxu0 %v1367
    %1417 = vmatpush.msra.mxu0 %v1365
    %1418 = vmatpush.msra.mxu0 %v1363
    %1419 = vmatpush.msra.mxu0 %v1361
    %1420 = vmatpush.msra.mxu0 %v1359
    %1421 = vmatpush.msra.mxu0 %v1357
    %1422 = vmatpush.msra.mxu0 %v1355
    %1423 = vmatpush.msra.mxu0 %v1353
    %1424 = vmatmul.f32.gmra.mxu0 %v1403
    %v1425 = vpop.f32.mrf.mxu0
    %v1426 = vadd.f32 %v99, %v1425
    %1427 = vdwg.mxu0
    %1428 = vmatpush.msra.mxu0 0.0
    %1429 = vmatpush.msra.mxu0 0.0
    %1430 = vmatpush.msra.mxu0 0.0
    %1431 = vmatpush.msra.mxu0 0.0
    %1432 = vmatpush.msra.mxu0 0.0
    %1433 = vmatpush.msra.mxu0 0.0
    %1434 = vmatpush.msra.mxu0 0.0
    %1435 = vmatpush.msra.mxu0 0.0
    %1436 = vmatpush.msra.mxu0 %v1399
    %1437 = vmatpush.msra.mxu0 %v1397
    %1438 = vmatpush.msra.mxu0 %v1395
    %1439 = vmatpush.msra.mxu0 %v1393
    %1440 = vmatpush.msra.mxu0 %v1391
    %1441 = vmatpush.msra.mxu0 %v1389
    %1442 = vmatpush.msra.mxu0 %v1387
    %1443 = vmatpush.msra.mxu0 %v1385
    %1444 = vmatmul.f32.gmra.mxu0 %v1406
    %v1445 = vpop.f32.mrf.mxu0
    %v1446 = vadd.f32 %v1426, %v1445
    %1447 = vdwg.mxu0
    %1448 = vmatpush.msra.mxu0 %v1384
    %1449 = vmatpush.msra.mxu0 %v1382
    %1450 = vmatpush.msra.mxu0 %v1380
    %1451 = vmatpush.msra.mxu0 %v1378
    %1452 = vmatpush.msra.mxu0 %v1376
    %1453 = vmatpush.msra.mxu0 %v1374
    %1454 = vmatpush.msra.mxu0 %v1372
    %1455 = vmatpush.msra.mxu0 %v1370
    %1456 = vmatpush.msra.mxu0 %v1368
    %1457 = vmatpush.msra.mxu0 %v1366
    %1458 = vmatpush.msra.mxu0 %v1364
    %1459 = vmatpush.msra.mxu0 %v1362
    %1460 = vmatpush.msra.mxu0 %v1360
    %1461 = vmatpush.msra.mxu0 %v1358
    %1462 = vmatpush.msra.mxu0 %v1356
    %1463 = vmatpush.msra.mxu0 %v1354
    %1464 = vmatmul.f32.gmra.mxu0 %v1403
    %v1465 = vpop.f32.mrf.mxu0
    %v1466 = vadd.f32 %v100, %v1465
    %1467 = vdwg.mxu0
    %1468 = vmatpush.msra.mxu0 0.0
    %1469 = vmatpush.msra.mxu0 0.0
    %1470 = vmatpush.msra.mxu0 0.0
    %1471 = vmatpush.msra.mxu0 0.0
    %1472 = vmatpush.msra.mxu0 0.0
    %1473 = vmatpush.msra.mxu0 0.0
    %1474 = vmatpush.msra.mxu0 0.0
    %1475 = vmatpush.msra.mxu0 0.0
    %1476 = vmatpush.msra.mxu0 %v1400
    %1477 = vmatpush.msra.mxu0 %v1398
    %1478 = vmatpush.msra.mxu0 %v1396
    %1479 = vmatpush.msra.mxu0 %v1394
    %1480 = vmatpush.msra.mxu0 %v1392
    %1481 = vmatpush.msra.mxu0 %v1390
    %1482 = vmatpush.msra.mxu0 %v1388
    %1483 = vmatpush.msra.mxu0 %v1386
    %1484 = vmatmul.f32.gmra.mxu0 %v1406
    %v1485 = vpop.f32.mrf.mxu0
    %v1486 = vadd.f32 %v1466, %v1485
    %1487 = vdwg.mxu0
    %v1488 = vmax.f32 %v1446, 0.0
    %v1489 = vmax.f32 %v1486, 0.0
    %v1492 = vrot.slane %v1489, 6
    %v1493 = vsel %vm196, %v1488, %v1492
    %1495 = vst [vmem:[#allocation2 + $0x28] sm:$0xf] %v1493
    %v1496 = vld [vmem:[%s0 + $0x14] sm:$0xf]
    %v1497 = vld [vmem:[%s1] sm:$0xff]
    %v1498 = vld [vmem:[%s1 + $0x8] sm:$0xff]
    %v1499 = vld [vmem:[%s1 + $0x10] sm:$0xff]
    %v1500 = vld [vmem:[%s1 + $0x18] sm:$0xff]
    %v1501 = vld [vmem:[%s1 + $0x20] sm:$0xff]
    %v1502 = vld [vmem:[%s1 + $0x28] sm:$0xff]
    %v1503 = vld [vmem:[%s1 + $0x30] sm:$0xff]
    %v1504 = vld [vmem:[%s1 + $0x38] sm:$0xff]
    %v1505 = vld [vmem:[%s1 + $0x40] sm:$0xff]
    %v1506 = vld [vmem:[%s1 + $0x48] sm:$0xff]
    %v1507 = vld [vmem:[%s1 + $0x50] sm:$0xff]
    %v1508 = vld [vmem:[%s1 + $0x58] sm:$0xff]
    %v1509 = vld [vmem:[%s1 + $0x60] sm:$0xff]
    %v1510 = vld [vmem:[%s1 + $0x68] sm:$0xff]
    %v1511 = vld [vmem:[%s1 + $0x70] sm:$0xff]
    %v1512 = vld [vmem:[%s1 + $0x78] sm:$0xff]
    %v1513 = vld [vmem:[%s1 + $0x80] sm:$0xff]
    %v1514 = vld [vmem:[%s1 + $0x88] sm:$0xff]
    %v1515 = vld [vmem:[%s1 + $0x90] sm:$0xff]
    %v1516 = vld [vmem:[%s1 + $0x98] sm:$0xff]
    %v1517 = vld [vmem:[%s1 + $0xa0] sm:$0xff]
    %v1518 = vld [vmem:[%s1 + $0xa8] sm:$0xff]
    %v1519 = vld [vmem:[%s1 + $0xb0] sm:$0xff]
    %v1520 = vld [vmem:[%s1 + $0xb8] sm:$0xff]
    %v1521 = vld [vmem:[%s1 + $0xc0] sm:$0xff]
    %v1522 = vld [vmem:[%s1 + $0xc8] sm:$0xff]
    %v1523 = vld [vmem:[%s1 + $0xd0] sm:$0xff]
    %v1524 = vld [vmem:[%s1 + $0xd8] sm:$0xff]
    %v1525 = vld [vmem:[%s1 + $0xe0] sm:$0xff]
    %v1526 = vld [vmem:[%s1 + $0xe8] sm:$0xff]
    %v1527 = vld [vmem:[%s1 + $0xf0] sm:$0xff]
    %v1528 = vld [vmem:[%s1 + $0xf8] sm:$0xff]
    %v1529 = vld [vmem:[%s1 + $0x100] sm:$0xff]
    %v1530 = vld [vmem:[%s1 + $0x108] sm:$0xff]
    %v1531 = vld [vmem:[%s1 + $0x110] sm:$0xff]
    %v1532 = vld [vmem:[%s1 + $0x118] sm:$0xff]
    %v1533 = vld [vmem:[%s1 + $0x120] sm:$0xff]
    %v1534 = vld [vmem:[%s1 + $0x128] sm:$0xff]
    %v1535 = vld [vmem:[%s1 + $0x130] sm:$0xff]
    %v1536 = vld [vmem:[%s1 + $0x138] sm:$0xff]
    %v1537 = vld [vmem:[%s1 + $0x140] sm:$0xff]
    %v1538 = vld [vmem:[%s1 + $0x148] sm:$0xff]
    %v1539 = vld [vmem:[%s1 + $0x150] sm:$0xff]
    %v1540 = vld [vmem:[%s1 + $0x158] sm:$0xff]
    %v1541 = vld [vmem:[%s1 + $0x160] sm:$0xff]
    %v1542 = vld [vmem:[%s1 + $0x168] sm:$0xff]
    %v1543 = vld [vmem:[%s1 + $0x170] sm:$0xff]
    %v1544 = vld [vmem:[%s1 + $0x178] sm:$0xff]
    %1546 = vst [vmem:[#allocation1] ss:$4 sm:$0xff] %v1496
    %v1547 = vld.sshfl [vmem:[#allocation1] sm:$0xff pattern:$0x73625140]
    %v1548 = vld.sshfl [vmem:[#allocation1 + $0x8] sm:$0xff pattern:$0x73625140]
    %v1550 = vsel %vm108, %v1548, 0
    %1552 = vmatpush.msra.mxu0 %v1527
    %1553 = vmatpush.msra.mxu0 %v1525
    %1554 = vmatpush.msra.mxu0 %v1523
    %1555 = vmatpush.msra.mxu0 %v1521
    %1556 = vmatpush.msra.mxu0 %v1519
    %1557 = vmatpush.msra.mxu0 %v1517
    %1558 = vmatpush.msra.mxu0 %v1515
    %1559 = vmatpush.msra.mxu0 %v1513
    %1560 = vmatpush.msra.mxu0 %v1511
    %1561 = vmatpush.msra.mxu0 %v1509
    %1562 = vmatpush.msra.mxu0 %v1507
    %1563 = vmatpush.msra.mxu0 %v1505
    %1564 = vmatpush.msra.mxu0 %v1503
    %1565 = vmatpush.msra.mxu0 %v1501
    %1566 = vmatpush.msra.mxu0 %v1499
    %1567 = vmatpush.msra.mxu0 %v1497
    %1568 = vmatmul.f32.gmra.mxu0 %v1547
    %v1569 = vpop.f32.mrf.mxu0
    %v1570 = vadd.f32 %v99, %v1569
    %1571 = vdwg.mxu0
    %1572 = vmatpush.msra.mxu0 0.0
    %1573 = vmatpush.msra.mxu0 0.0
    %1574 = vmatpush.msra.mxu0 0.0
    %1575 = vmatpush.msra.mxu0 0.0
    %1576 = vmatpush.msra.mxu0 0.0
    %1577 = vmatpush.msra.mxu0 0.0
    %1578 = vmatpush.msra.mxu0 0.0
    %1579 = vmatpush.msra.mxu0 0.0
    %1580 = vmatpush.msra.mxu0 %v1543
    %1581 = vmatpush.msra.mxu0 %v1541
    %1582 = vmatpush.msra.mxu0 %v1539
    %1583 = vmatpush.msra.mxu0 %v1537
    %1584 = vmatpush.msra.mxu0 %v1535
    %1585 = vmatpush.msra.mxu0 %v1533
    %1586 = vmatpush.msra.mxu0 %v1531
    %1587 = vmatpush.msra.mxu0 %v1529
    %1588 = vmatmul.f32.gmra.mxu0 %v1550
    %v1589 = vpop.f32.mrf.mxu0
    %v1590 = vadd.f32 %v1570, %v1589
    %1591 = vdwg.mxu0
    %1592 = vmatpush.msra.mxu0 %v1528
    %1593 = vmatpush.msra.mxu0 %v1526
    %1594 = vmatpush.msra.mxu0 %v1524
    %1595 = vmatpush.msra.mxu0 %v1522
    %1596 = vmatpush.msra.mxu0 %v1520
    %1597 = vmatpush.msra.mxu0 %v1518
    %1598 = vmatpush.msra.mxu0 %v1516
    %1599 = vmatpush.msra.mxu0 %v1514
    %1600 = vmatpush.msra.mxu0 %v1512
    %1601 = vmatpush.msra.mxu0 %v1510
    %1602 = vmatpush.msra.mxu0 %v1508
    %1603 = vmatpush.msra.mxu0 %v1506
    %1604 = vmatpush.msra.mxu0 %v1504
    %1605 = vmatpush.msra.mxu0 %v1502
    %1606 = vmatpush.msra.mxu0 %v1500
    %1607 = vmatpush.msra.mxu0 %v1498
    %1608 = vmatmul.f32.gmra.mxu0 %v1547
    %v1609 = vpop.f32.mrf.mxu0
    %v1610 = vadd.f32 %v100, %v1609
    %1611 = vdwg.mxu0
    %1612 = vmatpush.msra.mxu0 0.0
    %1613 = vmatpush.msra.mxu0 0.0
    %1614 = vmatpush.msra.mxu0 0.0
    %1615 = vmatpush.msra.mxu0 0.0
    %1616 = vmatpush.msra.mxu0 0.0
    %1617 = vmatpush.msra.mxu0 0.0
    %1618 = vmatpush.msra.mxu0 0.0
    %1619 = vmatpush.msra.mxu0 0.0
    %1620 = vmatpush.msra.mxu0 %v1544
    %1621 = vmatpush.msra.mxu0 %v1542
    %1622 = vmatpush.msra.mxu0 %v1540
    %1623 = vmatpush.msra.mxu0 %v1538
    %1624 = vmatpush.msra.mxu0 %v1536
    %1625 = vmatpush.msra.mxu0 %v1534
    %1626 = vmatpush.msra.mxu0 %v1532
    %1627 = vmatpush.msra.mxu0 %v1530
    %1628 = vmatmul.f32.gmra.mxu0 %v1550
    %v1629 = vpop.f32.mrf.mxu0
    %v1630 = vadd.f32 %v1610, %v1629
    %1631 = vdwg.mxu0
    %v1632 = vmax.f32 %v1590, 0.0
    %v1633 = vmax.f32 %v1630, 0.0
    %v1636 = vrot.slane %v1633, 6
    %v1637 = vsel %vm196, %v1632, %v1636
    %1639 = vst [vmem:[#allocation2 + $0x2c] sm:$0xf] %v1637
    %v1640 = vld [vmem:[%s0 + $0x16] sm:$0xf]
    %v1641 = vld [vmem:[%s1] sm:$0xff]
    %v1642 = vld [vmem:[%s1 + $0x8] sm:$0xff]
    %v1643 = vld [vmem:[%s1 + $0x10] sm:$0xff]
    %v1644 = vld [vmem:[%s1 + $0x18] sm:$0xff]
    %v1645 = vld [vmem:[%s1 + $0x20] sm:$0xff]
    %v1646 = vld [vmem:[%s1 + $0x28] sm:$0xff]
    %v1647 = vld [vmem:[%s1 + $0x30] sm:$0xff]
    %v1648 = vld [vmem:[%s1 + $0x38] sm:$0xff]
    %v1649 = vld [vmem:[%s1 + $0x40] sm:$0xff]
    %v1650 = vld [vmem:[%s1 + $0x48] sm:$0xff]
    %v1651 = vld [vmem:[%s1 + $0x50] sm:$0xff]
    %v1652 = vld [vmem:[%s1 + $0x58] sm:$0xff]
    %v1653 = vld [vmem:[%s1 + $0x60] sm:$0xff]
    %v1654 = vld [vmem:[%s1 + $0x68] sm:$0xff]
    %v1655 = vld [vmem:[%s1 + $0x70] sm:$0xff]
    %v1656 = vld [vmem:[%s1 + $0x78] sm:$0xff]
    %v1657 = vld [vmem:[%s1 + $0x80] sm:$0xff]
    %v1658 = vld [vmem:[%s1 + $0x88] sm:$0xff]
    %v1659 = vld [vmem:[%s1 + $0x90] sm:$0xff]
    %v1660 = vld [vmem:[%s1 + $0x98] sm:$0xff]
    %v1661 = vld [vmem:[%s1 + $0xa0] sm:$0xff]
    %v1662 = vld [vmem:[%s1 + $0xa8] sm:$0xff]
    %v1663 = vld [vmem:[%s1 + $0xb0] sm:$0xff]
    %v1664 = vld [vmem:[%s1 + $0xb8] sm:$0xff]
    %v1665 = vld [vmem:[%s1 + $0xc0] sm:$0xff]
    %v1666 = vld [vmem:[%s1 + $0xc8] sm:$0xff]
    %v1667 = vld [vmem:[%s1 + $0xd0] sm:$0xff]
    %v1668 = vld [vmem:[%s1 + $0xd8] sm:$0xff]
    %v1669 = vld [vmem:[%s1 + $0xe0] sm:$0xff]
    %v1670 = vld [vmem:[%s1 + $0xe8] sm:$0xff]
    %v1671 = vld [vmem:[%s1 + $0xf0] sm:$0xff]
    %v1672 = vld [vmem:[%s1 + $0xf8] sm:$0xff]
    %v1673 = vld [vmem:[%s1 + $0x100] sm:$0xff]
    %v1674 = vld [vmem:[%s1 + $0x108] sm:$0xff]
    %v1675 = vld [vmem:[%s1 + $0x110] sm:$0xff]
    %v1676 = vld [vmem:[%s1 + $0x118] sm:$0xff]
    %v1677 = vld [vmem:[%s1 + $0x120] sm:$0xff]
    %v1678 = vld [vmem:[%s1 + $0x128] sm:$0xff]
    %v1679 = vld [vmem:[%s1 + $0x130] sm:$0xff]
    %v1680 = vld [vmem:[%s1 + $0x138] sm:$0xff]
    %v1681 = vld [vmem:[%s1 + $0x140] sm:$0xff]
    %v1682 = vld [vmem:[%s1 + $0x148] sm:$0xff]
    %v1683 = vld [vmem:[%s1 + $0x150] sm:$0xff]
    %v1684 = vld [vmem:[%s1 + $0x158] sm:$0xff]
    %v1685 = vld [vmem:[%s1 + $0x160] sm:$0xff]
    %v1686 = vld [vmem:[%s1 + $0x168] sm:$0xff]
    %v1687 = vld [vmem:[%s1 + $0x170] sm:$0xff]
    %v1688 = vld [vmem:[%s1 + $0x178] sm:$0xff]
    %1690 = vst [vmem:[#allocation1] ss:$4 sm:$0xff] %v1640
    %v1691 = vld.sshfl [vmem:[#allocation1] sm:$0xff pattern:$0x73625140]
    %v1692 = vld.sshfl [vmem:[#allocation1 + $0x8] sm:$0xff pattern:$0x73625140]
    %v1694 = vsel %vm108, %v1692, 0
    %1696 = vmatpush.msra.mxu0 %v1671
    %1697 = vmatpush.msra.mxu0 %v1669
    %1698 = vmatpush.msra.mxu0 %v1667
    %1699 = vmatpush.msra.mxu0 %v1665
    %1700 = vmatpush.msra.mxu0 %v1663
    %1701 = vmatpush.msra.mxu0 %v1661
    %1702 = vmatpush.msra.mxu0 %v1659
    %1703 = vmatpush.msra.mxu0 %v1657
    %1704 = vmatpush.msra.mxu0 %v1655
    %1705 = vmatpush.msra.mxu0 %v1653
    %1706 = vmatpush.msra.mxu0 %v1651
    %1707 = vmatpush.msra.mxu0 %v1649
    %1708 = vmatpush.msra.mxu0 %v1647
    %1709 = vmatpush.msra.mxu0 %v1645
    %1710 = vmatpush.msra.mxu0 %v1643
    %1711 = vmatpush.msra.mxu0 %v1641
    %1712 = vmatmul.f32.gmra.mxu0 %v1691
    %v1713 = vpop.f32.mrf.mxu0
    %v1714 = vadd.f32 %v99, %v1713
    %1715 = vdwg.mxu0
    %1716 = vmatpush.msra.mxu0 0.0
    %1717 = vmatpush.msra.mxu0 0.0
    %1718 = vmatpush.msra.mxu0 0.0
    %1719 = vmatpush.msra.mxu0 0.0
    %1720 = vmatpush.msra.mxu0 0.0
    %1721 = vmatpush.msra.mxu0 0.0
    %1722 = vmatpush.msra.mxu0 0.0
    %1723 = vmatpush.msra.mxu0 0.0
    %1724 = vmatpush.msra.mxu0 %v1687
    %1725 = vmatpush.msra.mxu0 %v1685
    %1726 = vmatpush.msra.mxu0 %v1683
    %1727 = vmatpush.msra.mxu0 %v1681
    %1728 = vmatpush.msra.mxu0 %v1679
    %1729 = vmatpush.msra.mxu0 %v1677
    %1730 = vmatpush.msra.mxu0 %v1675
    %1731 = vmatpush.msra.mxu0 %v1673
    %1732 = vmatmul.f32.gmra.mxu0 %v1694
    %v1733 = vpop.f32.mrf.mxu0
    %v1734 = vadd.f32 %v1714, %v1733
    %1735 = vdwg.mxu0
    %1736 = vmatpush.msra.mxu0 %v1672
    %1737 = vmatpush.msra.mxu0 %v1670
    %1738 = vmatpush.msra.mxu0 %v1668
    %1739 = vmatpush.msra.mxu0 %v1666
    %1740 = vmatpush.msra.mxu0 %v1664
    %1741 = vmatpush.msra.mxu0 %v1662
    %1742 = vmatpush.msra.mxu0 %v1660
    %1743 = vmatpush.msra.mxu0 %v1658
    %1744 = vmatpush.msra.mxu0 %v1656
    %1745 = vmatpush.msra.mxu0 %v1654
    %1746 = vmatpush.msra.mxu0 %v1652
    %1747 = vmatpush.msra.mxu0 %v1650
    %1748 = vmatpush.msra.mxu0 %v1648
    %1749 = vmatpush.msra.mxu0 %v1646
    %1750 = vmatpush.msra.mxu0 %v1644
    %1751 = vmatpush.msra.mxu0 %v1642
    %1752 = vmatmul.f32.gmra.mxu0 %v1691
    %v1753 = vpop.f32.mrf.mxu0
    %v1754 = vadd.f32 %v100, %v1753
    %1755 = vdwg.mxu0
    %1756 = vmatpush.msra.mxu0 0.0
    %1757 = vmatpush.msra.mxu0 0.0
    %1758 = vmatpush.msra.mxu0 0.0
    %1759 = vmatpush.msra.mxu0 0.0
    %1760 = vmatpush.msra.mxu0 0.0
    %1761 = vmatpush.msra.mxu0 0.0
    %1762 = vmatpush.msra.mxu0 0.0
    %1763 = vmatpush.msra.mxu0 0.0
    %1764 = vmatpush.msra.mxu0 %v1688
    %1765 = vmatpush.msra.mxu0 %v1686
    %1766 = vmatpush.msra.mxu0 %v1684
    %1767 = vmatpush.msra.mxu0 %v1682
    %1768 = vmatpush.msra.mxu0 %v1680
    %1769 = vmatpush.msra.mxu0 %v1678
    %1770 = vmatpush.msra.mxu0 %v1676
    %1771 = vmatpush.msra.mxu0 %v1674
    %1772 = vmatmul.f32.gmra.mxu0 %v1694
    %v1773 = vpop.f32.mrf.mxu0
    %v1774 = vadd.f32 %v1754, %v1773
    %1775 = vdwg.mxu0
    %v1776 = vmax.f32 %v1734, 0.0
    %v1777 = vmax.f32 %v1774, 0.0
    %v1780 = vrot.slane %v1777, 6
    %v1781 = vsel %vm196, %v1776, %v1780
    %1783 = vst [vmem:[#allocation2 + $0x30] sm:$0xf] %v1781
    %v1784 = vld [vmem:[%s0 + $0x18] sm:$0xf]
    %v1785 = vld [vmem:[%s1] sm:$0xff]
    %v1786 = vld [vmem:[%s1 + $0x8] sm:$0xff]
    %v1787 = vld [vmem:[%s1 + $0x10] sm:$0xff]
    %v1788 = vld [vmem:[%s1 + $0x18] sm:$0xff]
    %v1789 = vld [vmem:[%s1 + $0x20] sm:$0xff]
    %v1790 = vld [vmem:[%s1 + $0x28] sm:$0xff]
    %v1791 = vld [vmem:[%s1 + $0x30] sm:$0xff]
    %v1792 = vld [vmem:[%s1 + $0x38] sm:$0xff]
    %v1793 = vld [vmem:[%s1 + $0x40] sm:$0xff]
    %v1794 = vld [vmem:[%s1 + $0x48] sm:$0xff]
    %v1795 = vld [vmem:[%s1 + $0x50] sm:$0xff]
    %v1796 = vld [vmem:[%s1 + $0x58] sm:$0xff]
    %v1797 = vld [vmem:[%s1 + $0x60] sm:$0xff]
    %v1798 = vld [vmem:[%s1 + $0x68] sm:$0xff]
    %v1799 = vld [vmem:[%s1 + $0x70] sm:$0xff]
    %v1800 = vld [vmem:[%s1 + $0x78] sm:$0xff]
    %v1801 = vld [vmem:[%s1 + $0x80] sm:$0xff]
    %v1802 = vld [vmem:[%s1 + $0x88] sm:$0xff]
    %v1803 = vld [vmem:[%s1 + $0x90] sm:$0xff]
    %v1804 = vld [vmem:[%s1 + $0x98] sm:$0xff]
    %v1805 = vld [vmem:[%s1 + $0xa0] sm:$0xff]
    %v1806 = vld [vmem:[%s1 + $0xa8] sm:$0xff]
    %v1807 = vld [vmem:[%s1 + $0xb0] sm:$0xff]
    %v1808 = vld [vmem:[%s1 + $0xb8] sm:$0xff]
    %v1809 = vld [vmem:[%s1 + $0xc0] sm:$0xff]
    %v1810 = vld [vmem:[%s1 + $0xc8] sm:$0xff]
    %v1811 = vld [vmem:[%s1 + $0xd0] sm:$0xff]
    %v1812 = vld [vmem:[%s1 + $0xd8] sm:$0xff]
    %v1813 = vld [vmem:[%s1 + $0xe0] sm:$0xff]
    %v1814 = vld [vmem:[%s1 + $0xe8] sm:$0xff]
    %v1815 = vld [vmem:[%s1 + $0xf0] sm:$0xff]
    %v1816 = vld [vmem:[%s1 + $0xf8] sm:$0xff]
    %v1817 = vld [vmem:[%s1 + $0x100] sm:$0xff]
    %v1818 = vld [vmem:[%s1 + $0x108] sm:$0xff]
    %v1819 = vld [vmem:[%s1 + $0x110] sm:$0xff]
    %v1820 = vld [vmem:[%s1 + $0x118] sm:$0xff]
    %v1821 = vld [vmem:[%s1 + $0x120] sm:$0xff]
    %v1822 = vld [vmem:[%s1 + $0x128] sm:$0xff]
    %v1823 = vld [vmem:[%s1 + $0x130] sm:$0xff]
    %v1824 = vld [vmem:[%s1 + $0x138] sm:$0xff]
    %v1825 = vld [vmem:[%s1 + $0x140] sm:$0xff]
    %v1826 = vld [vmem:[%s1 + $0x148] sm:$0xff]
    %v1827 = vld [vmem:[%s1 + $0x150] sm:$0xff]
    %v1828 = vld [vmem:[%s1 + $0x158] sm:$0xff]
    %v1829 = vld [vmem:[%s1 + $0x160] sm:$0xff]
    %v1830 = vld [vmem:[%s1 + $0x168] sm:$0xff]
    %v1831 = vld [vmem:[%s1 + $0x170] sm:$0xff]
    %v1832 = vld [vmem:[%s1 + $0x178] sm:$0xff]
    %1834 = vst [vmem:[#allocation1] ss:$4 sm:$0xff] %v1784
    %v1835 = vld.sshfl [vmem:[#allocation1] sm:$0xff pattern:$0x73625140]
    %v1836 = vld.sshfl [vmem:[#allocation1 + $0x8] sm:$0xff pattern:$0x73625140]
    %v1838 = vsel %vm108, %v1836, 0
    %1840 = vmatpush.msra.mxu0 %v1815
    %1841 = vmatpush.msra.mxu0 %v1813
    %1842 = vmatpush.msra.mxu0 %v1811
    %1843 = vmatpush.msra.mxu0 %v1809
    %1844 = vmatpush.msra.mxu0 %v1807
    %1845 = vmatpush.msra.mxu0 %v1805
    %1846 = vmatpush.msra.mxu0 %v1803
    %1847 = vmatpush.msra.mxu0 %v1801
    %1848 = vmatpush.msra.mxu0 %v1799
    %1849 = vmatpush.msra.mxu0 %v1797
    %1850 = vmatpush.msra.mxu0 %v1795
    %1851 = vmatpush.msra.mxu0 %v1793
    %1852 = vmatpush.msra.mxu0 %v1791
    %1853 = vmatpush.msra.mxu0 %v1789
    %1854 = vmatpush.msra.mxu0 %v1787
    %1855 = vmatpush.msra.mxu0 %v1785
    %1856 = vmatmul.f32.gmra.mxu0 %v1835
    %v1857 = vpop.f32.mrf.mxu0
    %v1858 = vadd.f32 %v99, %v1857
    %1859 = vdwg.mxu0
    %1860 = vmatpush.msra.mxu0 0.0
    %1861 = vmatpush.msra.mxu0 0.0
    %1862 = vmatpush.msra.mxu0 0.0
    %1863 = vmatpush.msra.mxu0 0.0
    %1864 = vmatpush.msra.mxu0 0.0
    %1865 = vmatpush.msra.mxu0 0.0
    %1866 = vmatpush.msra.mxu0 0.0
    %1867 = vmatpush.msra.mxu0 0.0
    %1868 = vmatpush.msra.mxu0 %v1831
    %1869 = vmatpush.msra.mxu0 %v1829
    %1870 = vmatpush.msra.mxu0 %v1827
    %1871 = vmatpush.msra.mxu0 %v1825
    %1872 = vmatpush.msra.mxu0 %v1823
    %1873 = vmatpush.msra.mxu0 %v1821
    %1874 = vmatpush.msra.mxu0 %v1819
    %1875 = vmatpush.msra.mxu0 %v1817
    %1876 = vmatmul.f32.gmra.mxu0 %v1838
    %v1877 = vpop.f32.mrf.mxu0
    %v1878 = vadd.f32 %v1858, %v1877
    %1879 = vdwg.mxu0
    %1880 = vmatpush.msra.mxu0 %v1816
    %1881 = vmatpush.msra.mxu0 %v1814
    %1882 = vmatpush.msra.mxu0 %v1812
    %1883 = vmatpush.msra.mxu0 %v1810
    %1884 = vmatpush.msra.mxu0 %v1808
    %1885 = vmatpush.msra.mxu0 %v1806
    %1886 = vmatpush.msra.mxu0 %v1804
    %1887 = vmatpush.msra.mxu0 %v1802
    %1888 = vmatpush.msra.mxu0 %v1800
    %1889 = vmatpush.msra.mxu0 %v1798
    %1890 = vmatpush.msra.mxu0 %v1796
    %1891 = vmatpush.msra.mxu0 %v1794
    %1892 = vmatpush.msra.mxu0 %v1792
    %1893 = vmatpush.msra.mxu0 %v1790
    %1894 = vmatpush.msra.mxu0 %v1788
    %1895 = vmatpush.msra.mxu0 %v1786
    %1896 = vmatmul.f32.gmra.mxu0 %v1835
    %v1897 = vpop.f32.mrf.mxu0
    %v1898 = vadd.f32 %v100, %v1897
    %1899 = vdwg.mxu0
    %1900 = vmatpush.msra.mxu0 0.0
    %1901 = vmatpush.msra.mxu0 0.0
    %1902 = vmatpush.msra.mxu0 0.0
    %1903 = vmatpush.msra.mxu0 0.0
    %1904 = vmatpush.msra.mxu0 0.0
    %1905 = vmatpush.msra.mxu0 0.0
    %1906 = vmatpush.msra.mxu0 0.0
    %1907 = vmatpush.msra.mxu0 0.0
    %1908 = vmatpush.msra.mxu0 %v1832
    %1909 = vmatpush.msra.mxu0 %v1830
    %1910 = vmatpush.msra.mxu0 %v1828
    %1911 = vmatpush.msra.mxu0 %v1826
    %1912 = vmatpush.msra.mxu0 %v1824
    %1913 = vmatpush.msra.mxu0 %v1822
    %1914 = vmatpush.msra.mxu0 %v1820
    %1915 = vmatpush.msra.mxu0 %v1818
    %1916 = vmatmul.f32.gmra.mxu0 %v1838
    %v1917 = vpop.f32.mrf.mxu0
    %v1918 = vadd.f32 %v1898, %v1917
    %1919 = vdwg.mxu0
    %v1920 = vmax.f32 %v1878, 0.0
    %v1921 = vmax.f32 %v1918, 0.0
    %v1924 = vrot.slane %v1921, 6
    %v1925 = vsel %vm196, %v1920, %v1924
    %1927 = vst [vmem:[#allocation2 + $0x34] sm:$0xf] %v1925
    %v1928 = vld [vmem:[%s0 + $0x1a] sm:$0xf]
    %v1929 = vld [vmem:[%s1] sm:$0xff]
    %v1930 = vld [vmem:[%s1 + $0x8] sm:$0xff]
    %v1931 = vld [vmem:[%s1 + $0x10] sm:$0xff]
    %v1932 = vld [vmem:[%s1 + $0x18] sm:$0xff]
    %v1933 = vld [vmem:[%s1 + $0x20] sm:$0xff]
    %v1934 = vld [vmem:[%s1 + $0x28] sm:$0xff]
    %v1935 = vld [vmem:[%s1 + $0x30] sm:$0xff]
    %v1936 = vld [vmem:[%s1 + $0x38] sm:$0xff]
    %v1937 = vld [vmem:[%s1 + $0x40] sm:$0xff]
    %v1938 = vld [vmem:[%s1 + $0x48] sm:$0xff]
    %v1939 = vld [vmem:[%s1 + $0x50] sm:$0xff]
    %v1940 = vld [vmem:[%s1 + $0x58] sm:$0xff]
    %v1941 = vld [vmem:[%s1 + $0x60] sm:$0xff]
    %v1942 = vld [vmem:[%s1 + $0x68] sm:$0xff]
    %v1943 = vld [vmem:[%s1 + $0x70] sm:$0xff]
    %v1944 = vld [vmem:[%s1 + $0x78] sm:$0xff]
    %v1945 = vld [vmem:[%s1 + $0x80] sm:$0xff]
    %v1946 = vld [vmem:[%s1 + $0x88] sm:$0xff]
    %v1947 = vld [vmem:[%s1 + $0x90] sm:$0xff]
    %v1948 = vld [vmem:[%s1 + $0x98] sm:$0xff]
    %v1949 = vld [vmem:[%s1 + $0xa0] sm:$0xff]
    %v1950 = vld [vmem:[%s1 + $0xa8] sm:$0xff]
    %v1951 = vld [vmem:[%s1 + $0xb0] sm:$0xff]
    %v1952 = vld [vmem:[%s1 + $0xb8] sm:$0xff]
    %v1953 = vld [vmem:[%s1 + $0xc0] sm:$0xff]
    %v1954 = vld [vmem:[%s1 + $0xc8] sm:$0xff]
    %v1955 = vld [vmem:[%s1 + $0xd0] sm:$0xff]
    %v1956 = vld [vmem:[%s1 + $0xd8] sm:$0xff]
    %v1957 = vld [vmem:[%s1 + $0xe0] sm:$0xff]
    %v1958 = vld [vmem:[%s1 + $0xe8] sm:$0xff]
    %v1959 = vld [vmem:[%s1 + $0xf0] sm:$0xff]
    %v1960 = vld [vmem:[%s1 + $0xf8] sm:$0xff]
    %v1961 = vld [vmem:[%s1 + $0x100] sm:$0xff]
    %v1962 = vld [vmem:[%s1 + $0x108] sm:$0xff]
    %v1963 = vld [vmem:[%s1 + $0x110] sm:$0xff]
    %v1964 = vld [vmem:[%s1 + $0x118] sm:$0xff]
    %v1965 = vld [vmem:[%s1 + $0x120] sm:$0xff]
    %v1966 = vld [vmem:[%s1 + $0x128] sm:$0xff]
    %v1967 = vld [vmem:[%s1 + $0x130] sm:$0xff]
    %v1968 = vld [vmem:[%s1 + $0x138] sm:$0xff]
    %v1969 = vld [vmem:[%s1 + $0x140] sm:$0xff]
    %v1970 = vld [vmem:[%s1 + $0x148] sm:$0xff]
    %v1971 = vld [vmem:[%s1 + $0x150] sm:$0xff]
    %v1972 = vld [vmem:[%s1 + $0x158] sm:$0xff]
    %v1973 = vld [vmem:[%s1 + $0x160] sm:$0xff]
    %v1974 = vld [vmem:[%s1 + $0x168] sm:$0xff]
    %v1975 = vld [vmem:[%s1 + $0x170] sm:$0xff]
    %v1976 = vld [vmem:[%s1 + $0x178] sm:$0xff]
    %1978 = vst [vmem:[#allocation1] ss:$4 sm:$0xff] %v1928
    %v1979 = vld.sshfl [vmem:[#allocation1] sm:$0xff pattern:$0x73625140]
    %v1980 = vld.sshfl [vmem:[#allocation1 + $0x8] sm:$0xff pattern:$0x73625140]
    %v1982 = vsel %vm108, %v1980, 0
    %1984 = vmatpush.msra.mxu0 %v1959
    %1985 = vmatpush.msra.mxu0 %v1957
    %1986 = vmatpush.msra.mxu0 %v1955
    %1987 = vmatpush.msra.mxu0 %v1953
    %1988 = vmatpush.msra.mxu0 %v1951
    %1989 = vmatpush.msra.mxu0 %v1949
    %1990 = vmatpush.msra.mxu0 %v1947
    %1991 = vmatpush.msra.mxu0 %v1945
    %1992 = vmatpush.msra.mxu0 %v1943
    %1993 = vmatpush.msra.mxu0 %v1941
    %1994 = vmatpush.msra.mxu0 %v1939
    %1995 = vmatpush.msra.mxu0 %v1937
    %1996 = vmatpush.msra.mxu0 %v1935
    %1997 = vmatpush.msra.mxu0 %v1933
    %1998 = vmatpush.msra.mxu0 %v1931
    %1999 = vmatpush.msra.mxu0 %v1929
    %2000 = vmatmul.f32.gmra.mxu0 %v1979
    %v2001 = vpop.f32.mrf.mxu0
    %v2002 = vadd.f32 %v99, %v2001
    %2003 = vdwg.mxu0
    %2004 = vmatpush.msra.mxu0 0.0
    %2005 = vmatpush.msra.mxu0 0.0
    %2006 = vmatpush.msra.mxu0 0.0
    %2007 = vmatpush.msra.mxu0 0.0
    %2008 = vmatpush.msra.mxu0 0.0
    %2009 = vmatpush.msra.mxu0 0.0
    %2010 = vmatpush.msra.mxu0 0.0
    %2011 = vmatpush.msra.mxu0 0.0
    %2012 = vmatpush.msra.mxu0 %v1975
    %2013 = vmatpush.msra.mxu0 %v1973
    %2014 = vmatpush.msra.mxu0 %v1971
    %2015 = vmatpush.msra.mxu0 %v1969
    %2016 = vmatpush.msra.mxu0 %v1967
    %2017 = vmatpush.msra.mxu0 %v1965
    %2018 = vmatpush.msra.mxu0 %v1963
    %2019 = vmatpush.msra.mxu0 %v1961
    %2020 = vmatmul.f32.gmra.mxu0 %v1982
    %v2021 = vpop.f32.mrf.mxu0
    %v2022 = vadd.f32 %v2002, %v2021
    %2023 = vdwg.mxu0
    %2024 = vmatpush.msra.mxu0 %v1960
    %2025 = vmatpush.msra.mxu0 %v1958
    %2026 = vmatpush.msra.mxu0 %v1956
    %2027 = vmatpush.msra.mxu0 %v1954
    %2028 = vmatpush.msra.mxu0 %v1952
    %2029 = vmatpush.msra.mxu0 %v1950
    %2030 = vmatpush.msra.mxu0 %v1948
    %2031 = vmatpush.msra.mxu0 %v1946
    %2032 = vmatpush.msra.mxu0 %v1944
    %2033 = vmatpush.msra.mxu0 %v1942
    %2034 = vmatpush.msra.mxu0 %v1940
    %2035 = vmatpush.msra.mxu0 %v1938
    %2036 = vmatpush.msra.mxu0 %v1936
    %2037 = vmatpush.msra.mxu0 %v1934
    %2038 = vmatpush.msra.mxu0 %v1932
    %2039 = vmatpush.msra.mxu0 %v1930
    %2040 = vmatmul.f32.gmra.mxu0 %v1979
    %v2041 = vpop.f32.mrf.mxu0
    %v2042 = vadd.f32 %v100, %v2041
    %2043 = vdwg.mxu0
    %2044 = vmatpush.msra.mxu0 0.0
    %2045 = vmatpush.msra.mxu0 0.0
    %2046 = vmatpush.msra.mxu0 0.0
    %2047 = vmatpush.msra.mxu0 0.0
    %2048 = vmatpush.msra.mxu0 0.0
    %2049 = vmatpush.msra.mxu0 0.0
    %2050 = vmatpush.msra.mxu0 0.0
    %2051 = vmatpush.msra.mxu0 0.0
    %2052 = vmatpush.msra.mxu0 %v1976
    %2053 = vmatpush.msra.mxu0 %v1974
    %2054 = vmatpush.msra.mxu0 %v1972
    %2055 = vmatpush.msra.mxu0 %v1970
    %2056 = vmatpush.msra.mxu0 %v1968
    %2057 = vmatpush.msra.mxu0 %v1966
    %2058 = vmatpush.msra.mxu0 %v1964
    %2059 = vmatpush.msra.mxu0 %v1962
    %2060 = vmatmul.f32.gmra.mxu0 %v1982
    %v2061 = vpop.f32.mrf.mxu0
    %v2062 = vadd.f32 %v2042, %v2061
    %2063 = vdwg.mxu0
    %v2064 = vmax.f32 %v2022, 0.0
    %v2065 = vmax.f32 %v2062, 0.0
    %v2068 = vrot.slane %v2065, 6
    %v2069 = vsel %vm196, %v2064, %v2068
    %2071 = vst [vmem:[#allocation2 + $0x38] sm:$0xf] %v2069
    %v2072 = vld [vmem:[#allocation2] sm:$0xff]
    %v2073 = vld [vmem:[#allocation2 + $0x8] sm:$0xf]
    %v2074 = vld [vmem:[#allocation4] sm:$0xff]
    %v2075 = vld [vmem:[#allocation4 + $0x8] sm:$0xff]
    %v2076 = vld [vmem:[#allocation4 + $0x10] sm:$0xff]
    %v2077 = vld [vmem:[#allocation4 + $0x18] sm:$0xff]
    %v2078 = vld [vmem:[#allocation4 + $0x20] sm:$0xff]
    %v2079 = vld [vmem:[#allocation4 + $0x28] sm:$0xff]
    %v2080 = vld [vmem:[#allocation4 + $0x30] sm:$0xff]
    %v2081 = vld [vmem:[#allocation4 + $0x38] sm:$0xff]
    %v2082 = vld [vmem:[#allocation4 + $0x40] sm:$0xff]
    %v2083 = vld [vmem:[#allocation4 + $0x48] sm:$0xff]
    %v2084 = vld [vmem:[#allocation4 + $0x50] sm:$0xff]
    %v2085 = vld [vmem:[#allocation4 + $0x58] sm:$0xff]
    %v2086 = vld [vmem:[#allocation4 + $0x60] sm:$0xff]
    %v2087 = vld [vmem:[#allocation4 + $0x68] sm:$0xff]
    %v2088 = vld [vmem:[#allocation4 + $0x70] sm:$0xff]
    %v2089 = vld [vmem:[#allocation4 + $0x78] sm:$0xff]
    %v2090 = vld [vmem:[#allocation4 + $0x80] sm:$0xff]
    %v2091 = vld [vmem:[#allocation4 + $0x88] sm:$0xff]
    %v2092 = vld [vmem:[#allocation4 + $0x90] sm:$0xff]
    %v2093 = vld [vmem:[#allocation4 + $0x98] sm:$0xff]
    %v2094 = vld [vmem:[#allocation4 + $0xa0] sm:$0xff]
    %v2095 = vld [vmem:[#allocation4 + $0xa8] sm:$0xff]
    %v2096 = vld [vmem:[#allocation4 + $0xb0] sm:$0xff]
    %v2097 = vld [vmem:[#allocation4 + $0xb8] sm:$0xff]
    %v2098 = vld [vmem:[#allocation4 + $0xc0] sm:$0xff]
    %v2099 = vld [vmem:[#allocation4 + $0xc8] sm:$0xff]
    %v2100 = vld [vmem:[#allocation4 + $0xd0] sm:$0xff]
    %v2101 = vld [vmem:[#allocation4 + $0xd8] sm:$0xff]
    %v2102 = vld [vmem:[#allocation4 + $0xe0] sm:$0xff]
    %v2103 = vld [vmem:[#allocation4 + $0xe8] sm:$0xff]
    %v2104 = vld [vmem:[#allocation4 + $0xf0] sm:$0xff]
    %v2105 = vld [vmem:[#allocation4 + $0xf8] sm:$0xff]
    %v2106 = vld [vmem:[#allocation4 + $0x100] sm:$0xff]
    %v2107 = vld [vmem:[#allocation4 + $0x108] sm:$0xff]
    %v2108 = vld [vmem:[#allocation4 + $0x110] sm:$0xff]
    %v2109 = vld [vmem:[#allocation4 + $0x118] sm:$0xff]
    %v2110 = vld [vmem:[#allocation4 + $0x120] sm:$0xff]
    %v2111 = vld [vmem:[#allocation4 + $0x128] sm:$0xff]
    %v2112 = vld [vmem:[#allocation4 + $0x130] sm:$0xff]
    %v2113 = vld [vmem:[#allocation4 + $0x138] sm:$0xff]
    %v2114 = vld [vmem:[#allocation4 + $0x140] sm:$0xff]
    %v2115 = vld [vmem:[#allocation4 + $0x148] sm:$0xff]
    %v2116 = vld [vmem:[#allocation4 + $0x150] sm:$0xff]
    %v2117 = vld [vmem:[#allocation4 + $0x158] sm:$0xff]
    %v2118 = vld [vmem:[#allocation4 + $0x160] sm:$0xff]
    %v2119 = vld [vmem:[#allocation4 + $0x168] sm:$0xff]
    %v2120 = vld [vmem:[#allocation4 + $0x170] sm:$0xff]
    %v2121 = vld [vmem:[#allocation4 + $0x178] sm:$0xff]
    %v2122 = vld [vmem:[#allocation4 + $0x180] sm:$0xff]
    %v2123 = vld [vmem:[#allocation4 + $0x188] sm:$0xff]
    %v2124 = vld [vmem:[#allocation4 + $0x190] sm:$0xff]
    %v2125 = vld [vmem:[#allocation4 + $0x198] sm:$0xff]
    %v2126 = vld [vmem:[#allocation4 + $0x1a0] sm:$0xff]
    %v2127 = vld [vmem:[#allocation4 + $0x1a8] sm:$0xff]
    %v2128 = vld [vmem:[#allocation4 + $0x1b0] sm:$0xff]
    %v2129 = vld [vmem:[#allocation4 + $0x1b8] sm:$0xff]
    %v2130 = vld [vmem:[#allocation4 + $0x1c0] sm:$0xff]
    %v2131 = vld [vmem:[#allocation4 + $0x1c8] sm:$0xff]
    %v2132 = vld [vmem:[#allocation4 + $0x1d0] sm:$0xff]
    %v2133 = vld [vmem:[#allocation4 + $0x1d8] sm:$0xff]
    %v2134 = vld [vmem:[#allocation4 + $0x1e0] sm:$0xff]
    %v2135 = vld [vmem:[#allocation4 + $0x1e8] sm:$0xff]
    %v2136 = vld [vmem:[#allocation4 + $0x1f0] sm:$0xff]
    %v2137 = vld [vmem:[#allocation4 + $0x1f8] sm:$0xff]
    %v2138 = vld [vmem:[#allocation4 + $0x200] sm:$0xff]
    %v2139 = vld [vmem:[#allocation4 + $0x208] sm:$0xff]
    %v2140 = vld [vmem:[#allocation4 + $0x210] sm:$0xff]
    %v2141 = vld [vmem:[#allocation4 + $0x218] sm:$0xff]
    %v2142 = vld [vmem:[#allocation4 + $0x220] sm:$0xff]
    %v2143 = vld [vmem:[#allocation4 + $0x228] sm:$0xff]
    %v2144 = vld [vmem:[#allocation4 + $0x230] sm:$0xff]
    %v2145 = vld [vmem:[#allocation4 + $0x238] sm:$0xff]
    %v2146 = vld [vmem:[#allocation4 + $0x240] sm:$0xff]
    %v2147 = vld [vmem:[#allocation4 + $0x248] sm:$0xff]
    %v2148 = vld [vmem:[#allocation4 + $0x250] sm:$0xff]
    %v2149 = vld [vmem:[#allocation4 + $0x258] sm:$0xff]
    %v2150 = vld [vmem:[#allocation4 + $0x260] sm:$0xff]
    %v2151 = vld [vmem:[#allocation4 + $0x268] sm:$0xff]
    %v2152 = vld [vmem:[#allocation4 + $0x270] sm:$0xff]
    %v2153 = vld [vmem:[#allocation4 + $0x278] sm:$0xff]
    %v2154 = vld [vmem:[#allocation4 + $0x280] sm:$0xff]
    %v2155 = vld [vmem:[#allocation4 + $0x288] sm:$0xff]
    %v2156 = vld [vmem:[#allocation4 + $0x290] sm:$0xff]
    %v2157 = vld [vmem:[#allocation4 + $0x298] sm:$0xff]
    %v2158 = vld [vmem:[#allocation4 + $0x2a0] sm:$0xff]
    %v2159 = vld [vmem:[#allocation4 + $0x2a8] sm:$0xff]
    %v2160 = vld [vmem:[#allocation4 + $0x2b0] sm:$0xff]
    %v2161 = vld [vmem:[#allocation4 + $0x2b8] sm:$0xff]
    %v2162 = vld [vmem:[#allocation4 + $0x2c0] sm:$0xff]
    %v2163 = vld [vmem:[#allocation4 + $0x2c8] sm:$0xff]
    %v2164 = vld [vmem:[#allocation4 + $0x2d0] sm:$0xff]
    %v2165 = vld [vmem:[#allocation4 + $0x2d8] sm:$0xff]
    %v2166 = vld [vmem:[#allocation4 + $0x2e0] sm:$0xff]
    %v2167 = vld [vmem:[#allocation4 + $0x2e8] sm:$0xff]
    %v2168 = vld [vmem:[#allocation4 + $0x2f0] sm:$0xff]
    %v2169 = vld [vmem:[#allocation4 + $0x2f8] sm:$0xff]
    %v2170 = vld [vmem:[#allocation4 + $0x300] sm:$0xff]
    %v2171 = vld [vmem:[#allocation4 + $0x308] sm:$0xff]
    %v2172 = vld [vmem:[#allocation4 + $0x310] sm:$0xff]
    %v2173 = vld [vmem:[#allocation4 + $0x318] sm:$0xff]
    %v2174 = vld [vmem:[#allocation4 + $0x320] sm:$0xff]
    %v2175 = vld [vmem:[#allocation4 + $0x328] sm:$0xff]
    %v2176 = vld [vmem:[#allocation4 + $0x330] sm:$0xff]
    %v2177 = vld [vmem:[#allocation4 + $0x338] sm:$0xff]
    %v2178 = vld [vmem:[#allocation4 + $0x340] sm:$0xff]
    %v2179 = vld [vmem:[#allocation4 + $0x348] sm:$0xff]
    %v2180 = vld [vmem:[#allocation4 + $0x350] sm:$0xff]
    %v2181 = vld [vmem:[#allocation4 + $0x358] sm:$0xff]
    %v2182 = vld [vmem:[#allocation4 + $0x360] sm:$0xff]
    %v2183 = vld [vmem:[#allocation4 + $0x368] sm:$0xff]
    %v2184 = vld [vmem:[#allocation4 + $0x370] sm:$0xff]
    %v2185 = vld [vmem:[#allocation4 + $0x378] sm:$0xff]
    %v2186 = vld [vmem:[#allocation4 + $0x380] sm:$0xff]
    %v2187 = vld [vmem:[#allocation4 + $0x388] sm:$0xff]
    %v2188 = vld [vmem:[#allocation4 + $0x390] sm:$0xff]
    %v2189 = vld [vmem:[#allocation4 + $0x398] sm:$0xff]
    %v2190 = vld [vmem:[#allocation4 + $0x3a0] sm:$0xff]
    %v2191 = vld [vmem:[#allocation4 + $0x3a8] sm:$0xff]
    %v2192 = vld [vmem:[#allocation4 + $0x3b0] sm:$0xff]
    %v2193 = vld [vmem:[#allocation4 + $0x3b8] sm:$0xff]
    %v2194 = vld [vmem:[#allocation4 + $0x3c0] sm:$0xff]
    %v2195 = vld [vmem:[#allocation4 + $0x3c8] sm:$0xff]
    %v2196 = vld [vmem:[#allocation4 + $0x3d0] sm:$0xff]
    %v2197 = vld [vmem:[#allocation4 + $0x3d8] sm:$0xff]
    %v2198 = vld [vmem:[#allocation4 + $0x3e0] sm:$0xff]
    %v2199 = vld [vmem:[#allocation4 + $0x3e8] sm:$0xff]
    %v2200 = vld [vmem:[#allocation4 + $0x3f0] sm:$0xff]
    %v2201 = vld [vmem:[#allocation4 + $0x3f8] sm:$0xff]
    %v2202 = vld [vmem:[#allocation4 + $0x400] sm:$0xff]
    %v2203 = vld [vmem:[#allocation4 + $0x408] sm:$0xff]
    %v2204 = vld [vmem:[#allocation4 + $0x410] sm:$0xff]
    %v2205 = vld [vmem:[#allocation4 + $0x418] sm:$0xff]
    %v2206 = vld [vmem:[#allocation4 + $0x420] sm:$0xff]
    %v2207 = vld [vmem:[#allocation4 + $0x428] sm:$0xff]
    %v2208 = vld [vmem:[#allocation4 + $0x430] sm:$0xff]
    %v2209 = vld [vmem:[#allocation4 + $0x438] sm:$0xff]
    %v2210 = vld [vmem:[#allocation4 + $0x440] sm:$0xff]
    %v2211 = vld [vmem:[#allocation4 + $0x448] sm:$0xff]
    %v2212 = vld [vmem:[#allocation4 + $0x450] sm:$0xff]
    %v2213 = vld [vmem:[#allocation4 + $0x458] sm:$0xff]
    %v2214 = vld [vmem:[#allocation4 + $0x460] sm:$0xff]
    %v2215 = vld [vmem:[#allocation4 + $0x468] sm:$0xff]
    %v2216 = vld [vmem:[#allocation4 + $0x470] sm:$0xff]
    %v2217 = vld [vmem:[#allocation4 + $0x478] sm:$0xff]
    %v2218 = vld [vmem:[#allocation4 + $0x480] sm:$0xff]
    %v2219 = vld [vmem:[#allocation4 + $0x488] sm:$0xff]
    %v2220 = vld [vmem:[#allocation4 + $0x490] sm:$0xff]
    %v2221 = vld [vmem:[#allocation4 + $0x498] sm:$0xff]
    %v2222 = vld [vmem:[#allocation4 + $0x4a0] sm:$0xff]
    %v2223 = vld [vmem:[#allocation4 + $0x4a8] sm:$0xff]
    %v2224 = vld [vmem:[#allocation4 + $0x4b0] sm:$0xff]
    %v2225 = vld [vmem:[#allocation4 + $0x4b8] sm:$0xff]
    %v2226 = vld [vmem:[#allocation4 + $0x4c0] sm:$0xff]
    %v2227 = vld [vmem:[#allocation4 + $0x4c8] sm:$0xff]
    %v2228 = vld [vmem:[#allocation4 + $0x4d0] sm:$0xff]
    %v2229 = vld [vmem:[#allocation4 + $0x4d8] sm:$0xff]
    %v2230 = vld [vmem:[#allocation4 + $0x4e0] sm:$0xff]
    %v2231 = vld [vmem:[#allocation4 + $0x4e8] sm:$0xff]
    %v2232 = vld [vmem:[#allocation4 + $0x4f0] sm:$0xff]
    %v2233 = vld [vmem:[#allocation4 + $0x4f8] sm:$0xff]
    %v2234 = vld [vmem:[#allocation4 + $0x500] sm:$0xff]
    %v2235 = vld [vmem:[#allocation4 + $0x508] sm:$0xff]
    %v2236 = vld [vmem:[#allocation4 + $0x510] sm:$0xff]
    %v2237 = vld [vmem:[#allocation4 + $0x518] sm:$0xff]
    %v2238 = vld [vmem:[#allocation4 + $0x520] sm:$0xff]
    %v2239 = vld [vmem:[#allocation4 + $0x528] sm:$0xff]
    %v2240 = vld [vmem:[#allocation4 + $0x530] sm:$0xff]
    %v2241 = vld [vmem:[#allocation4 + $0x538] sm:$0xff]
    %v2242 = vld [vmem:[#allocation4 + $0x540] sm:$0xff]
    %v2243 = vld [vmem:[#allocation4 + $0x548] sm:$0xff]
    %v2244 = vld [vmem:[#allocation4 + $0x550] sm:$0xff]
    %v2245 = vld [vmem:[#allocation4 + $0x558] sm:$0xff]
    %v2246 = vld [vmem:[#allocation4 + $0x560] sm:$0xff]
    %v2247 = vld [vmem:[#allocation4 + $0x568] sm:$0xff]
    %v2248 = vld [vmem:[#allocation4 + $0x570] sm:$0xff]
    %v2249 = vld [vmem:[#allocation4 + $0x578] sm:$0xff]
    %v2250 = vld [vmem:[#allocation4 + $0x580] sm:$0xff]
    %v2251 = vld [vmem:[#allocation4 + $0x588] sm:$0xff]
    %v2252 = vld [vmem:[#allocation4 + $0x590] sm:$0xff]
    %v2253 = vld [vmem:[#allocation4 + $0x598] sm:$0xff]
    %v2254 = vld [vmem:[#allocation4 + $0x5a0] sm:$0xff]
    %v2255 = vld [vmem:[#allocation4 + $0x5a8] sm:$0xff]
    %v2256 = vld [vmem:[#allocation4 + $0x5b0] sm:$0xff]
    %v2257 = vld [vmem:[#allocation4 + $0x5b8] sm:$0xff]
    %v2258 = vld [vmem:[#allocation4 + $0x5c0] sm:$0xff]
    %v2259 = vld [vmem:[#allocation4 + $0x5c8] sm:$0xff]
    %v2260 = vld [vmem:[#allocation4 + $0x5d0] sm:$0xff]
    %v2261 = vld [vmem:[#allocation4 + $0x5d8] sm:$0xff]
    %v2262 = vld [vmem:[#allocation4 + $0x5e0] sm:$0xff]
    %v2263 = vld [vmem:[#allocation4 + $0x5e8] sm:$0xff]
    %v2264 = vld [vmem:[#allocation4 + $0x5f0] sm:$0xff]
    %v2265 = vld [vmem:[#allocation4 + $0x5f8] sm:$0xff]
    %v2267 = vperm.slane %v47, 0
    %v2268 = vperm.slane %v47, 1
    %2273 = vst [vmem:[#allocation1] ss:$4 sm:$0xff] %v2072
    %s2274 = scalar_lea.vmem [#allocation1], 32
    %2275 = vst [vmem:[%s2274] ss:$4 sm:$0xff] %v2073
    %v2276 = vld.sshfl [vmem:[#allocation1] sm:$0xff pattern:$0x73625140]
    %v2277 = vld.sshfl [vmem:[#allocation1 + $0x8] sm:$0xff pattern:$0x73625140]
    %v2278 = vld.sshfl [vmem:[#allocation1 + $0x10] sm:$0xff pattern:$0x73625140]
    %v2279 = vld.sshfl [vmem:[#allocation1 + $0x18] sm:$0xff pattern:$0x73625140]
    %v2280 = vld.sshfl [vmem:[#allocation1 + $0x20] sm:$0xff pattern:$0x73625140]
    %v2281 = vld.sshfl [vmem:[#allocation1 + $0x28] sm:$0xff pattern:$0x73625140]
    %2288 = vmatpush.msra.mxu0 %v2104
    %2289 = vmatpush.msra.mxu0 %v2102
    %2290 = vmatpush.msra.mxu0 %v2100
    %2291 = vmatpush.msra.mxu0 %v2098
    %2292 = vmatpush.msra.mxu0 %v2096
    %2293 = vmatpush.msra.mxu0 %v2094
    %2294 = vmatpush.msra.mxu0 %v2092
    %2295 = vmatpush.msra.mxu0 %v2090
    %2296 = vmatpush.msra.mxu0 %v2088
    %2297 = vmatpush.msra.mxu0 %v2086
    %2298 = vmatpush.msra.mxu0 %v2084
    %2299 = vmatpush.msra.mxu0 %v2082
    %2300 = vmatpush.msra.mxu0 %v2080
    %2301 = vmatpush.msra.mxu0 %v2078
    %2302 = vmatpush.msra.mxu0 %v2076
    %2303 = vmatpush.msra.mxu0 %v2074
    %2304 = vmatmul.f32.gmra.mxu0 %v2276
    %v2305 = vpop.f32.mrf.mxu0
    %v2306 = vadd.f32 %v2267, %v2305
    %2307 = vdwg.mxu0
    %2308 = vmatpush.msra.mxu0 %v2136
    %2309 = vmatpush.msra.mxu0 %v2134
    %2310 = vmatpush.msra.mxu0 %v2132
    %2311 = vmatpush.msra.mxu0 %v2130
    %2312 = vmatpush.msra.mxu0 %v2128
    %2313 = vmatpush.msra.mxu0 %v2126
    %2314 = vmatpush.msra.mxu0 %v2124
    %2315 = vmatpush.msra.mxu0 %v2122
    %2316 = vmatpush.msra.mxu0 %v2120
    %2317 = vmatpush.msra.mxu0 %v2118
    %2318 = vmatpush.msra.mxu0 %v2116
    %2319 = vmatpush.msra.mxu0 %v2114
    %2320 = vmatpush.msra.mxu0 %v2112
    %2321 = vmatpush.msra.mxu0 %v2110
    %2322 = vmatpush.msra.mxu0 %v2108
    %2323 = vmatpush.msra.mxu0 %v2106
    %2324 = vmatmul.f32.gmra.mxu0 %v2277
    %v2325 = vpop.f32.mrf.mxu0
    %v2326 = vadd.f32 %v2306, %v2325
    %2327 = vdwg.mxu0
    %2328 = vmatpush.msra.mxu0 %v2168
    %2329 = vmatpush.msra.mxu0 %v2166
    %2330 = vmatpush.msra.mxu0 %v2164
    %2331 = vmatpush.msra.mxu0 %v2162
    %2332 = vmatpush.msra.mxu0 %v2160
    %2333 = vmatpush.msra.mxu0 %v2158
    %2334 = vmatpush.msra.mxu0 %v2156
    %2335 = vmatpush.msra.mxu0 %v2154
    %2336 = vmatpush.msra.mxu0 %v2152
    %2337 = vmatpush.msra.mxu0 %v2150
    %2338 = vmatpush.msra.mxu0 %v2148
    %2339 = vmatpush.msra.mxu0 %v2146
    %2340 = vmatpush.msra.mxu0 %v2144
    %2341 = vmatpush.msra.mxu0 %v2142
    %2342 = vmatpush.msra.mxu0 %v2140
    %2343 = vmatpush.msra.mxu0 %v2138
    %2344 = vmatmul.f32.gmra.mxu0 %v2278
    %v2345 = vpop.f32.mrf.mxu0
    %v2346 = vadd.f32 %v2326, %v2345
    %2347 = vdwg.mxu0
    %2348 = vmatpush.msra.mxu0 %v2200
    %2349 = vmatpush.msra.mxu0 %v2198
    %2350 = vmatpush.msra.mxu0 %v2196
    %2351 = vmatpush.msra.mxu0 %v2194
    %2352 = vmatpush.msra.mxu0 %v2192
    %2353 = vmatpush.msra.mxu0 %v2190
    %2354 = vmatpush.msra.mxu0 %v2188
    %2355 = vmatpush.msra.mxu0 %v2186
    %2356 = vmatpush.msra.mxu0 %v2184
    %2357 = vmatpush.msra.mxu0 %v2182
    %2358 = vmatpush.msra.mxu0 %v2180
    %2359 = vmatpush.msra.mxu0 %v2178
    %2360 = vmatpush.msra.mxu0 %v2176
    %2361 = vmatpush.msra.mxu0 %v2174
    %2362 = vmatpush.msra.mxu0 %v2172
    %2363 = vmatpush.msra.mxu0 %v2170
    %2364 = vmatmul.f32.gmra.mxu0 %v2279
    %v2365 = vpop.f32.mrf.mxu0
    %v2366 = vadd.f32 %v2346, %v2365
    %2367 = vdwg.mxu0
    %2368 = vmatpush.msra.mxu0 %v2232
    %2369 = vmatpush.msra.mxu0 %v2230
    %2370 = vmatpush.msra.mxu0 %v2228
    %2371 = vmatpush.msra.mxu0 %v2226
    %2372 = vmatpush.msra.mxu0 %v2224
    %2373 = vmatpush.msra.mxu0 %v2222
    %2374 = vmatpush.msra.mxu0 %v2220
    %2375 = vmatpush.msra.mxu0 %v2218
    %2376 = vmatpush.msra.mxu0 %v2216
    %2377 = vmatpush.msra.mxu0 %v2214
    %2378 = vmatpush.msra.mxu0 %v2212
    %2379 = vmatpush.msra.mxu0 %v2210
    %2380 = vmatpush.msra.mxu0 %v2208
    %2381 = vmatpush.msra.mxu0 %v2206
    %2382 = vmatpush.msra.mxu0 %v2204
    %2383 = vmatpush.msra.mxu0 %v2202
    %2384 = vmatmul.f32.gmra.mxu0 %v2280
    %v2385 = vpop.f32.mrf.mxu0
    %v2386 = vadd.f32 %v2366, %v2385
    %2387 = vdwg.mxu0
    %2388 = vmatpush.msra.mxu0 %v2264
    %2389 = vmatpush.msra.mxu0 %v2262
    %2390 = vmatpush.msra.mxu0 %v2260
    %2391 = vmatpush.msra.mxu0 %v2258
    %2392 = vmatpush.msra.mxu0 %v2256
    %2393 = vmatpush.msra.mxu0 %v2254
    %2394 = vmatpush.msra.mxu0 %v2252
    %2395 = vmatpush.msra.mxu0 %v2250
    %2396 = vmatpush.msra.mxu0 %v2248
    %2397 = vmatpush.msra.mxu0 %v2246
    %2398 = vmatpush.msra.mxu0 %v2244
    %2399 = vmatpush.msra.mxu0 %v2242
    %2400 = vmatpush.msra.mxu0 %v2240
    %2401 = vmatpush.msra.mxu0 %v2238
    %2402 = vmatpush.msra.mxu0 %v2236
    %2403 = vmatpush.msra.mxu0 %v2234
    %2404 = vmatmul.f32.gmra.mxu0 %v2281
    %v2405 = vpop.f32.mrf.mxu0
    %v2406 = vadd.f32 %v2386, %v2405
    %2407 = vdwg.mxu0
    %2408 = vmatpush.msra.mxu0 %v2105
    %2409 = vmatpush.msra.mxu0 %v2103
    %2410 = vmatpush.msra.mxu0 %v2101
    %2411 = vmatpush.msra.mxu0 %v2099
    %2412 = vmatpush.msra.mxu0 %v2097
    %2413 = vmatpush.msra.mxu0 %v2095
    %2414 = vmatpush.msra.mxu0 %v2093
    %2415 = vmatpush.msra.mxu0 %v2091
    %2416 = vmatpush.msra.mxu0 %v2089
    %2417 = vmatpush.msra.mxu0 %v2087
    %2418 = vmatpush.msra.mxu0 %v2085
    %2419 = vmatpush.msra.mxu0 %v2083
    %2420 = vmatpush.msra.mxu0 %v2081
    %2421 = vmatpush.msra.mxu0 %v2079
    %2422 = vmatpush.msra.mxu0 %v2077
    %2423 = vmatpush.msra.mxu0 %v2075
    %2424 = vmatmul.f32.gmra.mxu0 %v2276
    %v2425 = vpop.f32.mrf.mxu0
    %v2426 = vadd.f32 %v2268, %v2425
    %2427 = vdwg.mxu0
    %2428 = vmatpush.msra.mxu0 %v2137
    %2429 = vmatpush.msra.mxu0 %v2135
    %2430 = vmatpush.msra.mxu0 %v2133
    %2431 = vmatpush.msra.mxu0 %v2131
    %2432 = vmatpush.msra.mxu0 %v2129
    %2433 = vmatpush.msra.mxu0 %v2127
    %2434 = vmatpush.msra.mxu0 %v2125
    %2435 = vmatpush.msra.mxu0 %v2123
    %2436 = vmatpush.msra.mxu0 %v2121
    %2437 = vmatpush.msra.mxu0 %v2119
    %2438 = vmatpush.msra.mxu0 %v2117
    %2439 = vmatpush.msra.mxu0 %v2115
    %2440 = vmatpush.msra.mxu0 %v2113
    %2441 = vmatpush.msra.mxu0 %v2111
    %2442 = vmatpush.msra.mxu0 %v2109
    %2443 = vmatpush.msra.mxu0 %v2107
    %2444 = vmatmul.f32.gmra.mxu0 %v2277
    %v2445 = vpop.f32.mrf.mxu0
    %v2446 = vadd.f32 %v2426, %v2445
    %2447 = vdwg.mxu0
    %2448 = vmatpush.msra.mxu0 %v2169
    %2449 = vmatpush.msra.mxu0 %v2167
    %2450 = vmatpush.msra.mxu0 %v2165
    %2451 = vmatpush.msra.mxu0 %v2163
    %2452 = vmatpush.msra.mxu0 %v2161
    %2453 = vmatpush.msra.mxu0 %v2159
    %2454 = vmatpush.msra.mxu0 %v2157
    %2455 = vmatpush.msra.mxu0 %v2155
    %2456 = vmatpush.msra.mxu0 %v2153
    %2457 = vmatpush.msra.mxu0 %v2151
    %2458 = vmatpush.msra.mxu0 %v2149
    %2459 = vmatpush.msra.mxu0 %v2147
    %2460 = vmatpush.msra.mxu0 %v2145
    %2461 = vmatpush.msra.mxu0 %v2143
    %2462 = vmatpush.msra.mxu0 %v2141
    %2463 = vmatpush.msra.mxu0 %v2139
    %2464 = vmatmul.f32.gmra.mxu0 %v2278
    %v2465 = vpop.f32.mrf.mxu0
    %v2466 = vadd.f32 %v2446, %v2465
    %2467 = vdwg.mxu0
    %2468 = vmatpush.msra.mxu0 %v2201
    %2469 = vmatpush.msra.mxu0 %v2199
    %2470 = vmatpush.msra.mxu0 %v2197
    %2471 = vmatpush.msra.mxu0 %v2195
    %2472 = vmatpush.msra.mxu0 %v2193
    %2473 = vmatpush.msra.mxu0 %v2191
    %2474 = vmatpush.msra.mxu0 %v2189
    %2475 = vmatpush.msra.mxu0 %v2187
    %2476 = vmatpush.msra.mxu0 %v2185
    %2477 = vmatpush.msra.mxu0 %v2183
    %2478 = vmatpush.msra.mxu0 %v2181
    %2479 = vmatpush.msra.mxu0 %v2179
    %2480 = vmatpush.msra.mxu0 %v2177
    %2481 = vmatpush.msra.mxu0 %v2175
    %2482 = vmatpush.msra.mxu0 %v2173
    %2483 = vmatpush.msra.mxu0 %v2171
    %2484 = vmatmul.f32.gmra.mxu0 %v2279
    %v2485 = vpop.f32.mrf.mxu0
    %v2486 = vadd.f32 %v2466, %v2485
    %2487 = vdwg.mxu0
    %2488 = vmatpush.msra.mxu0 %v2233
    %2489 = vmatpush.msra.mxu0 %v2231
    %2490 = vmatpush.msra.mxu0 %v2229
    %2491 = vmatpush.msra.mxu0 %v2227
    %2492 = vmatpush.msra.mxu0 %v2225
    %2493 = vmatpush.msra.mxu0 %v2223
    %2494 = vmatpush.msra.mxu0 %v2221
    %2495 = vmatpush.msra.mxu0 %v2219
    %2496 = vmatpush.msra.mxu0 %v2217
    %2497 = vmatpush.msra.mxu0 %v2215
    %2498 = vmatpush.msra.mxu0 %v2213
    %2499 = vmatpush.msra.mxu0 %v2211
    %2500 = vmatpush.msra.mxu0 %v2209
    %2501 = vmatpush.msra.mxu0 %v2207
    %2502 = vmatpush.msra.mxu0 %v2205
    %2503 = vmatpush.msra.mxu0 %v2203
    %2504 = vmatmul.f32.gmra.mxu0 %v2280
    %v2505 = vpop.f32.mrf.mxu0
    %v2506 = vadd.f32 %v2486, %v2505
    %2507 = vdwg.mxu0
    %2508 = vmatpush.msra.mxu0 %v2265
    %2509 = vmatpush.msra.mxu0 %v2263
    %2510 = vmatpush.msra.mxu0 %v2261
    %2511 = vmatpush.msra.mxu0 %v2259
    %2512 = vmatpush.msra.mxu0 %v2257
    %2513 = vmatpush.msra.mxu0 %v2255
    %2514 = vmatpush.msra.mxu0 %v2253
    %2515 = vmatpush.msra.mxu0 %v2251
    %2516 = vmatpush.msra.mxu0 %v2249
    %2517 = vmatpush.msra.mxu0 %v2247
    %2518 = vmatpush.msra.mxu0 %v2245
    %2519 = vmatpush.msra.mxu0 %v2243
    %2520 = vmatpush.msra.mxu0 %v2241
    %2521 = vmatpush.msra.mxu0 %v2239
    %2522 = vmatpush.msra.mxu0 %v2237
    %2523 = vmatpush.msra.mxu0 %v2235
    %2524 = vmatmul.f32.gmra.mxu0 %v2281
    %v2525 = vpop.f32.mrf.mxu0
    %v2526 = vadd.f32 %v2506, %v2525
    %2527 = vdwg.mxu0
    %v2528 = vmax.f32 %v2406, 0.0
    %v2529 = vmax.f32 %v2526, 0.0
    %v2532 = vrot.slane %v2529, 6
    %v2533 = vsel %vm196, %v2528, %v2532
    %2535 = vst [vmem:[#allocation3 + $0x4] sm:$0xf] %v2533
    %v2536 = vld [vmem:[#allocation2 + $0x8] sm:$0xff]
    %v2537 = vld [vmem:[#allocation2 + $0x10] sm:$0xf]
    %v2538 = vld [vmem:[#allocation4] sm:$0xff]
    %v2539 = vld [vmem:[#allocation4 + $0x8] sm:$0xff]
    %v2540 = vld [vmem:[#allocation4 + $0x10] sm:$0xff]
    %v2541 = vld [vmem:[#allocation4 + $0x18] sm:$0xff]
    %v2542 = vld [vmem:[#allocation4 + $0x20] sm:$0xff]
    %v2543 = vld [vmem:[#allocation4 + $0x28] sm:$0xff]
    %v2544 = vld [vmem:[#allocation4 + $0x30] sm:$0xff]
    %v2545 = vld [vmem:[#allocation4 + $0x38] sm:$0xff]
    %v2546 = vld [vmem:[#allocation4 + $0x40] sm:$0xff]
    %v2547 = vld [vmem:[#allocation4 + $0x48] sm:$0xff]
    %v2548 = vld [vmem:[#allocation4 + $0x50] sm:$0xff]
    %v2549 = vld [vmem:[#allocation4 + $0x58] sm:$0xff]
    %v2550 = vld [vmem:[#allocation4 + $0x60] sm:$0xff]
    %v2551 = vld [vmem:[#allocation4 + $0x68] sm:$0xff]
    %v2552 = vld [vmem:[#allocation4 + $0x70] sm:$0xff]
    %v2553 = vld [vmem:[#allocation4 + $0x78] sm:$0xff]
    %v2554 = vld [vmem:[#allocation4 + $0x80] sm:$0xff]
    %v2555 = vld [vmem:[#allocation4 + $0x88] sm:$0xff]
    %v2556 = vld [vmem:[#allocation4 + $0x90] sm:$0xff]
    %v2557 = vld [vmem:[#allocation4 + $0x98] sm:$0xff]
    %v2558 = vld [vmem:[#allocation4 + $0xa0] sm:$0xff]
    %v2559 = vld [vmem:[#allocation4 + $0xa8] sm:$0xff]
    %v2560 = vld [vmem:[#allocation4 + $0xb0] sm:$0xff]
    %v2561 = vld [vmem:[#allocation4 + $0xb8] sm:$0xff]
    %v2562 = vld [vmem:[#allocation4 + $0xc0] sm:$0xff]
    %v2563 = vld [vmem:[#allocation4 + $0xc8] sm:$0xff]
    %v2564 = vld [vmem:[#allocation4 + $0xd0] sm:$0xff]
    %v2565 = vld [vmem:[#allocation4 + $0xd8] sm:$0xff]
    %v2566 = vld [vmem:[#allocation4 + $0xe0] sm:$0xff]
    %v2567 = vld [vmem:[#allocation4 + $0xe8] sm:$0xff]
    %v2568 = vld [vmem:[#allocation4 + $0xf0] sm:$0xff]
    %v2569 = vld [vmem:[#allocation4 + $0xf8] sm:$0xff]
    %v2570 = vld [vmem:[#allocation4 + $0x100] sm:$0xff]
    %v2571 = vld [vmem:[#allocation4 + $0x108] sm:$0xff]
    %v2572 = vld [vmem:[#allocation4 + $0x110] sm:$0xff]
    %v2573 = vld [vmem:[#allocation4 + $0x118] sm:$0xff]
    %v2574 = vld [vmem:[#allocation4 + $0x120] sm:$0xff]
    %v2575 = vld [vmem:[#allocation4 + $0x128] sm:$0xff]
    %v2576 = vld [vmem:[#allocation4 + $0x130] sm:$0xff]
    %v2577 = vld [vmem:[#allocation4 + $0x138] sm:$0xff]
    %v2578 = vld [vmem:[#allocation4 + $0x140] sm:$0xff]
    %v2579 = vld [vmem:[#allocation4 + $0x148] sm:$0xff]
    %v2580 = vld [vmem:[#allocation4 + $0x150] sm:$0xff]
    %v2581 = vld [vmem:[#allocation4 + $0x158] sm:$0xff]
    %v2582 = vld [vmem:[#allocation4 + $0x160] sm:$0xff]
    %v2583 = vld [vmem:[#allocation4 + $0x168] sm:$0xff]
    %v2584 = vld [vmem:[#allocation4 + $0x170] sm:$0xff]
    %v2585 = vld [vmem:[#allocation4 + $0x178] sm:$0xff]
    %v2586 = vld [vmem:[#allocation4 + $0x180] sm:$0xff]
    %v2587 = vld [vmem:[#allocation4 + $0x188] sm:$0xff]
    %v2588 = vld [vmem:[#allocation4 + $0x190] sm:$0xff]
    %v2589 = vld [vmem:[#allocation4 + $0x198] sm:$0xff]
    %v2590 = vld [vmem:[#allocation4 + $0x1a0] sm:$0xff]
    %v2591 = vld [vmem:[#allocation4 + $0x1a8] sm:$0xff]
    %v2592 = vld [vmem:[#allocation4 + $0x1b0] sm:$0xff]
    %v2593 = vld [vmem:[#allocation4 + $0x1b8] sm:$0xff]
    %v2594 = vld [vmem:[#allocation4 + $0x1c0] sm:$0xff]
    %v2595 = vld [vmem:[#allocation4 + $0x1c8] sm:$0xff]
    %v2596 = vld [vmem:[#allocation4 + $0x1d0] sm:$0xff]
    %v2597 = vld [vmem:[#allocation4 + $0x1d8] sm:$0xff]
    %v2598 = vld [vmem:[#allocation4 + $0x1e0] sm:$0xff]
    %v2599 = vld [vmem:[#allocation4 + $0x1e8] sm:$0xff]
    %v2600 = vld [vmem:[#allocation4 + $0x1f0] sm:$0xff]
    %v2601 = vld [vmem:[#allocation4 + $0x1f8] sm:$0xff]
    %v2602 = vld [vmem:[#allocation4 + $0x200] sm:$0xff]
    %v2603 = vld [vmem:[#allocation4 + $0x208] sm:$0xff]
    %v2604 = vld [vmem:[#allocation4 + $0x210] sm:$0xff]
    %v2605 = vld [vmem:[#allocation4 + $0x218] sm:$0xff]
    %v2606 = vld [vmem:[#allocation4 + $0x220] sm:$0xff]
    %v2607 = vld [vmem:[#allocation4 + $0x228] sm:$0xff]
    %v2608 = vld [vmem:[#allocation4 + $0x230] sm:$0xff]
    %v2609 = vld [vmem:[#allocation4 + $0x238] sm:$0xff]
    %v2610 = vld [vmem:[#allocation4 + $0x240] sm:$0xff]
    %v2611 = vld [vmem:[#allocation4 + $0x248] sm:$0xff]
    %v2612 = vld [vmem:[#allocation4 + $0x250] sm:$0xff]
    %v2613 = vld [vmem:[#allocation4 + $0x258] sm:$0xff]
    %v2614 = vld [vmem:[#allocation4 + $0x260] sm:$0xff]
    %v2615 = vld [vmem:[#allocation4 + $0x268] sm:$0xff]
    %v2616 = vld [vmem:[#allocation4 + $0x270] sm:$0xff]
    %v2617 = vld [vmem:[#allocation4 + $0x278] sm:$0xff]
    %v2618 = vld [vmem:[#allocation4 + $0x280] sm:$0xff]
    %v2619 = vld [vmem:[#allocation4 + $0x288] sm:$0xff]
    %v2620 = vld [vmem:[#allocation4 + $0x290] sm:$0xff]
    %v2621 = vld [vmem:[#allocation4 + $0x298] sm:$0xff]
    %v2622 = vld [vmem:[#allocation4 + $0x2a0] sm:$0xff]
    %v2623 = vld [vmem:[#allocation4 + $0x2a8] sm:$0xff]
    %v2624 = vld [vmem:[#allocation4 + $0x2b0] sm:$0xff]
    %v2625 = vld [vmem:[#allocation4 + $0x2b8] sm:$0xff]
    %v2626 = vld [vmem:[#allocation4 + $0x2c0] sm:$0xff]
    %v2627 = vld [vmem:[#allocation4 + $0x2c8] sm:$0xff]
    %v2628 = vld [vmem:[#allocation4 + $0x2d0] sm:$0xff]
    %v2629 = vld [vmem:[#allocation4 + $0x2d8] sm:$0xff]
    %v2630 = vld [vmem:[#allocation4 + $0x2e0] sm:$0xff]
    %v2631 = vld [vmem:[#allocation4 + $0x2e8] sm:$0xff]
    %v2632 = vld [vmem:[#allocation4 + $0x2f0] sm:$0xff]
    %v2633 = vld [vmem:[#allocation4 + $0x2f8] sm:$0xff]
    %v2634 = vld [vmem:[#allocation4 + $0x300] sm:$0xff]
    %v2635 = vld [vmem:[#allocation4 + $0x308] sm:$0xff]
    %v2636 = vld [vmem:[#allocation4 + $0x310] sm:$0xff]
    %v2637 = vld [vmem:[#allocation4 + $0x318] sm:$0xff]
    %v2638 = vld [vmem:[#allocation4 + $0x320] sm:$0xff]
    %v2639 = vld [vmem:[#allocation4 + $0x328] sm:$0xff]
    %v2640 = vld [vmem:[#allocation4 + $0x330] sm:$0xff]
    %v2641 = vld [vmem:[#allocation4 + $0x338] sm:$0xff]
    %v2642 = vld [vmem:[#allocation4 + $0x340] sm:$0xff]
    %v2643 = vld [vmem:[#allocation4 + $0x348] sm:$0xff]
    %v2644 = vld [vmem:[#allocation4 + $0x350] sm:$0xff]
    %v2645 = vld [vmem:[#allocation4 + $0x358] sm:$0xff]
    %v2646 = vld [vmem:[#allocation4 + $0x360] sm:$0xff]
    %v2647 = vld [vmem:[#allocation4 + $0x368] sm:$0xff]
    %v2648 = vld [vmem:[#allocation4 + $0x370] sm:$0xff]
    %v2649 = vld [vmem:[#allocation4 + $0x378] sm:$0xff]
    %v2650 = vld [vmem:[#allocation4 + $0x380] sm:$0xff]
    %v2651 = vld [vmem:[#allocation4 + $0x388] sm:$0xff]
    %v2652 = vld [vmem:[#allocation4 + $0x390] sm:$0xff]
    %v2653 = vld [vmem:[#allocation4 + $0x398] sm:$0xff]
    %v2654 = vld [vmem:[#allocation4 + $0x3a0] sm:$0xff]
    %v2655 = vld [vmem:[#allocation4 + $0x3a8] sm:$0xff]
    %v2656 = vld [vmem:[#allocation4 + $0x3b0] sm:$0xff]
    %v2657 = vld [vmem:[#allocation4 + $0x3b8] sm:$0xff]
    %v2658 = vld [vmem:[#allocation4 + $0x3c0] sm:$0xff]
    %v2659 = vld [vmem:[#allocation4 + $0x3c8] sm:$0xff]
    %v2660 = vld [vmem:[#allocation4 + $0x3d0] sm:$0xff]
    %v2661 = vld [vmem:[#allocation4 + $0x3d8] sm:$0xff]
    %v2662 = vld [vmem:[#allocation4 + $0x3e0] sm:$0xff]
    %v2663 = vld [vmem:[#allocation4 + $0x3e8] sm:$0xff]
    %v2664 = vld [vmem:[#allocation4 + $0x3f0] sm:$0xff]
    %v2665 = vld [vmem:[#allocation4 + $0x3f8] sm:$0xff]
    %v2666 = vld [vmem:[#allocation4 + $0x400] sm:$0xff]
    %v2667 = vld [vmem:[#allocation4 + $0x408] sm:$0xff]
    %v2668 = vld [vmem:[#allocation4 + $0x410] sm:$0xff]
    %v2669 = vld [vmem:[#allocation4 + $0x418] sm:$0xff]
    %v2670 = vld [vmem:[#allocation4 + $0x420] sm:$0xff]
    %v2671 = vld [vmem:[#allocation4 + $0x428] sm:$0xff]
    %v2672 = vld [vmem:[#allocation4 + $0x430] sm:$0xff]
    %v2673 = vld [vmem:[#allocation4 + $0x438] sm:$0xff]
    %v2674 = vld [vmem:[#allocation4 + $0x440] sm:$0xff]
    %v2675 = vld [vmem:[#allocation4 + $0x448] sm:$0xff]
    %v2676 = vld [vmem:[#allocation4 + $0x450] sm:$0xff]
    %v2677 = vld [vmem:[#allocation4 + $0x458] sm:$0xff]
    %v2678 = vld [vmem:[#allocation4 + $0x460] sm:$0xff]
    %v2679 = vld [vmem:[#allocation4 + $0x468] sm:$0xff]
    %v2680 = vld [vmem:[#allocation4 + $0x470] sm:$0xff]
    %v2681 = vld [vmem:[#allocation4 + $0x478] sm:$0xff]
    %v2682 = vld [vmem:[#allocation4 + $0x480] sm:$0xff]
    %v2683 = vld [vmem:[#allocation4 + $0x488] sm:$0xff]
    %v2684 = vld [vmem:[#allocation4 + $0x490] sm:$0xff]
    %v2685 = vld [vmem:[#allocation4 + $0x498] sm:$0xff]
    %v2686 = vld [vmem:[#allocation4 + $0x4a0] sm:$0xff]
    %v2687 = vld [vmem:[#allocation4 + $0x4a8] sm:$0xff]
    %v2688 = vld [vmem:[#allocation4 + $0x4b0] sm:$0xff]
    %v2689 = vld [vmem:[#allocation4 + $0x4b8] sm:$0xff]
    %v2690 = vld [vmem:[#allocation4 + $0x4c0] sm:$0xff]
    %v2691 = vld [vmem:[#allocation4 + $0x4c8] sm:$0xff]
    %v2692 = vld [vmem:[#allocation4 + $0x4d0] sm:$0xff]
    %v2693 = vld [vmem:[#allocation4 + $0x4d8] sm:$0xff]
    %v2694 = vld [vmem:[#allocation4 + $0x4e0] sm:$0xff]
    %v2695 = vld [vmem:[#allocation4 + $0x4e8] sm:$0xff]
    %v2696 = vld [vmem:[#allocation4 + $0x4f0] sm:$0xff]
    %v2697 = vld [vmem:[#allocation4 + $0x4f8] sm:$0xff]
    %v2698 = vld [vmem:[#allocation4 + $0x500] sm:$0xff]
    %v2699 = vld [vmem:[#allocation4 + $0x508] sm:$0xff]
    %v2700 = vld [vmem:[#allocation4 + $0x510] sm:$0xff]
    %v2701 = vld [vmem:[#allocation4 + $0x518] sm:$0xff]
    %v2702 = vld [vmem:[#allocation4 + $0x520] sm:$0xff]
    %v2703 = vld [vmem:[#allocation4 + $0x528] sm:$0xff]
    %v2704 = vld [vmem:[#allocation4 + $0x530] sm:$0xff]
    %v2705 = vld [vmem:[#allocation4 + $0x538] sm:$0xff]
    %v2706 = vld [vmem:[#allocation4 + $0x540] sm:$0xff]
    %v2707 = vld [vmem:[#allocation4 + $0x548] sm:$0xff]
    %v2708 = vld [vmem:[#allocation4 + $0x550] sm:$0xff]
    %v2709 = vld [vmem:[#allocation4 + $0x558] sm:$0xff]
    %v2710 = vld [vmem:[#allocation4 + $0x560] sm:$0xff]
    %v2711 = vld [vmem:[#allocation4 + $0x568] sm:$0xff]
    %v2712 = vld [vmem:[#allocation4 + $0x570] sm:$0xff]
    %v2713 = vld [vmem:[#allocation4 + $0x578] sm:$0xff]
    %v2714 = vld [vmem:[#allocation4 + $0x580] sm:$0xff]
    %v2715 = vld [vmem:[#allocation4 + $0x588] sm:$0xff]
    %v2716 = vld [vmem:[#allocation4 + $0x590] sm:$0xff]
    %v2717 = vld [vmem:[#allocation4 + $0x598] sm:$0xff]
    %v2718 = vld [vmem:[#allocation4 + $0x5a0] sm:$0xff]
    %v2719 = vld [vmem:[#allocation4 + $0x5a8] sm:$0xff]
    %v2720 = vld [vmem:[#allocation4 + $0x5b0] sm:$0xff]
    %v2721 = vld [vmem:[#allocation4 + $0x5b8] sm:$0xff]
    %v2722 = vld [vmem:[#allocation4 + $0x5c0] sm:$0xff]
    %v2723 = vld [vmem:[#allocation4 + $0x5c8] sm:$0xff]
    %v2724 = vld [vmem:[#allocation4 + $0x5d0] sm:$0xff]
    %v2725 = vld [vmem:[#allocation4 + $0x5d8] sm:$0xff]
    %v2726 = vld [vmem:[#allocation4 + $0x5e0] sm:$0xff]
    %v2727 = vld [vmem:[#allocation4 + $0x5e8] sm:$0xff]
    %v2728 = vld [vmem:[#allocation4 + $0x5f0] sm:$0xff]
    %v2729 = vld [vmem:[#allocation4 + $0x5f8] sm:$0xff]
    %2732 = vst [vmem:[#allocation1] ss:$4 sm:$0xff] %v2536
    %s2733 = scalar_lea.vmem [#allocation1], 32
    %2734 = vst [vmem:[%s2733] ss:$4 sm:$0xff] %v2537
    %v2735 = vld.sshfl [vmem:[#allocation1] sm:$0xff pattern:$0x73625140]
    %v2736 = vld.sshfl [vmem:[#allocation1 + $0x8] sm:$0xff pattern:$0x73625140]
    %v2737 = vld.sshfl [vmem:[#allocation1 + $0x10] sm:$0xff pattern:$0x73625140]
    %v2738 = vld.sshfl [vmem:[#allocation1 + $0x18] sm:$0xff pattern:$0x73625140]
    %v2739 = vld.sshfl [vmem:[#allocation1 + $0x20] sm:$0xff pattern:$0x73625140]
    %v2740 = vld.sshfl [vmem:[#allocation1 + $0x28] sm:$0xff pattern:$0x73625140]
    %2747 = vmatpush.msra.mxu0 %v2568
    %2748 = vmatpush.msra.mxu0 %v2566
    %2749 = vmatpush.msra.mxu0 %v2564
    %2750 = vmatpush.msra.mxu0 %v2562
    %2751 = vmatpush.msra.mxu0 %v2560
    %2752 = vmatpush.msra.mxu0 %v2558
    %2753 = vmatpush.msra.mxu0 %v2556
    %2754 = vmatpush.msra.mxu0 %v2554
    %2755 = vmatpush.msra.mxu0 %v2552
    %2756 = vmatpush.msra.mxu0 %v2550
    %2757 = vmatpush.msra.mxu0 %v2548
    %2758 = vmatpush.msra.mxu0 %v2546
    %2759 = vmatpush.msra.mxu0 %v2544
    %2760 = vmatpush.msra.mxu0 %v2542
    %2761 = vmatpush.msra.mxu0 %v2540
    %2762 = vmatpush.msra.mxu0 %v2538
    %2763 = vmatmul.f32.gmra.mxu0 %v2735
    %v2764 = vpop.f32.mrf.mxu0
    %v2765 = vadd.f32 %v2267, %v2764
    %2766 = vdwg.mxu0
    %2767 = vmatpush.msra.mxu0 %v2600
    %2768 = vmatpush.msra.mxu0 %v2598
    %2769 = vmatpush.msra.mxu0 %v2596
    %2770 = vmatpush.msra.mxu0 %v2594
    %2771 = vmatpush.msra.mxu0 %v2592
    %2772 = vmatpush.msra.mxu0 %v2590
    %2773 = vmatpush.msra.mxu0 %v2588
    %2774 = vmatpush.msra.mxu0 %v2586
    %2775 = vmatpush.msra.mxu0 %v2584
    %2776 = vmatpush.msra.mxu0 %v2582
    %2777 = vmatpush.msra.mxu0 %v2580
    %2778 = vmatpush.msra.mxu0 %v2578
    %2779 = vmatpush.msra.mxu0 %v2576
    %2780 = vmatpush.msra.mxu0 %v2574
    %2781 = vmatpush.msra.mxu0 %v2572
    %2782 = vmatpush.msra.mxu0 %v2570
    %2783 = vmatmul.f32.gmra.mxu0 %v2736
    %v2784 = vpop.f32.mrf.mxu0
    %v2785 = vadd.f32 %v2765, %v2784
    %2786 = vdwg.mxu0
    %2787 = vmatpush.msra.mxu0 %v2632
    %2788 = vmatpush.msra.mxu0 %v2630
    %2789 = vmatpush.msra.mxu0 %v2628
    %2790 = vmatpush.msra.mxu0 %v2626
    %2791 = vmatpush.msra.mxu0 %v2624
    %2792 = vmatpush.msra.mxu0 %v2622
    %2793 = vmatpush.msra.mxu0 %v2620
    %2794 = vmatpush.msra.mxu0 %v2618
    %2795 = vmatpush.msra.mxu0 %v2616
    %2796 = vmatpush.msra.mxu0 %v2614
    %2797 = vmatpush.msra.mxu0 %v2612
    %2798 = vmatpush.msra.mxu0 %v2610
    %2799 = vmatpush.msra.mxu0 %v2608
    %2800 = vmatpush.msra.mxu0 %v2606
    %2801 = vmatpush.msra.mxu0 %v2604
    %2802 = vmatpush.msra.mxu0 %v2602
    %2803 = vmatmul.f32.gmra.mxu0 %v2737
    %v2804 = vpop.f32.mrf.mxu0
    %v2805 = vadd.f32 %v2785, %v2804
    %2806 = vdwg.mxu0
    %2807 = vmatpush.msra.mxu0 %v2664
    %2808 = vmatpush.msra.mxu0 %v2662
    %2809 = vmatpush.msra.mxu0 %v2660
    %2810 = vmatpush.msra.mxu0 %v2658
    %2811 = vmatpush.msra.mxu0 %v2656
    %2812 = vmatpush.msra.mxu0 %v2654
    %2813 = vmatpush.msra.mxu0 %v2652
    %2814 = vmatpush.msra.mxu0 %v2650
    %2815 = vmatpush.msra.mxu0 %v2648
    %2816 = vmatpush.msra.mxu0 %v2646
    %2817 = vmatpush.msra.mxu0 %v2644
    %2818 = vmatpush.msra.mxu0 %v2642
    %2819 = vmatpush.msra.mxu0 %v2640
    %2820 = vmatpush.msra.mxu0 %v2638
    %2821 = vmatpush.msra.mxu0 %v2636
    %2822 = vmatpush.msra.mxu0 %v2634
    %2823 = vmatmul.f32.gmra.mxu0 %v2738
    %v2824 = vpop.f32.mrf.mxu0
    %v2825 = vadd.f32 %v2805, %v2824
    %2826 = vdwg.mxu0
    %2827 = vmatpush.msra.mxu0 %v2696
    %2828 = vmatpush.msra.mxu0 %v2694
    %2829 = vmatpush.msra.mxu0 %v2692
    %2830 = vmatpush.msra.mxu0 %v2690
    %2831 = vmatpush.msra.mxu0 %v2688
    %2832 = vmatpush.msra.mxu0 %v2686
    %2833 = vmatpush.msra.mxu0 %v2684
    %2834 = vmatpush.msra.mxu0 %v2682
    %2835 = vmatpush.msra.mxu0 %v2680
    %2836 = vmatpush.msra.mxu0 %v2678
    %2837 = vmatpush.msra.mxu0 %v2676
    %2838 = vmatpush.msra.mxu0 %v2674
    %2839 = vmatpush.msra.mxu0 %v2672
    %2840 = vmatpush.msra.mxu0 %v2670
    %2841 = vmatpush.msra.mxu0 %v2668
    %2842 = vmatpush.msra.mxu0 %v2666
    %2843 = vmatmul.f32.gmra.mxu0 %v2739
    %v2844 = vpop.f32.mrf.mxu0
    %v2845 = vadd.f32 %v2825, %v2844
    %2846 = vdwg.mxu0
    %2847 = vmatpush.msra.mxu0 %v2728
    %2848 = vmatpush.msra.mxu0 %v2726
    %2849 = vmatpush.msra.mxu0 %v2724
    %2850 = vmatpush.msra.mxu0 %v2722
    %2851 = vmatpush.msra.mxu0 %v2720
    %2852 = vmatpush.msra.mxu0 %v2718
    %2853 = vmatpush.msra.mxu0 %v2716
    %2854 = vmatpush.msra.mxu0 %v2714
    %2855 = vmatpush.msra.mxu0 %v2712
    %2856 = vmatpush.msra.mxu0 %v2710
    %2857 = vmatpush.msra.mxu0 %v2708
    %2858 = vmatpush.msra.mxu0 %v2706
    %2859 = vmatpush.msra.mxu0 %v2704
    %2860 = vmatpush.msra.mxu0 %v2702
    %2861 = vmatpush.msra.mxu0 %v2700
    %2862 = vmatpush.msra.mxu0 %v2698
    %2863 = vmatmul.f32.gmra.mxu0 %v2740
    %v2864 = vpop.f32.mrf.mxu0
    %v2865 = vadd.f32 %v2845, %v2864
    %2866 = vdwg.mxu0
    %2867 = vmatpush.msra.mxu0 %v2569
    %2868 = vmatpush.msra.mxu0 %v2567
    %2869 = vmatpush.msra.mxu0 %v2565
    %2870 = vmatpush.msra.mxu0 %v2563
    %2871 = vmatpush.msra.mxu0 %v2561
    %2872 = vmatpush.msra.mxu0 %v2559
    %2873 = vmatpush.msra.mxu0 %v2557
    %2874 = vmatpush.msra.mxu0 %v2555
    %2875 = vmatpush.msra.mxu0 %v2553
    %2876 = vmatpush.msra.mxu0 %v2551
    %2877 = vmatpush.msra.mxu0 %v2549
    %2878 = vmatpush.msra.mxu0 %v2547
    %2879 = vmatpush.msra.mxu0 %v2545
    %2880 = vmatpush.msra.mxu0 %v2543
    %2881 = vmatpush.msra.mxu0 %v2541
    %2882 = vmatpush.msra.mxu0 %v2539
    %2883 = vmatmul.f32.gmra.mxu0 %v2735
    %v2884 = vpop.f32.mrf.mxu0
    %v2885 = vadd.f32 %v2268, %v2884
    %2886 = vdwg.mxu0
    %2887 = vmatpush.msra.mxu0 %v2601
    %2888 = vmatpush.msra.mxu0 %v2599
    %2889 = vmatpush.msra.mxu0 %v2597
    %2890 = vmatpush.msra.mxu0 %v2595
    %2891 = vmatpush.msra.mxu0 %v2593
    %2892 = vmatpush.msra.mxu0 %v2591
    %2893 = vmatpush.msra.mxu0 %v2589
    %2894 = vmatpush.msra.mxu0 %v2587
    %2895 = vmatpush.msra.mxu0 %v2585
    %2896 = vmatpush.msra.mxu0 %v2583
    %2897 = vmatpush.msra.mxu0 %v2581
    %2898 = vmatpush.msra.mxu0 %v2579
    %2899 = vmatpush.msra.mxu0 %v2577
    %2900 = vmatpush.msra.mxu0 %v2575
    %2901 = vmatpush.msra.mxu0 %v2573
    %2902 = vmatpush.msra.mxu0 %v2571
    %2903 = vmatmul.f32.gmra.mxu0 %v2736
    %v2904 = vpop.f32.mrf.mxu0
    %v2905 = vadd.f32 %v2885, %v2904
    %2906 = vdwg.mxu0
    %2907 = vmatpush.msra.mxu0 %v2633
    %2908 = vmatpush.msra.mxu0 %v2631
    %2909 = vmatpush.msra.mxu0 %v2629
    %2910 = vmatpush.msra.mxu0 %v2627
    %2911 = vmatpush.msra.mxu0 %v2625
    %2912 = vmatpush.msra.mxu0 %v2623
    %2913 = vmatpush.msra.mxu0 %v2621
    %2914 = vmatpush.msra.mxu0 %v2619
    %2915 = vmatpush.msra.mxu0 %v2617
    %2916 = vmatpush.msra.mxu0 %v2615
    %2917 = vmatpush.msra.mxu0 %v2613
    %2918 = vmatpush.msra.mxu0 %v2611
    %2919 = vmatpush.msra.mxu0 %v2609
    %2920 = vmatpush.msra.mxu0 %v2607
    %2921 = vmatpush.msra.mxu0 %v2605
    %2922 = vmatpush.msra.mxu0 %v2603
    %2923 = vmatmul.f32.gmra.mxu0 %v2737
    %v2924 = vpop.f32.mrf.mxu0
    %v2925 = vadd.f32 %v2905, %v2924
    %2926 = vdwg.mxu0
    %2927 = vmatpush.msra.mxu0 %v2665
    %2928 = vmatpush.msra.mxu0 %v2663
    %2929 = vmatpush.msra.mxu0 %v2661
    %2930 = vmatpush.msra.mxu0 %v2659
    %2931 = vmatpush.msra.mxu0 %v2657
    %2932 = vmatpush.msra.mxu0 %v2655
    %2933 = vmatpush.msra.mxu0 %v2653
    %2934 = vmatpush.msra.mxu0 %v2651
    %2935 = vmatpush.msra.mxu0 %v2649
    %2936 = vmatpush.msra.mxu0 %v2647
    %2937 = vmatpush.msra.mxu0 %v2645
    %2938 = vmatpush.msra.mxu0 %v2643
    %2939 = vmatpush.msra.mxu0 %v2641
    %2940 = vmatpush.msra.mxu0 %v2639
    %2941 = vmatpush.msra.mxu0 %v2637
    %2942 = vmatpush.msra.mxu0 %v2635
    %2943 = vmatmul.f32.gmra.mxu0 %v2738
    %v2944 = vpop.f32.mrf.mxu0
    %v2945 = vadd.f32 %v2925, %v2944
    %2946 = vdwg.mxu0
    %2947 = vmatpush.msra.mxu0 %v2697
    %2948 = vmatpush.msra.mxu0 %v2695
    %2949 = vmatpush.msra.mxu0 %v2693
    %2950 = vmatpush.msra.mxu0 %v2691
    %2951 = vmatpush.msra.mxu0 %v2689
    %2952 = vmatpush.msra.mxu0 %v2687
    %2953 = vmatpush.msra.mxu0 %v2685
    %2954 = vmatpush.msra.mxu0 %v2683
    %2955 = vmatpush.msra.mxu0 %v2681
    %2956 = vmatpush.msra.mxu0 %v2679
    %2957 = vmatpush.msra.mxu0 %v2677
    %2958 = vmatpush.msra.mxu0 %v2675
    %2959 = vmatpush.msra.mxu0 %v2673
    %2960 = vmatpush.msra.mxu0 %v2671
    %2961 = vmatpush.msra.mxu0 %v2669
    %2962 = vmatpush.msra.mxu0 %v2667
    %2963 = vmatmul.f32.gmra.mxu0 %v2739
    %v2964 = vpop.f32.mrf.mxu0
    %v2965 = vadd.f32 %v2945, %v2964
    %2966 = vdwg.mxu0
    %2967 = vmatpush.msra.mxu0 %v2729
    %2968 = vmatpush.msra.mxu0 %v2727
    %2969 = vmatpush.msra.mxu0 %v2725
    %2970 = vmatpush.msra.mxu0 %v2723
    %2971 = vmatpush.msra.mxu0 %v2721
    %2972 = vmatpush.msra.mxu0 %v2719
    %2973 = vmatpush.msra.mxu0 %v2717
    %2974 = vmatpush.msra.mxu0 %v2715
    %2975 = vmatpush.msra.mxu0 %v2713
    %2976 = vmatpush.msra.mxu0 %v2711
    %2977 = vmatpush.msra.mxu0 %v2709
    %2978 = vmatpush.msra.mxu0 %v2707
    %2979 = vmatpush.msra.mxu0 %v2705
    %2980 = vmatpush.msra.mxu0 %v2703
    %2981 = vmatpush.msra.mxu0 %v2701
    %2982 = vmatpush.msra.mxu0 %v2699
    %2983 = vmatmul.f32.gmra.mxu0 %v2740
    %v2984 = vpop.f32.mrf.mxu0
    %v2985 = vadd.f32 %v2965, %v2984
    %2986 = vdwg.mxu0
    %v2987 = vmax.f32 %v2865, 0.0
    %v2988 = vmax.f32 %v2985, 0.0
    %v2991 = vrot.slane %v2988, 6
    %v2992 = vsel %vm196, %v2987, %v2991
    %2994 = vst [vmem:[#allocation3 + $0x8] sm:$0xf] %v2992
    %v2995 = vld [vmem:[#allocation2 + $0x10] sm:$0xff]
    %v2996 = vld [vmem:[#allocation2 + $0x18] sm:$0xf]
    %v2997 = vld [vmem:[#allocation4] sm:$0xff]
    %v2998 = vld [vmem:[#allocation4 + $0x8] sm:$0xff]
    %v2999 = vld [vmem:[#allocation4 + $0x10] sm:$0xff]
    %v3000 = vld [vmem:[#allocation4 + $0x18] sm:$0xff]
    %v3001 = vld [vmem:[#allocation4 + $0x20] sm:$0xff]
    %v3002 = vld [vmem:[#allocation4 + $0x28] sm:$0xff]
    %v3003 = vld [vmem:[#allocation4 + $0x30] sm:$0xff]
    %v3004 = vld [vmem:[#allocation4 + $0x38] sm:$0xff]
    %v3005 = vld [vmem:[#allocation4 + $0x40] sm:$0xff]
    %v3006 = vld [vmem:[#allocation4 + $0x48] sm:$0xff]
    %v3007 = vld [vmem:[#allocation4 + $0x50] sm:$0xff]
    %v3008 = vld [vmem:[#allocation4 + $0x58] sm:$0xff]
    %v3009 = vld [vmem:[#allocation4 + $0x60] sm:$0xff]
    %v3010 = vld [vmem:[#allocation4 + $0x68] sm:$0xff]
    %v3011 = vld [vmem:[#allocation4 + $0x70] sm:$0xff]
    %v3012 = vld [vmem:[#allocation4 + $0x78] sm:$0xff]
    %v3013 = vld [vmem:[#allocation4 + $0x80] sm:$0xff]
    %v3014 = vld [vmem:[#allocation4 + $0x88] sm:$0xff]
    %v3015 = vld [vmem:[#allocation4 + $0x90] sm:$0xff]
    %v3016 = vld [vmem:[#allocation4 + $0x98] sm:$0xff]
    %v3017 = vld [vmem:[#allocation4 + $0xa0] sm:$0xff]
    %v3018 = vld [vmem:[#allocation4 + $0xa8] sm:$0xff]
    %v3019 = vld [vmem:[#allocation4 + $0xb0] sm:$0xff]
    %v3020 = vld [vmem:[#allocation4 + $0xb8] sm:$0xff]
    %v3021 = vld [vmem:[#allocation4 + $0xc0] sm:$0xff]
    %v3022 = vld [vmem:[#allocation4 + $0xc8] sm:$0xff]
    %v3023 = vld [vmem:[#allocation4 + $0xd0] sm:$0xff]
    %v3024 = vld [vmem:[#allocation4 + $0xd8] sm:$0xff]
    %v3025 = vld [vmem:[#allocation4 + $0xe0] sm:$0xff]
    %v3026 = vld [vmem:[#allocation4 + $0xe8] sm:$0xff]
    %v3027 = vld [vmem:[#allocation4 + $0xf0] sm:$0xff]
    %v3028 = vld [vmem:[#allocation4 + $0xf8] sm:$0xff]
    %v3029 = vld [vmem:[#allocation4 + $0x100] sm:$0xff]
    %v3030 = vld [vmem:[#allocation4 + $0x108] sm:$0xff]
    %v3031 = vld [vmem:[#allocation4 + $0x110] sm:$0xff]
    %v3032 = vld [vmem:[#allocation4 + $0x118] sm:$0xff]
    %v3033 = vld [vmem:[#allocation4 + $0x120] sm:$0xff]
    %v3034 = vld [vmem:[#allocation4 + $0x128] sm:$0xff]
    %v3035 = vld [vmem:[#allocation4 + $0x130] sm:$0xff]
    %v3036 = vld [vmem:[#allocation4 + $0x138] sm:$0xff]
    %v3037 = vld [vmem:[#allocation4 + $0x140] sm:$0xff]
    %v3038 = vld [vmem:[#allocation4 + $0x148] sm:$0xff]
    %v3039 = vld [vmem:[#allocation4 + $0x150] sm:$0xff]
    %v3040 = vld [vmem:[#allocation4 + $0x158] sm:$0xff]
    %v3041 = vld [vmem:[#allocation4 + $0x160] sm:$0xff]
    %v3042 = vld [vmem:[#allocation4 + $0x168] sm:$0xff]
    %v3043 = vld [vmem:[#allocation4 + $0x170] sm:$0xff]
    %v3044 = vld [vmem:[#allocation4 + $0x178] sm:$0xff]
    %v3045 = vld [vmem:[#allocation4 + $0x180] sm:$0xff]
    %v3046 = vld [vmem:[#allocation4 + $0x188] sm:$0xff]
    %v3047 = vld [vmem:[#allocation4 + $0x190] sm:$0xff]
    %v3048 = vld [vmem:[#allocation4 + $0x198] sm:$0xff]
    %v3049 = vld [vmem:[#allocation4 + $0x1a0] sm:$0xff]
    %v3050 = vld [vmem:[#allocation4 + $0x1a8] sm:$0xff]
    %v3051 = vld [vmem:[#allocation4 + $0x1b0] sm:$0xff]
    %v3052 = vld [vmem:[#allocation4 + $0x1b8] sm:$0xff]
    %v3053 = vld [vmem:[#allocation4 + $0x1c0] sm:$0xff]
    %v3054 = vld [vmem:[#allocation4 + $0x1c8] sm:$0xff]
    %v3055 = vld [vmem:[#allocation4 + $0x1d0] sm:$0xff]
    %v3056 = vld [vmem:[#allocation4 + $0x1d8] sm:$0xff]
    %v3057 = vld [vmem:[#allocation4 + $0x1e0] sm:$0xff]
    %v3058 = vld [vmem:[#allocation4 + $0x1e8] sm:$0xff]
    %v3059 = vld [vmem:[#allocation4 + $0x1f0] sm:$0xff]
    %v3060 = vld [vmem:[#allocation4 + $0x1f8] sm:$0xff]
    %v3061 = vld [vmem:[#allocation4 + $0x200] sm:$0xff]
    %v3062 = vld [vmem:[#allocation4 + $0x208] sm:$0xff]
    %v3063 = vld [vmem:[#allocation4 + $0x210] sm:$0xff]
    %v3064 = vld [vmem:[#allocation4 + $0x218] sm:$0xff]
    %v3065 = vld [vmem:[#allocation4 + $0x220] sm:$0xff]
    %v3066 = vld [vmem:[#allocation4 + $0x228] sm:$0xff]
    %v3067 = vld [vmem:[#allocation4 + $0x230] sm:$0xff]
    %v3068 = vld [vmem:[#allocation4 + $0x238] sm:$0xff]
    %v3069 = vld [vmem:[#allocation4 + $0x240] sm:$0xff]
    %v3070 = vld [vmem:[#allocation4 + $0x248] sm:$0xff]
    %v3071 = vld [vmem:[#allocation4 + $0x250] sm:$0xff]
    %v3072 = vld [vmem:[#allocation4 + $0x258] sm:$0xff]
    %v3073 = vld [vmem:[#allocation4 + $0x260] sm:$0xff]
    %v3074 = vld [vmem:[#allocation4 + $0x268] sm:$0xff]
    %v3075 = vld [vmem:[#allocation4 + $0x270] sm:$0xff]
    %v3076 = vld [vmem:[#allocation4 + $0x278] sm:$0xff]
    %v3077 = vld [vmem:[#allocation4 + $0x280] sm:$0xff]
    %v3078 = vld [vmem:[#allocation4 + $0x288] sm:$0xff]
    %v3079 = vld [vmem:[#allocation4 + $0x290] sm:$0xff]
    %v3080 = vld [vmem:[#allocation4 + $0x298] sm:$0xff]
    %v3081 = vld [vmem:[#allocation4 + $0x2a0] sm:$0xff]
    %v3082 = vld [vmem:[#allocation4 + $0x2a8] sm:$0xff]
    %v3083 = vld [vmem:[#allocation4 + $0x2b0] sm:$0xff]
    %v3084 = vld [vmem:[#allocation4 + $0x2b8] sm:$0xff]
    %v3085 = vld [vmem:[#allocation4 + $0x2c0] sm:$0xff]
    %v3086 = vld [vmem:[#allocation4 + $0x2c8] sm:$0xff]
    %v3087 = vld [vmem:[#allocation4 + $0x2d0] sm:$0xff]
    %v3088 = vld [vmem:[#allocation4 + $0x2d8] sm:$0xff]
    %v3089 = vld [vmem:[#allocation4 + $0x2e0] sm:$0xff]
    %v3090 = vld [vmem:[#allocation4 + $0x2e8] sm:$0xff]
    %v3091 = vld [vmem:[#allocation4 + $0x2f0] sm:$0xff]
    %v3092 = vld [vmem:[#allocation4 + $0x2f8] sm:$0xff]
    %v3093 = vld [vmem:[#allocation4 + $0x300] sm:$0xff]
    %v3094 = vld [vmem:[#allocation4 + $0x308] sm:$0xff]
    %v3095 = vld [vmem:[#allocation4 + $0x310] sm:$0xff]
    %v3096 = vld [vmem:[#allocation4 + $0x318] sm:$0xff]
    %v3097 = vld [vmem:[#allocation4 + $0x320] sm:$0xff]
    %v3098 = vld [vmem:[#allocation4 + $0x328] sm:$0xff]
    %v3099 = vld [vmem:[#allocation4 + $0x330] sm:$0xff]
    %v3100 = vld [vmem:[#allocation4 + $0x338] sm:$0xff]
    %v3101 = vld [vmem:[#allocation4 + $0x340] sm:$0xff]
    %v3102 = vld [vmem:[#allocation4 + $0x348] sm:$0xff]
    %v3103 = vld [vmem:[#allocation4 + $0x350] sm:$0xff]
    %v3104 = vld [vmem:[#allocation4 + $0x358] sm:$0xff]
    %v3105 = vld [vmem:[#allocation4 + $0x360] sm:$0xff]
    %v3106 = vld [vmem:[#allocation4 + $0x368] sm:$0xff]
    %v3107 = vld [vmem:[#allocation4 + $0x370] sm:$0xff]
    %v3108 = vld [vmem:[#allocation4 + $0x378] sm:$0xff]
    %v3109 = vld [vmem:[#allocation4 + $0x380] sm:$0xff]
    %v3110 = vld [vmem:[#allocation4 + $0x388] sm:$0xff]
    %v3111 = vld [vmem:[#allocation4 + $0x390] sm:$0xff]
    %v3112 = vld [vmem:[#allocation4 + $0x398] sm:$0xff]
    %v3113 = vld [vmem:[#allocation4 + $0x3a0] sm:$0xff]
    %v3114 = vld [vmem:[#allocation4 + $0x3a8] sm:$0xff]
    %v3115 = vld [vmem:[#allocation4 + $0x3b0] sm:$0xff]
    %v3116 = vld [vmem:[#allocation4 + $0x3b8] sm:$0xff]
    %v3117 = vld [vmem:[#allocation4 + $0x3c0] sm:$0xff]
    %v3118 = vld [vmem:[#allocation4 + $0x3c8] sm:$0xff]
    %v3119 = vld [vmem:[#allocation4 + $0x3d0] sm:$0xff]
    %v3120 = vld [vmem:[#allocation4 + $0x3d8] sm:$0xff]
    %v3121 = vld [vmem:[#allocation4 + $0x3e0] sm:$0xff]
    %v3122 = vld [vmem:[#allocation4 + $0x3e8] sm:$0xff]
    %v3123 = vld [vmem:[#allocation4 + $0x3f0] sm:$0xff]
    %v3124 = vld [vmem:[#allocation4 + $0x3f8] sm:$0xff]
    %v3125 = vld [vmem:[#allocation4 + $0x400] sm:$0xff]
    %v3126 = vld [vmem:[#allocation4 + $0x408] sm:$0xff]
    %v3127 = vld [vmem:[#allocation4 + $0x410] sm:$0xff]
    %v3128 = vld [vmem:[#allocation4 + $0x418] sm:$0xff]
    %v3129 = vld [vmem:[#allocation4 + $0x420] sm:$0xff]
    %v3130 = vld [vmem:[#allocation4 + $0x428] sm:$0xff]
    %v3131 = vld [vmem:[#allocation4 + $0x430] sm:$0xff]
    %v3132 = vld [vmem:[#allocation4 + $0x438] sm:$0xff]
    %v3133 = vld [vmem:[#allocation4 + $0x440] sm:$0xff]
    %v3134 = vld [vmem:[#allocation4 + $0x448] sm:$0xff]
    %v3135 = vld [vmem:[#allocation4 + $0x450] sm:$0xff]
    %v3136 = vld [vmem:[#allocation4 + $0x458] sm:$0xff]
    %v3137 = vld [vmem:[#allocation4 + $0x460] sm:$0xff]
    %v3138 = vld [vmem:[#allocation4 + $0x468] sm:$0xff]
    %v3139 = vld [vmem:[#allocation4 + $0x470] sm:$0xff]
    %v3140 = vld [vmem:[#allocation4 + $0x478] sm:$0xff]
    %v3141 = vld [vmem:[#allocation4 + $0x480] sm:$0xff]
    %v3142 = vld [vmem:[#allocation4 + $0x488] sm:$0xff]
    %v3143 = vld [vmem:[#allocation4 + $0x490] sm:$0xff]
    %v3144 = vld [vmem:[#allocation4 + $0x498] sm:$0xff]
    %v3145 = vld [vmem:[#allocation4 + $0x4a0] sm:$0xff]
    %v3146 = vld [vmem:[#allocation4 + $0x4a8] sm:$0xff]
    %v3147 = vld [vmem:[#allocation4 + $0x4b0] sm:$0xff]
    %v3148 = vld [vmem:[#allocation4 + $0x4b8] sm:$0xff]
    %v3149 = vld [vmem:[#allocation4 + $0x4c0] sm:$0xff]
    %v3150 = vld [vmem:[#allocation4 + $0x4c8] sm:$0xff]
    %v3151 = vld [vmem:[#allocation4 + $0x4d0] sm:$0xff]
    %v3152 = vld [vmem:[#allocation4 + $0x4d8] sm:$0xff]
    %v3153 = vld [vmem:[#allocation4 + $0x4e0] sm:$0xff]
    %v3154 = vld [vmem:[#allocation4 + $0x4e8] sm:$0xff]
    %v3155 = vld [vmem:[#allocation4 + $0x4f0] sm:$0xff]
    %v3156 = vld [vmem:[#allocation4 + $0x4f8] sm:$0xff]
    %v3157 = vld [vmem:[#allocation4 + $0x500] sm:$0xff]
    %v3158 = vld [vmem:[#allocation4 + $0x508] sm:$0xff]
    %v3159 = vld [vmem:[#allocation4 + $0x510] sm:$0xff]
    %v3160 = vld [vmem:[#allocation4 + $0x518] sm:$0xff]
    %v3161 = vld [vmem:[#allocation4 + $0x520] sm:$0xff]
    %v3162 = vld [vmem:[#allocation4 + $0x528] sm:$0xff]
    %v3163 = vld [vmem:[#allocation4 + $0x530] sm:$0xff]
    %v3164 = vld [vmem:[#allocation4 + $0x538] sm:$0xff]
    %v3165 = vld [vmem:[#allocation4 + $0x540] sm:$0xff]
    %v3166 = vld [vmem:[#allocation4 + $0x548] sm:$0xff]
    %v3167 = vld [vmem:[#allocation4 + $0x550] sm:$0xff]
    %v3168 = vld [vmem:[#allocation4 + $0x558] sm:$0xff]
    %v3169 = vld [vmem:[#allocation4 + $0x560] sm:$0xff]
    %v3170 = vld [vmem:[#allocation4 + $0x568] sm:$0xff]
    %v3171 = vld [vmem:[#allocation4 + $0x570] sm:$0xff]
    %v3172 = vld [vmem:[#allocation4 + $0x578] sm:$0xff]
    %v3173 = vld [vmem:[#allocation4 + $0x580] sm:$0xff]
    %v3174 = vld [vmem:[#allocation4 + $0x588] sm:$0xff]
    %v3175 = vld [vmem:[#allocation4 + $0x590] sm:$0xff]
    %v3176 = vld [vmem:[#allocation4 + $0x598] sm:$0xff]
    %v3177 = vld [vmem:[#allocation4 + $0x5a0] sm:$0xff]
    %v3178 = vld [vmem:[#allocation4 + $0x5a8] sm:$0xff]
    %v3179 = vld [vmem:[#allocation4 + $0x5b0] sm:$0xff]
    %v3180 = vld [vmem:[#allocation4 + $0x5b8] sm:$0xff]
    %v3181 = vld [vmem:[#allocation4 + $0x5c0] sm:$0xff]
    %v3182 = vld [vmem:[#allocation4 + $0x5c8] sm:$0xff]
    %v3183 = vld [vmem:[#allocation4 + $0x5d0] sm:$0xff]
    %v3184 = vld [vmem:[#allocation4 + $0x5d8] sm:$0xff]
    %v3185 = vld [vmem:[#allocation4 + $0x5e0] sm:$0xff]
    %v3186 = vld [vmem:[#allocation4 + $0x5e8] sm:$0xff]
    %v3187 = vld [vmem:[#allocation4 + $0x5f0] sm:$0xff]
    %v3188 = vld [vmem:[#allocation4 + $0x5f8] sm:$0xff]
    %3191 = vst [vmem:[#allocation1] ss:$4 sm:$0xff] %v2995
    %s3192 = scalar_lea.vmem [#allocation1], 32
    %3193 = vst [vmem:[%s3192] ss:$4 sm:$0xff] %v2996
    %v3194 = vld.sshfl [vmem:[#allocation1] sm:$0xff pattern:$0x73625140]
    %v3195 = vld.sshfl [vmem:[#allocation1 + $0x8] sm:$0xff pattern:$0x73625140]
    %v3196 = vld.sshfl [vmem:[#allocation1 + $0x10] sm:$0xff pattern:$0x73625140]
    %v3197 = vld.sshfl [vmem:[#allocation1 + $0x18] sm:$0xff pattern:$0x73625140]
    %v3198 = vld.sshfl [vmem:[#allocation1 + $0x20] sm:$0xff pattern:$0x73625140]
    %v3199 = vld.sshfl [vmem:[#allocation1 + $0x28] sm:$0xff pattern:$0x73625140]
    %3206 = vmatpush.msra.mxu0 %v3027
    %3207 = vmatpush.msra.mxu0 %v3025
    %3208 = vmatpush.msra.mxu0 %v3023
    %3209 = vmatpush.msra.mxu0 %v3021
    %3210 = vmatpush.msra.mxu0 %v3019
    %3211 = vmatpush.msra.mxu0 %v3017
    %3212 = vmatpush.msra.mxu0 %v3015
    %3213 = vmatpush.msra.mxu0 %v3013
    %3214 = vmatpush.msra.mxu0 %v3011
    %3215 = vmatpush.msra.mxu0 %v3009
    %3216 = vmatpush.msra.mxu0 %v3007
    %3217 = vmatpush.msra.mxu0 %v3005
    %3218 = vmatpush.msra.mxu0 %v3003
    %3219 = vmatpush.msra.mxu0 %v3001
    %3220 = vmatpush.msra.mxu0 %v2999
    %3221 = vmatpush.msra.mxu0 %v2997
    %3222 = vmatmul.f32.gmra.mxu0 %v3194
    %v3223 = vpop.f32.mrf.mxu0
    %v3224 = vadd.f32 %v2267, %v3223
    %3225 = vdwg.mxu0
    %3226 = vmatpush.msra.mxu0 %v3059
    %3227 = vmatpush.msra.mxu0 %v3057
    %3228 = vmatpush.msra.mxu0 %v3055
    %3229 = vmatpush.msra.mxu0 %v3053
    %3230 = vmatpush.msra.mxu0 %v3051
    %3231 = vmatpush.msra.mxu0 %v3049
    %3232 = vmatpush.msra.mxu0 %v3047
    %3233 = vmatpush.msra.mxu0 %v3045
    %3234 = vmatpush.msra.mxu0 %v3043
    %3235 = vmatpush.msra.mxu0 %v3041
    %3236 = vmatpush.msra.mxu0 %v3039
    %3237 = vmatpush.msra.mxu0 %v3037
    %3238 = vmatpush.msra.mxu0 %v3035
    %3239 = vmatpush.msra.mxu0 %v3033
    %3240 = vmatpush.msra.mxu0 %v3031
    %3241 = vmatpush.msra.mxu0 %v3029
    %3242 = vmatmul.f32.gmra.mxu0 %v3195
    %v3243 = vpop.f32.mrf.mxu0
    %v3244 = vadd.f32 %v3224, %v3243
    %3245 = vdwg.mxu0
    %3246 = vmatpush.msra.mxu0 %v3091
    %3247 = vmatpush.msra.mxu0 %v3089
    %3248 = vmatpush.msra.mxu0 %v3087
    %3249 = vmatpush.msra.mxu0 %v3085
    %3250 = vmatpush.msra.mxu0 %v3083
    %3251 = vmatpush.msra.mxu0 %v3081
    %3252 = vmatpush.msra.mxu0 %v3079
    %3253 = vmatpush.msra.mxu0 %v3077
    %3254 = vmatpush.msra.mxu0 %v3075
    %3255 = vmatpush.msra.mxu0 %v3073
    %3256 = vmatpush.msra.mxu0 %v3071
    %3257 = vmatpush.msra.mxu0 %v3069
    %3258 = vmatpush.msra.mxu0 %v3067
    %3259 = vmatpush.msra.mxu0 %v3065
    %3260 = vmatpush.msra.mxu0 %v3063
    %3261 = vmatpush.msra.mxu0 %v3061
    %3262 = vmatmul.f32.gmra.mxu0 %v3196
    %v3263 = vpop.f32.mrf.mxu0
    %v3264 = vadd.f32 %v3244, %v3263
    %3265 = vdwg.mxu0
    %3266 = vmatpush.msra.mxu0 %v3123
    %3267 = vmatpush.msra.mxu0 %v3121
    %3268 = vmatpush.msra.mxu0 %v3119
    %3269 = vmatpush.msra.mxu0 %v3117
    %3270 = vmatpush.msra.mxu0 %v3115
    %3271 = vmatpush.msra.mxu0 %v3113
    %3272 = vmatpush.msra.mxu0 %v3111
    %3273 = vmatpush.msra.mxu0 %v3109
    %3274 = vmatpush.msra.mxu0 %v3107
    %3275 = vmatpush.msra.mxu0 %v3105
    %3276 = vmatpush.msra.mxu0 %v3103
    %3277 = vmatpush.msra.mxu0 %v3101
    %3278 = vmatpush.msra.mxu0 %v3099
    %3279 = vmatpush.msra.mxu0 %v3097
    %3280 = vmatpush.msra.mxu0 %v3095
    %3281 = vmatpush.msra.mxu0 %v3093
    %3282 = vmatmul.f32.gmra.mxu0 %v3197
    %v3283 = vpop.f32.mrf.mxu0
    %v3284 = vadd.f32 %v3264, %v3283
    %3285 = vdwg.mxu0
    %3286 = vmatpush.msra.mxu0 %v3155
    %3287 = vmatpush.msra.mxu0 %v3153
    %3288 = vmatpush.msra.mxu0 %v3151
    %3289 = vmatpush.msra.mxu0 %v3149
    %3290 = vmatpush.msra.mxu0 %v3147
    %3291 = vmatpush.msra.mxu0 %v3145
    %3292 = vmatpush.msra.mxu0 %v3143
    %3293 = vmatpush.msra.mxu0 %v3141
    %3294 = vmatpush.msra.mxu0 %v3139
    %3295 = vmatpush.msra.mxu0 %v3137
    %3296 = vmatpush.msra.mxu0 %v3135
    %3297 = vmatpush.msra.mxu0 %v3133
    %3298 = vmatpush.msra.mxu0 %v3131
    %3299 = vmatpush.msra.mxu0 %v3129
    %3300 = vmatpush.msra.mxu0 %v3127
    %3301 = vmatpush.msra.mxu0 %v3125
    %3302 = vmatmul.f32.gmra.mxu0 %v3198
    %v3303 = vpop.f32.mrf.mxu0
    %v3304 = vadd.f32 %v3284, %v3303
    %3305 = vdwg.mxu0
    %3306 = vmatpush.msra.mxu0 %v3187
    %3307 = vmatpush.msra.mxu0 %v3185
    %3308 = vmatpush.msra.mxu0 %v3183
    %3309 = vmatpush.msra.mxu0 %v3181
    %3310 = vmatpush.msra.mxu0 %v3179
    %3311 = vmatpush.msra.mxu0 %v3177
    %3312 = vmatpush.msra.mxu0 %v3175
    %3313 = vmatpush.msra.mxu0 %v3173
    %3314 = vmatpush.msra.mxu0 %v3171
    %3315 = vmatpush.msra.mxu0 %v3169
    %3316 = vmatpush.msra.mxu0 %v3167
    %3317 = vmatpush.msra.mxu0 %v3165
    %3318 = vmatpush.msra.mxu0 %v3163
    %3319 = vmatpush.msra.mxu0 %v3161
    %3320 = vmatpush.msra.mxu0 %v3159
    %3321 = vmatpush.msra.mxu0 %v3157
    %3322 = vmatmul.f32.gmra.mxu0 %v3199
    %v3323 = vpop.f32.mrf.mxu0
    %v3324 = vadd.f32 %v3304, %v3323
    %3325 = vdwg.mxu0
    %3326 = vmatpush.msra.mxu0 %v3028
    %3327 = vmatpush.msra.mxu0 %v3026
    %3328 = vmatpush.msra.mxu0 %v3024
    %3329 = vmatpush.msra.mxu0 %v3022
    %3330 = vmatpush.msra.mxu0 %v3020
    %3331 = vmatpush.msra.mxu0 %v3018
    %3332 = vmatpush.msra.mxu0 %v3016
    %3333 = vmatpush.msra.mxu0 %v3014
    %3334 = vmatpush.msra.mxu0 %v3012
    %3335 = vmatpush.msra.mxu0 %v3010
    %3336 = vmatpush.msra.mxu0 %v3008
    %3337 = vmatpush.msra.mxu0 %v3006
    %3338 = vmatpush.msra.mxu0 %v3004
    %3339 = vmatpush.msra.mxu0 %v3002
    %3340 = vmatpush.msra.mxu0 %v3000
    %3341 = vmatpush.msra.mxu0 %v2998
    %3342 = vmatmul.f32.gmra.mxu0 %v3194
    %v3343 = vpop.f32.mrf.mxu0
    %v3344 = vadd.f32 %v2268, %v3343
    %3345 = vdwg.mxu0
    %3346 = vmatpush.msra.mxu0 %v3060
    %3347 = vmatpush.msra.mxu0 %v3058
    %3348 = vmatpush.msra.mxu0 %v3056
    %3349 = vmatpush.msra.mxu0 %v3054
    %3350 = vmatpush.msra.mxu0 %v3052
    %3351 = vmatpush.msra.mxu0 %v3050
    %3352 = vmatpush.msra.mxu0 %v3048
    %3353 = vmatpush.msra.mxu0 %v3046
    %3354 = vmatpush.msra.mxu0 %v3044
    %3355 = vmatpush.msra.mxu0 %v3042
    %3356 = vmatpush.msra.mxu0 %v3040
    %3357 = vmatpush.msra.mxu0 %v3038
    %3358 = vmatpush.msra.mxu0 %v3036
    %3359 = vmatpush.msra.mxu0 %v3034
    %3360 = vmatpush.msra.mxu0 %v3032
    %3361 = vmatpush.msra.mxu0 %v3030
    %3362 = vmatmul.f32.gmra.mxu0 %v3195
    %v3363 = vpop.f32.mrf.mxu0
    %v3364 = vadd.f32 %v3344, %v3363
    %3365 = vdwg.mxu0
    %3366 = vmatpush.msra.mxu0 %v3092
    %3367 = vmatpush.msra.mxu0 %v3090
    %3368 = vmatpush.msra.mxu0 %v3088
    %3369 = vmatpush.msra.mxu0 %v3086
    %3370 = vmatpush.msra.mxu0 %v3084
    %3371 = vmatpush.msra.mxu0 %v3082
    %3372 = vmatpush.msra.mxu0 %v3080
    %3373 = vmatpush.msra.mxu0 %v3078
    %3374 = vmatpush.msra.mxu0 %v3076
    %3375 = vmatpush.msra.mxu0 %v3074
    %3376 = vmatpush.msra.mxu0 %v3072
    %3377 = vmatpush.msra.mxu0 %v3070
    %3378 = vmatpush.msra.mxu0 %v3068
    %3379 = vmatpush.msra.mxu0 %v3066
    %3380 = vmatpush.msra.mxu0 %v3064
    %3381 = vmatpush.msra.mxu0 %v3062
    %3382 = vmatmul.f32.gmra.mxu0 %v3196
    %v3383 = vpop.f32.mrf.mxu0
    %v3384 = vadd.f32 %v3364, %v3383
    %3385 = vdwg.mxu0
    %3386 = vmatpush.msra.mxu0 %v3124
    %3387 = vmatpush.msra.mxu0 %v3122
    %3388 = vmatpush.msra.mxu0 %v3120
    %3389 = vmatpush.msra.mxu0 %v3118
    %3390 = vmatpush.msra.mxu0 %v3116
    %3391 = vmatpush.msra.mxu0 %v3114
    %3392 = vmatpush.msra.mxu0 %v3112
    %3393 = vmatpush.msra.mxu0 %v3110
    %3394 = vmatpush.msra.mxu0 %v3108
    %3395 = vmatpush.msra.mxu0 %v3106
    %3396 = vmatpush.msra.mxu0 %v3104
    %3397 = vmatpush.msra.mxu0 %v3102
    %3398 = vmatpush.msra.mxu0 %v3100
    %3399 = vmatpush.msra.mxu0 %v3098
    %3400 = vmatpush.msra.mxu0 %v3096
    %3401 = vmatpush.msra.mxu0 %v3094
    %3402 = vmatmul.f32.gmra.mxu0 %v3197
    %v3403 = vpop.f32.mrf.mxu0
    %v3404 = vadd.f32 %v3384, %v3403
    %3405 = vdwg.mxu0
    %3406 = vmatpush.msra.mxu0 %v3156
    %3407 = vmatpush.msra.mxu0 %v3154
    %3408 = vmatpush.msra.mxu0 %v3152
    %3409 = vmatpush.msra.mxu0 %v3150
    %3410 = vmatpush.msra.mxu0 %v3148
    %3411 = vmatpush.msra.mxu0 %v3146
    %3412 = vmatpush.msra.mxu0 %v3144
    %3413 = vmatpush.msra.mxu0 %v3142
    %3414 = vmatpush.msra.mxu0 %v3140
    %3415 = vmatpush.msra.mxu0 %v3138
    %3416 = vmatpush.msra.mxu0 %v3136
    %3417 = vmatpush.msra.mxu0 %v3134
    %3418 = vmatpush.msra.mxu0 %v3132
    %3419 = vmatpush.msra.mxu0 %v3130
    %3420 = vmatpush.msra.mxu0 %v3128
    %3421 = vmatpush.msra.mxu0 %v3126
    %3422 = vmatmul.f32.gmra.mxu0 %v3198
    %v3423 = vpop.f32.mrf.mxu0
    %v3424 = vadd.f32 %v3404, %v3423
    %3425 = vdwg.mxu0
    %3426 = vmatpush.msra.mxu0 %v3188
    %3427 = vmatpush.msra.mxu0 %v3186
    %3428 = vmatpush.msra.mxu0 %v3184
    %3429 = vmatpush.msra.mxu0 %v3182
    %3430 = vmatpush.msra.mxu0 %v3180
    %3431 = vmatpush.msra.mxu0 %v3178
    %3432 = vmatpush.msra.mxu0 %v3176
    %3433 = vmatpush.msra.mxu0 %v3174
    %3434 = vmatpush.msra.mxu0 %v3172
    %3435 = vmatpush.msra.mxu0 %v3170
    %3436 = vmatpush.msra.mxu0 %v3168
    %3437 = vmatpush.msra.mxu0 %v3166
    %3438 = vmatpush.msra.mxu0 %v3164
    %3439 = vmatpush.msra.mxu0 %v3162
    %3440 = vmatpush.msra.mxu0 %v3160
    %3441 = vmatpush.msra.mxu0 %v3158
    %3442 = vmatmul.f32.gmra.mxu0 %v3199
    %v3443 = vpop.f32.mrf.mxu0
    %v3444 = vadd.f32 %v3424, %v3443
    %3445 = vdwg.mxu0
    %v3446 = vmax.f32 %v3324, 0.0
    %v3447 = vmax.f32 %v3444, 0.0
    %v3450 = vrot.slane %v3447, 6
    %v3451 = vsel %vm196, %v3446, %v3450
    %3453 = vst [vmem:[#allocation3 + $0xc] sm:$0xf] %v3451
    %v3454 = vld [vmem:[#allocation2 + $0x18] sm:$0xff]
    %v3455 = vld [vmem:[#allocation2 + $0x20] sm:$0xf]
    %v3456 = vld [vmem:[#allocation4] sm:$0xff]
    %v3457 = vld [vmem:[#allocation4 + $0x8] sm:$0xff]
    %v3458 = vld [vmem:[#allocation4 + $0x10] sm:$0xff]
    %v3459 = vld [vmem:[#allocation4 + $0x18] sm:$0xff]
    %v3460 = vld [vmem:[#allocation4 + $0x20] sm:$0xff]
    %v3461 = vld [vmem:[#allocation4 + $0x28] sm:$0xff]
    %v3462 = vld [vmem:[#allocation4 + $0x30] sm:$0xff]
    %v3463 = vld [vmem:[#allocation4 + $0x38] sm:$0xff]
    %v3464 = vld [vmem:[#allocation4 + $0x40] sm:$0xff]
    %v3465 = vld [vmem:[#allocation4 + $0x48] sm:$0xff]
    %v3466 = vld [vmem:[#allocation4 + $0x50] sm:$0xff]
    %v3467 = vld [vmem:[#allocation4 + $0x58] sm:$0xff]
    %v3468 = vld [vmem:[#allocation4 + $0x60] sm:$0xff]
    %v3469 = vld [vmem:[#allocation4 + $0x68] sm:$0xff]
    %v3470 = vld [vmem:[#allocation4 + $0x70] sm:$0xff]
    %v3471 = vld [vmem:[#allocation4 + $0x78] sm:$0xff]
    %v3472 = vld [vmem:[#allocation4 + $0x80] sm:$0xff]
    %v3473 = vld [vmem:[#allocation4 + $0x88] sm:$0xff]
    %v3474 = vld [vmem:[#allocation4 + $0x90] sm:$0xff]
    %v3475 = vld [vmem:[#allocation4 + $0x98] sm:$0xff]
    %v3476 = vld [vmem:[#allocation4 + $0xa0] sm:$0xff]
    %v3477 = vld [vmem:[#allocation4 + $0xa8] sm:$0xff]
    %v3478 = vld [vmem:[#allocation4 + $0xb0] sm:$0xff]
    %v3479 = vld [vmem:[#allocation4 + $0xb8] sm:$0xff]
    %v3480 = vld [vmem:[#allocation4 + $0xc0] sm:$0xff]
    %v3481 = vld [vmem:[#allocation4 + $0xc8] sm:$0xff]
    %v3482 = vld [vmem:[#allocation4 + $0xd0] sm:$0xff]
    %v3483 = vld [vmem:[#allocation4 + $0xd8] sm:$0xff]
    %v3484 = vld [vmem:[#allocation4 + $0xe0] sm:$0xff]
    %v3485 = vld [vmem:[#allocation4 + $0xe8] sm:$0xff]
    %v3486 = vld [vmem:[#allocation4 + $0xf0] sm:$0xff]
    %v3487 = vld [vmem:[#allocation4 + $0xf8] sm:$0xff]
    %v3488 = vld [vmem:[#allocation4 + $0x100] sm:$0xff]
    %v3489 = vld [vmem:[#allocation4 + $0x108] sm:$0xff]
    %v3490 = vld [vmem:[#allocation4 + $0x110] sm:$0xff]
    %v3491 = vld [vmem:[#allocation4 + $0x118] sm:$0xff]
    %v3492 = vld [vmem:[#allocation4 + $0x120] sm:$0xff]
    %v3493 = vld [vmem:[#allocation4 + $0x128] sm:$0xff]
    %v3494 = vld [vmem:[#allocation4 + $0x130] sm:$0xff]
    %v3495 = vld [vmem:[#allocation4 + $0x138] sm:$0xff]
    %v3496 = vld [vmem:[#allocation4 + $0x140] sm:$0xff]
    %v3497 = vld [vmem:[#allocation4 + $0x148] sm:$0xff]
    %v3498 = vld [vmem:[#allocation4 + $0x150] sm:$0xff]
    %v3499 = vld [vmem:[#allocation4 + $0x158] sm:$0xff]
    %v3500 = vld [vmem:[#allocation4 + $0x160] sm:$0xff]
    %v3501 = vld [vmem:[#allocation4 + $0x168] sm:$0xff]
    %v3502 = vld [vmem:[#allocation4 + $0x170] sm:$0xff]
    %v3503 = vld [vmem:[#allocation4 + $0x178] sm:$0xff]
    %v3504 = vld [vmem:[#allocation4 + $0x180] sm:$0xff]
    %v3505 = vld [vmem:[#allocation4 + $0x188] sm:$0xff]
    %v3506 = vld [vmem:[#allocation4 + $0x190] sm:$0xff]
    %v3507 = vld [vmem:[#allocation4 + $0x198] sm:$0xff]
    %v3508 = vld [vmem:[#allocation4 + $0x1a0] sm:$0xff]
    %v3509 = vld [vmem:[#allocation4 + $0x1a8] sm:$0xff]
    %v3510 = vld [vmem:[#allocation4 + $0x1b0] sm:$0xff]
    %v3511 = vld [vmem:[#allocation4 + $0x1b8] sm:$0xff]
    %v3512 = vld [vmem:[#allocation4 + $0x1c0] sm:$0xff]
    %v3513 = vld [vmem:[#allocation4 + $0x1c8] sm:$0xff]
    %v3514 = vld [vmem:[#allocation4 + $0x1d0] sm:$0xff]
    %v3515 = vld [vmem:[#allocation4 + $0x1d8] sm:$0xff]
    %v3516 = vld [vmem:[#allocation4 + $0x1e0] sm:$0xff]
    %v3517 = vld [vmem:[#allocation4 + $0x1e8] sm:$0xff]
    %v3518 = vld [vmem:[#allocation4 + $0x1f0] sm:$0xff]
    %v3519 = vld [vmem:[#allocation4 + $0x1f8] sm:$0xff]
    %v3520 = vld [vmem:[#allocation4 + $0x200] sm:$0xff]
    %v3521 = vld [vmem:[#allocation4 + $0x208] sm:$0xff]
    %v3522 = vld [vmem:[#allocation4 + $0x210] sm:$0xff]
    %v3523 = vld [vmem:[#allocation4 + $0x218] sm:$0xff]
    %v3524 = vld [vmem:[#allocation4 + $0x220] sm:$0xff]
    %v3525 = vld [vmem:[#allocation4 + $0x228] sm:$0xff]
    %v3526 = vld [vmem:[#allocation4 + $0x230] sm:$0xff]
    %v3527 = vld [vmem:[#allocation4 + $0x238] sm:$0xff]
    %v3528 = vld [vmem:[#allocation4 + $0x240] sm:$0xff]
    %v3529 = vld [vmem:[#allocation4 + $0x248] sm:$0xff]
    %v3530 = vld [vmem:[#allocation4 + $0x250] sm:$0xff]
    %v3531 = vld [vmem:[#allocation4 + $0x258] sm:$0xff]
    %v3532 = vld [vmem:[#allocation4 + $0x260] sm:$0xff]
    %v3533 = vld [vmem:[#allocation4 + $0x268] sm:$0xff]
    %v3534 = vld [vmem:[#allocation4 + $0x270] sm:$0xff]
    %v3535 = vld [vmem:[#allocation4 + $0x278] sm:$0xff]
    %v3536 = vld [vmem:[#allocation4 + $0x280] sm:$0xff]
    %v3537 = vld [vmem:[#allocation4 + $0x288] sm:$0xff]
    %v3538 = vld [vmem:[#allocation4 + $0x290] sm:$0xff]
    %v3539 = vld [vmem:[#allocation4 + $0x298] sm:$0xff]
    %v3540 = vld [vmem:[#allocation4 + $0x2a0] sm:$0xff]
    %v3541 = vld [vmem:[#allocation4 + $0x2a8] sm:$0xff]
    %v3542 = vld [vmem:[#allocation4 + $0x2b0] sm:$0xff]
    %v3543 = vld [vmem:[#allocation4 + $0x2b8] sm:$0xff]
    %v3544 = vld [vmem:[#allocation4 + $0x2c0] sm:$0xff]
    %v3545 = vld [vmem:[#allocation4 + $0x2c8] sm:$0xff]
    %v3546 = vld [vmem:[#allocation4 + $0x2d0] sm:$0xff]
    %v3547 = vld [vmem:[#allocation4 + $0x2d8] sm:$0xff]
    %v3548 = vld [vmem:[#allocation4 + $0x2e0] sm:$0xff]
    %v3549 = vld [vmem:[#allocation4 + $0x2e8] sm:$0xff]
    %v3550 = vld [vmem:[#allocation4 + $0x2f0] sm:$0xff]
    %v3551 = vld [vmem:[#allocation4 + $0x2f8] sm:$0xff]
    %v3552 = vld [vmem:[#allocation4 + $0x300] sm:$0xff]
    %v3553 = vld [vmem:[#allocation4 + $0x308] sm:$0xff]
    %v3554 = vld [vmem:[#allocation4 + $0x310] sm:$0xff]
    %v3555 = vld [vmem:[#allocation4 + $0x318] sm:$0xff]
    %v3556 = vld [vmem:[#allocation4 + $0x320] sm:$0xff]
    %v3557 = vld [vmem:[#allocation4 + $0x328] sm:$0xff]
    %v3558 = vld [vmem:[#allocation4 + $0x330] sm:$0xff]
    %v3559 = vld [vmem:[#allocation4 + $0x338] sm:$0xff]
    %v3560 = vld [vmem:[#allocation4 + $0x340] sm:$0xff]
    %v3561 = vld [vmem:[#allocation4 + $0x348] sm:$0xff]
    %v3562 = vld [vmem:[#allocation4 + $0x350] sm:$0xff]
    %v3563 = vld [vmem:[#allocation4 + $0x358] sm:$0xff]
    %v3564 = vld [vmem:[#allocation4 + $0x360] sm:$0xff]
    %v3565 = vld [vmem:[#allocation4 + $0x368] sm:$0xff]
    %v3566 = vld [vmem:[#allocation4 + $0x370] sm:$0xff]
    %v3567 = vld [vmem:[#allocation4 + $0x378] sm:$0xff]
    %v3568 = vld [vmem:[#allocation4 + $0x380] sm:$0xff]
    %v3569 = vld [vmem:[#allocation4 + $0x388] sm:$0xff]
    %v3570 = vld [vmem:[#allocation4 + $0x390] sm:$0xff]
    %v3571 = vld [vmem:[#allocation4 + $0x398] sm:$0xff]
    %v3572 = vld [vmem:[#allocation4 + $0x3a0] sm:$0xff]
    %v3573 = vld [vmem:[#allocation4 + $0x3a8] sm:$0xff]
    %v3574 = vld [vmem:[#allocation4 + $0x3b0] sm:$0xff]
    %v3575 = vld [vmem:[#allocation4 + $0x3b8] sm:$0xff]
    %v3576 = vld [vmem:[#allocation4 + $0x3c0] sm:$0xff]
    %v3577 = vld [vmem:[#allocation4 + $0x3c8] sm:$0xff]
    %v3578 = vld [vmem:[#allocation4 + $0x3d0] sm:$0xff]
    %v3579 = vld [vmem:[#allocation4 + $0x3d8] sm:$0xff]
    %v3580 = vld [vmem:[#allocation4 + $0x3e0] sm:$0xff]
    %v3581 = vld [vmem:[#allocation4 + $0x3e8] sm:$0xff]
    %v3582 = vld [vmem:[#allocation4 + $0x3f0] sm:$0xff]
    %v3583 = vld [vmem:[#allocation4 + $0x3f8] sm:$0xff]
    %v3584 = vld [vmem:[#allocation4 + $0x400] sm:$0xff]
    %v3585 = vld [vmem:[#allocation4 + $0x408] sm:$0xff]
    %v3586 = vld [vmem:[#allocation4 + $0x410] sm:$0xff]
    %v3587 = vld [vmem:[#allocation4 + $0x418] sm:$0xff]
    %v3588 = vld [vmem:[#allocation4 + $0x420] sm:$0xff]
    %v3589 = vld [vmem:[#allocation4 + $0x428] sm:$0xff]
    %v3590 = vld [vmem:[#allocation4 + $0x430] sm:$0xff]
    %v3591 = vld [vmem:[#allocation4 + $0x438] sm:$0xff]
    %v3592 = vld [vmem:[#allocation4 + $0x440] sm:$0xff]
    %v3593 = vld [vmem:[#allocation4 + $0x448] sm:$0xff]
    %v3594 = vld [vmem:[#allocation4 + $0x450] sm:$0xff]
    %v3595 = vld [vmem:[#allocation4 + $0x458] sm:$0xff]
    %v3596 = vld [vmem:[#allocation4 + $0x460] sm:$0xff]
    %v3597 = vld [vmem:[#allocation4 + $0x468] sm:$0xff]
    %v3598 = vld [vmem:[#allocation4 + $0x470] sm:$0xff]
    %v3599 = vld [vmem:[#allocation4 + $0x478] sm:$0xff]
    %v3600 = vld [vmem:[#allocation4 + $0x480] sm:$0xff]
    %v3601 = vld [vmem:[#allocation4 + $0x488] sm:$0xff]
    %v3602 = vld [vmem:[#allocation4 + $0x490] sm:$0xff]
    %v3603 = vld [vmem:[#allocation4 + $0x498] sm:$0xff]
    %v3604 = vld [vmem:[#allocation4 + $0x4a0] sm:$0xff]
    %v3605 = vld [vmem:[#allocation4 + $0x4a8] sm:$0xff]
    %v3606 = vld [vmem:[#allocation4 + $0x4b0] sm:$0xff]
    %v3607 = vld [vmem:[#allocation4 + $0x4b8] sm:$0xff]
    %v3608 = vld [vmem:[#allocation4 + $0x4c0] sm:$0xff]
    %v3609 = vld [vmem:[#allocation4 + $0x4c8] sm:$0xff]
    %v3610 = vld [vmem:[#allocation4 + $0x4d0] sm:$0xff]
    %v3611 = vld [vmem:[#allocation4 + $0x4d8] sm:$0xff]
    %v3612 = vld [vmem:[#allocation4 + $0x4e0] sm:$0xff]
    %v3613 = vld [vmem:[#allocation4 + $0x4e8] sm:$0xff]
    %v3614 = vld [vmem:[#allocation4 + $0x4f0] sm:$0xff]
    %v3615 = vld [vmem:[#allocation4 + $0x4f8] sm:$0xff]
    %v3616 = vld [vmem:[#allocation4 + $0x500] sm:$0xff]
    %v3617 = vld [vmem:[#allocation4 + $0x508] sm:$0xff]
    %v3618 = vld [vmem:[#allocation4 + $0x510] sm:$0xff]
    %v3619 = vld [vmem:[#allocation4 + $0x518] sm:$0xff]
    %v3620 = vld [vmem:[#allocation4 + $0x520] sm:$0xff]
    %v3621 = vld [vmem:[#allocation4 + $0x528] sm:$0xff]
    %v3622 = vld [vmem:[#allocation4 + $0x530] sm:$0xff]
    %v3623 = vld [vmem:[#allocation4 + $0x538] sm:$0xff]
    %v3624 = vld [vmem:[#allocation4 + $0x540] sm:$0xff]
    %v3625 = vld [vmem:[#allocation4 + $0x548] sm:$0xff]
    %v3626 = vld [vmem:[#allocation4 + $0x550] sm:$0xff]
    %v3627 = vld [vmem:[#allocation4 + $0x558] sm:$0xff]
    %v3628 = vld [vmem:[#allocation4 + $0x560] sm:$0xff]
    %v3629 = vld [vmem:[#allocation4 + $0x568] sm:$0xff]
    %v3630 = vld [vmem:[#allocation4 + $0x570] sm:$0xff]
    %v3631 = vld [vmem:[#allocation4 + $0x578] sm:$0xff]
    %v3632 = vld [vmem:[#allocation4 + $0x580] sm:$0xff]
    %v3633 = vld [vmem:[#allocation4 + $0x588] sm:$0xff]
    %v3634 = vld [vmem:[#allocation4 + $0x590] sm:$0xff]
    %v3635 = vld [vmem:[#allocation4 + $0x598] sm:$0xff]
    %v3636 = vld [vmem:[#allocation4 + $0x5a0] sm:$0xff]
    %v3637 = vld [vmem:[#allocation4 + $0x5a8] sm:$0xff]
    %v3638 = vld [vmem:[#allocation4 + $0x5b0] sm:$0xff]
    %v3639 = vld [vmem:[#allocation4 + $0x5b8] sm:$0xff]
    %v3640 = vld [vmem:[#allocation4 + $0x5c0] sm:$0xff]
    %v3641 = vld [vmem:[#allocation4 + $0x5c8] sm:$0xff]
    %v3642 = vld [vmem:[#allocation4 + $0x5d0] sm:$0xff]
    %v3643 = vld [vmem:[#allocation4 + $0x5d8] sm:$0xff]
    %v3644 = vld [vmem:[#allocation4 + $0x5e0] sm:$0xff]
    %v3645 = vld [vmem:[#allocation4 + $0x5e8] sm:$0xff]
    %v3646 = vld [vmem:[#allocation4 + $0x5f0] sm:$0xff]
    %v3647 = vld [vmem:[#allocation4 + $0x5f8] sm:$0xff]
    %3650 = vst [vmem:[#allocation1] ss:$4 sm:$0xff] %v3454
    %s3651 = scalar_lea.vmem [#allocation1], 32
    %3652 = vst [vmem:[%s3651] ss:$4 sm:$0xff] %v3455
    %v3653 = vld.sshfl [vmem:[#allocation1] sm:$0xff pattern:$0x73625140]
    %v3654 = vld.sshfl [vmem:[#allocation1 + $0x8] sm:$0xff pattern:$0x73625140]
    %v3655 = vld.sshfl [vmem:[#allocation1 + $0x10] sm:$0xff pattern:$0x73625140]
    %v3656 = vld.sshfl [vmem:[#allocation1 + $0x18] sm:$0xff pattern:$0x73625140]
    %v3657 = vld.sshfl [vmem:[#allocation1 + $0x20] sm:$0xff pattern:$0x73625140]
    %v3658 = vld.sshfl [vmem:[#allocation1 + $0x28] sm:$0xff pattern:$0x73625140]
    %3665 = vmatpush.msra.mxu0 %v3486
    %3666 = vmatpush.msra.mxu0 %v3484
    %3667 = vmatpush.msra.mxu0 %v3482
    %3668 = vmatpush.msra.mxu0 %v3480
    %3669 = vmatpush.msra.mxu0 %v3478
    %3670 = vmatpush.msra.mxu0 %v3476
    %3671 = vmatpush.msra.mxu0 %v3474
    %3672 = vmatpush.msra.mxu0 %v3472
    %3673 = vmatpush.msra.mxu0 %v3470
    %3674 = vmatpush.msra.mxu0 %v3468
    %3675 = vmatpush.msra.mxu0 %v3466
    %3676 = vmatpush.msra.mxu0 %v3464
    %3677 = vmatpush.msra.mxu0 %v3462
    %3678 = vmatpush.msra.mxu0 %v3460
    %3679 = vmatpush.msra.mxu0 %v3458
    %3680 = vmatpush.msra.mxu0 %v3456
    %3681 = vmatmul.f32.gmra.mxu0 %v3653
    %v3682 = vpop.f32.mrf.mxu0
    %v3683 = vadd.f32 %v2267, %v3682
    %3684 = vdwg.mxu0
    %3685 = vmatpush.msra.mxu0 %v3518
    %3686 = vmatpush.msra.mxu0 %v3516
    %3687 = vmatpush.msra.mxu0 %v3514
    %3688 = vmatpush.msra.mxu0 %v3512
    %3689 = vmatpush.msra.mxu0 %v3510
    %3690 = vmatpush.msra.mxu0 %v3508
    %3691 = vmatpush.msra.mxu0 %v3506
    %3692 = vmatpush.msra.mxu0 %v3504
    %3693 = vmatpush.msra.mxu0 %v3502
    %3694 = vmatpush.msra.mxu0 %v3500
    %3695 = vmatpush.msra.mxu0 %v3498
    %3696 = vmatpush.msra.mxu0 %v3496
    %3697 = vmatpush.msra.mxu0 %v3494
    %3698 = vmatpush.msra.mxu0 %v3492
    %3699 = vmatpush.msra.mxu0 %v3490
    %3700 = vmatpush.msra.mxu0 %v3488
    %3701 = vmatmul.f32.gmra.mxu0 %v3654
    %v3702 = vpop.f32.mrf.mxu0
    %v3703 = vadd.f32 %v3683, %v3702
    %3704 = vdwg.mxu0
    %3705 = vmatpush.msra.mxu0 %v3550
    %3706 = vmatpush.msra.mxu0 %v3548
    %3707 = vmatpush.msra.mxu0 %v3546
    %3708 = vmatpush.msra.mxu0 %v3544
    %3709 = vmatpush.msra.mxu0 %v3542
    %3710 = vmatpush.msra.mxu0 %v3540
    %3711 = vmatpush.msra.mxu0 %v3538
    %3712 = vmatpush.msra.mxu0 %v3536
    %3713 = vmatpush.msra.mxu0 %v3534
    %3714 = vmatpush.msra.mxu0 %v3532
    %3715 = vmatpush.msra.mxu0 %v3530
    %3716 = vmatpush.msra.mxu0 %v3528
    %3717 = vmatpush.msra.mxu0 %v3526
    %3718 = vmatpush.msra.mxu0 %v3524
    %3719 = vmatpush.msra.mxu0 %v3522
    %3720 = vmatpush.msra.mxu0 %v3520
    %3721 = vmatmul.f32.gmra.mxu0 %v3655
    %v3722 = vpop.f32.mrf.mxu0
    %v3723 = vadd.f32 %v3703, %v3722
    %3724 = vdwg.mxu0
    %3725 = vmatpush.msra.mxu0 %v3582
    %3726 = vmatpush.msra.mxu0 %v3580
    %3727 = vmatpush.msra.mxu0 %v3578
    %3728 = vmatpush.msra.mxu0 %v3576
    %3729 = vmatpush.msra.mxu0 %v3574
    %3730 = vmatpush.msra.mxu0 %v3572
    %3731 = vmatpush.msra.mxu0 %v3570
    %3732 = vmatpush.msra.mxu0 %v3568
    %3733 = vmatpush.msra.mxu0 %v3566
    %3734 = vmatpush.msra.mxu0 %v3564
    %3735 = vmatpush.msra.mxu0 %v3562
    %3736 = vmatpush.msra.mxu0 %v3560
    %3737 = vmatpush.msra.mxu0 %v3558
    %3738 = vmatpush.msra.mxu0 %v3556
    %3739 = vmatpush.msra.mxu0 %v3554
    %3740 = vmatpush.msra.mxu0 %v3552
    %3741 = vmatmul.f32.gmra.mxu0 %v3656
    %v3742 = vpop.f32.mrf.mxu0
    %v3743 = vadd.f32 %v3723, %v3742
    %3744 = vdwg.mxu0
    %3745 = vmatpush.msra.mxu0 %v3614
    %3746 = vmatpush.msra.mxu0 %v3612
    %3747 = vmatpush.msra.mxu0 %v3610
    %3748 = vmatpush.msra.mxu0 %v3608
    %3749 = vmatpush.msra.mxu0 %v3606
    %3750 = vmatpush.msra.mxu0 %v3604
    %3751 = vmatpush.msra.mxu0 %v3602
    %3752 = vmatpush.msra.mxu0 %v3600
    %3753 = vmatpush.msra.mxu0 %v3598
    %3754 = vmatpush.msra.mxu0 %v3596
    %3755 = vmatpush.msra.mxu0 %v3594
    %3756 = vmatpush.msra.mxu0 %v3592
    %3757 = vmatpush.msra.mxu0 %v3590
    %3758 = vmatpush.msra.mxu0 %v3588
    %3759 = vmatpush.msra.mxu0 %v3586
    %3760 = vmatpush.msra.mxu0 %v3584
    %3761 = vmatmul.f32.gmra.mxu0 %v3657
    %v3762 = vpop.f32.mrf.mxu0
    %v3763 = vadd.f32 %v3743, %v3762
    %3764 = vdwg.mxu0
    %3765 = vmatpush.msra.mxu0 %v3646
    %3766 = vmatpush.msra.mxu0 %v3644
    %3767 = vmatpush.msra.mxu0 %v3642
    %3768 = vmatpush.msra.mxu0 %v3640
    %3769 = vmatpush.msra.mxu0 %v3638
    %3770 = vmatpush.msra.mxu0 %v3636
    %3771 = vmatpush.msra.mxu0 %v3634
    %3772 = vmatpush.msra.mxu0 %v3632
    %3773 = vmatpush.msra.mxu0 %v3630
    %3774 = vmatpush.msra.mxu0 %v3628
    %3775 = vmatpush.msra.mxu0 %v3626
    %3776 = vmatpush.msra.mxu0 %v3624
    %3777 = vmatpush.msra.mxu0 %v3622
    %3778 = vmatpush.msra.mxu0 %v3620
    %3779 = vmatpush.msra.mxu0 %v3618
    %3780 = vmatpush.msra.mxu0 %v3616
    %3781 = vmatmul.f32.gmra.mxu0 %v3658
    %v3782 = vpop.f32.mrf.mxu0
    %v3783 = vadd.f32 %v3763, %v3782
    %3784 = vdwg.mxu0
    %3785 = vmatpush.msra.mxu0 %v3487
    %3786 = vmatpush.msra.mxu0 %v3485
    %3787 = vmatpush.msra.mxu0 %v3483
    %3788 = vmatpush.msra.mxu0 %v3481
    %3789 = vmatpush.msra.mxu0 %v3479
    %3790 = vmatpush.msra.mxu0 %v3477
    %3791 = vmatpush.msra.mxu0 %v3475
    %3792 = vmatpush.msra.mxu0 %v3473
    %3793 = vmatpush.msra.mxu0 %v3471
    %3794 = vmatpush.msra.mxu0 %v3469
    %3795 = vmatpush.msra.mxu0 %v3467
    %3796 = vmatpush.msra.mxu0 %v3465
    %3797 = vmatpush.msra.mxu0 %v3463
    %3798 = vmatpush.msra.mxu0 %v3461
    %3799 = vmatpush.msra.mxu0 %v3459
    %3800 = vmatpush.msra.mxu0 %v3457
    %3801 = vmatmul.f32.gmra.mxu0 %v3653
    %v3802 = vpop.f32.mrf.mxu0
    %v3803 = vadd.f32 %v2268, %v3802
    %3804 = vdwg.mxu0
    %3805 = vmatpush.msra.mxu0 %v3519
    %3806 = vmatpush.msra.mxu0 %v3517
    %3807 = vmatpush.msra.mxu0 %v3515
    %3808 = vmatpush.msra.mxu0 %v3513
    %3809 = vmatpush.msra.mxu0 %v3511
    %3810 = vmatpush.msra.mxu0 %v3509
    %3811 = vmatpush.msra.mxu0 %v3507
    %3812 = vmatpush.msra.mxu0 %v3505
    %3813 = vmatpush.msra.mxu0 %v3503
    %3814 = vmatpush.msra.mxu0 %v3501
    %3815 = vmatpush.msra.mxu0 %v3499
    %3816 = vmatpush.msra.mxu0 %v3497
    %3817 = vmatpush.msra.mxu0 %v3495
    %3818 = vmatpush.msra.mxu0 %v3493
    %3819 = vmatpush.msra.mxu0 %v3491
    %3820 = vmatpush.msra.mxu0 %v3489
    %3821 = vmatmul.f32.gmra.mxu0 %v3654
    %v3822 = vpop.f32.mrf.mxu0
    %v3823 = vadd.f32 %v3803, %v3822
    %3824 = vdwg.mxu0
    %3825 = vmatpush.msra.mxu0 %v3551
    %3826 = vmatpush.msra.mxu0 %v3549
    %3827 = vmatpush.msra.mxu0 %v3547
    %3828 = vmatpush.msra.mxu0 %v3545
    %3829 = vmatpush.msra.mxu0 %v3543
    %3830 = vmatpush.msra.mxu0 %v3541
    %3831 = vmatpush.msra.mxu0 %v3539
    %3832 = vmatpush.msra.mxu0 %v3537
    %3833 = vmatpush.msra.mxu0 %v3535
    %3834 = vmatpush.msra.mxu0 %v3533
    %3835 = vmatpush.msra.mxu0 %v3531
    %3836 = vmatpush.msra.mxu0 %v3529
    %3837 = vmatpush.msra.mxu0 %v3527
    %3838 = vmatpush.msra.mxu0 %v3525
    %3839 = vmatpush.msra.mxu0 %v3523
    %3840 = vmatpush.msra.mxu0 %v3521
    %3841 = vmatmul.f32.gmra.mxu0 %v3655
    %v3842 = vpop.f32.mrf.mxu0
    %v3843 = vadd.f32 %v3823, %v3842
    %3844 = vdwg.mxu0
    %3845 = vmatpush.msra.mxu0 %v3583
    %3846 = vmatpush.msra.mxu0 %v3581
    %3847 = vmatpush.msra.mxu0 %v3579
    %3848 = vmatpush.msra.mxu0 %v3577
    %3849 = vmatpush.msra.mxu0 %v3575
    %3850 = vmatpush.msra.mxu0 %v3573
    %3851 = vmatpush.msra.mxu0 %v3571
    %3852 = vmatpush.msra.mxu0 %v3569
    %3853 = vmatpush.msra.mxu0 %v3567
    %3854 = vmatpush.msra.mxu0 %v3565
    %3855 = vmatpush.msra.mxu0 %v3563
    %3856 = vmatpush.msra.mxu0 %v3561
    %3857 = vmatpush.msra.mxu0 %v3559
    %3858 = vmatpush.msra.mxu0 %v3557
    %3859 = vmatpush.msra.mxu0 %v3555
    %3860 = vmatpush.msra.mxu0 %v3553
    %3861 = vmatmul.f32.gmra.mxu0 %v3656
    %v3862 = vpop.f32.mrf.mxu0
    %v3863 = vadd.f32 %v3843, %v3862
    %3864 = vdwg.mxu0
    %3865 = vmatpush.msra.mxu0 %v3615
    %3866 = vmatpush.msra.mxu0 %v3613
    %3867 = vmatpush.msra.mxu0 %v3611
    %3868 = vmatpush.msra.mxu0 %v3609
    %3869 = vmatpush.msra.mxu0 %v3607
    %3870 = vmatpush.msra.mxu0 %v3605
    %3871 = vmatpush.msra.mxu0 %v3603
    %3872 = vmatpush.msra.mxu0 %v3601
    %3873 = vmatpush.msra.mxu0 %v3599
    %3874 = vmatpush.msra.mxu0 %v3597
    %3875 = vmatpush.msra.mxu0 %v3595
    %3876 = vmatpush.msra.mxu0 %v3593
    %3877 = vmatpush.msra.mxu0 %v3591
    %3878 = vmatpush.msra.mxu0 %v3589
    %3879 = vmatpush.msra.mxu0 %v3587
    %3880 = vmatpush.msra.mxu0 %v3585
    %3881 = vmatmul.f32.gmra.mxu0 %v3657
    %v3882 = vpop.f32.mrf.mxu0
    %v3883 = vadd.f32 %v3863, %v3882
    %3884 = vdwg.mxu0
    %3885 = vmatpush.msra.mxu0 %v3647
    %3886 = vmatpush.msra.mxu0 %v3645
    %3887 = vmatpush.msra.mxu0 %v3643
    %3888 = vmatpush.msra.mxu0 %v3641
    %3889 = vmatpush.msra.mxu0 %v3639
    %3890 = vmatpush.msra.mxu0 %v3637
    %3891 = vmatpush.msra.mxu0 %v3635
    %3892 = vmatpush.msra.mxu0 %v3633
    %3893 = vmatpush.msra.mxu0 %v3631
    %3894 = vmatpush.msra.mxu0 %v3629
    %3895 = vmatpush.msra.mxu0 %v3627
    %3896 = vmatpush.msra.mxu0 %v3625
    %3897 = vmatpush.msra.mxu0 %v3623
    %3898 = vmatpush.msra.mxu0 %v3621
    %3899 = vmatpush.msra.mxu0 %v3619
    %3900 = vmatpush.msra.mxu0 %v3617
    %3901 = vmatmul.f32.gmra.mxu0 %v3658
    %v3902 = vpop.f32.mrf.mxu0
    %v3903 = vadd.f32 %v3883, %v3902
    %3904 = vdwg.mxu0
    %v3905 = vmax.f32 %v3783, 0.0
    %v3906 = vmax.f32 %v3903, 0.0
    %v3909 = vrot.slane %v3906, 6
    %v3910 = vsel %vm196, %v3905, %v3909
    %3912 = vst [vmem:[#allocation3 + $0x10] sm:$0xf] %v3910
    %v3913 = vld [vmem:[#allocation2 + $0x20] sm:$0xff]
    %v3914 = vld [vmem:[#allocation2 + $0x28] sm:$0xf]
    %v3915 = vld [vmem:[#allocation4] sm:$0xff]
    %v3916 = vld [vmem:[#allocation4 + $0x8] sm:$0xff]
    %v3917 = vld [vmem:[#allocation4 + $0x10] sm:$0xff]
    %v3918 = vld [vmem:[#allocation4 + $0x18] sm:$0xff]
    %v3919 = vld [vmem:[#allocation4 + $0x20] sm:$0xff]
    %v3920 = vld [vmem:[#allocation4 + $0x28] sm:$0xff]
    %v3921 = vld [vmem:[#allocation4 + $0x30] sm:$0xff]
    %v3922 = vld [vmem:[#allocation4 + $0x38] sm:$0xff]
    %v3923 = vld [vmem:[#allocation4 + $0x40] sm:$0xff]
    %v3924 = vld [vmem:[#allocation4 + $0x48] sm:$0xff]
    %v3925 = vld [vmem:[#allocation4 + $0x50] sm:$0xff]
    %v3926 = vld [vmem:[#allocation4 + $0x58] sm:$0xff]
    %v3927 = vld [vmem:[#allocation4 + $0x60] sm:$0xff]
    %v3928 = vld [vmem:[#allocation4 + $0x68] sm:$0xff]
    %v3929 = vld [vmem:[#allocation4 + $0x70] sm:$0xff]
    %v3930 = vld [vmem:[#allocation4 + $0x78] sm:$0xff]
    %v3931 = vld [vmem:[#allocation4 + $0x80] sm:$0xff]
    %v3932 = vld [vmem:[#allocation4 + $0x88] sm:$0xff]
    %v3933 = vld [vmem:[#allocation4 + $0x90] sm:$0xff]
    %v3934 = vld [vmem:[#allocation4 + $0x98] sm:$0xff]
    %v3935 = vld [vmem:[#allocation4 + $0xa0] sm:$0xff]
    %v3936 = vld [vmem:[#allocation4 + $0xa8] sm:$0xff]
    %v3937 = vld [vmem:[#allocation4 + $0xb0] sm:$0xff]
    %v3938 = vld [vmem:[#allocation4 + $0xb8] sm:$0xff]
    %v3939 = vld [vmem:[#allocation4 + $0xc0] sm:$0xff]
    %v3940 = vld [vmem:[#allocation4 + $0xc8] sm:$0xff]
    %v3941 = vld [vmem:[#allocation4 + $0xd0] sm:$0xff]
    %v3942 = vld [vmem:[#allocation4 + $0xd8] sm:$0xff]
    %v3943 = vld [vmem:[#allocation4 + $0xe0] sm:$0xff]
    %v3944 = vld [vmem:[#allocation4 + $0xe8] sm:$0xff]
    %v3945 = vld [vmem:[#allocation4 + $0xf0] sm:$0xff]
    %v3946 = vld [vmem:[#allocation4 + $0xf8] sm:$0xff]
    %v3947 = vld [vmem:[#allocation4 + $0x100] sm:$0xff]
    %v3948 = vld [vmem:[#allocation4 + $0x108] sm:$0xff]
    %v3949 = vld [vmem:[#allocation4 + $0x110] sm:$0xff]
    %v3950 = vld [vmem:[#allocation4 + $0x118] sm:$0xff]
    %v3951 = vld [vmem:[#allocation4 + $0x120] sm:$0xff]
    %v3952 = vld [vmem:[#allocation4 + $0x128] sm:$0xff]
    %v3953 = vld [vmem:[#allocation4 + $0x130] sm:$0xff]
    %v3954 = vld [vmem:[#allocation4 + $0x138] sm:$0xff]
    %v3955 = vld [vmem:[#allocation4 + $0x140] sm:$0xff]
    %v3956 = vld [vmem:[#allocation4 + $0x148] sm:$0xff]
    %v3957 = vld [vmem:[#allocation4 + $0x150] sm:$0xff]
    %v3958 = vld [vmem:[#allocation4 + $0x158] sm:$0xff]
    %v3959 = vld [vmem:[#allocation4 + $0x160] sm:$0xff]
    %v3960 = vld [vmem:[#allocation4 + $0x168] sm:$0xff]
    %v3961 = vld [vmem:[#allocation4 + $0x170] sm:$0xff]
    %v3962 = vld [vmem:[#allocation4 + $0x178] sm:$0xff]
    %v3963 = vld [vmem:[#allocation4 + $0x180] sm:$0xff]
    %v3964 = vld [vmem:[#allocation4 + $0x188] sm:$0xff]
    %v3965 = vld [vmem:[#allocation4 + $0x190] sm:$0xff]
    %v3966 = vld [vmem:[#allocation4 + $0x198] sm:$0xff]
    %v3967 = vld [vmem:[#allocation4 + $0x1a0] sm:$0xff]
    %v3968 = vld [vmem:[#allocation4 + $0x1a8] sm:$0xff]
    %v3969 = vld [vmem:[#allocation4 + $0x1b0] sm:$0xff]
    %v3970 = vld [vmem:[#allocation4 + $0x1b8] sm:$0xff]
    %v3971 = vld [vmem:[#allocation4 + $0x1c0] sm:$0xff]
    %v3972 = vld [vmem:[#allocation4 + $0x1c8] sm:$0xff]
    %v3973 = vld [vmem:[#allocation4 + $0x1d0] sm:$0xff]
    %v3974 = vld [vmem:[#allocation4 + $0x1d8] sm:$0xff]
    %v3975 = vld [vmem:[#allocation4 + $0x1e0] sm:$0xff]
    %v3976 = vld [vmem:[#allocation4 + $0x1e8] sm:$0xff]
    %v3977 = vld [vmem:[#allocation4 + $0x1f0] sm:$0xff]
    %v3978 = vld [vmem:[#allocation4 + $0x1f8] sm:$0xff]
    %v3979 = vld [vmem:[#allocation4 + $0x200] sm:$0xff]
    %v3980 = vld [vmem:[#allocation4 + $0x208] sm:$0xff]
    %v3981 = vld [vmem:[#allocation4 + $0x210] sm:$0xff]
    %v3982 = vld [vmem:[#allocation4 + $0x218] sm:$0xff]
    %v3983 = vld [vmem:[#allocation4 + $0x220] sm:$0xff]
    %v3984 = vld [vmem:[#allocation4 + $0x228] sm:$0xff]
    %v3985 = vld [vmem:[#allocation4 + $0x230] sm:$0xff]
    %v3986 = vld [vmem:[#allocation4 + $0x238] sm:$0xff]
    %v3987 = vld [vmem:[#allocation4 + $0x240] sm:$0xff]
    %v3988 = vld [vmem:[#allocation4 + $0x248] sm:$0xff]
    %v3989 = vld [vmem:[#allocation4 + $0x250] sm:$0xff]
    %v3990 = vld [vmem:[#allocation4 + $0x258] sm:$0xff]
    %v3991 = vld [vmem:[#allocation4 + $0x260] sm:$0xff]
    %v3992 = vld [vmem:[#allocation4 + $0x268] sm:$0xff]
    %v3993 = vld [vmem:[#allocation4 + $0x270] sm:$0xff]
    %v3994 = vld [vmem:[#allocation4 + $0x278] sm:$0xff]
    %v3995 = vld [vmem:[#allocation4 + $0x280] sm:$0xff]
    %v3996 = vld [vmem:[#allocation4 + $0x288] sm:$0xff]
    %v3997 = vld [vmem:[#allocation4 + $0x290] sm:$0xff]
    %v3998 = vld [vmem:[#allocation4 + $0x298] sm:$0xff]
    %v3999 = vld [vmem:[#allocation4 + $0x2a0] sm:$0xff]
    %v4000 = vld [vmem:[#allocation4 + $0x2a8] sm:$0xff]
    %v4001 = vld [vmem:[#allocation4 + $0x2b0] sm:$0xff]
    %v4002 = vld [vmem:[#allocation4 + $0x2b8] sm:$0xff]
    %v4003 = vld [vmem:[#allocation4 + $0x2c0] sm:$0xff]
    %v4004 = vld [vmem:[#allocation4 + $0x2c8] sm:$0xff]
    %v4005 = vld [vmem:[#allocation4 + $0x2d0] sm:$0xff]
    %v4006 = vld [vmem:[#allocation4 + $0x2d8] sm:$0xff]
    %v4007 = vld [vmem:[#allocation4 + $0x2e0] sm:$0xff]
    %v4008 = vld [vmem:[#allocation4 + $0x2e8] sm:$0xff]
    %v4009 = vld [vmem:[#allocation4 + $0x2f0] sm:$0xff]
    %v4010 = vld [vmem:[#allocation4 + $0x2f8] sm:$0xff]
    %v4011 = vld [vmem:[#allocation4 + $0x300] sm:$0xff]
    %v4012 = vld [vmem:[#allocation4 + $0x308] sm:$0xff]
    %v4013 = vld [vmem:[#allocation4 + $0x310] sm:$0xff]
    %v4014 = vld [vmem:[#allocation4 + $0x318] sm:$0xff]
    %v4015 = vld [vmem:[#allocation4 + $0x320] sm:$0xff]
    %v4016 = vld [vmem:[#allocation4 + $0x328] sm:$0xff]
    %v4017 = vld [vmem:[#allocation4 + $0x330] sm:$0xff]
    %v4018 = vld [vmem:[#allocation4 + $0x338] sm:$0xff]
    %v4019 = vld [vmem:[#allocation4 + $0x340] sm:$0xff]
    %v4020 = vld [vmem:[#allocation4 + $0x348] sm:$0xff]
    %v4021 = vld [vmem:[#allocation4 + $0x350] sm:$0xff]
    %v4022 = vld [vmem:[#allocation4 + $0x358] sm:$0xff]
    %v4023 = vld [vmem:[#allocation4 + $0x360] sm:$0xff]
    %v4024 = vld [vmem:[#allocation4 + $0x368] sm:$0xff]
    %v4025 = vld [vmem:[#allocation4 + $0x370] sm:$0xff]
    %v4026 = vld [vmem:[#allocation4 + $0x378] sm:$0xff]
    %v4027 = vld [vmem:[#allocation4 + $0x380] sm:$0xff]
    %v4028 = vld [vmem:[#allocation4 + $0x388] sm:$0xff]
    %v4029 = vld [vmem:[#allocation4 + $0x390] sm:$0xff]
    %v4030 = vld [vmem:[#allocation4 + $0x398] sm:$0xff]
    %v4031 = vld [vmem:[#allocation4 + $0x3a0] sm:$0xff]
    %v4032 = vld [vmem:[#allocation4 + $0x3a8] sm:$0xff]
    %v4033 = vld [vmem:[#allocation4 + $0x3b0] sm:$0xff]
    %v4034 = vld [vmem:[#allocation4 + $0x3b8] sm:$0xff]
    %v4035 = vld [vmem:[#allocation4 + $0x3c0] sm:$0xff]
    %v4036 = vld [vmem:[#allocation4 + $0x3c8] sm:$0xff]
    %v4037 = vld [vmem:[#allocation4 + $0x3d0] sm:$0xff]
    %v4038 = vld [vmem:[#allocation4 + $0x3d8] sm:$0xff]
    %v4039 = vld [vmem:[#allocation4 + $0x3e0] sm:$0xff]
    %v4040 = vld [vmem:[#allocation4 + $0x3e8] sm:$0xff]
    %v4041 = vld [vmem:[#allocation4 + $0x3f0] sm:$0xff]
    %v4042 = vld [vmem:[#allocation4 + $0x3f8] sm:$0xff]
    %v4043 = vld [vmem:[#allocation4 + $0x400] sm:$0xff]
    %v4044 = vld [vmem:[#allocation4 + $0x408] sm:$0xff]
    %v4045 = vld [vmem:[#allocation4 + $0x410] sm:$0xff]
    %v4046 = vld [vmem:[#allocation4 + $0x418] sm:$0xff]
    %v4047 = vld [vmem:[#allocation4 + $0x420] sm:$0xff]
    %v4048 = vld [vmem:[#allocation4 + $0x428] sm:$0xff]
    %v4049 = vld [vmem:[#allocation4 + $0x430] sm:$0xff]
    %v4050 = vld [vmem:[#allocation4 + $0x438] sm:$0xff]
    %v4051 = vld [vmem:[#allocation4 + $0x440] sm:$0xff]
    %v4052 = vld [vmem:[#allocation4 + $0x448] sm:$0xff]
    %v4053 = vld [vmem:[#allocation4 + $0x450] sm:$0xff]
    %v4054 = vld [vmem:[#allocation4 + $0x458] sm:$0xff]
    %v4055 = vld [vmem:[#allocation4 + $0x460] sm:$0xff]
    %v4056 = vld [vmem:[#allocation4 + $0x468] sm:$0xff]
    %v4057 = vld [vmem:[#allocation4 + $0x470] sm:$0xff]
    %v4058 = vld [vmem:[#allocation4 + $0x478] sm:$0xff]
    %v4059 = vld [vmem:[#allocation4 + $0x480] sm:$0xff]
    %v4060 = vld [vmem:[#allocation4 + $0x488] sm:$0xff]
    %v4061 = vld [vmem:[#allocation4 + $0x490] sm:$0xff]
    %v4062 = vld [vmem:[#allocation4 + $0x498] sm:$0xff]
    %v4063 = vld [vmem:[#allocation4 + $0x4a0] sm:$0xff]
    %v4064 = vld [vmem:[#allocation4 + $0x4a8] sm:$0xff]
    %v4065 = vld [vmem:[#allocation4 + $0x4b0] sm:$0xff]
    %v4066 = vld [vmem:[#allocation4 + $0x4b8] sm:$0xff]
    %v4067 = vld [vmem:[#allocation4 + $0x4c0] sm:$0xff]
    %v4068 = vld [vmem:[#allocation4 + $0x4c8] sm:$0xff]
    %v4069 = vld [vmem:[#allocation4 + $0x4d0] sm:$0xff]
    %v4070 = vld [vmem:[#allocation4 + $0x4d8] sm:$0xff]
    %v4071 = vld [vmem:[#allocation4 + $0x4e0] sm:$0xff]
    %v4072 = vld [vmem:[#allocation4 + $0x4e8] sm:$0xff]
    %v4073 = vld [vmem:[#allocation4 + $0x4f0] sm:$0xff]
    %v4074 = vld [vmem:[#allocation4 + $0x4f8] sm:$0xff]
    %v4075 = vld [vmem:[#allocation4 + $0x500] sm:$0xff]
    %v4076 = vld [vmem:[#allocation4 + $0x508] sm:$0xff]
    %v4077 = vld [vmem:[#allocation4 + $0x510] sm:$0xff]
    %v4078 = vld [vmem:[#allocation4 + $0x518] sm:$0xff]
    %v4079 = vld [vmem:[#allocation4 + $0x520] sm:$0xff]
    %v4080 = vld [vmem:[#allocation4 + $0x528] sm:$0xff]
    %v4081 = vld [vmem:[#allocation4 + $0x530] sm:$0xff]
    %v4082 = vld [vmem:[#allocation4 + $0x538] sm:$0xff]
    %v4083 = vld [vmem:[#allocation4 + $0x540] sm:$0xff]
    %v4084 = vld [vmem:[#allocation4 + $0x548] sm:$0xff]
    %v4085 = vld [vmem:[#allocation4 + $0x550] sm:$0xff]
    %v4086 = vld [vmem:[#allocation4 + $0x558] sm:$0xff]
    %v4087 = vld [vmem:[#allocation4 + $0x560] sm:$0xff]
    %v4088 = vld [vmem:[#allocation4 + $0x568] sm:$0xff]
    %v4089 = vld [vmem:[#allocation4 + $0x570] sm:$0xff]
    %v4090 = vld [vmem:[#allocation4 + $0x578] sm:$0xff]
    %v4091 = vld [vmem:[#allocation4 + $0x580] sm:$0xff]
    %v4092 = vld [vmem:[#allocation4 + $0x588] sm:$0xff]
    %v4093 = vld [vmem:[#allocation4 + $0x590] sm:$0xff]
    %v4094 = vld [vmem:[#allocation4 + $0x598] sm:$0xff]
    %v4095 = vld [vmem:[#allocation4 + $0x5a0] sm:$0xff]
    %v4096 = vld [vmem:[#allocation4 + $0x5a8] sm:$0xff]
    %v4097 = vld [vmem:[#allocation4 + $0x5b0] sm:$0xff]
    %v4098 = vld [vmem:[#allocation4 + $0x5b8] sm:$0xff]
    %v4099 = vld [vmem:[#allocation4 + $0x5c0] sm:$0xff]
    %v4100 = vld [vmem:[#allocation4 + $0x5c8] sm:$0xff]
    %v4101 = vld [vmem:[#allocation4 + $0x5d0] sm:$0xff]
    %v4102 = vld [vmem:[#allocation4 + $0x5d8] sm:$0xff]
    %v4103 = vld [vmem:[#allocation4 + $0x5e0] sm:$0xff]
    %v4104 = vld [vmem:[#allocation4 + $0x5e8] sm:$0xff]
    %v4105 = vld [vmem:[#allocation4 + $0x5f0] sm:$0xff]
    %v4106 = vld [vmem:[#allocation4 + $0x5f8] sm:$0xff]
    %4109 = vst [vmem:[#allocation1] ss:$4 sm:$0xff] %v3913
    %s4110 = scalar_lea.vmem [#allocation1], 32
    %4111 = vst [vmem:[%s4110] ss:$4 sm:$0xff] %v3914
    %v4112 = vld.sshfl [vmem:[#allocation1] sm:$0xff pattern:$0x73625140]
    %v4113 = vld.sshfl [vmem:[#allocation1 + $0x8] sm:$0xff pattern:$0x73625140]
    %v4114 = vld.sshfl [vmem:[#allocation1 + $0x10] sm:$0xff pattern:$0x73625140]
    %v4115 = vld.sshfl [vmem:[#allocation1 + $0x18] sm:$0xff pattern:$0x73625140]
    %v4116 = vld.sshfl [vmem:[#allocation1 + $0x20] sm:$0xff pattern:$0x73625140]
    %v4117 = vld.sshfl [vmem:[#allocation1 + $0x28] sm:$0xff pattern:$0x73625140]
    %4124 = vmatpush.msra.mxu0 %v3945
    %4125 = vmatpush.msra.mxu0 %v3943
    %4126 = vmatpush.msra.mxu0 %v3941
    %4127 = vmatpush.msra.mxu0 %v3939
    %4128 = vmatpush.msra.mxu0 %v3937
    %4129 = vmatpush.msra.mxu0 %v3935
    %4130 = vmatpush.msra.mxu0 %v3933
    %4131 = vmatpush.msra.mxu0 %v3931
    %4132 = vmatpush.msra.mxu0 %v3929
    %4133 = vmatpush.msra.mxu0 %v3927
    %4134 = vmatpush.msra.mxu0 %v3925
    %4135 = vmatpush.msra.mxu0 %v3923
    %4136 = vmatpush.msra.mxu0 %v3921
    %4137 = vmatpush.msra.mxu0 %v3919
    %4138 = vmatpush.msra.mxu0 %v3917
    %4139 = vmatpush.msra.mxu0 %v3915
    %4140 = vmatmul.f32.gmra.mxu0 %v4112
    %v4141 = vpop.f32.mrf.mxu0
    %v4142 = vadd.f32 %v2267, %v4141
    %4143 = vdwg.mxu0
    %4144 = vmatpush.msra.mxu0 %v3977
    %4145 = vmatpush.msra.mxu0 %v3975
    %4146 = vmatpush.msra.mxu0 %v3973
    %4147 = vmatpush.msra.mxu0 %v3971
    %4148 = vmatpush.msra.mxu0 %v3969
    %4149 = vmatpush.msra.mxu0 %v3967
    %4150 = vmatpush.msra.mxu0 %v3965
    %4151 = vmatpush.msra.mxu0 %v3963
    %4152 = vmatpush.msra.mxu0 %v3961
    %4153 = vmatpush.msra.mxu0 %v3959
    %4154 = vmatpush.msra.mxu0 %v3957
    %4155 = vmatpush.msra.mxu0 %v3955
    %4156 = vmatpush.msra.mxu0 %v3953
    %4157 = vmatpush.msra.mxu0 %v3951
    %4158 = vmatpush.msra.mxu0 %v3949
    %4159 = vmatpush.msra.mxu0 %v3947
    %4160 = vmatmul.f32.gmra.mxu0 %v4113
    %v4161 = vpop.f32.mrf.mxu0
    %v4162 = vadd.f32 %v4142, %v4161
    %4163 = vdwg.mxu0
    %4164 = vmatpush.msra.mxu0 %v4009
    %4165 = vmatpush.msra.mxu0 %v4007
    %4166 = vmatpush.msra.mxu0 %v4005
    %4167 = vmatpush.msra.mxu0 %v4003
    %4168 = vmatpush.msra.mxu0 %v4001
    %4169 = vmatpush.msra.mxu0 %v3999
    %4170 = vmatpush.msra.mxu0 %v3997
    %4171 = vmatpush.msra.mxu0 %v3995
    %4172 = vmatpush.msra.mxu0 %v3993
    %4173 = vmatpush.msra.mxu0 %v3991
    %4174 = vmatpush.msra.mxu0 %v3989
    %4175 = vmatpush.msra.mxu0 %v3987
    %4176 = vmatpush.msra.mxu0 %v3985
    %4177 = vmatpush.msra.mxu0 %v3983
    %4178 = vmatpush.msra.mxu0 %v3981
    %4179 = vmatpush.msra.mxu0 %v3979
    %4180 = vmatmul.f32.gmra.mxu0 %v4114
    %v4181 = vpop.f32.mrf.mxu0
    %v4182 = vadd.f32 %v4162, %v4181
    %4183 = vdwg.mxu0
    %4184 = vmatpush.msra.mxu0 %v4041
    %4185 = vmatpush.msra.mxu0 %v4039
    %4186 = vmatpush.msra.mxu0 %v4037
    %4187 = vmatpush.msra.mxu0 %v4035
    %4188 = vmatpush.msra.mxu0 %v4033
    %4189 = vmatpush.msra.mxu0 %v4031
    %4190 = vmatpush.msra.mxu0 %v4029
    %4191 = vmatpush.msra.mxu0 %v4027
    %4192 = vmatpush.msra.mxu0 %v4025
    %4193 = vmatpush.msra.mxu0 %v4023
    %4194 = vmatpush.msra.mxu0 %v4021
    %4195 = vmatpush.msra.mxu0 %v4019
    %4196 = vmatpush.msra.mxu0 %v4017
    %4197 = vmatpush.msra.mxu0 %v4015
    %4198 = vmatpush.msra.mxu0 %v4013
    %4199 = vmatpush.msra.mxu0 %v4011
    %4200 = vmatmul.f32.gmra.mxu0 %v4115
    %v4201 = vpop.f32.mrf.mxu0
    %v4202 = vadd.f32 %v4182, %v4201
    %4203 = vdwg.mxu0
    %4204 = vmatpush.msra.mxu0 %v4073
    %4205 = vmatpush.msra.mxu0 %v4071
    %4206 = vmatpush.msra.mxu0 %v4069
    %4207 = vmatpush.msra.mxu0 %v4067
    %4208 = vmatpush.msra.mxu0 %v4065
    %4209 = vmatpush.msra.mxu0 %v4063
    %4210 = vmatpush.msra.mxu0 %v4061
    %4211 = vmatpush.msra.mxu0 %v4059
    %4212 = vmatpush.msra.mxu0 %v4057
    %4213 = vmatpush.msra.mxu0 %v4055
    %4214 = vmatpush.msra.mxu0 %v4053
    %4215 = vmatpush.msra.mxu0 %v4051
    %4216 = vmatpush.msra.mxu0 %v4049
    %4217 = vmatpush.msra.mxu0 %v4047
    %4218 = vmatpush.msra.mxu0 %v4045
    %4219 = vmatpush.msra.mxu0 %v4043
    %4220 = vmatmul.f32.gmra.mxu0 %v4116
    %v4221 = vpop.f32.mrf.mxu0
    %v4222 = vadd.f32 %v4202, %v4221
    %4223 = vdwg.mxu0
    %4224 = vmatpush.msra.mxu0 %v4105
    %4225 = vmatpush.msra.mxu0 %v4103
    %4226 = vmatpush.msra.mxu0 %v4101
    %4227 = vmatpush.msra.mxu0 %v4099
    %4228 = vmatpush.msra.mxu0 %v4097
    %4229 = vmatpush.msra.mxu0 %v4095
    %4230 = vmatpush.msra.mxu0 %v4093
    %4231 = vmatpush.msra.mxu0 %v4091
    %4232 = vmatpush.msra.mxu0 %v4089
    %4233 = vmatpush.msra.mxu0 %v4087
    %4234 = vmatpush.msra.mxu0 %v4085
    %4235 = vmatpush.msra.mxu0 %v4083
    %4236 = vmatpush.msra.mxu0 %v4081
    %4237 = vmatpush.msra.mxu0 %v4079
    %4238 = vmatpush.msra.mxu0 %v4077
    %4239 = vmatpush.msra.mxu0 %v4075
    %4240 = vmatmul.f32.gmra.mxu0 %v4117
    %v4241 = vpop.f32.mrf.mxu0
    %v4242 = vadd.f32 %v4222, %v4241
    %4243 = vdwg.mxu0
    %4244 = vmatpush.msra.mxu0 %v3946
    %4245 = vmatpush.msra.mxu0 %v3944
    %4246 = vmatpush.msra.mxu0 %v3942
    %4247 = vmatpush.msra.mxu0 %v3940
    %4248 = vmatpush.msra.mxu0 %v3938
    %4249 = vmatpush.msra.mxu0 %v3936
    %4250 = vmatpush.msra.mxu0 %v3934
    %4251 = vmatpush.msra.mxu0 %v3932
    %4252 = vmatpush.msra.mxu0 %v3930
    %4253 = vmatpush.msra.mxu0 %v3928
    %4254 = vmatpush.msra.mxu0 %v3926
    %4255 = vmatpush.msra.mxu0 %v3924
    %4256 = vmatpush.msra.mxu0 %v3922
    %4257 = vmatpush.msra.mxu0 %v3920
    %4258 = vmatpush.msra.mxu0 %v3918
    %4259 = vmatpush.msra.mxu0 %v3916
    %4260 = vmatmul.f32.gmra.mxu0 %v4112
    %v4261 = vpop.f32.mrf.mxu0
    %v4262 = vadd.f32 %v2268, %v4261
    %4263 = vdwg.mxu0
    %4264 = vmatpush.msra.mxu0 %v3978
    %4265 = vmatpush.msra.mxu0 %v3976
    %4266 = vmatpush.msra.mxu0 %v3974
    %4267 = vmatpush.msra.mxu0 %v3972
    %4268 = vmatpush.msra.mxu0 %v3970
    %4269 = vmatpush.msra.mxu0 %v3968
    %4270 = vmatpush.msra.mxu0 %v3966
    %4271 = vmatpush.msra.mxu0 %v3964
    %4272 = vmatpush.msra.mxu0 %v3962
    %4273 = vmatpush.msra.mxu0 %v3960
    %4274 = vmatpush.msra.mxu0 %v3958
    %4275 = vmatpush.msra.mxu0 %v3956
    %4276 = vmatpush.msra.mxu0 %v3954
    %4277 = vmatpush.msra.mxu0 %v3952
    %4278 = vmatpush.msra.mxu0 %v3950
    %4279 = vmatpush.msra.mxu0 %v3948
    %4280 = vmatmul.f32.gmra.mxu0 %v4113
    %v4281 = vpop.f32.mrf.mxu0
    %v4282 = vadd.f32 %v4262, %v4281
    %4283 = vdwg.mxu0
    %4284 = vmatpush.msra.mxu0 %v4010
    %4285 = vmatpush.msra.mxu0 %v4008
    %4286 = vmatpush.msra.mxu0 %v4006
    %4287 = vmatpush.msra.mxu0 %v4004
    %4288 = vmatpush.msra.mxu0 %v4002
    %4289 = vmatpush.msra.mxu0 %v4000
    %4290 = vmatpush.msra.mxu0 %v3998
    %4291 = vmatpush.msra.mxu0 %v3996
    %4292 = vmatpush.msra.mxu0 %v3994
    %4293 = vmatpush.msra.mxu0 %v3992
    %4294 = vmatpush.msra.mxu0 %v3990
    %4295 = vmatpush.msra.mxu0 %v3988
    %4296 = vmatpush.msra.mxu0 %v3986
    %4297 = vmatpush.msra.mxu0 %v3984
    %4298 = vmatpush.msra.mxu0 %v3982
    %4299 = vmatpush.msra.mxu0 %v3980
    %4300 = vmatmul.f32.gmra.mxu0 %v4114
    %v4301 = vpop.f32.mrf.mxu0
    %v4302 = vadd.f32 %v4282, %v4301
    %4303 = vdwg.mxu0
    %4304 = vmatpush.msra.mxu0 %v4042
    %4305 = vmatpush.msra.mxu0 %v4040
    %4306 = vmatpush.msra.mxu0 %v4038
    %4307 = vmatpush.msra.mxu0 %v4036
    %4308 = vmatpush.msra.mxu0 %v4034
    %4309 = vmatpush.msra.mxu0 %v4032
    %4310 = vmatpush.msra.mxu0 %v4030
    %4311 = vmatpush.msra.mxu0 %v4028
    %4312 = vmatpush.msra.mxu0 %v4026
    %4313 = vmatpush.msra.mxu0 %v4024
    %4314 = vmatpush.msra.mxu0 %v4022
    %4315 = vmatpush.msra.mxu0 %v4020
    %4316 = vmatpush.msra.mxu0 %v4018
    %4317 = vmatpush.msra.mxu0 %v4016
    %4318 = vmatpush.msra.mxu0 %v4014
    %4319 = vmatpush.msra.mxu0 %v4012
    %4320 = vmatmul.f32.gmra.mxu0 %v4115
    %v4321 = vpop.f32.mrf.mxu0
    %v4322 = vadd.f32 %v4302, %v4321
    %4323 = vdwg.mxu0
    %4324 = vmatpush.msra.mxu0 %v4074
    %4325 = vmatpush.msra.mxu0 %v4072
    %4326 = vmatpush.msra.mxu0 %v4070
    %4327 = vmatpush.msra.mxu0 %v4068
    %4328 = vmatpush.msra.mxu0 %v4066
    %4329 = vmatpush.msra.mxu0 %v4064
    %4330 = vmatpush.msra.mxu0 %v4062
    %4331 = vmatpush.msra.mxu0 %v4060
    %4332 = vmatpush.msra.mxu0 %v4058
    %4333 = vmatpush.msra.mxu0 %v4056
    %4334 = vmatpush.msra.mxu0 %v4054
    %4335 = vmatpush.msra.mxu0 %v4052
    %4336 = vmatpush.msra.mxu0 %v4050
    %4337 = vmatpush.msra.mxu0 %v4048
    %4338 = vmatpush.msra.mxu0 %v4046
    %4339 = vmatpush.msra.mxu0 %v4044
    %4340 = vmatmul.f32.gmra.mxu0 %v4116
    %v4341 = vpop.f32.mrf.mxu0
    %v4342 = vadd.f32 %v4322, %v4341
    %4343 = vdwg.mxu0
    %4344 = vmatpush.msra.mxu0 %v4106
    %4345 = vmatpush.msra.mxu0 %v4104
    %4346 = vmatpush.msra.mxu0 %v4102
    %4347 = vmatpush.msra.mxu0 %v4100
    %4348 = vmatpush.msra.mxu0 %v4098
    %4349 = vmatpush.msra.mxu0 %v4096
    %4350 = vmatpush.msra.mxu0 %v4094
    %4351 = vmatpush.msra.mxu0 %v4092
    %4352 = vmatpush.msra.mxu0 %v4090
    %4353 = vmatpush.msra.mxu0 %v4088
    %4354 = vmatpush.msra.mxu0 %v4086
    %4355 = vmatpush.msra.mxu0 %v4084
    %4356 = vmatpush.msra.mxu0 %v4082
    %4357 = vmatpush.msra.mxu0 %v4080
    %4358 = vmatpush.msra.mxu0 %v4078
    %4359 = vmatpush.msra.mxu0 %v4076
    %4360 = vmatmul.f32.gmra.mxu0 %v4117
    %v4361 = vpop.f32.mrf.mxu0
    %v4362 = vadd.f32 %v4342, %v4361
    %4363 = vdwg.mxu0
    %v4364 = vmax.f32 %v4242, 0.0
    %v4365 = vmax.f32 %v4362, 0.0
    %v4368 = vrot.slane %v4365, 6
    %v4369 = vsel %vm196, %v4364, %v4368
    %4371 = vst [vmem:[#allocation3 + $0x14] sm:$0xf] %v4369
    %v4372 = vld [vmem:[#allocation2 + $0x28] sm:$0xff]
    %v4373 = vld [vmem:[#allocation2 + $0x30] sm:$0xf]
    %v4374 = vld [vmem:[#allocation4] sm:$0xff]
    %v4375 = vld [vmem:[#allocation4 + $0x8] sm:$0xff]
    %v4376 = vld [vmem:[#allocation4 + $0x10] sm:$0xff]
    %v4377 = vld [vmem:[#allocation4 + $0x18] sm:$0xff]
    %v4378 = vld [vmem:[#allocation4 + $0x20] sm:$0xff]
    %v4379 = vld [vmem:[#allocation4 + $0x28] sm:$0xff]
    %v4380 = vld [vmem:[#allocation4 + $0x30] sm:$0xff]
    %v4381 = vld [vmem:[#allocation4 + $0x38] sm:$0xff]
    %v4382 = vld [vmem:[#allocation4 + $0x40] sm:$0xff]
    %v4383 = vld [vmem:[#allocation4 + $0x48] sm:$0xff]
    %v4384 = vld [vmem:[#allocation4 + $0x50] sm:$0xff]
    %v4385 = vld [vmem:[#allocation4 + $0x58] sm:$0xff]
    %v4386 = vld [vmem:[#allocation4 + $0x60] sm:$0xff]
    %v4387 = vld [vmem:[#allocation4 + $0x68] sm:$0xff]
    %v4388 = vld [vmem:[#allocation4 + $0x70] sm:$0xff]
    %v4389 = vld [vmem:[#allocation4 + $0x78] sm:$0xff]
    %v4390 = vld [vmem:[#allocation4 + $0x80] sm:$0xff]
    %v4391 = vld [vmem:[#allocation4 + $0x88] sm:$0xff]
    %v4392 = vld [vmem:[#allocation4 + $0x90] sm:$0xff]
    %v4393 = vld [vmem:[#allocation4 + $0x98] sm:$0xff]
    %v4394 = vld [vmem:[#allocation4 + $0xa0] sm:$0xff]
    %v4395 = vld [vmem:[#allocation4 + $0xa8] sm:$0xff]
    %v4396 = vld [vmem:[#allocation4 + $0xb0] sm:$0xff]
    %v4397 = vld [vmem:[#allocation4 + $0xb8] sm:$0xff]
    %v4398 = vld [vmem:[#allocation4 + $0xc0] sm:$0xff]
    %v4399 = vld [vmem:[#allocation4 + $0xc8] sm:$0xff]
    %v4400 = vld [vmem:[#allocation4 + $0xd0] sm:$0xff]
    %v4401 = vld [vmem:[#allocation4 + $0xd8] sm:$0xff]
    %v4402 = vld [vmem:[#allocation4 + $0xe0] sm:$0xff]
    %v4403 = vld [vmem:[#allocation4 + $0xe8] sm:$0xff]
    %v4404 = vld [vmem:[#allocation4 + $0xf0] sm:$0xff]
    %v4405 = vld [vmem:[#allocation4 + $0xf8] sm:$0xff]
    %v4406 = vld [vmem:[#allocation4 + $0x100] sm:$0xff]
    %v4407 = vld [vmem:[#allocation4 + $0x108] sm:$0xff]
    %v4408 = vld [vmem:[#allocation4 + $0x110] sm:$0xff]
    %v4409 = vld [vmem:[#allocation4 + $0x118] sm:$0xff]
    %v4410 = vld [vmem:[#allocation4 + $0x120] sm:$0xff]
    %v4411 = vld [vmem:[#allocation4 + $0x128] sm:$0xff]
    %v4412 = vld [vmem:[#allocation4 + $0x130] sm:$0xff]
    %v4413 = vld [vmem:[#allocation4 + $0x138] sm:$0xff]
    %v4414 = vld [vmem:[#allocation4 + $0x140] sm:$0xff]
    %v4415 = vld [vmem:[#allocation4 + $0x148] sm:$0xff]
    %v4416 = vld [vmem:[#allocation4 + $0x150] sm:$0xff]
    %v4417 = vld [vmem:[#allocation4 + $0x158] sm:$0xff]
    %v4418 = vld [vmem:[#allocation4 + $0x160] sm:$0xff]
    %v4419 = vld [vmem:[#allocation4 + $0x168] sm:$0xff]
    %v4420 = vld [vmem:[#allocation4 + $0x170] sm:$0xff]
    %v4421 = vld [vmem:[#allocation4 + $0x178] sm:$0xff]
    %v4422 = vld [vmem:[#allocation4 + $0x180] sm:$0xff]
    %v4423 = vld [vmem:[#allocation4 + $0x188] sm:$0xff]
    %v4424 = vld [vmem:[#allocation4 + $0x190] sm:$0xff]
    %v4425 = vld [vmem:[#allocation4 + $0x198] sm:$0xff]
    %v4426 = vld [vmem:[#allocation4 + $0x1a0] sm:$0xff]
    %v4427 = vld [vmem:[#allocation4 + $0x1a8] sm:$0xff]
    %v4428 = vld [vmem:[#allocation4 + $0x1b0] sm:$0xff]
    %v4429 = vld [vmem:[#allocation4 + $0x1b8] sm:$0xff]
    %v4430 = vld [vmem:[#allocation4 + $0x1c0] sm:$0xff]
    %v4431 = vld [vmem:[#allocation4 + $0x1c8] sm:$0xff]
    %v4432 = vld [vmem:[#allocation4 + $0x1d0] sm:$0xff]
    %v4433 = vld [vmem:[#allocation4 + $0x1d8] sm:$0xff]
    %v4434 = vld [vmem:[#allocation4 + $0x1e0] sm:$0xff]
    %v4435 = vld [vmem:[#allocation4 + $0x1e8] sm:$0xff]
    %v4436 = vld [vmem:[#allocation4 + $0x1f0] sm:$0xff]
    %v4437 = vld [vmem:[#allocation4 + $0x1f8] sm:$0xff]
    %v4438 = vld [vmem:[#allocation4 + $0x200] sm:$0xff]
    %v4439 = vld [vmem:[#allocation4 + $0x208] sm:$0xff]
    %v4440 = vld [vmem:[#allocation4 + $0x210] sm:$0xff]
    %v4441 = vld [vmem:[#allocation4 + $0x218] sm:$0xff]
    %v4442 = vld [vmem:[#allocation4 + $0x220] sm:$0xff]
    %v4443 = vld [vmem:[#allocation4 + $0x228] sm:$0xff]
    %v4444 = vld [vmem:[#allocation4 + $0x230] sm:$0xff]
    %v4445 = vld [vmem:[#allocation4 + $0x238] sm:$0xff]
    %v4446 = vld [vmem:[#allocation4 + $0x240] sm:$0xff]
    %v4447 = vld [vmem:[#allocation4 + $0x248] sm:$0xff]
    %v4448 = vld [vmem:[#allocation4 + $0x250] sm:$0xff]
    %v4449 = vld [vmem:[#allocation4 + $0x258] sm:$0xff]
    %v4450 = vld [vmem:[#allocation4 + $0x260] sm:$0xff]
    %v4451 = vld [vmem:[#allocation4 + $0x268] sm:$0xff]
    %v4452 = vld [vmem:[#allocation4 + $0x270] sm:$0xff]
    %v4453 = vld [vmem:[#allocation4 + $0x278] sm:$0xff]
    %v4454 = vld [vmem:[#allocation4 + $0x280] sm:$0xff]
    %v4455 = vld [vmem:[#allocation4 + $0x288] sm:$0xff]
    %v4456 = vld [vmem:[#allocation4 + $0x290] sm:$0xff]
    %v4457 = vld [vmem:[#allocation4 + $0x298] sm:$0xff]
    %v4458 = vld [vmem:[#allocation4 + $0x2a0] sm:$0xff]
    %v4459 = vld [vmem:[#allocation4 + $0x2a8] sm:$0xff]
    %v4460 = vld [vmem:[#allocation4 + $0x2b0] sm:$0xff]
    %v4461 = vld [vmem:[#allocation4 + $0x2b8] sm:$0xff]
    %v4462 = vld [vmem:[#allocation4 + $0x2c0] sm:$0xff]
    %v4463 = vld [vmem:[#allocation4 + $0x2c8] sm:$0xff]
    %v4464 = vld [vmem:[#allocation4 + $0x2d0] sm:$0xff]
    %v4465 = vld [vmem:[#allocation4 + $0x2d8] sm:$0xff]
    %v4466 = vld [vmem:[#allocation4 + $0x2e0] sm:$0xff]
    %v4467 = vld [vmem:[#allocation4 + $0x2e8] sm:$0xff]
    %v4468 = vld [vmem:[#allocation4 + $0x2f0] sm:$0xff]
    %v4469 = vld [vmem:[#allocation4 + $0x2f8] sm:$0xff]
    %v4470 = vld [vmem:[#allocation4 + $0x300] sm:$0xff]
    %v4471 = vld [vmem:[#allocation4 + $0x308] sm:$0xff]
    %v4472 = vld [vmem:[#allocation4 + $0x310] sm:$0xff]
    %v4473 = vld [vmem:[#allocation4 + $0x318] sm:$0xff]
    %v4474 = vld [vmem:[#allocation4 + $0x320] sm:$0xff]
    %v4475 = vld [vmem:[#allocation4 + $0x328] sm:$0xff]
    %v4476 = vld [vmem:[#allocation4 + $0x330] sm:$0xff]
    %v4477 = vld [vmem:[#allocation4 + $0x338] sm:$0xff]
    %v4478 = vld [vmem:[#allocation4 + $0x340] sm:$0xff]
    %v4479 = vld [vmem:[#allocation4 + $0x348] sm:$0xff]
    %v4480 = vld [vmem:[#allocation4 + $0x350] sm:$0xff]
    %v4481 = vld [vmem:[#allocation4 + $0x358] sm:$0xff]
    %v4482 = vld [vmem:[#allocation4 + $0x360] sm:$0xff]
    %v4483 = vld [vmem:[#allocation4 + $0x368] sm:$0xff]
    %v4484 = vld [vmem:[#allocation4 + $0x370] sm:$0xff]
    %v4485 = vld [vmem:[#allocation4 + $0x378] sm:$0xff]
    %v4486 = vld [vmem:[#allocation4 + $0x380] sm:$0xff]
    %v4487 = vld [vmem:[#allocation4 + $0x388] sm:$0xff]
    %v4488 = vld [vmem:[#allocation4 + $0x390] sm:$0xff]
    %v4489 = vld [vmem:[#allocation4 + $0x398] sm:$0xff]
    %v4490 = vld [vmem:[#allocation4 + $0x3a0] sm:$0xff]
    %v4491 = vld [vmem:[#allocation4 + $0x3a8] sm:$0xff]
    %v4492 = vld [vmem:[#allocation4 + $0x3b0] sm:$0xff]
    %v4493 = vld [vmem:[#allocation4 + $0x3b8] sm:$0xff]
    %v4494 = vld [vmem:[#allocation4 + $0x3c0] sm:$0xff]
    %v4495 = vld [vmem:[#allocation4 + $0x3c8] sm:$0xff]
    %v4496 = vld [vmem:[#allocation4 + $0x3d0] sm:$0xff]
    %v4497 = vld [vmem:[#allocation4 + $0x3d8] sm:$0xff]
    %v4498 = vld [vmem:[#allocation4 + $0x3e0] sm:$0xff]
    %v4499 = vld [vmem:[#allocation4 + $0x3e8] sm:$0xff]
    %v4500 = vld [vmem:[#allocation4 + $0x3f0] sm:$0xff]
    %v4501 = vld [vmem:[#allocation4 + $0x3f8] sm:$0xff]
    %v4502 = vld [vmem:[#allocation4 + $0x400] sm:$0xff]
    %v4503 = vld [vmem:[#allocation4 + $0x408] sm:$0xff]
    %v4504 = vld [vmem:[#allocation4 + $0x410] sm:$0xff]
    %v4505 = vld [vmem:[#allocation4 + $0x418] sm:$0xff]
    %v4506 = vld [vmem:[#allocation4 + $0x420] sm:$0xff]
    %v4507 = vld [vmem:[#allocation4 + $0x428] sm:$0xff]
    %v4508 = vld [vmem:[#allocation4 + $0x430] sm:$0xff]
    %v4509 = vld [vmem:[#allocation4 + $0x438] sm:$0xff]
    %v4510 = vld [vmem:[#allocation4 + $0x440] sm:$0xff]
    %v4511 = vld [vmem:[#allocation4 + $0x448] sm:$0xff]
    %v4512 = vld [vmem:[#allocation4 + $0x450] sm:$0xff]
    %v4513 = vld [vmem:[#allocation4 + $0x458] sm:$0xff]
    %v4514 = vld [vmem:[#allocation4 + $0x460] sm:$0xff]
    %v4515 = vld [vmem:[#allocation4 + $0x468] sm:$0xff]
    %v4516 = vld [vmem:[#allocation4 + $0x470] sm:$0xff]
    %v4517 = vld [vmem:[#allocation4 + $0x478] sm:$0xff]
    %v4518 = vld [vmem:[#allocation4 + $0x480] sm:$0xff]
    %v4519 = vld [vmem:[#allocation4 + $0x488] sm:$0xff]
    %v4520 = vld [vmem:[#allocation4 + $0x490] sm:$0xff]
    %v4521 = vld [vmem:[#allocation4 + $0x498] sm:$0xff]
    %v4522 = vld [vmem:[#allocation4 + $0x4a0] sm:$0xff]
    %v4523 = vld [vmem:[#allocation4 + $0x4a8] sm:$0xff]
    %v4524 = vld [vmem:[#allocation4 + $0x4b0] sm:$0xff]
    %v4525 = vld [vmem:[#allocation4 + $0x4b8] sm:$0xff]
    %v4526 = vld [vmem:[#allocation4 + $0x4c0] sm:$0xff]
    %v4527 = vld [vmem:[#allocation4 + $0x4c8] sm:$0xff]
    %v4528 = vld [vmem:[#allocation4 + $0x4d0] sm:$0xff]
    %v4529 = vld [vmem:[#allocation4 + $0x4d8] sm:$0xff]
    %v4530 = vld [vmem:[#allocation4 + $0x4e0] sm:$0xff]
    %v4531 = vld [vmem:[#allocation4 + $0x4e8] sm:$0xff]
    %v4532 = vld [vmem:[#allocation4 + $0x4f0] sm:$0xff]
    %v4533 = vld [vmem:[#allocation4 + $0x4f8] sm:$0xff]
    %v4534 = vld [vmem:[#allocation4 + $0x500] sm:$0xff]
    %v4535 = vld [vmem:[#allocation4 + $0x508] sm:$0xff]
    %v4536 = vld [vmem:[#allocation4 + $0x510] sm:$0xff]
    %v4537 = vld [vmem:[#allocation4 + $0x518] sm:$0xff]
    %v4538 = vld [vmem:[#allocation4 + $0x520] sm:$0xff]
    %v4539 = vld [vmem:[#allocation4 + $0x528] sm:$0xff]
    %v4540 = vld [vmem:[#allocation4 + $0x530] sm:$0xff]
    %v4541 = vld [vmem:[#allocation4 + $0x538] sm:$0xff]
    %v4542 = vld [vmem:[#allocation4 + $0x540] sm:$0xff]
    %v4543 = vld [vmem:[#allocation4 + $0x548] sm:$0xff]
    %v4544 = vld [vmem:[#allocation4 + $0x550] sm:$0xff]
    %v4545 = vld [vmem:[#allocation4 + $0x558] sm:$0xff]
    %v4546 = vld [vmem:[#allocation4 + $0x560] sm:$0xff]
    %v4547 = vld [vmem:[#allocation4 + $0x568] sm:$0xff]
    %v4548 = vld [vmem:[#allocation4 + $0x570] sm:$0xff]
    %v4549 = vld [vmem:[#allocation4 + $0x578] sm:$0xff]
    %v4550 = vld [vmem:[#allocation4 + $0x580] sm:$0xff]
    %v4551 = vld [vmem:[#allocation4 + $0x588] sm:$0xff]
    %v4552 = vld [vmem:[#allocation4 + $0x590] sm:$0xff]
    %v4553 = vld [vmem:[#allocation4 + $0x598] sm:$0xff]
    %v4554 = vld [vmem:[#allocation4 + $0x5a0] sm:$0xff]
    %v4555 = vld [vmem:[#allocation4 + $0x5a8] sm:$0xff]
    %v4556 = vld [vmem:[#allocation4 + $0x5b0] sm:$0xff]
    %v4557 = vld [vmem:[#allocation4 + $0x5b8] sm:$0xff]
    %v4558 = vld [vmem:[#allocation4 + $0x5c0] sm:$0xff]
    %v4559 = vld [vmem:[#allocation4 + $0x5c8] sm:$0xff]
    %v4560 = vld [vmem:[#allocation4 + $0x5d0] sm:$0xff]
    %v4561 = vld [vmem:[#allocation4 + $0x5d8] sm:$0xff]
    %v4562 = vld [vmem:[#allocation4 + $0x5e0] sm:$0xff]
    %v4563 = vld [vmem:[#allocation4 + $0x5e8] sm:$0xff]
    %v4564 = vld [vmem:[#allocation4 + $0x5f0] sm:$0xff]
    %v4565 = vld [vmem:[#allocation4 + $0x5f8] sm:$0xff]
    %4568 = vst [vmem:[#allocation1] ss:$4 sm:$0xff] %v4372
    %s4569 = scalar_lea.vmem [#allocation1], 32
    %4570 = vst [vmem:[%s4569] ss:$4 sm:$0xff] %v4373
    %v4571 = vld.sshfl [vmem:[#allocation1] sm:$0xff pattern:$0x73625140]
    %v4572 = vld.sshfl [vmem:[#allocation1 + $0x8] sm:$0xff pattern:$0x73625140]
    %v4573 = vld.sshfl [vmem:[#allocation1 + $0x10] sm:$0xff pattern:$0x73625140]
    %v4574 = vld.sshfl [vmem:[#allocation1 + $0x18] sm:$0xff pattern:$0x73625140]
    %v4575 = vld.sshfl [vmem:[#allocation1 + $0x20] sm:$0xff pattern:$0x73625140]
    %v4576 = vld.sshfl [vmem:[#allocation1 + $0x28] sm:$0xff pattern:$0x73625140]
    %4583 = vmatpush.msra.mxu0 %v4404
    %4584 = vmatpush.msra.mxu0 %v4402
    %4585 = vmatpush.msra.mxu0 %v4400
    %4586 = vmatpush.msra.mxu0 %v4398
    %4587 = vmatpush.msra.mxu0 %v4396
    %4588 = vmatpush.msra.mxu0 %v4394
    %4589 = vmatpush.msra.mxu0 %v4392
    %4590 = vmatpush.msra.mxu0 %v4390
    %4591 = vmatpush.msra.mxu0 %v4388
    %4592 = vmatpush.msra.mxu0 %v4386
    %4593 = vmatpush.msra.mxu0 %v4384
    %4594 = vmatpush.msra.mxu0 %v4382
    %4595 = vmatpush.msra.mxu0 %v4380
    %4596 = vmatpush.msra.mxu0 %v4378
    %4597 = vmatpush.msra.mxu0 %v4376
    %4598 = vmatpush.msra.mxu0 %v4374
    %4599 = vmatmul.f32.gmra.mxu0 %v4571
    %v4600 = vpop.f32.mrf.mxu0
    %v4601 = vadd.f32 %v2267, %v4600
    %4602 = vdwg.mxu0
    %4603 = vmatpush.msra.mxu0 %v4436
    %4604 = vmatpush.msra.mxu0 %v4434
    %4605 = vmatpush.msra.mxu0 %v4432
    %4606 = vmatpush.msra.mxu0 %v4430
    %4607 = vmatpush.msra.mxu0 %v4428
    %4608 = vmatpush.msra.mxu0 %v4426
    %4609 = vmatpush.msra.mxu0 %v4424
    %4610 = vmatpush.msra.mxu0 %v4422
    %4611 = vmatpush.msra.mxu0 %v4420
    %4612 = vmatpush.msra.mxu0 %v4418
    %4613 = vmatpush.msra.mxu0 %v4416
    %4614 = vmatpush.msra.mxu0 %v4414
    %4615 = vmatpush.msra.mxu0 %v4412
    %4616 = vmatpush.msra.mxu0 %v4410
    %4617 = vmatpush.msra.mxu0 %v4408
    %4618 = vmatpush.msra.mxu0 %v4406
    %4619 = vmatmul.f32.gmra.mxu0 %v4572
    %v4620 = vpop.f32.mrf.mxu0
    %v4621 = vadd.f32 %v4601, %v4620
    %4622 = vdwg.mxu0
    %4623 = vmatpush.msra.mxu0 %v4468
    %4624 = vmatpush.msra.mxu0 %v4466
    %4625 = vmatpush.msra.mxu0 %v4464
    %4626 = vmatpush.msra.mxu0 %v4462
    %4627 = vmatpush.msra.mxu0 %v4460
    %4628 = vmatpush.msra.mxu0 %v4458
    %4629 = vmatpush.msra.mxu0 %v4456
    %4630 = vmatpush.msra.mxu0 %v4454
    %4631 = vmatpush.msra.mxu0 %v4452
    %4632 = vmatpush.msra.mxu0 %v4450
    %4633 = vmatpush.msra.mxu0 %v4448
    %4634 = vmatpush.msra.mxu0 %v4446
    %4635 = vmatpush.msra.mxu0 %v4444
    %4636 = vmatpush.msra.mxu0 %v4442
    %4637 = vmatpush.msra.mxu0 %v4440
    %4638 = vmatpush.msra.mxu0 %v4438
    %4639 = vmatmul.f32.gmra.mxu0 %v4573
    %v4640 = vpop.f32.mrf.mxu0
    %v4641 = vadd.f32 %v4621, %v4640
    %4642 = vdwg.mxu0
    %4643 = vmatpush.msra.mxu0 %v4500
    %4644 = vmatpush.msra.mxu0 %v4498
    %4645 = vmatpush.msra.mxu0 %v4496
    %4646 = vmatpush.msra.mxu0 %v4494
    %4647 = vmatpush.msra.mxu0 %v4492
    %4648 = vmatpush.msra.mxu0 %v4490
    %4649 = vmatpush.msra.mxu0 %v4488
    %4650 = vmatpush.msra.mxu0 %v4486
    %4651 = vmatpush.msra.mxu0 %v4484
    %4652 = vmatpush.msra.mxu0 %v4482
    %4653 = vmatpush.msra.mxu0 %v4480
    %4654 = vmatpush.msra.mxu0 %v4478
    %4655 = vmatpush.msra.mxu0 %v4476
    %4656 = vmatpush.msra.mxu0 %v4474
    %4657 = vmatpush.msra.mxu0 %v4472
    %4658 = vmatpush.msra.mxu0 %v4470
    %4659 = vmatmul.f32.gmra.mxu0 %v4574
    %v4660 = vpop.f32.mrf.mxu0
    %v4661 = vadd.f32 %v4641, %v4660
    %4662 = vdwg.mxu0
    %4663 = vmatpush.msra.mxu0 %v4532
    %4664 = vmatpush.msra.mxu0 %v4530
    %4665 = vmatpush.msra.mxu0 %v4528
    %4666 = vmatpush.msra.mxu0 %v4526
    %4667 = vmatpush.msra.mxu0 %v4524
    %4668 = vmatpush.msra.mxu0 %v4522
    %4669 = vmatpush.msra.mxu0 %v4520
    %4670 = vmatpush.msra.mxu0 %v4518
    %4671 = vmatpush.msra.mxu0 %v4516
    %4672 = vmatpush.msra.mxu0 %v4514
    %4673 = vmatpush.msra.mxu0 %v4512
    %4674 = vmatpush.msra.mxu0 %v4510
    %4675 = vmatpush.msra.mxu0 %v4508
    %4676 = vmatpush.msra.mxu0 %v4506
    %4677 = vmatpush.msra.mxu0 %v4504
    %4678 = vmatpush.msra.mxu0 %v4502
    %4679 = vmatmul.f32.gmra.mxu0 %v4575
    %v4680 = vpop.f32.mrf.mxu0
    %v4681 = vadd.f32 %v4661, %v4680
    %4682 = vdwg.mxu0
    %4683 = vmatpush.msra.mxu0 %v4564
    %4684 = vmatpush.msra.mxu0 %v4562
    %4685 = vmatpush.msra.mxu0 %v4560
    %4686 = vmatpush.msra.mxu0 %v4558
    %4687 = vmatpush.msra.mxu0 %v4556
    %4688 = vmatpush.msra.mxu0 %v4554
    %4689 = vmatpush.msra.mxu0 %v4552
    %4690 = vmatpush.msra.mxu0 %v4550
    %4691 = vmatpush.msra.mxu0 %v4548
    %4692 = vmatpush.msra.mxu0 %v4546
    %4693 = vmatpush.msra.mxu0 %v4544
    %4694 = vmatpush.msra.mxu0 %v4542
    %4695 = vmatpush.msra.mxu0 %v4540
    %4696 = vmatpush.msra.mxu0 %v4538
    %4697 = vmatpush.msra.mxu0 %v4536
    %4698 = vmatpush.msra.mxu0 %v4534
    %4699 = vmatmul.f32.gmra.mxu0 %v4576
    %v4700 = vpop.f32.mrf.mxu0
    %v4701 = vadd.f32 %v4681, %v4700
    %4702 = vdwg.mxu0
    %4703 = vmatpush.msra.mxu0 %v4405
    %4704 = vmatpush.msra.mxu0 %v4403
    %4705 = vmatpush.msra.mxu0 %v4401
    %4706 = vmatpush.msra.mxu0 %v4399
    %4707 = vmatpush.msra.mxu0 %v4397
    %4708 = vmatpush.msra.mxu0 %v4395
    %4709 = vmatpush.msra.mxu0 %v4393
    %4710 = vmatpush.msra.mxu0 %v4391
    %4711 = vmatpush.msra.mxu0 %v4389
    %4712 = vmatpush.msra.mxu0 %v4387
    %4713 = vmatpush.msra.mxu0 %v4385
    %4714 = vmatpush.msra.mxu0 %v4383
    %4715 = vmatpush.msra.mxu0 %v4381
    %4716 = vmatpush.msra.mxu0 %v4379
    %4717 = vmatpush.msra.mxu0 %v4377
    %4718 = vmatpush.msra.mxu0 %v4375
    %4719 = vmatmul.f32.gmra.mxu0 %v4571
    %v4720 = vpop.f32.mrf.mxu0
    %v4721 = vadd.f32 %v2268, %v4720
    %4722 = vdwg.mxu0
    %4723 = vmatpush.msra.mxu0 %v4437
    %4724 = vmatpush.msra.mxu0 %v4435
    %4725 = vmatpush.msra.mxu0 %v4433
    %4726 = vmatpush.msra.mxu0 %v4431
    %4727 = vmatpush.msra.mxu0 %v4429
    %4728 = vmatpush.msra.mxu0 %v4427
    %4729 = vmatpush.msra.mxu0 %v4425
    %4730 = vmatpush.msra.mxu0 %v4423
    %4731 = vmatpush.msra.mxu0 %v4421
    %4732 = vmatpush.msra.mxu0 %v4419
    %4733 = vmatpush.msra.mxu0 %v4417
    %4734 = vmatpush.msra.mxu0 %v4415
    %4735 = vmatpush.msra.mxu0 %v4413
    %4736 = vmatpush.msra.mxu0 %v4411
    %4737 = vmatpush.msra.mxu0 %v4409
    %4738 = vmatpush.msra.mxu0 %v4407
    %4739 = vmatmul.f32.gmra.mxu0 %v4572
    %v4740 = vpop.f32.mrf.mxu0
    %v4741 = vadd.f32 %v4721, %v4740
    %4742 = vdwg.mxu0
    %4743 = vmatpush.msra.mxu0 %v4469
    %4744 = vmatpush.msra.mxu0 %v4467
    %4745 = vmatpush.msra.mxu0 %v4465
    %4746 = vmatpush.msra.mxu0 %v4463
    %4747 = vmatpush.msra.mxu0 %v4461
    %4748 = vmatpush.msra.mxu0 %v4459
    %4749 = vmatpush.msra.mxu0 %v4457
    %4750 = vmatpush.msra.mxu0 %v4455
    %4751 = vmatpush.msra.mxu0 %v4453
    %4752 = vmatpush.msra.mxu0 %v4451
    %4753 = vmatpush.msra.mxu0 %v4449
    %4754 = vmatpush.msra.mxu0 %v4447
    %4755 = vmatpush.msra.mxu0 %v4445
    %4756 = vmatpush.msra.mxu0 %v4443
    %4757 = vmatpush.msra.mxu0 %v4441
    %4758 = vmatpush.msra.mxu0 %v4439
    %4759 = vmatmul.f32.gmra.mxu0 %v4573
    %v4760 = vpop.f32.mrf.mxu0
    %v4761 = vadd.f32 %v4741, %v4760
    %4762 = vdwg.mxu0
    %4763 = vmatpush.msra.mxu0 %v4501
    %4764 = vmatpush.msra.mxu0 %v4499
    %4765 = vmatpush.msra.mxu0 %v4497
    %4766 = vmatpush.msra.mxu0 %v4495
    %4767 = vmatpush.msra.mxu0 %v4493
    %4768 = vmatpush.msra.mxu0 %v4491
    %4769 = vmatpush.msra.mxu0 %v4489
    %4770 = vmatpush.msra.mxu0 %v4487
    %4771 = vmatpush.msra.mxu0 %v4485
    %4772 = vmatpush.msra.mxu0 %v4483
    %4773 = vmatpush.msra.mxu0 %v4481
    %4774 = vmatpush.msra.mxu0 %v4479
    %4775 = vmatpush.msra.mxu0 %v4477
    %4776 = vmatpush.msra.mxu0 %v4475
    %4777 = vmatpush.msra.mxu0 %v4473
    %4778 = vmatpush.msra.mxu0 %v4471
    %4779 = vmatmul.f32.gmra.mxu0 %v4574
    %v4780 = vpop.f32.mrf.mxu0
    %v4781 = vadd.f32 %v4761, %v4780
    %4782 = vdwg.mxu0
    %4783 = vmatpush.msra.mxu0 %v4533
    %4784 = vmatpush.msra.mxu0 %v4531
    %4785 = vmatpush.msra.mxu0 %v4529
    %4786 = vmatpush.msra.mxu0 %v4527
    %4787 = vmatpush.msra.mxu0 %v4525
    %4788 = vmatpush.msra.mxu0 %v4523
    %4789 = vmatpush.msra.mxu0 %v4521
    %4790 = vmatpush.msra.mxu0 %v4519
    %4791 = vmatpush.msra.mxu0 %v4517
    %4792 = vmatpush.msra.mxu0 %v4515
    %4793 = vmatpush.msra.mxu0 %v4513
    %4794 = vmatpush.msra.mxu0 %v4511
    %4795 = vmatpush.msra.mxu0 %v4509
    %4796 = vmatpush.msra.mxu0 %v4507
    %4797 = vmatpush.msra.mxu0 %v4505
    %4798 = vmatpush.msra.mxu0 %v4503
    %4799 = vmatmul.f32.gmra.mxu0 %v4575
    %v4800 = vpop.f32.mrf.mxu0
    %v4801 = vadd.f32 %v4781, %v4800
    %4802 = vdwg.mxu0
    %4803 = vmatpush.msra.mxu0 %v4565
    %4804 = vmatpush.msra.mxu0 %v4563
    %4805 = vmatpush.msra.mxu0 %v4561
    %4806 = vmatpush.msra.mxu0 %v4559
    %4807 = vmatpush.msra.mxu0 %v4557
    %4808 = vmatpush.msra.mxu0 %v4555
    %4809 = vmatpush.msra.mxu0 %v4553
    %4810 = vmatpush.msra.mxu0 %v4551
    %4811 = vmatpush.msra.mxu0 %v4549
    %4812 = vmatpush.msra.mxu0 %v4547
    %4813 = vmatpush.msra.mxu0 %v4545
    %4814 = vmatpush.msra.mxu0 %v4543
    %4815 = vmatpush.msra.mxu0 %v4541
    %4816 = vmatpush.msra.mxu0 %v4539
    %4817 = vmatpush.msra.mxu0 %v4537
    %4818 = vmatpush.msra.mxu0 %v4535
    %4819 = vmatmul.f32.gmra.mxu0 %v4576
    %v4820 = vpop.f32.mrf.mxu0
    %v4821 = vadd.f32 %v4801, %v4820
    %4822 = vdwg.mxu0
    %v4823 = vmax.f32 %v4701, 0.0
    %v4824 = vmax.f32 %v4821, 0.0
    %v4827 = vrot.slane %v4824, 6
    %v4828 = vsel %vm196, %v4823, %v4827
    %4830 = vst [vmem:[#allocation3 + $0x18] sm:$0xf] %v4828
    %v4831 = vld [vmem:[#allocation2 + $0x30] sm:$0xff]
    %v4832 = vld [vmem:[#allocation2 + $0x38] sm:$0xf]
    %v4833 = vld [vmem:[#allocation4] sm:$0xff]
    %v4834 = vld [vmem:[#allocation4 + $0x8] sm:$0xff]
    %v4835 = vld [vmem:[#allocation4 + $0x10] sm:$0xff]
    %v4836 = vld [vmem:[#allocation4 + $0x18] sm:$0xff]
    %v4837 = vld [vmem:[#allocation4 + $0x20] sm:$0xff]
    %v4838 = vld [vmem:[#allocation4 + $0x28] sm:$0xff]
    %v4839 = vld [vmem:[#allocation4 + $0x30] sm:$0xff]
    %v4840 = vld [vmem:[#allocation4 + $0x38] sm:$0xff]
    %v4841 = vld [vmem:[#allocation4 + $0x40] sm:$0xff]
    %v4842 = vld [vmem:[#allocation4 + $0x48] sm:$0xff]
    %v4843 = vld [vmem:[#allocation4 + $0x50] sm:$0xff]
    %v4844 = vld [vmem:[#allocation4 + $0x58] sm:$0xff]
    %v4845 = vld [vmem:[#allocation4 + $0x60] sm:$0xff]
    %v4846 = vld [vmem:[#allocation4 + $0x68] sm:$0xff]
    %v4847 = vld [vmem:[#allocation4 + $0x70] sm:$0xff]
    %v4848 = vld [vmem:[#allocation4 + $0x78] sm:$0xff]
    %v4849 = vld [vmem:[#allocation4 + $0x80] sm:$0xff]
    %v4850 = vld [vmem:[#allocation4 + $0x88] sm:$0xff]
    %v4851 = vld [vmem:[#allocation4 + $0x90] sm:$0xff]
    %v4852 = vld [vmem:[#allocation4 + $0x98] sm:$0xff]
    %v4853 = vld [vmem:[#allocation4 + $0xa0] sm:$0xff]
    %v4854 = vld [vmem:[#allocation4 + $0xa8] sm:$0xff]
    %v4855 = vld [vmem:[#allocation4 + $0xb0] sm:$0xff]
    %v4856 = vld [vmem:[#allocation4 + $0xb8] sm:$0xff]
    %v4857 = vld [vmem:[#allocation4 + $0xc0] sm:$0xff]
    %v4858 = vld [vmem:[#allocation4 + $0xc8] sm:$0xff]
    %v4859 = vld [vmem:[#allocation4 + $0xd0] sm:$0xff]
    %v4860 = vld [vmem:[#allocation4 + $0xd8] sm:$0xff]
    %v4861 = vld [vmem:[#allocation4 + $0xe0] sm:$0xff]
    %v4862 = vld [vmem:[#allocation4 + $0xe8] sm:$0xff]
    %v4863 = vld [vmem:[#allocation4 + $0xf0] sm:$0xff]
    %v4864 = vld [vmem:[#allocation4 + $0xf8] sm:$0xff]
    %v4865 = vld [vmem:[#allocation4 + $0x100] sm:$0xff]
    %v4866 = vld [vmem:[#allocation4 + $0x108] sm:$0xff]
    %v4867 = vld [vmem:[#allocation4 + $0x110] sm:$0xff]
    %v4868 = vld [vmem:[#allocation4 + $0x118] sm:$0xff]
    %v4869 = vld [vmem:[#allocation4 + $0x120] sm:$0xff]
    %v4870 = vld [vmem:[#allocation4 + $0x128] sm:$0xff]
    %v4871 = vld [vmem:[#allocation4 + $0x130] sm:$0xff]
    %v4872 = vld [vmem:[#allocation4 + $0x138] sm:$0xff]
    %v4873 = vld [vmem:[#allocation4 + $0x140] sm:$0xff]
    %v4874 = vld [vmem:[#allocation4 + $0x148] sm:$0xff]
    %v4875 = vld [vmem:[#allocation4 + $0x150] sm:$0xff]
    %v4876 = vld [vmem:[#allocation4 + $0x158] sm:$0xff]
    %v4877 = vld [vmem:[#allocation4 + $0x160] sm:$0xff]
    %v4878 = vld [vmem:[#allocation4 + $0x168] sm:$0xff]
    %v4879 = vld [vmem:[#allocation4 + $0x170] sm:$0xff]
    %v4880 = vld [vmem:[#allocation4 + $0x178] sm:$0xff]
    %v4881 = vld [vmem:[#allocation4 + $0x180] sm:$0xff]
    %v4882 = vld [vmem:[#allocation4 + $0x188] sm:$0xff]
    %v4883 = vld [vmem:[#allocation4 + $0x190] sm:$0xff]
    %v4884 = vld [vmem:[#allocation4 + $0x198] sm:$0xff]
    %v4885 = vld [vmem:[#allocation4 + $0x1a0] sm:$0xff]
    %v4886 = vld [vmem:[#allocation4 + $0x1a8] sm:$0xff]
    %v4887 = vld [vmem:[#allocation4 + $0x1b0] sm:$0xff]
    %v4888 = vld [vmem:[#allocation4 + $0x1b8] sm:$0xff]
    %v4889 = vld [vmem:[#allocation4 + $0x1c0] sm:$0xff]
    %v4890 = vld [vmem:[#allocation4 + $0x1c8] sm:$0xff]
    %v4891 = vld [vmem:[#allocation4 + $0x1d0] sm:$0xff]
    %v4892 = vld [vmem:[#allocation4 + $0x1d8] sm:$0xff]
    %v4893 = vld [vmem:[#allocation4 + $0x1e0] sm:$0xff]
    %v4894 = vld [vmem:[#allocation4 + $0x1e8] sm:$0xff]
    %v4895 = vld [vmem:[#allocation4 + $0x1f0] sm:$0xff]
    %v4896 = vld [vmem:[#allocation4 + $0x1f8] sm:$0xff]
    %v4897 = vld [vmem:[#allocation4 + $0x200] sm:$0xff]
    %v4898 = vld [vmem:[#allocation4 + $0x208] sm:$0xff]
    %v4899 = vld [vmem:[#allocation4 + $0x210] sm:$0xff]
    %v4900 = vld [vmem:[#allocation4 + $0x218] sm:$0xff]
    %v4901 = vld [vmem:[#allocation4 + $0x220] sm:$0xff]
    %v4902 = vld [vmem:[#allocation4 + $0x228] sm:$0xff]
    %v4903 = vld [vmem:[#allocation4 + $0x230] sm:$0xff]
    %v4904 = vld [vmem:[#allocation4 + $0x238] sm:$0xff]
    %v4905 = vld [vmem:[#allocation4 + $0x240] sm:$0xff]
    %v4906 = vld [vmem:[#allocation4 + $0x248] sm:$0xff]
    %v4907 = vld [vmem:[#allocation4 + $0x250] sm:$0xff]
    %v4908 = vld [vmem:[#allocation4 + $0x258] sm:$0xff]
    %v4909 = vld [vmem:[#allocation4 + $0x260] sm:$0xff]
    %v4910 = vld [vmem:[#allocation4 + $0x268] sm:$0xff]
    %v4911 = vld [vmem:[#allocation4 + $0x270] sm:$0xff]
    %v4912 = vld [vmem:[#allocation4 + $0x278] sm:$0xff]
    %v4913 = vld [vmem:[#allocation4 + $0x280] sm:$0xff]
    %v4914 = vld [vmem:[#allocation4 + $0x288] sm:$0xff]
    %v4915 = vld [vmem:[#allocation4 + $0x290] sm:$0xff]
    %v4916 = vld [vmem:[#allocation4 + $0x298] sm:$0xff]
    %v4917 = vld [vmem:[#allocation4 + $0x2a0] sm:$0xff]
    %v4918 = vld [vmem:[#allocation4 + $0x2a8] sm:$0xff]
    %v4919 = vld [vmem:[#allocation4 + $0x2b0] sm:$0xff]
    %v4920 = vld [vmem:[#allocation4 + $0x2b8] sm:$0xff]
    %v4921 = vld [vmem:[#allocation4 + $0x2c0] sm:$0xff]
    %v4922 = vld [vmem:[#allocation4 + $0x2c8] sm:$0xff]
    %v4923 = vld [vmem:[#allocation4 + $0x2d0] sm:$0xff]
    %v4924 = vld [vmem:[#allocation4 + $0x2d8] sm:$0xff]
    %v4925 = vld [vmem:[#allocation4 + $0x2e0] sm:$0xff]
    %v4926 = vld [vmem:[#allocation4 + $0x2e8] sm:$0xff]
    %v4927 = vld [vmem:[#allocation4 + $0x2f0] sm:$0xff]
    %v4928 = vld [vmem:[#allocation4 + $0x2f8] sm:$0xff]
    %v4929 = vld [vmem:[#allocation4 + $0x300] sm:$0xff]
    %v4930 = vld [vmem:[#allocation4 + $0x308] sm:$0xff]
    %v4931 = vld [vmem:[#allocation4 + $0x310] sm:$0xff]
    %v4932 = vld [vmem:[#allocation4 + $0x318] sm:$0xff]
    %v4933 = vld [vmem:[#allocation4 + $0x320] sm:$0xff]
    %v4934 = vld [vmem:[#allocation4 + $0x328] sm:$0xff]
    %v4935 = vld [vmem:[#allocation4 + $0x330] sm:$0xff]
    %v4936 = vld [vmem:[#allocation4 + $0x338] sm:$0xff]
    %v4937 = vld [vmem:[#allocation4 + $0x340] sm:$0xff]
    %v4938 = vld [vmem:[#allocation4 + $0x348] sm:$0xff]
    %v4939 = vld [vmem:[#allocation4 + $0x350] sm:$0xff]
    %v4940 = vld [vmem:[#allocation4 + $0x358] sm:$0xff]
    %v4941 = vld [vmem:[#allocation4 + $0x360] sm:$0xff]
    %v4942 = vld [vmem:[#allocation4 + $0x368] sm:$0xff]
    %v4943 = vld [vmem:[#allocation4 + $0x370] sm:$0xff]
    %v4944 = vld [vmem:[#allocation4 + $0x378] sm:$0xff]
    %v4945 = vld [vmem:[#allocation4 + $0x380] sm:$0xff]
    %v4946 = vld [vmem:[#allocation4 + $0x388] sm:$0xff]
    %v4947 = vld [vmem:[#allocation4 + $0x390] sm:$0xff]
    %v4948 = vld [vmem:[#allocation4 + $0x398] sm:$0xff]
    %v4949 = vld [vmem:[#allocation4 + $0x3a0] sm:$0xff]
    %v4950 = vld [vmem:[#allocation4 + $0x3a8] sm:$0xff]
    %v4951 = vld [vmem:[#allocation4 + $0x3b0] sm:$0xff]
    %v4952 = vld [vmem:[#allocation4 + $0x3b8] sm:$0xff]
    %v4953 = vld [vmem:[#allocation4 + $0x3c0] sm:$0xff]
    %v4954 = vld [vmem:[#allocation4 + $0x3c8] sm:$0xff]
    %v4955 = vld [vmem:[#allocation4 + $0x3d0] sm:$0xff]
    %v4956 = vld [vmem:[#allocation4 + $0x3d8] sm:$0xff]
    %v4957 = vld [vmem:[#allocation4 + $0x3e0] sm:$0xff]
    %v4958 = vld [vmem:[#allocation4 + $0x3e8] sm:$0xff]
    %v4959 = vld [vmem:[#allocation4 + $0x3f0] sm:$0xff]
    %v4960 = vld [vmem:[#allocation4 + $0x3f8] sm:$0xff]
    %v4961 = vld [vmem:[#allocation4 + $0x400] sm:$0xff]
    %v4962 = vld [vmem:[#allocation4 + $0x408] sm:$0xff]
    %v4963 = vld [vmem:[#allocation4 + $0x410] sm:$0xff]
    %v4964 = vld [vmem:[#allocation4 + $0x418] sm:$0xff]
    %v4965 = vld [vmem:[#allocation4 + $0x420] sm:$0xff]
    %v4966 = vld [vmem:[#allocation4 + $0x428] sm:$0xff]
    %v4967 = vld [vmem:[#allocation4 + $0x430] sm:$0xff]
    %v4968 = vld [vmem:[#allocation4 + $0x438] sm:$0xff]
    %v4969 = vld [vmem:[#allocation4 + $0x440] sm:$0xff]
    %v4970 = vld [vmem:[#allocation4 + $0x448] sm:$0xff]
    %v4971 = vld [vmem:[#allocation4 + $0x450] sm:$0xff]
    %v4972 = vld [vmem:[#allocation4 + $0x458] sm:$0xff]
    %v4973 = vld [vmem:[#allocation4 + $0x460] sm:$0xff]
    %v4974 = vld [vmem:[#allocation4 + $0x468] sm:$0xff]
    %v4975 = vld [vmem:[#allocation4 + $0x470] sm:$0xff]
    %v4976 = vld [vmem:[#allocation4 + $0x478] sm:$0xff]
    %v4977 = vld [vmem:[#allocation4 + $0x480] sm:$0xff]
    %v4978 = vld [vmem:[#allocation4 + $0x488] sm:$0xff]
    %v4979 = vld [vmem:[#allocation4 + $0x490] sm:$0xff]
    %v4980 = vld [vmem:[#allocation4 + $0x498] sm:$0xff]
    %v4981 = vld [vmem:[#allocation4 + $0x4a0] sm:$0xff]
    %v4982 = vld [vmem:[#allocation4 + $0x4a8] sm:$0xff]
    %v4983 = vld [vmem:[#allocation4 + $0x4b0] sm:$0xff]
    %v4984 = vld [vmem:[#allocation4 + $0x4b8] sm:$0xff]
    %v4985 = vld [vmem:[#allocation4 + $0x4c0] sm:$0xff]
    %v4986 = vld [vmem:[#allocation4 + $0x4c8] sm:$0xff]
    %v4987 = vld [vmem:[#allocation4 + $0x4d0] sm:$0xff]
    %v4988 = vld [vmem:[#allocation4 + $0x4d8] sm:$0xff]
    %v4989 = vld [vmem:[#allocation4 + $0x4e0] sm:$0xff]
    %v4990 = vld [vmem:[#allocation4 + $0x4e8] sm:$0xff]
    %v4991 = vld [vmem:[#allocation4 + $0x4f0] sm:$0xff]
    %v4992 = vld [vmem:[#allocation4 + $0x4f8] sm:$0xff]
    %v4993 = vld [vmem:[#allocation4 + $0x500] sm:$0xff]
    %v4994 = vld [vmem:[#allocation4 + $0x508] sm:$0xff]
    %v4995 = vld [vmem:[#allocation4 + $0x510] sm:$0xff]
    %v4996 = vld [vmem:[#allocation4 + $0x518] sm:$0xff]
    %v4997 = vld [vmem:[#allocation4 + $0x520] sm:$0xff]
    %v4998 = vld [vmem:[#allocation4 + $0x528] sm:$0xff]
    %v4999 = vld [vmem:[#allocation4 + $0x530] sm:$0xff]
    %v5000 = vld [vmem:[#allocation4 + $0x538] sm:$0xff]
    %v5001 = vld [vmem:[#allocation4 + $0x540] sm:$0xff]
    %v5002 = vld [vmem:[#allocation4 + $0x548] sm:$0xff]
    %v5003 = vld [vmem:[#allocation4 + $0x550] sm:$0xff]
    %v5004 = vld [vmem:[#allocation4 + $0x558] sm:$0xff]
    %v5005 = vld [vmem:[#allocation4 + $0x560] sm:$0xff]
    %v5006 = vld [vmem:[#allocation4 + $0x568] sm:$0xff]
    %v5007 = vld [vmem:[#allocation4 + $0x570] sm:$0xff]
    %v5008 = vld [vmem:[#allocation4 + $0x578] sm:$0xff]
    %v5009 = vld [vmem:[#allocation4 + $0x580] sm:$0xff]
    %v5010 = vld [vmem:[#allocation4 + $0x588] sm:$0xff]
    %v5011 = vld [vmem:[#allocation4 + $0x590] sm:$0xff]
    %v5012 = vld [vmem:[#allocation4 + $0x598] sm:$0xff]
    %v5013 = vld [vmem:[#allocation4 + $0x5a0] sm:$0xff]
    %v5014 = vld [vmem:[#allocation4 + $0x5a8] sm:$0xff]
    %v5015 = vld [vmem:[#allocation4 + $0x5b0] sm:$0xff]
    %v5016 = vld [vmem:[#allocation4 + $0x5b8] sm:$0xff]
    %v5017 = vld [vmem:[#allocation4 + $0x5c0] sm:$0xff]
    %v5018 = vld [vmem:[#allocation4 + $0x5c8] sm:$0xff]
    %v5019 = vld [vmem:[#allocation4 + $0x5d0] sm:$0xff]
    %v5020 = vld [vmem:[#allocation4 + $0x5d8] sm:$0xff]
    %v5021 = vld [vmem:[#allocation4 + $0x5e0] sm:$0xff]
    %v5022 = vld [vmem:[#allocation4 + $0x5e8] sm:$0xff]
    %v5023 = vld [vmem:[#allocation4 + $0x5f0] sm:$0xff]
    %v5024 = vld [vmem:[#allocation4 + $0x5f8] sm:$0xff]
    %5027 = vst [vmem:[#allocation1] ss:$4 sm:$0xff] %v4831
    %s5028 = scalar_lea.vmem [#allocation1], 32
    %5029 = vst [vmem:[%s5028] ss:$4 sm:$0xff] %v4832
    %v5030 = vld.sshfl [vmem:[#allocation1] sm:$0xff pattern:$0x73625140]
    %v5031 = vld.sshfl [vmem:[#allocation1 + $0x8] sm:$0xff pattern:$0x73625140]
    %v5032 = vld.sshfl [vmem:[#allocation1 + $0x10] sm:$0xff pattern:$0x73625140]
    %v5033 = vld.sshfl [vmem:[#allocation1 + $0x18] sm:$0xff pattern:$0x73625140]
    %v5034 = vld.sshfl [vmem:[#allocation1 + $0x20] sm:$0xff pattern:$0x73625140]
    %v5035 = vld.sshfl [vmem:[#allocation1 + $0x28] sm:$0xff pattern:$0x73625140]
    %5042 = vmatpush.msra.mxu0 %v4863
    %5043 = vmatpush.msra.mxu0 %v4861
    %5044 = vmatpush.msra.mxu0 %v4859
    %5045 = vmatpush.msra.mxu0 %v4857
    %5046 = vmatpush.msra.mxu0 %v4855
    %5047 = vmatpush.msra.mxu0 %v4853
    %5048 = vmatpush.msra.mxu0 %v4851
    %5049 = vmatpush.msra.mxu0 %v4849
    %5050 = vmatpush.msra.mxu0 %v4847
    %5051 = vmatpush.msra.mxu0 %v4845
    %5052 = vmatpush.msra.mxu0 %v4843
    %5053 = vmatpush.msra.mxu0 %v4841
    %5054 = vmatpush.msra.mxu0 %v4839
    %5055 = vmatpush.msra.mxu0 %v4837
    %5056 = vmatpush.msra.mxu0 %v4835
    %5057 = vmatpush.msra.mxu0 %v4833
    %5058 = vmatmul.f32.gmra.mxu0 %v5030
    %v5059 = vpop.f32.mrf.mxu0
    %v5060 = vadd.f32 %v2267, %v5059
    %5061 = vdwg.mxu0
    %5062 = vmatpush.msra.mxu0 %v4895
    %5063 = vmatpush.msra.mxu0 %v4893
    %5064 = vmatpush.msra.mxu0 %v4891
    %5065 = vmatpush.msra.mxu0 %v4889
    %5066 = vmatpush.msra.mxu0 %v4887
    %5067 = vmatpush.msra.mxu0 %v4885
    %5068 = vmatpush.msra.mxu0 %v4883
    %5069 = vmatpush.msra.mxu0 %v4881
    %5070 = vmatpush.msra.mxu0 %v4879
    %5071 = vmatpush.msra.mxu0 %v4877
    %5072 = vmatpush.msra.mxu0 %v4875
    %5073 = vmatpush.msra.mxu0 %v4873
    %5074 = vmatpush.msra.mxu0 %v4871
    %5075 = vmatpush.msra.mxu0 %v4869
    %5076 = vmatpush.msra.mxu0 %v4867
    %5077 = vmatpush.msra.mxu0 %v4865
    %5078 = vmatmul.f32.gmra.mxu0 %v5031
    %v5079 = vpop.f32.mrf.mxu0
    %v5080 = vadd.f32 %v5060, %v5079
    %5081 = vdwg.mxu0
    %5082 = vmatpush.msra.mxu0 %v4927
    %5083 = vmatpush.msra.mxu0 %v4925
    %5084 = vmatpush.msra.mxu0 %v4923
    %5085 = vmatpush.msra.mxu0 %v4921
    %5086 = vmatpush.msra.mxu0 %v4919
    %5087 = vmatpush.msra.mxu0 %v4917
    %5088 = vmatpush.msra.mxu0 %v4915
    %5089 = vmatpush.msra.mxu0 %v4913
    %5090 = vmatpush.msra.mxu0 %v4911
    %5091 = vmatpush.msra.mxu0 %v4909
    %5092 = vmatpush.msra.mxu0 %v4907
    %5093 = vmatpush.msra.mxu0 %v4905
    %5094 = vmatpush.msra.mxu0 %v4903
    %5095 = vmatpush.msra.mxu0 %v4901
    %5096 = vmatpush.msra.mxu0 %v4899
    %5097 = vmatpush.msra.mxu0 %v4897
    %5098 = vmatmul.f32.gmra.mxu0 %v5032
    %v5099 = vpop.f32.mrf.mxu0
    %v5100 = vadd.f32 %v5080, %v5099
    %5101 = vdwg.mxu0
    %5102 = vmatpush.msra.mxu0 %v4959
    %5103 = vmatpush.msra.mxu0 %v4957
    %5104 = vmatpush.msra.mxu0 %v4955
    %5105 = vmatpush.msra.mxu0 %v4953
    %5106 = vmatpush.msra.mxu0 %v4951
    %5107 = vmatpush.msra.mxu0 %v4949
    %5108 = vmatpush.msra.mxu0 %v4947
    %5109 = vmatpush.msra.mxu0 %v4945
    %5110 = vmatpush.msra.mxu0 %v4943
    %5111 = vmatpush.msra.mxu0 %v4941
    %5112 = vmatpush.msra.mxu0 %v4939
    %5113 = vmatpush.msra.mxu0 %v4937
    %5114 = vmatpush.msra.mxu0 %v4935
    %5115 = vmatpush.msra.mxu0 %v4933
    %5116 = vmatpush.msra.mxu0 %v4931
    %5117 = vmatpush.msra.mxu0 %v4929
    %5118 = vmatmul.f32.gmra.mxu0 %v5033
    %v5119 = vpop.f32.mrf.mxu0
    %v5120 = vadd.f32 %v5100, %v5119
    %5121 = vdwg.mxu0
    %5122 = vmatpush.msra.mxu0 %v4991
    %5123 = vmatpush.msra.mxu0 %v4989
    %5124 = vmatpush.msra.mxu0 %v4987
    %5125 = vmatpush.msra.mxu0 %v4985
    %5126 = vmatpush.msra.mxu0 %v4983
    %5127 = vmatpush.msra.mxu0 %v4981
    %5128 = vmatpush.msra.mxu0 %v4979
    %5129 = vmatpush.msra.mxu0 %v4977
    %5130 = vmatpush.msra.mxu0 %v4975
    %5131 = vmatpush.msra.mxu0 %v4973
    %5132 = vmatpush.msra.mxu0 %v4971
    %5133 = vmatpush.msra.mxu0 %v4969
    %5134 = vmatpush.msra.mxu0 %v4967
    %5135 = vmatpush.msra.mxu0 %v4965
    %5136 = vmatpush.msra.mxu0 %v4963
    %5137 = vmatpush.msra.mxu0 %v4961
    %5138 = vmatmul.f32.gmra.mxu0 %v5034
    %v5139 = vpop.f32.mrf.mxu0
    %v5140 = vadd.f32 %v5120, %v5139
    %5141 = vdwg.mxu0
    %5142 = vmatpush.msra.mxu0 %v5023
    %5143 = vmatpush.msra.mxu0 %v5021
    %5144 = vmatpush.msra.mxu0 %v5019
    %5145 = vmatpush.msra.mxu0 %v5017
    %5146 = vmatpush.msra.mxu0 %v5015
    %5147 = vmatpush.msra.mxu0 %v5013
    %5148 = vmatpush.msra.mxu0 %v5011
    %5149 = vmatpush.msra.mxu0 %v5009
    %5150 = vmatpush.msra.mxu0 %v5007
    %5151 = vmatpush.msra.mxu0 %v5005
    %5152 = vmatpush.msra.mxu0 %v5003
    %5153 = vmatpush.msra.mxu0 %v5001
    %5154 = vmatpush.msra.mxu0 %v4999
    %5155 = vmatpush.msra.mxu0 %v4997
    %5156 = vmatpush.msra.mxu0 %v4995
    %5157 = vmatpush.msra.mxu0 %v4993
    %5158 = vmatmul.f32.gmra.mxu0 %v5035
    %v5159 = vpop.f32.mrf.mxu0
    %v5160 = vadd.f32 %v5140, %v5159
    %5161 = vdwg.mxu0
    %5162 = vmatpush.msra.mxu0 %v4864
    %5163 = vmatpush.msra.mxu0 %v4862
    %5164 = vmatpush.msra.mxu0 %v4860
    %5165 = vmatpush.msra.mxu0 %v4858
    %5166 = vmatpush.msra.mxu0 %v4856
    %5167 = vmatpush.msra.mxu0 %v4854
    %5168 = vmatpush.msra.mxu0 %v4852
    %5169 = vmatpush.msra.mxu0 %v4850
    %5170 = vmatpush.msra.mxu0 %v4848
    %5171 = vmatpush.msra.mxu0 %v4846
    %5172 = vmatpush.msra.mxu0 %v4844
    %5173 = vmatpush.msra.mxu0 %v4842
    %5174 = vmatpush.msra.mxu0 %v4840
    %5175 = vmatpush.msra.mxu0 %v4838
    %5176 = vmatpush.msra.mxu0 %v4836
    %5177 = vmatpush.msra.mxu0 %v4834
    %5178 = vmatmul.f32.gmra.mxu0 %v5030
    %v5179 = vpop.f32.mrf.mxu0
    %v5180 = vadd.f32 %v2268, %v5179
    %5181 = vdwg.mxu0
    %5182 = vmatpush.msra.mxu0 %v4896
    %5183 = vmatpush.msra.mxu0 %v4894
    %5184 = vmatpush.msra.mxu0 %v4892
    %5185 = vmatpush.msra.mxu0 %v4890
    %5186 = vmatpush.msra.mxu0 %v4888
    %5187 = vmatpush.msra.mxu0 %v4886
    %5188 = vmatpush.msra.mxu0 %v4884
    %5189 = vmatpush.msra.mxu0 %v4882
    %5190 = vmatpush.msra.mxu0 %v4880
    %5191 = vmatpush.msra.mxu0 %v4878
    %5192 = vmatpush.msra.mxu0 %v4876
    %5193 = vmatpush.msra.mxu0 %v4874
    %5194 = vmatpush.msra.mxu0 %v4872
    %5195 = vmatpush.msra.mxu0 %v4870
    %5196 = vmatpush.msra.mxu0 %v4868
    %5197 = vmatpush.msra.mxu0 %v4866
    %5198 = vmatmul.f32.gmra.mxu0 %v5031
    %v5199 = vpop.f32.mrf.mxu0
    %v5200 = vadd.f32 %v5180, %v5199
    %5201 = vdwg.mxu0
    %5202 = vmatpush.msra.mxu0 %v4928
    %5203 = vmatpush.msra.mxu0 %v4926
    %5204 = vmatpush.msra.mxu0 %v4924
    %5205 = vmatpush.msra.mxu0 %v4922
    %5206 = vmatpush.msra.mxu0 %v4920
    %5207 = vmatpush.msra.mxu0 %v4918
    %5208 = vmatpush.msra.mxu0 %v4916
    %5209 = vmatpush.msra.mxu0 %v4914
    %5210 = vmatpush.msra.mxu0 %v4912
    %5211 = vmatpush.msra.mxu0 %v4910
    %5212 = vmatpush.msra.mxu0 %v4908
    %5213 = vmatpush.msra.mxu0 %v4906
    %5214 = vmatpush.msra.mxu0 %v4904
    %5215 = vmatpush.msra.mxu0 %v4902
    %5216 = vmatpush.msra.mxu0 %v4900
    %5217 = vmatpush.msra.mxu0 %v4898
    %5218 = vmatmul.f32.gmra.mxu0 %v5032
    %v5219 = vpop.f32.mrf.mxu0
    %v5220 = vadd.f32 %v5200, %v5219
    %5221 = vdwg.mxu0
    %5222 = vmatpush.msra.mxu0 %v4960
    %5223 = vmatpush.msra.mxu0 %v4958
    %5224 = vmatpush.msra.mxu0 %v4956
    %5225 = vmatpush.msra.mxu0 %v4954
    %5226 = vmatpush.msra.mxu0 %v4952
    %5227 = vmatpush.msra.mxu0 %v4950
    %5228 = vmatpush.msra.mxu0 %v4948
    %5229 = vmatpush.msra.mxu0 %v4946
    %5230 = vmatpush.msra.mxu0 %v4944
    %5231 = vmatpush.msra.mxu0 %v4942
    %5232 = vmatpush.msra.mxu0 %v4940
    %5233 = vmatpush.msra.mxu0 %v4938
    %5234 = vmatpush.msra.mxu0 %v4936
    %5235 = vmatpush.msra.mxu0 %v4934
    %5236 = vmatpush.msra.mxu0 %v4932
    %5237 = vmatpush.msra.mxu0 %v4930
    %5238 = vmatmul.f32.gmra.mxu0 %v5033
    %v5239 = vpop.f32.mrf.mxu0
    %v5240 = vadd.f32 %v5220, %v5239
    %5241 = vdwg.mxu0
    %5242 = vmatpush.msra.mxu0 %v4992
    %5243 = vmatpush.msra.mxu0 %v4990
    %5244 = vmatpush.msra.mxu0 %v4988
    %5245 = vmatpush.msra.mxu0 %v4986
    %5246 = vmatpush.msra.mxu0 %v4984
    %5247 = vmatpush.msra.mxu0 %v4982
    %5248 = vmatpush.msra.mxu0 %v4980
    %5249 = vmatpush.msra.mxu0 %v4978
    %5250 = vmatpush.msra.mxu0 %v4976
    %5251 = vmatpush.msra.mxu0 %v4974
    %5252 = vmatpush.msra.mxu0 %v4972
    %5253 = vmatpush.msra.mxu0 %v4970
    %5254 = vmatpush.msra.mxu0 %v4968
    %5255 = vmatpush.msra.mxu0 %v4966
    %5256 = vmatpush.msra.mxu0 %v4964
    %5257 = vmatpush.msra.mxu0 %v4962
    %5258 = vmatmul.f32.gmra.mxu0 %v5034
    %v5259 = vpop.f32.mrf.mxu0
    %v5260 = vadd.f32 %v5240, %v5259
    %5261 = vdwg.mxu0
    %5262 = vmatpush.msra.mxu0 %v5024
    %5263 = vmatpush.msra.mxu0 %v5022
    %5264 = vmatpush.msra.mxu0 %v5020
    %5265 = vmatpush.msra.mxu0 %v5018
    %5266 = vmatpush.msra.mxu0 %v5016
    %5267 = vmatpush.msra.mxu0 %v5014
    %5268 = vmatpush.msra.mxu0 %v5012
    %5269 = vmatpush.msra.mxu0 %v5010
    %5270 = vmatpush.msra.mxu0 %v5008
    %5271 = vmatpush.msra.mxu0 %v5006
    %5272 = vmatpush.msra.mxu0 %v5004
    %5273 = vmatpush.msra.mxu0 %v5002
    %5274 = vmatpush.msra.mxu0 %v5000
    %5275 = vmatpush.msra.mxu0 %v4998
    %5276 = vmatpush.msra.mxu0 %v4996
    %5277 = vmatpush.msra.mxu0 %v4994
    %5278 = vmatmul.f32.gmra.mxu0 %v5035
    %v5279 = vpop.f32.mrf.mxu0
    %v5280 = vadd.f32 %v5260, %v5279
    %5281 = vdwg.mxu0
    %v5282 = vmax.f32 %v5160, 0.0
    %v5283 = vmax.f32 %v5280, 0.0
    %v5286 = vrot.slane %v5283, 6
    %v5287 = vsel %vm196, %v5282, %v5286
    %5289 = vst [vmem:[#allocation3 + $0x1c] sm:$0xf] %v5287
    %v5290 = vld [vmem:[#allocation3] sm:$0xff]
    %v5291 = vld [vmem:[#allocation3 + $0x8] sm:$0xf]
    %v5292 = vld [vmem:[%s5] sm:$0xff]
    %v5293 = vld [vmem:[%s5 + $0x8] sm:$0xff]
    %v5294 = vld [vmem:[%s5 + $0x10] sm:$0xff]
    %v5295 = vld [vmem:[%s5 + $0x18] sm:$0xff]
    %v5296 = vld [vmem:[%s5 + $0x20] sm:$0xff]
    %v5297 = vld [vmem:[%s5 + $0x28] sm:$0xff]
    %v5298 = vld [vmem:[%s5 + $0x30] sm:$0xff]
    %v5299 = vld [vmem:[%s5 + $0x38] sm:$0xff]
    %v5300 = vld [vmem:[%s5 + $0x40] sm:$0xff]
    %v5301 = vld [vmem:[%s5 + $0x48] sm:$0xff]
    %v5302 = vld [vmem:[%s5 + $0x50] sm:$0xff]
    %v5303 = vld [vmem:[%s5 + $0x58] sm:$0xff]
    %v5304 = vld [vmem:[%s5 + $0x60] sm:$0xff]
    %v5305 = vld [vmem:[%s5 + $0x68] sm:$0xff]
    %v5306 = vld [vmem:[%s5 + $0x70] sm:$0xff]
    %v5307 = vld [vmem:[%s5 + $0x78] sm:$0xff]
    %v5308 = vld [vmem:[%s5 + $0x80] sm:$0xff]
    %v5309 = vld [vmem:[%s5 + $0x88] sm:$0xff]
    %v5310 = vld [vmem:[%s5 + $0x90] sm:$0xff]
    %v5311 = vld [vmem:[%s5 + $0x98] sm:$0xff]
    %v5312 = vld [vmem:[%s5 + $0xa0] sm:$0xff]
    %v5313 = vld [vmem:[%s5 + $0xa8] sm:$0xff]
    %v5314 = vld [vmem:[%s5 + $0xb0] sm:$0xff]
    %v5315 = vld [vmem:[%s5 + $0xb8] sm:$0xff]
    %v5316 = vld [vmem:[%s5 + $0xc0] sm:$0xff]
    %v5317 = vld [vmem:[%s5 + $0xc8] sm:$0xff]
    %v5318 = vld [vmem:[%s5 + $0xd0] sm:$0xff]
    %v5319 = vld [vmem:[%s5 + $0xd8] sm:$0xff]
    %v5320 = vld [vmem:[%s5 + $0xe0] sm:$0xff]
    %v5321 = vld [vmem:[%s5 + $0xe8] sm:$0xff]
    %v5322 = vld [vmem:[%s5 + $0xf0] sm:$0xff]
    %v5323 = vld [vmem:[%s5 + $0xf8] sm:$0xff]
    %v5324 = vld [vmem:[%s5 + $0x100] sm:$0xff]
    %v5325 = vld [vmem:[%s5 + $0x108] sm:$0xff]
    %v5326 = vld [vmem:[%s5 + $0x110] sm:$0xff]
    %v5327 = vld [vmem:[%s5 + $0x118] sm:$0xff]
    %v5328 = vld [vmem:[%s5 + $0x120] sm:$0xff]
    %v5329 = vld [vmem:[%s5 + $0x128] sm:$0xff]
    %v5330 = vld [vmem:[%s5 + $0x130] sm:$0xff]
    %v5331 = vld [vmem:[%s5 + $0x138] sm:$0xff]
    %v5332 = vld [vmem:[%s5 + $0x140] sm:$0xff]
    %v5333 = vld [vmem:[%s5 + $0x148] sm:$0xff]
    %v5334 = vld [vmem:[%s5 + $0x150] sm:$0xff]
    %v5335 = vld [vmem:[%s5 + $0x158] sm:$0xff]
    %v5336 = vld [vmem:[%s5 + $0x160] sm:$0xff]
    %v5337 = vld [vmem:[%s5 + $0x168] sm:$0xff]
    %v5338 = vld [vmem:[%s5 + $0x170] sm:$0xff]
    %v5339 = vld [vmem:[%s5 + $0x178] sm:$0xff]
    %v5340 = vld [vmem:[%s5 + $0x180] sm:$0xff]
    %v5341 = vld [vmem:[%s5 + $0x188] sm:$0xff]
    %v5342 = vld [vmem:[%s5 + $0x190] sm:$0xff]
    %v5343 = vld [vmem:[%s5 + $0x198] sm:$0xff]
    %v5344 = vld [vmem:[%s5 + $0x1a0] sm:$0xff]
    %v5345 = vld [vmem:[%s5 + $0x1a8] sm:$0xff]
    %v5346 = vld [vmem:[%s5 + $0x1b0] sm:$0xff]
    %v5347 = vld [vmem:[%s5 + $0x1b8] sm:$0xff]
    %v5348 = vld [vmem:[%s5 + $0x1c0] sm:$0xff]
    %v5349 = vld [vmem:[%s5 + $0x1c8] sm:$0xff]
    %v5350 = vld [vmem:[%s5 + $0x1d0] sm:$0xff]
    %v5351 = vld [vmem:[%s5 + $0x1d8] sm:$0xff]
    %v5352 = vld [vmem:[%s5 + $0x1e0] sm:$0xff]
    %v5353 = vld [vmem:[%s5 + $0x1e8] sm:$0xff]
    %v5354 = vld [vmem:[%s5 + $0x1f0] sm:$0xff]
    %v5355 = vld [vmem:[%s5 + $0x1f8] sm:$0xff]
    %v5356 = vld [vmem:[%s5 + $0x200] sm:$0xff]
    %v5357 = vld [vmem:[%s5 + $0x208] sm:$0xff]
    %v5358 = vld [vmem:[%s5 + $0x210] sm:$0xff]
    %v5359 = vld [vmem:[%s5 + $0x218] sm:$0xff]
    %v5360 = vld [vmem:[%s5 + $0x220] sm:$0xff]
    %v5361 = vld [vmem:[%s5 + $0x228] sm:$0xff]
    %v5362 = vld [vmem:[%s5 + $0x230] sm:$0xff]
    %v5363 = vld [vmem:[%s5 + $0x238] sm:$0xff]
    %v5364 = vld [vmem:[%s5 + $0x240] sm:$0xff]
    %v5365 = vld [vmem:[%s5 + $0x248] sm:$0xff]
    %v5366 = vld [vmem:[%s5 + $0x250] sm:$0xff]
    %v5367 = vld [vmem:[%s5 + $0x258] sm:$0xff]
    %v5368 = vld [vmem:[%s5 + $0x260] sm:$0xff]
    %v5369 = vld [vmem:[%s5 + $0x268] sm:$0xff]
    %v5370 = vld [vmem:[%s5 + $0x270] sm:$0xff]
    %v5371 = vld [vmem:[%s5 + $0x278] sm:$0xff]
    %v5372 = vld [vmem:[%s5 + $0x280] sm:$0xff]
    %v5373 = vld [vmem:[%s5 + $0x288] sm:$0xff]
    %v5374 = vld [vmem:[%s5 + $0x290] sm:$0xff]
    %v5375 = vld [vmem:[%s5 + $0x298] sm:$0xff]
    %v5376 = vld [vmem:[%s5 + $0x2a0] sm:$0xff]
    %v5377 = vld [vmem:[%s5 + $0x2a8] sm:$0xff]
    %v5378 = vld [vmem:[%s5 + $0x2b0] sm:$0xff]
    %v5379 = vld [vmem:[%s5 + $0x2b8] sm:$0xff]
    %v5380 = vld [vmem:[%s5 + $0x2c0] sm:$0xff]
    %v5381 = vld [vmem:[%s5 + $0x2c8] sm:$0xff]
    %v5382 = vld [vmem:[%s5 + $0x2d0] sm:$0xff]
    %v5383 = vld [vmem:[%s5 + $0x2d8] sm:$0xff]
    %v5384 = vld [vmem:[%s5 + $0x2e0] sm:$0xff]
    %v5385 = vld [vmem:[%s5 + $0x2e8] sm:$0xff]
    %v5386 = vld [vmem:[%s5 + $0x2f0] sm:$0xff]
    %v5387 = vld [vmem:[%s5 + $0x2f8] sm:$0xff]
    %v5389 = vperm.slane %v48, 0
    %5393 = vst [vmem:[#allocation1] ss:$4 sm:$0xff] %v5290
    %s5394 = scalar_lea.vmem [#allocation1], 32
    %5395 = vst [vmem:[%s5394] ss:$4 sm:$0xff] %v5291
    %v5396 = vld.sshfl [vmem:[#allocation1] sm:$0xff pattern:$0x73625140]
    %v5397 = vld.sshfl [vmem:[#allocation1 + $0x8] sm:$0xff pattern:$0x73625140]
    %v5398 = vld.sshfl [vmem:[#allocation1 + $0x10] sm:$0xff pattern:$0x73625140]
    %v5399 = vld.sshfl [vmem:[#allocation1 + $0x18] sm:$0xff pattern:$0x73625140]
    %v5400 = vld.sshfl [vmem:[#allocation1 + $0x20] sm:$0xff pattern:$0x73625140]
    %v5401 = vld.sshfl [vmem:[#allocation1 + $0x28] sm:$0xff pattern:$0x73625140]
    %5408 = vmatpush.msra.mxu0 %v5307
    %5409 = vmatpush.msra.mxu0 %v5306
    %5410 = vmatpush.msra.mxu0 %v5305
    %5411 = vmatpush.msra.mxu0 %v5304
    %5412 = vmatpush.msra.mxu0 %v5303
    %5413 = vmatpush.msra.mxu0 %v5302
    %5414 = vmatpush.msra.mxu0 %v5301
    %5415 = vmatpush.msra.mxu0 %v5300
    %5416 = vmatpush.msra.mxu0 %v5299
    %5417 = vmatpush.msra.mxu0 %v5298
    %5418 = vmatpush.msra.mxu0 %v5297
    %5419 = vmatpush.msra.mxu0 %v5296
    %5420 = vmatpush.msra.mxu0 %v5295
    %5421 = vmatpush.msra.mxu0 %v5294
    %5422 = vmatpush.msra.mxu0 %v5293
    %5423 = vmatpush.msra.mxu0 %v5292
    %5424 = vmatmul.f32.gmra.mxu0 %v5396
    %v5425 = vpop.f32.mrf.mxu0
    %v5426 = vadd.f32 %v5389, %v5425
    %5427 = vdwg.mxu0
    %5428 = vmatpush.msra.mxu0 %v5323
    %5429 = vmatpush.msra.mxu0 %v5322
    %5430 = vmatpush.msra.mxu0 %v5321
    %5431 = vmatpush.msra.mxu0 %v5320
    %5432 = vmatpush.msra.mxu0 %v5319
    %5433 = vmatpush.msra.mxu0 %v5318
    %5434 = vmatpush.msra.mxu0 %v5317
    %5435 = vmatpush.msra.mxu0 %v5316
    %5436 = vmatpush.msra.mxu0 %v5315
    %5437 = vmatpush.msra.mxu0 %v5314
    %5438 = vmatpush.msra.mxu0 %v5313
    %5439 = vmatpush.msra.mxu0 %v5312
    %5440 = vmatpush.msra.mxu0 %v5311
    %5441 = vmatpush.msra.mxu0 %v5310
    %5442 = vmatpush.msra.mxu0 %v5309
    %5443 = vmatpush.msra.mxu0 %v5308
    %5444 = vmatmul.f32.gmra.mxu0 %v5397
    %v5445 = vpop.f32.mrf.mxu0
    %v5446 = vadd.f32 %v5426, %v5445
    %5447 = vdwg.mxu0
    %5448 = vmatpush.msra.mxu0 %v5339
    %5449 = vmatpush.msra.mxu0 %v5338
    %5450 = vmatpush.msra.mxu0 %v5337
    %5451 = vmatpush.msra.mxu0 %v5336
    %5452 = vmatpush.msra.mxu0 %v5335
    %5453 = vmatpush.msra.mxu0 %v5334
    %5454 = vmatpush.msra.mxu0 %v5333
    %5455 = vmatpush.msra.mxu0 %v5332
    %5456 = vmatpush.msra.mxu0 %v5331
    %5457 = vmatpush.msra.mxu0 %v5330
    %5458 = vmatpush.msra.mxu0 %v5329
    %5459 = vmatpush.msra.mxu0 %v5328
    %5460 = vmatpush.msra.mxu0 %v5327
    %5461 = vmatpush.msra.mxu0 %v5326
    %5462 = vmatpush.msra.mxu0 %v5325
    %5463 = vmatpush.msra.mxu0 %v5324
    %5464 = vmatmul.f32.gmra.mxu0 %v5398
    %v5465 = vpop.f32.mrf.mxu0
    %v5466 = vadd.f32 %v5446, %v5465
    %5467 = vdwg.mxu0
    %5468 = vmatpush.msra.mxu0 %v5355
    %5469 = vmatpush.msra.mxu0 %v5354
    %5470 = vmatpush.msra.mxu0 %v5353
    %5471 = vmatpush.msra.mxu0 %v5352
    %5472 = vmatpush.msra.mxu0 %v5351
    %5473 = vmatpush.msra.mxu0 %v5350
    %5474 = vmatpush.msra.mxu0 %v5349
    %5475 = vmatpush.msra.mxu0 %v5348
    %5476 = vmatpush.msra.mxu0 %v5347
    %5477 = vmatpush.msra.mxu0 %v5346
    %5478 = vmatpush.msra.mxu0 %v5345
    %5479 = vmatpush.msra.mxu0 %v5344
    %5480 = vmatpush.msra.mxu0 %v5343
    %5481 = vmatpush.msra.mxu0 %v5342
    %5482 = vmatpush.msra.mxu0 %v5341
    %5483 = vmatpush.msra.mxu0 %v5340
    %5484 = vmatmul.f32.gmra.mxu0 %v5399
    %v5485 = vpop.f32.mrf.mxu0
    %v5486 = vadd.f32 %v5466, %v5485
    %5487 = vdwg.mxu0
    %5488 = vmatpush.msra.mxu0 %v5371
    %5489 = vmatpush.msra.mxu0 %v5370
    %5490 = vmatpush.msra.mxu0 %v5369
    %5491 = vmatpush.msra.mxu0 %v5368
    %5492 = vmatpush.msra.mxu0 %v5367
    %5493 = vmatpush.msra.mxu0 %v5366
    %5494 = vmatpush.msra.mxu0 %v5365
    %5495 = vmatpush.msra.mxu0 %v5364
    %5496 = vmatpush.msra.mxu0 %v5363
    %5497 = vmatpush.msra.mxu0 %v5362
    %5498 = vmatpush.msra.mxu0 %v5361
    %5499 = vmatpush.msra.mxu0 %v5360
    %5500 = vmatpush.msra.mxu0 %v5359
    %5501 = vmatpush.msra.mxu0 %v5358
    %5502 = vmatpush.msra.mxu0 %v5357
    %5503 = vmatpush.msra.mxu0 %v5356
    %5504 = vmatmul.f32.gmra.mxu0 %v5400
    %v5505 = vpop.f32.mrf.mxu0
    %v5506 = vadd.f32 %v5486, %v5505
    %5507 = vdwg.mxu0
    %5508 = vmatpush.msra.mxu0 %v5387
    %5509 = vmatpush.msra.mxu0 %v5386
    %5510 = vmatpush.msra.mxu0 %v5385
    %5511 = vmatpush.msra.mxu0 %v5384
    %5512 = vmatpush.msra.mxu0 %v5383
    %5513 = vmatpush.msra.mxu0 %v5382
    %5514 = vmatpush.msra.mxu0 %v5381
    %5515 = vmatpush.msra.mxu0 %v5380
    %5516 = vmatpush.msra.mxu0 %v5379
    %5517 = vmatpush.msra.mxu0 %v5378
    %5518 = vmatpush.msra.mxu0 %v5377
    %5519 = vmatpush.msra.mxu0 %v5376
    %5520 = vmatpush.msra.mxu0 %v5375
    %5521 = vmatpush.msra.mxu0 %v5374
    %5522 = vmatpush.msra.mxu0 %v5373
    %5523 = vmatpush.msra.mxu0 %v5372
    %5524 = vmatmul.f32.gmra.mxu0 %v5401
    %v5525 = vpop.f32.mrf.mxu0
    %v5526 = vadd.f32 %v5506, %v5525
    %5527 = vdwg.mxu0
    %v5528 = vmax.f32 %v5526, 0.0
    %v5529 = vadd.f32 %v5528, 0.0
    %5531 = vrot.lane.b32.xlu0 %v5528, 118
    %v5532 = vpop.permute.xlu0 %5531
    %v5534 = vadd.f32 %v5529, %v5532
    %5535 = vrot.lane.b32.xlu0 %v5528, 108
    %v5536 = vpop.permute.xlu0 %5535
    %v5538 = vadd.f32 %v5534, %v5536
    %5539 = vrot.lane.b32.xlu0 %v5528, 98
    %v5540 = vpop.permute.xlu0 %5539
    %v5542 = vadd.f32 %v5538, %v5540
    %v5543 = vld [vmem:[#allocation3 + $0x8] sm:$0xff]
    %v5544 = vld [vmem:[#allocation3 + $0x10] sm:$0xf]
    %5547 = vst [vmem:[#allocation1] ss:$4 sm:$0xff] %v5543
    %s5548 = scalar_lea.vmem [#allocation1], 32
    %5549 = vst [vmem:[%s5548] ss:$4 sm:$0xff] %v5544
    %v5550 = vld.sshfl [vmem:[#allocation1] sm:$0xff pattern:$0x73625140]
    %v5551 = vld.sshfl [vmem:[#allocation1 + $0x8] sm:$0xff pattern:$0x73625140]
    %v5552 = vld.sshfl [vmem:[#allocation1 + $0x10] sm:$0xff pattern:$0x73625140]
    %v5553 = vld.sshfl [vmem:[#allocation1 + $0x18] sm:$0xff pattern:$0x73625140]
    %v5554 = vld.sshfl [vmem:[#allocation1 + $0x20] sm:$0xff pattern:$0x73625140]
    %v5555 = vld.sshfl [vmem:[#allocation1 + $0x28] sm:$0xff pattern:$0x73625140]
    %5562 = vmatpush.msra.mxu0 %v5307
    %5563 = vmatpush.msra.mxu0 %v5306
    %5564 = vmatpush.msra.mxu0 %v5305
    %5565 = vmatpush.msra.mxu0 %v5304
    %5566 = vmatpush.msra.mxu0 %v5303
    %5567 = vmatpush.msra.mxu0 %v5302
    %5568 = vmatpush.msra.mxu0 %v5301
    %5569 = vmatpush.msra.mxu0 %v5300
    %5570 = vmatpush.msra.mxu0 %v5299
    %5571 = vmatpush.msra.mxu0 %v5298
    %5572 = vmatpush.msra.mxu0 %v5297
    %5573 = vmatpush.msra.mxu0 %v5296
    %5574 = vmatpush.msra.mxu0 %v5295
    %5575 = vmatpush.msra.mxu0 %v5294
    %5576 = vmatpush.msra.mxu0 %v5293
    %5577 = vmatpush.msra.mxu0 %v5292
    %5578 = vmatmul.f32.gmra.mxu0 %v5550
    %v5579 = vpop.f32.mrf.mxu0
    %v5580 = vadd.f32 %v5389, %v5579
    %5581 = vdwg.mxu0
    %5582 = vmatpush.msra.mxu0 %v5323
    %5583 = vmatpush.msra.mxu0 %v5322
    %5584 = vmatpush.msra.mxu0 %v5321
    %5585 = vmatpush.msra.mxu0 %v5320
    %5586 = vmatpush.msra.mxu0 %v5319
    %5587 = vmatpush.msra.mxu0 %v5318
    %5588 = vmatpush.msra.mxu0 %v5317
    %5589 = vmatpush.msra.mxu0 %v5316
    %5590 = vmatpush.msra.mxu0 %v5315
    %5591 = vmatpush.msra.mxu0 %v5314
    %5592 = vmatpush.msra.mxu0 %v5313
    %5593 = vmatpush.msra.mxu0 %v5312
    %5594 = vmatpush.msra.mxu0 %v5311
    %5595 = vmatpush.msra.mxu0 %v5310
    %5596 = vmatpush.msra.mxu0 %v5309
    %5597 = vmatpush.msra.mxu0 %v5308
    %5598 = vmatmul.f32.gmra.mxu0 %v5551
    %v5599 = vpop.f32.mrf.mxu0
    %v5600 = vadd.f32 %v5580, %v5599
    %5601 = vdwg.mxu0
    %5602 = vmatpush.msra.mxu0 %v5339
    %5603 = vmatpush.msra.mxu0 %v5338
    %5604 = vmatpush.msra.mxu0 %v5337
    %5605 = vmatpush.msra.mxu0 %v5336
    %5606 = vmatpush.msra.mxu0 %v5335
    %5607 = vmatpush.msra.mxu0 %v5334
    %5608 = vmatpush.msra.mxu0 %v5333
    %5609 = vmatpush.msra.mxu0 %v5332
    %5610 = vmatpush.msra.mxu0 %v5331
    %5611 = vmatpush.msra.mxu0 %v5330
    %5612 = vmatpush.msra.mxu0 %v5329
    %5613 = vmatpush.msra.mxu0 %v5328
    %5614 = vmatpush.msra.mxu0 %v5327
    %5615 = vmatpush.msra.mxu0 %v5326
    %5616 = vmatpush.msra.mxu0 %v5325
    %5617 = vmatpush.msra.mxu0 %v5324
    %5618 = vmatmul.f32.gmra.mxu0 %v5552
    %v5619 = vpop.f32.mrf.mxu0
    %v5620 = vadd.f32 %v5600, %v5619
    %5621 = vdwg.mxu0
    %5622 = vmatpush.msra.mxu0 %v5355
    %5623 = vmatpush.msra.mxu0 %v5354
    %5624 = vmatpush.msra.mxu0 %v5353
    %5625 = vmatpush.msra.mxu0 %v5352
    %5626 = vmatpush.msra.mxu0 %v5351
    %5627 = vmatpush.msra.mxu0 %v5350
    %5628 = vmatpush.msra.mxu0 %v5349
    %5629 = vmatpush.msra.mxu0 %v5348
    %5630 = vmatpush.msra.mxu0 %v5347
    %5631 = vmatpush.msra.mxu0 %v5346
    %5632 = vmatpush.msra.mxu0 %v5345
    %5633 = vmatpush.msra.mxu0 %v5344
    %5634 = vmatpush.msra.mxu0 %v5343
    %5635 = vmatpush.msra.mxu0 %v5342
    %5636 = vmatpush.msra.mxu0 %v5341
    %5637 = vmatpush.msra.mxu0 %v5340
    %5638 = vmatmul.f32.gmra.mxu0 %v5553
    %v5639 = vpop.f32.mrf.mxu0
    %v5640 = vadd.f32 %v5620, %v5639
    %5641 = vdwg.mxu0
    %5642 = vmatpush.msra.mxu0 %v5371
    %5643 = vmatpush.msra.mxu0 %v5370
    %5644 = vmatpush.msra.mxu0 %v5369
    %5645 = vmatpush.msra.mxu0 %v5368
    %5646 = vmatpush.msra.mxu0 %v5367
    %5647 = vmatpush.msra.mxu0 %v5366
    %5648 = vmatpush.msra.mxu0 %v5365
    %5649 = vmatpush.msra.mxu0 %v5364
    %5650 = vmatpush.msra.mxu0 %v5363
    %5651 = vmatpush.msra.mxu0 %v5362
    %5652 = vmatpush.msra.mxu0 %v5361
    %5653 = vmatpush.msra.mxu0 %v5360
    %5654 = vmatpush.msra.mxu0 %v5359
    %5655 = vmatpush.msra.mxu0 %v5358
    %5656 = vmatpush.msra.mxu0 %v5357
    %5657 = vmatpush.msra.mxu0 %v5356
    %5658 = vmatmul.f32.gmra.mxu0 %v5554
    %v5659 = vpop.f32.mrf.mxu0
    %v5660 = vadd.f32 %v5640, %v5659
    %5661 = vdwg.mxu0
    %5662 = vmatpush.msra.mxu0 %v5387
    %5663 = vmatpush.msra.mxu0 %v5386
    %5664 = vmatpush.msra.mxu0 %v5385
    %5665 = vmatpush.msra.mxu0 %v5384
    %5666 = vmatpush.msra.mxu0 %v5383
    %5667 = vmatpush.msra.mxu0 %v5382
    %5668 = vmatpush.msra.mxu0 %v5381
    %5669 = vmatpush.msra.mxu0 %v5380
    %5670 = vmatpush.msra.mxu0 %v5379
    %5671 = vmatpush.msra.mxu0 %v5378
    %5672 = vmatpush.msra.mxu0 %v5377
    %5673 = vmatpush.msra.mxu0 %v5376
    %5674 = vmatpush.msra.mxu0 %v5375
    %5675 = vmatpush.msra.mxu0 %v5374
    %5676 = vmatpush.msra.mxu0 %v5373
    %5677 = vmatpush.msra.mxu0 %v5372
    %5678 = vmatmul.f32.gmra.mxu0 %v5555
    %v5679 = vpop.f32.mrf.mxu0
    %v5680 = vadd.f32 %v5660, %v5679
    %5681 = vdwg.mxu0
    %v5682 = vmax.f32 %v5680, 0.0
    %v5683 = vadd.f32 %v5542, %v5682
    %5685 = vrot.lane.b32.xlu0 %v5682, 118
    %v5686 = vpop.permute.xlu0 %5685
    %v5688 = vadd.f32 %v5683, %v5686
    %5689 = vrot.lane.b32.xlu0 %v5682, 108
    %v5690 = vpop.permute.xlu0 %5689
    %v5692 = vadd.f32 %v5688, %v5690
    %5693 = vrot.lane.b32.xlu0 %v5682, 98
    %v5694 = vpop.permute.xlu0 %5693
    %v5696 = vadd.f32 %v5692, %v5694
    %v5697 = vld [vmem:[#allocation3 + $0x10] sm:$0xff]
    %v5698 = vld [vmem:[#allocation3 + $0x18] sm:$0xf]
    %5701 = vst [vmem:[#allocation1] ss:$4 sm:$0xff] %v5697
    %s5702 = scalar_lea.vmem [#allocation1], 32
    %5703 = vst [vmem:[%s5702] ss:$4 sm:$0xff] %v5698
    %v5704 = vld.sshfl [vmem:[#allocation1] sm:$0xff pattern:$0x73625140]
    %v5705 = vld.sshfl [vmem:[#allocation1 + $0x8] sm:$0xff pattern:$0x73625140]
    %v5706 = vld.sshfl [vmem:[#allocation1 + $0x10] sm:$0xff pattern:$0x73625140]
    %v5707 = vld.sshfl [vmem:[#allocation1 + $0x18] sm:$0xff pattern:$0x73625140]
    %v5708 = vld.sshfl [vmem:[#allocation1 + $0x20] sm:$0xff pattern:$0x73625140]
    %v5709 = vld.sshfl [vmem:[#allocation1 + $0x28] sm:$0xff pattern:$0x73625140]
    %5716 = vmatpush.msra.mxu0 %v5307
    %5717 = vmatpush.msra.mxu0 %v5306
    %5718 = vmatpush.msra.mxu0 %v5305
    %5719 = vmatpush.msra.mxu0 %v5304
    %5720 = vmatpush.msra.mxu0 %v5303
    %5721 = vmatpush.msra.mxu0 %v5302
    %5722 = vmatpush.msra.mxu0 %v5301
    %5723 = vmatpush.msra.mxu0 %v5300
    %5724 = vmatpush.msra.mxu0 %v5299
    %5725 = vmatpush.msra.mxu0 %v5298
    %5726 = vmatpush.msra.mxu0 %v5297
    %5727 = vmatpush.msra.mxu0 %v5296
    %5728 = vmatpush.msra.mxu0 %v5295
    %5729 = vmatpush.msra.mxu0 %v5294
    %5730 = vmatpush.msra.mxu0 %v5293
    %5731 = vmatpush.msra.mxu0 %v5292
    %5732 = vmatmul.f32.gmra.mxu0 %v5704
    %v5733 = vpop.f32.mrf.mxu0
    %v5734 = vadd.f32 %v5389, %v5733
    %5735 = vdwg.mxu0
    %5736 = vmatpush.msra.mxu0 %v5323
    %5737 = vmatpush.msra.mxu0 %v5322
    %5738 = vmatpush.msra.mxu0 %v5321
    %5739 = vmatpush.msra.mxu0 %v5320
    %5740 = vmatpush.msra.mxu0 %v5319
    %5741 = vmatpush.msra.mxu0 %v5318
    %5742 = vmatpush.msra.mxu0 %v5317
    %5743 = vmatpush.msra.mxu0 %v5316
    %5744 = vmatpush.msra.mxu0 %v5315
    %5745 = vmatpush.msra.mxu0 %v5314
    %5746 = vmatpush.msra.mxu0 %v5313
    %5747 = vmatpush.msra.mxu0 %v5312
    %5748 = vmatpush.msra.mxu0 %v5311
    %5749 = vmatpush.msra.mxu0 %v5310
    %5750 = vmatpush.msra.mxu0 %v5309
    %5751 = vmatpush.msra.mxu0 %v5308
    %5752 = vmatmul.f32.gmra.mxu0 %v5705
    %v5753 = vpop.f32.mrf.mxu0
    %v5754 = vadd.f32 %v5734, %v5753
    %5755 = vdwg.mxu0
    %5756 = vmatpush.msra.mxu0 %v5339
    %5757 = vmatpush.msra.mxu0 %v5338
    %5758 = vmatpush.msra.mxu0 %v5337
    %5759 = vmatpush.msra.mxu0 %v5336
    %5760 = vmatpush.msra.mxu0 %v5335
    %5761 = vmatpush.msra.mxu0 %v5334
    %5762 = vmatpush.msra.mxu0 %v5333
    %5763 = vmatpush.msra.mxu0 %v5332
    %5764 = vmatpush.msra.mxu0 %v5331
    %5765 = vmatpush.msra.mxu0 %v5330
    %5766 = vmatpush.msra.mxu0 %v5329
    %5767 = vmatpush.msra.mxu0 %v5328
    %5768 = vmatpush.msra.mxu0 %v5327
    %5769 = vmatpush.msra.mxu0 %v5326
    %5770 = vmatpush.msra.mxu0 %v5325
    %5771 = vmatpush.msra.mxu0 %v5324
    %5772 = vmatmul.f32.gmra.mxu0 %v5706
    %v5773 = vpop.f32.mrf.mxu0
    %v5774 = vadd.f32 %v5754, %v5773
    %5775 = vdwg.mxu0
    %5776 = vmatpush.msra.mxu0 %v5355
    %5777 = vmatpush.msra.mxu0 %v5354
    %5778 = vmatpush.msra.mxu0 %v5353
    %5779 = vmatpush.msra.mxu0 %v5352
    %5780 = vmatpush.msra.mxu0 %v5351
    %5781 = vmatpush.msra.mxu0 %v5350
    %5782 = vmatpush.msra.mxu0 %v5349
    %5783 = vmatpush.msra.mxu0 %v5348
    %5784 = vmatpush.msra.mxu0 %v5347
    %5785 = vmatpush.msra.mxu0 %v5346
    %5786 = vmatpush.msra.mxu0 %v5345
    %5787 = vmatpush.msra.mxu0 %v5344
    %5788 = vmatpush.msra.mxu0 %v5343
    %5789 = vmatpush.msra.mxu0 %v5342
    %5790 = vmatpush.msra.mxu0 %v5341
    %5791 = vmatpush.msra.mxu0 %v5340
    %5792 = vmatmul.f32.gmra.mxu0 %v5707
    %v5793 = vpop.f32.mrf.mxu0
    %v5794 = vadd.f32 %v5774, %v5793
    %5795 = vdwg.mxu0
    %5796 = vmatpush.msra.mxu0 %v5371
    %5797 = vmatpush.msra.mxu0 %v5370
    %5798 = vmatpush.msra.mxu0 %v5369
    %5799 = vmatpush.msra.mxu0 %v5368
    %5800 = vmatpush.msra.mxu0 %v5367
    %5801 = vmatpush.msra.mxu0 %v5366
    %5802 = vmatpush.msra.mxu0 %v5365
    %5803 = vmatpush.msra.mxu0 %v5364
    %5804 = vmatpush.msra.mxu0 %v5363
    %5805 = vmatpush.msra.mxu0 %v5362
    %5806 = vmatpush.msra.mxu0 %v5361
    %5807 = vmatpush.msra.mxu0 %v5360
    %5808 = vmatpush.msra.mxu0 %v5359
    %5809 = vmatpush.msra.mxu0 %v5358
    %5810 = vmatpush.msra.mxu0 %v5357
    %5811 = vmatpush.msra.mxu0 %v5356
    %5812 = vmatmul.f32.gmra.mxu0 %v5708
    %v5813 = vpop.f32.mrf.mxu0
    %v5814 = vadd.f32 %v5794, %v5813
    %5815 = vdwg.mxu0
    %5816 = vmatpush.msra.mxu0 %v5387
    %5817 = vmatpush.msra.mxu0 %v5386
    %5818 = vmatpush.msra.mxu0 %v5385
    %5819 = vmatpush.msra.mxu0 %v5384
    %5820 = vmatpush.msra.mxu0 %v5383
    %5821 = vmatpush.msra.mxu0 %v5382
    %5822 = vmatpush.msra.mxu0 %v5381
    %5823 = vmatpush.msra.mxu0 %v5380
    %5824 = vmatpush.msra.mxu0 %v5379
    %5825 = vmatpush.msra.mxu0 %v5378
    %5826 = vmatpush.msra.mxu0 %v5377
    %5827 = vmatpush.msra.mxu0 %v5376
    %5828 = vmatpush.msra.mxu0 %v5375
    %5829 = vmatpush.msra.mxu0 %v5374
    %5830 = vmatpush.msra.mxu0 %v5373
    %5831 = vmatpush.msra.mxu0 %v5372
    %5832 = vmatmul.f32.gmra.mxu0 %v5709
    %v5833 = vpop.f32.mrf.mxu0
    %v5834 = vadd.f32 %v5814, %v5833
    %5835 = vdwg.mxu0
    %v5836 = vmax.f32 %v5834, 0.0
    %v5837 = vadd.f32 %v5696, %v5836
    %5839 = vrot.lane.b32.xlu0 %v5836, 118
    %v5840 = vpop.permute.xlu0 %5839
    %v5842 = vadd.f32 %v5837, %v5840
    %5843 = vrot.lane.b32.xlu0 %v5836, 108
    %v5844 = vpop.permute.xlu0 %5843
    %v5846 = vadd.f32 %v5842, %v5844
    %5847 = vrot.lane.b32.xlu0 %v5836, 98
    %v5848 = vpop.permute.xlu0 %5847
    %v5850 = vadd.f32 %v5846, %v5848
    %v5851 = vld [vmem:[#allocation3 + $0x18] sm:$0xff]
    %v5852 = vld [vmem:[#allocation3 + $0x20] sm:$0xf]
    %5855 = vst [vmem:[#allocation1] ss:$4 sm:$0xff] %v5851
    %s5856 = scalar_lea.vmem [#allocation1], 32
    %5857 = vst [vmem:[%s5856] ss:$4 sm:$0xff] %v5852
    %v5858 = vld.sshfl [vmem:[#allocation1] sm:$0xff pattern:$0x73625140]
    %v5859 = vld.sshfl [vmem:[#allocation1 + $0x8] sm:$0xff pattern:$0x73625140]
    %v5860 = vld.sshfl [vmem:[#allocation1 + $0x10] sm:$0xff pattern:$0x73625140]
    %v5861 = vld.sshfl [vmem:[#allocation1 + $0x18] sm:$0xff pattern:$0x73625140]
    %v5862 = vld.sshfl [vmem:[#allocation1 + $0x20] sm:$0xff pattern:$0x73625140]
    %v5863 = vld.sshfl [vmem:[#allocation1 + $0x28] sm:$0xff pattern:$0x73625140]
    %5870 = vmatpush.msra.mxu0 %v5307
    %5871 = vmatpush.msra.mxu0 %v5306
    %5872 = vmatpush.msra.mxu0 %v5305
    %5873 = vmatpush.msra.mxu0 %v5304
    %5874 = vmatpush.msra.mxu0 %v5303
    %5875 = vmatpush.msra.mxu0 %v5302
    %5876 = vmatpush.msra.mxu0 %v5301
    %5877 = vmatpush.msra.mxu0 %v5300
    %5878 = vmatpush.msra.mxu0 %v5299
    %5879 = vmatpush.msra.mxu0 %v5298
    %5880 = vmatpush.msra.mxu0 %v5297
    %5881 = vmatpush.msra.mxu0 %v5296
    %5882 = vmatpush.msra.mxu0 %v5295
    %5883 = vmatpush.msra.mxu0 %v5294
    %5884 = vmatpush.msra.mxu0 %v5293
    %5885 = vmatpush.msra.mxu0 %v5292
    %5886 = vmatmul.f32.gmra.mxu0 %v5858
    %v5887 = vpop.f32.mrf.mxu0
    %v5888 = vadd.f32 %v5389, %v5887
    %5889 = vdwg.mxu0
    %5890 = vmatpush.msra.mxu0 %v5323
    %5891 = vmatpush.msra.mxu0 %v5322
    %5892 = vmatpush.msra.mxu0 %v5321
    %5893 = vmatpush.msra.mxu0 %v5320
    %5894 = vmatpush.msra.mxu0 %v5319
    %5895 = vmatpush.msra.mxu0 %v5318
    %5896 = vmatpush.msra.mxu0 %v5317
    %5897 = vmatpush.msra.mxu0 %v5316
    %5898 = vmatpush.msra.mxu0 %v5315
    %5899 = vmatpush.msra.mxu0 %v5314
    %5900 = vmatpush.msra.mxu0 %v5313
    %5901 = vmatpush.msra.mxu0 %v5312
    %5902 = vmatpush.msra.mxu0 %v5311
    %5903 = vmatpush.msra.mxu0 %v5310
    %5904 = vmatpush.msra.mxu0 %v5309
    %5905 = vmatpush.msra.mxu0 %v5308
    %5906 = vmatmul.f32.gmra.mxu0 %v5859
    %v5907 = vpop.f32.mrf.mxu0
    %v5908 = vadd.f32 %v5888, %v5907
    %5909 = vdwg.mxu0
    %5910 = vmatpush.msra.mxu0 %v5339
    %5911 = vmatpush.msra.mxu0 %v5338
    %5912 = vmatpush.msra.mxu0 %v5337
    %5913 = vmatpush.msra.mxu0 %v5336
    %5914 = vmatpush.msra.mxu0 %v5335
    %5915 = vmatpush.msra.mxu0 %v5334
    %5916 = vmatpush.msra.mxu0 %v5333
    %5917 = vmatpush.msra.mxu0 %v5332
    %5918 = vmatpush.msra.mxu0 %v5331
    %5919 = vmatpush.msra.mxu0 %v5330
    %5920 = vmatpush.msra.mxu0 %v5329
    %5921 = vmatpush.msra.mxu0 %v5328
    %5922 = vmatpush.msra.mxu0 %v5327
    %5923 = vmatpush.msra.mxu0 %v5326
    %5924 = vmatpush.msra.mxu0 %v5325
    %5925 = vmatpush.msra.mxu0 %v5324
    %5926 = vmatmul.f32.gmra.mxu0 %v5860
    %v5927 = vpop.f32.mrf.mxu0
    %v5928 = vadd.f32 %v5908, %v5927
    %5929 = vdwg.mxu0
    %5930 = vmatpush.msra.mxu0 %v5355
    %5931 = vmatpush.msra.mxu0 %v5354
    %5932 = vmatpush.msra.mxu0 %v5353
    %5933 = vmatpush.msra.mxu0 %v5352
    %5934 = vmatpush.msra.mxu0 %v5351
    %5935 = vmatpush.msra.mxu0 %v5350
    %5936 = vmatpush.msra.mxu0 %v5349
    %5937 = vmatpush.msra.mxu0 %v5348
    %5938 = vmatpush.msra.mxu0 %v5347
    %5939 = vmatpush.msra.mxu0 %v5346
    %5940 = vmatpush.msra.mxu0 %v5345
    %5941 = vmatpush.msra.mxu0 %v5344
    %5942 = vmatpush.msra.mxu0 %v5343
    %5943 = vmatpush.msra.mxu0 %v5342
    %5944 = vmatpush.msra.mxu0 %v5341
    %5945 = vmatpush.msra.mxu0 %v5340
    %5946 = vmatmul.f32.gmra.mxu0 %v5861
    %v5947 = vpop.f32.mrf.mxu0
    %v5948 = vadd.f32 %v5928, %v5947
    %5949 = vdwg.mxu0
    %5950 = vmatpush.msra.mxu0 %v5371
    %5951 = vmatpush.msra.mxu0 %v5370
    %5952 = vmatpush.msra.mxu0 %v5369
    %5953 = vmatpush.msra.mxu0 %v5368
    %5954 = vmatpush.msra.mxu0 %v5367
    %5955 = vmatpush.msra.mxu0 %v5366
    %5956 = vmatpush.msra.mxu0 %v5365
    %5957 = vmatpush.msra.mxu0 %v5364
    %5958 = vmatpush.msra.mxu0 %v5363
    %5959 = vmatpush.msra.mxu0 %v5362
    %5960 = vmatpush.msra.mxu0 %v5361
    %5961 = vmatpush.msra.mxu0 %v5360
    %5962 = vmatpush.msra.mxu0 %v5359
    %5963 = vmatpush.msra.mxu0 %v5358
    %5964 = vmatpush.msra.mxu0 %v5357
    %5965 = vmatpush.msra.mxu0 %v5356
    %5966 = vmatmul.f32.gmra.mxu0 %v5862
    %v5967 = vpop.f32.mrf.mxu0
    %v5968 = vadd.f32 %v5948, %v5967
    %5969 = vdwg.mxu0
    %5970 = vmatpush.msra.mxu0 %v5387
    %5971 = vmatpush.msra.mxu0 %v5386
    %5972 = vmatpush.msra.mxu0 %v5385
    %5973 = vmatpush.msra.mxu0 %v5384
    %5974 = vmatpush.msra.mxu0 %v5383
    %5975 = vmatpush.msra.mxu0 %v5382
    %5976 = vmatpush.msra.mxu0 %v5381
    %5977 = vmatpush.msra.mxu0 %v5380
    %5978 = vmatpush.msra.mxu0 %v5379
    %5979 = vmatpush.msra.mxu0 %v5378
    %5980 = vmatpush.msra.mxu0 %v5377
    %5981 = vmatpush.msra.mxu0 %v5376
    %5982 = vmatpush.msra.mxu0 %v5375
    %5983 = vmatpush.msra.mxu0 %v5374
    %5984 = vmatpush.msra.mxu0 %v5373
    %5985 = vmatpush.msra.mxu0 %v5372
    %5986 = vmatmul.f32.gmra.mxu0 %v5863
    %v5987 = vpop.f32.mrf.mxu0
    %v5988 = vadd.f32 %v5968, %v5987
    %5989 = vdwg.mxu0
    %v5990 = vmax.f32 %v5988, 0.0
    %v5991 = vadd.f32 %v5850, %v5990
    %5993 = vrot.lane.b32.xlu0 %v5990, 118
    %v5994 = vpop.permute.xlu0 %5993
    %v5996 = vadd.f32 %v5991, %v5994
    %5997 = vrot.lane.b32.xlu0 %v5990, 108
    %v5998 = vpop.permute.xlu0 %5997
    %v6000 = vadd.f32 %v5996, %v5998
    %6001 = vrot.lane.b32.xlu0 %v5990, 98
    %v6002 = vpop.permute.xlu0 %6001
    %v6004 = vadd.f32 %v6000, %v6002
    %v6005 = vmul.f32 %v6004, 0.0625
    %vm6006 = vcmask 74752
    %6007 = vst.msk [vmem:[#allocation7] sm:$0x3] %vm6006, %v6005
    // Predicated region
    $region34: #{mnist_cnn_forward.1} parent=1 // pred_check
      _
    $region35: #{mnist_cnn_forward.1} parent=1 // pred_check_branch
      %6009 = sbr.rel (0) target = $region37
    $region36: #{mnist_cnn_forward.1} parent=1 // pred_region
      %6011 = vsyncadd [#allocation6], 0
      %s6013 = sshll.u32 [#allocation7], 4
      %s6014 = int_to_ptr.vmem [resolvable:$true] %s6013
      %s6015 = sshll.u32 %s7, 4
      %s6016 = int_to_ptr.hbm [resolvable:$true] %s6015
      %6018 = dma.vmem_to_hbm [thread:$0]  %s6014, 32, %s6016, [#allocation6]
    $region37: #{mnist_cnn_forward.1} parent=1 // pred_fallthru
      _
    // Predicated region
    $region38: #{mnist_cnn_forward.1} parent=1 // pred_check
      _
    $region39: #{mnist_cnn_forward.1} parent=1 // pred_check_branch
      %6020 = sbr.rel (0) target = $region41
    $region40: #{mnist_cnn_forward.1} parent=1 // pred_region
      %6022 = dma.done [#allocation6], 32
    $region41: #{mnist_cnn_forward.1} parent=1 // pred_fallthru
      _
    %6023 = vsyncpa [#allocation5], 1
    %6024 = vsyncpa [#allocation6], 1

</llo_original>
